<compile_context>
chip_gen: v6e
topology: v6e:2x2x1
jax: 0.10.0
libtpu: 0.0.40
codegen_flags: <defaults>
</compile_context>

<pallas_src>
import functools

import jax
import jax.numpy as jnp
from jax.experimental import pallas as pl
from jax.experimental.pallas import tpu as pltpu

LANE = 128
TM, TN, TK = 128, 128, 128

# (planes multiplier, stride) per ResNet layer. layer4 stride forced to 1,
# matching PCB_test's layer4[0].downsample[0].stride=(1,1), conv2.stride=(1,1).
LAYER_CFG = ((1, 1), (2, 2), (4, 2), (8, 1))


# ------------------------------ small helpers -------------------------------

def _ceil_to(n, m):
    return ((n + m - 1) // m) * m


def _pad_axis(x, axis, target, value=0.0):
    pad = target - x.shape[axis]
    if pad == 0:
        return x
    cfg = [(0, 0)] * x.ndim
    cfg[axis] = (0, pad)
    return jnp.pad(x, cfg, constant_values=value)


# ----------------------------- Pallas kernels ------------------------------

def _make_conv_kernel(relu, has_residual):
    """Fused conv-as-matmul: MXU matmul + BN shift (+ residual) (+ ReLU)."""

    def kernel(*args):
        if has_residual:
            x_ref, w_ref, b_ref, r_ref, o_ref, acc_ref = args
        else:
            x_ref, w_ref, b_ref, o_ref, acc_ref = args

        @pl.when(pl.program_id(2) == 0)
        def _init():
            acc_ref[...] = jnp.zeros_like(acc_ref)

        acc_ref[...] += jnp.dot(x_ref[...], w_ref[...],
                                preferred_element_type=jnp.float32)

        @pl.when(pl.program_id(2) == pl.num_programs(2) - 1)
        def _finalize():
            y = acc_ref[...] + b_ref[...].astype(jnp.float32)
            if has_residual:
                y = y + r_ref[...].astype(jnp.float32)
            if relu:
                y = jnp.maximum(y, 0.0)
            o_ref[...] = y.astype(o_ref.dtype)

    return kernel


def _max9_kernel(*refs):
    # pairwise max over 9 shifted NHWC slices: MaxPool2d(3, stride=2, padding=1)
    o_ref = refs[-1]
    m = refs[0][...]
    for r in refs[1:-1]:
        m = jnp.maximum(m, r[...])
    o_ref[...] = m


def _mean_kernel(x_ref, o_ref):
    # mean over the leading (bin) axis: AdaptiveAvgPool2d((part, 1))
    o_ref[...] = jnp.mean(x_ref[...].astype(jnp.float32), axis=0)


# ------------------------------ conv + BN ------------------------------------

def conv_bn(x, w, scale, shift, *, stride, pad, relu, residual=None):
    """Conv2d (no bias, OIHW weight) + folded BN + optional residual/ReLU.

    x: NHWC activation, channel dim already padded to a lane multiple (or the
    raw 3-channel image for conv1). Returns NHWC bf16 with cout padded to a
    multiple of 128 (kept padded between layers).
    """
    B, H, W, cin_pad = x.shape
    cout, cin, kh, kw = w.shape
    cout_pad = _ceil_to(cout, LANE)

    # weights: fold BN scale, pad cin -> cin_pad, cout -> cout_pad, K -> K_pad
    w_hwio = jnp.transpose(w, (2, 3, 1, 0)) * scale[None, None, None, :]
    w_hwio = _pad_axis(w_hwio, 2, cin_pad)
    w_hwio = _pad_axis(w_hwio, 3, cout_pad)
    K = kh * kw * cin_pad
    K_pad = _ceil_to(K, TK)
    w_mat = _pad_axis(w_hwio.reshape(K, cout_pad), 0, K_pad).astype(jnp.bfloat16)
    shift_p = _pad_axis(shift, 0, cout_pad).reshape(1, cout_pad).astype(jnp.float32)

    # activation patches
    if kh == 1 and kw == 1 and pad == 0:
        xs = x if stride == 1 else x[:, ::stride, ::stride, :]
        Ho, Wo = xs.shape[1], xs.shape[2]
        patches = xs.reshape(B * Ho * Wo, cin_pad)
    else:
        # TODO(synk): read shifted windows directly in-kernel (implicit im2col)
        # to avoid materializing kh*kw copies of the activation in HBM.
        xp = jnp.pad(x, ((0, 0), (pad, pad), (pad, pad), (0, 0)))
        Hp, Wp = H + 2 * pad, W + 2 * pad
        Ho = (Hp - kh) // stride + 1
        Wo = (Wp - kw) // stride + 1
        taps = []
        for i in range(kh):
            for j in range(kw):
                taps.append(xp[:, i:i + stride * (Ho - 1) + 1:stride,
                               j:j + stride * (Wo - 1) + 1:stride, :])
        patches = jnp.stack(taps, axis=3).reshape(B * Ho * Wo, K)

    M = B * Ho * Wo
    M_pad = _ceil_to(M, TM)
    patches = _pad_axis(_pad_axis(patches, 0, M_pad), 1, K_pad).astype(jnp.bfloat16)

    args = [patches, w_mat, shift_p]
    in_specs = [
        pl.BlockSpec((TM, TK), lambda i, j, k: (i, k)),
        pl.BlockSpec((TK, TN), lambda i, j, k: (k, j)),
        pl.BlockSpec((1, TN), lambda i, j, k: (0, j)),
    ]
    has_residual = residual is not None
    if has_residual:
        r = _pad_axis(residual.reshape(M, cout_pad), 0, M_pad).astype(jnp.bfloat16)
        args.append(r)
        in_specs.append(pl.BlockSpec((TM, TN), lambda i, j, k: (i, j)))

    out = pl.pallas_call(
        _make_conv_kernel(relu, has_residual),
        grid_spec=pltpu.PrefetchScalarGridSpec(
            num_scalar_prefetch=0,
            grid=(M_pad // TM, cout_pad // TN, K_pad // TK),
            in_specs=in_specs,
            out_specs=pl.BlockSpec((TM, TN), lambda i, j, k: (i, j)),
            scratch_shapes=[pltpu.VMEM((TM, TN), jnp.float32)],
        ),
        out_shape=jax.ShapeDtypeStruct((M_pad, cout_pad), jnp.bfloat16),
        compiler_params=pltpu.CompilerParams(
            dimension_semantics=("parallel", "parallel", "arbitrary"),
            vmem_limit_bytes=32 * 1024 * 1024),
    )(*args)
    return out[:M].reshape(B, Ho, Wo, cout_pad)


# ------------------------------- pooling -------------------------------------

def maxpool_3x3_s2_p1(x):
    B, H, W, C = x.shape
    xp = jnp.pad(x, ((0, 0), (1, 1), (1, 1), (0, 0)),
                 constant_values=-jnp.inf)
    Ho = (H + 2 - 3) // 2 + 1
    Wo = (W + 2 - 3) // 2 + 1
    M = B * Ho * Wo
    M_pad = _ceil_to(M, TM)
    taps = []
    for i in range(3):
        for j in range(3):
            t = xp[:, i:i + 2 * (Ho - 1) + 1:2, j:j + 2 * (Wo - 1) + 1:2, :]
            taps.append(_pad_axis(t.reshape(M, C), 0, M_pad))
    out = pl.pallas_call(
        _max9_kernel,
        grid_spec=pltpu.PrefetchScalarGridSpec(
            num_scalar_prefetch=0,
            grid=(M_pad // TM,),
            in_specs=[pl.BlockSpec((TM, C), lambda i: (i, 0))] * 9,
            out_specs=pl.BlockSpec((TM, C), lambda i: (i, 0)),
        ),
        out_shape=jax.ShapeDtypeStruct((M_pad, C), x.dtype),
        compiler_params=pltpu.CompilerParams(
            dimension_semantics=("parallel",)),
    )(*taps)
    return out[:M].reshape(B, Ho, Wo, C)


def adaptive_avgpool_part(x, part, c_real):
    """AdaptiveAvgPool2d((part, 1)) + view(B, C, part)."""
    B, H, W, C = x.shape
    assert H % part == 0  # TODO(synk): general adaptive bin boundaries when H % part != 0
    binsz = (H // part) * W
    G = B * part
    p = jnp.transpose(x.reshape(G, binsz, C), (1, 0, 2))  # (binsz, G, C)
    out = pl.pallas_call(
        _mean_kernel,
        grid_spec=pltpu.PrefetchScalarGridSpec(
            num_scalar_prefetch=0,
            grid=(1,),
            in_specs=[pl.BlockSpec((binsz, G, C), lambda i: (0, 0, 0))],
            out_specs=pl.BlockSpec((G, C), lambda i: (0, 0)),
        ),
        out_shape=jax.ShapeDtypeStruct((G, C), jnp.float32),
    )(p)
    out = jnp.transpose(out.reshape(B, part, C), (0, 2, 1))  # (B, C_pad, part)
    return out[:, :c_real, :]


# -------------------------- parameters (synthetic) ---------------------------

def _fold_bn(key, c):
    k1, k2, k3, k4 = jax.random.split(key, 4)
    gamma = 1.0 + 0.1 * jax.random.normal(k1, (c,), jnp.float32)
    beta = 0.05 * jax.random.normal(k2, (c,), jnp.float32)
    mean = 0.02 * jax.random.normal(k3, (c,), jnp.float32)
    var = 1.0 + 0.1 * jax.random.uniform(k4, (c,), jnp.float32)
    scale = gamma / jnp.sqrt(var + 1e-5)
    shift = beta - mean * scale
    return scale, shift


def _conv_w(key, cout, cin, kh, kw):
    fan_in = cin * kh * kw
    return jax.random.normal(key, (cout, cin, kh, kw), jnp.float32) * (2.0 / fan_in) ** 0.5


def init_params(key, base=8):
    keys = iter(jax.random.split(key, 64))
    p = {}
    p["conv1_w"] = _conv_w(next(keys), base, 3, 7, 7)
    p["bn1_s"], p["bn1_b"] = _fold_bn(next(keys), base)
    layers = []
    inplanes = base
    for mult, _stride in LAYER_CFG:          # strides kept static, NOT in params
        planes = base * mult
        outp = planes * 4                     # Bottleneck expansion
        blk = {}
        blk["w1"] = _conv_w(next(keys), planes, inplanes, 1, 1)
        blk["s1"], blk["b1"] = _fold_bn(next(keys), planes)
        blk["w2"] = _conv_w(next(keys), planes, planes, 3, 3)
        blk["s2"], blk["b2"] = _fold_bn(next(keys), planes)
        blk["w3"] = _conv_w(next(keys), outp, planes, 1, 1)
        blk["s3"], blk["b3"] = _fold_bn(next(keys), outp)
        blk["wd"] = _conv_w(next(keys), outp, inplanes, 1, 1)
        blk["sd"], blk["bd"] = _fold_bn(next(keys), outp)
        layers.append(blk)
        inplanes = outp
    p["layers"] = layers
    return p


# ------------------------------- forward ------------------------------------

def bottleneck(x, blk, stride):
    identity = conv_bn(x, blk["wd"], blk["sd"], blk["bd"],
                       stride=stride, pad=0, relu=False)
    out = conv_bn(x, blk["w1"], blk["s1"], blk["b1"], stride=1, pad=0, relu=True)
    out = conv_bn(out, blk["w2"], blk["s2"], blk["b2"], stride=stride, pad=1, relu=True)
    # conv3 + BN + residual add + ReLU fused into a single matmul kernel
    out = conv_bn(out, blk["w3"], blk["s3"], blk["b3"], stride=1, pad=0,
                  relu=True, residual=identity)
    return out


def pcb_test_forward(x_nchw, params, part=2):
    # x: NCHW (PyTorch) -> NHWC internally (channels ride the 128-lane axis)
    x = jnp.transpose(x_nchw, (0, 2, 3, 1)).astype(jnp.float32)
    x = conv_bn(x, params["conv1_w"], params["bn1_s"], params["bn1_b"],
                stride=2, pad=3, relu=True)           # conv1 + bn1 + relu
    x = maxpool_3x3_s2_p1(x)                           # maxpool
    for blk, (_, stride) in zip(params["layers"], LAYER_CFG):  # layer1..layer4
        x = bottleneck(x, blk, stride)
    c_real = params["layers"][-1]["w3"].shape[0]       # real (unpadded) channels
    return adaptive_avgpool_part(x, part, c_real)      # (B, C, part) == x.view(B, C, 2)


if __name__ == "__main__":
    key = jax.random.PRNGKey(0)
    kx, kp = jax.random.split(key)
    base = 8
    x = jax.random.normal(kx, (2, 3, 64, 32), jnp.float32)  # NCHW, small H/W
    params = init_params(kp, base=base)
    fwd = jax.jit(functools.partial(pcb_test_forward, part=2))
    y = fwd(x, params)
    jax.block_until_ready(y)
    assert y.shape == (2, base * 8 * 4, 2), y.shape  # (B, C=256, part=2)
    assert y.dtype == jnp.float32
    print("KERNEL_OK")
</pallas_src>

<mosaic_0001>
module attributes {stable_mosaic.version = 11 : i64} {
  func.func @kernel(%arg0: i32, %arg1: i32, %arg2: i32, %arg3: memref<128x128xbf16, #tpu.memory_space<vmem>>, %arg4: memref<128x128xbf16, #tpu.memory_space<vmem>>, %arg5: memref<1x128xf32, #tpu.memory_space<vmem>>, %arg6: memref<128x128xbf16, #tpu.memory_space<vmem>>, %arg7: memref<128x128xf32, #tpu.memory_space<vmem>>) attributes {dimension_semantics = [#tpu.dimension_semantics<parallel>, #tpu.dimension_semantics<parallel>, #tpu.dimension_semantics<arbitrary>], iteration_bounds = array<i64: 8, 1, 2>, scalar_prefetch = 0 : i64, scratch_operands = 1 : i64, tpu.core_type = #tpu.core_type<tc>, window_params = [{transform_indices = @transform_0, window_bounds = array<i64: 128, 128>}, {transform_indices = @transform_1, window_bounds = array<i64: 128, 128>}, {transform_indices = @transform_2, window_bounds = array<i64: 1, 128>}, {transform_indices = @transform_3, window_bounds = array<i64: 128, 128>}]} {
    %c0_i32 = arith.constant 0 : i32
    %0 = arith.cmpi eq, %arg2, %c0_i32 : i32
    %1 = arith.extui %0 : i1 to i32
    %c0_i32_0 = arith.constant 0 : i32
    %2 = arith.cmpi ne, %1, %c0_i32_0 : i32
    scf.if %2 {
      %cst_9 = arith.constant 0.000000e+00 : f32
      %12 = vector.broadcast %cst_9 : f32 to vector<128x128xf32>
      %c0_10 = arith.constant 0 : index
      %c0_11 = arith.constant 0 : index
      %13 = vector.load %arg7[%c0_10, %c0_11] : memref<128x128xf32, #tpu.memory_space<vmem>>, vector<128x128xf32>
      tpu.vector_store %arg7[%c0_10, %c0_11], %12 {strides = array<i32>} : memref<128x128xf32, #tpu.memory_space<vmem>>, vector<128x128xf32>,
    } else {
    }
    %c0 = arith.constant 0 : index
    %c0_1 = arith.constant 0 : index
    %3 = vector.load %arg7[%c0, %c0_1] : memref<128x128xf32, #tpu.memory_space<vmem>>, vector<128x128xf32>
    %c0_2 = arith.constant 0 : index
    %c0_3 = arith.constant 0 : index
    %4 = vector.load %arg3[%c0_2, %c0_3] : memref<128x128xbf16, #tpu.memory_space<vmem>>, vector<128x128xbf16>
    %c0_4 = arith.constant 0 : index
    %c0_5 = arith.constant 0 : index
    %5 = vector.load %arg4[%c0_4, %c0_5] : memref<128x128xbf16, #tpu.memory_space<vmem>>, vector<128x128xbf16>
    %cst = arith.constant dense<0.000000e+00> : vector<128x128xf32>
    %6 = tpu.matmul %4, %5, %cst {dimension_numbers = #tpu.dot_dimension_numbers<[1], [0], [0], [1], [0, 0, 1, 1], [], []>} : vector<128x128xbf16>, vector<128x128xbf16>, vector<128x128xf32> -> vector<128x128xf32>
    %7 = arith.addf %3, %6 : vector<128x128xf32>
    %c0_6 = arith.constant 0 : index
    %c0_7 = arith.constant 0 : index
    %8 = vector.load %arg7[%c0_6, %c0_7] : memref<128x128xf32, #tpu.memory_space<vmem>>, vector<128x128xf32>
    tpu.vector_store %arg7[%c0_6, %c0_7], %7 {strides = array<i32>} : memref<128x128xf32, #tpu.memory_space<vmem>>, vector<128x128xf32>,
    %c1_i32 = arith.constant 1 : i32
    %9 = arith.cmpi eq, %arg2, %c1_i32 : i32
    %10 = arith.extui %9 : i1 to i32
    %c0_i32_8 = arith.constant 0 : i32
    %11 = arith.cmpi ne, %10, %c0_i32_8 : i32
    scf.if %11 {
      %c0_9 = arith.constant 0 : index
      %c0_10 = arith.constant 0 : index
      %12 = vector.load %arg7[%c0_9, %c0_10] : memref<128x128xf32, #tpu.memory_space<vmem>>, vector<128x128xf32>
      %c0_11 = arith.constant 0 : index
      %c0_12 = arith.constant 0 : index
      %13 = vector.load %arg5[%c0_11, %c0_12] : memref<1x128xf32, #tpu.memory_space<vmem>>, vector<1x128xf32>
      %14 = vector.broadcast %13 : vector<1x128xf32> to vector<128x128xf32>
      %15 = arith.addf %12, %14 : vector<128x128xf32>
      %cst_13 = arith.constant 0.000000e+00 : f32
      %16 = vector.broadcast %cst_13 : f32 to vector<128x128xf32>
      %17 = arith.maximumf %15, %16 : vector<128x128xf32>
      %18 = arith.truncf %17 : vector<128x128xf32> to vector<128x128xbf16>
      %c0_14 = arith.constant 0 : index
      %c0_15 = arith.constant 0 : index
      %19 = vector.load %arg6[%c0_14, %c0_15] : memref<128x128xbf16, #tpu.memory_space<vmem>>, vector<128x128xbf16>
      tpu.vector_store %arg6[%c0_14, %c0_15], %18 {strides = array<i32>} : memref<128x128xbf16, #tpu.memory_space<vmem>>, vector<128x128xbf16>,
    } else {
    }
    return
  }
  func.func @transform_0(%arg0: i32, %arg1: i32, %arg2: i32) -> (i32, i32) {
    %c0_i32 = arith.constant 0 : i32
    return %arg0, %arg2 : i32, i32
  }
  func.func @transform_1(%arg0: i32, %arg1: i32, %arg2: i32) -> (i32, i32) {
    %c0_i32 = arith.constant 0 : i32
    return %arg2, %arg1 : i32, i32
  }
  func.func @transform_2(%arg0: i32, %arg1: i32, %arg2: i32) -> (i32, i32) {
    %c0_i32 = arith.constant 0 : i32
    %c0_i32_0 = arith.constant 0 : i32
    return %c0_i32, %arg1 : i32, i32
  }
  func.func @transform_3(%arg0: i32, %arg1: i32, %arg2: i32) -> (i32, i32) {
    %c0_i32 = arith.constant 0 : i32
    return %arg0, %arg1 : i32, i32
  }
}

module attributes {stable_mosaic.version = 11 : i64} {
  func.func @_max9_kernel(%arg0: i32, %arg1: memref<128x128xbf16, #tpu.memory_space<vmem>>, %arg2: memref<128x128xbf16, #tpu.memory_space<vmem>>, %arg3: memref<128x128xbf16, #tpu.memory_space<vmem>>, %arg4: memref<128x128xbf16, #tpu.memory_space<vmem>>, %arg5: memref<128x128xbf16, #tpu.memory_space<vmem>>, %arg6: memref<128x128xbf16, #tpu.memory_space<vmem>>, %arg7: memref<128x128xbf16, #tpu.memory_space<vmem>>, %arg8: memref<128x128xbf16, #tpu.memory_space<vmem>>, %arg9: memref<128x128xbf16, #tpu.memory_space<vmem>>, %arg10: memref<128x128xbf16, #tpu.memory_space<vmem>>) attributes {dimension_semantics = [#tpu.dimension_semantics<parallel>], iteration_bounds = array<i64: 2>, scalar_prefetch = 0 : i64, scratch_operands = 0 : i64, tpu.core_type = #tpu.core_type<tc>, window_params = [{transform_indices = @transform_0, window_bounds = array<i64: 128, 128>}, {transform_indices = @transform_1, window_bounds = array<i64: 128, 128>}, {transform_indices = @transform_2, window_bounds = array<i64: 128, 128>}, {transform_indices = @transform_3, window_bounds = array<i64: 128, 128>}, {transform_indices = @transform_4, window_bounds = array<i64: 128, 128>}, {transform_indices = @transform_5, window_bounds = array<i64: 128, 128>}, {transform_indices = @transform_6, window_bounds = array<i64: 128, 128>}, {transform_indices = @transform_7, window_bounds = array<i64: 128, 128>}, {transform_indices = @transform_8, window_bounds = array<i64: 128, 128>}, {transform_indices = @transform_9, window_bounds = array<i64: 128, 128>}]} {
    %c0 = arith.constant 0 : index
    %c0_0 = arith.constant 0 : index
    %0 = vector.load %arg1[%c0, %c0_0] : memref<128x128xbf16, #tpu.memory_space<vmem>>, vector<128x128xbf16>
    %c0_1 = arith.constant 0 : index
    %c0_2 = arith.constant 0 : index
    %1 = vector.load %arg2[%c0_1, %c0_2] : memref<128x128xbf16, #tpu.memory_space<vmem>>, vector<128x128xbf16>
    %2 = arith.maximumf %0, %1 : vector<128x128xbf16>
    %c0_3 = arith.constant 0 : index
    %c0_4 = arith.constant 0 : index
    %3 = vector.load %arg3[%c0_3, %c0_4] : memref<128x128xbf16, #tpu.memory_space<vmem>>, vector<128x128xbf16>
    %4 = arith.maximumf %2, %3 : vector<128x128xbf16>
    %c0_5 = arith.constant 0 : index
    %c0_6 = arith.constant 0 : index
    %5 = vector.load %arg4[%c0_5, %c0_6] : memref<128x128xbf16, #tpu.memory_space<vmem>>, vector<128x128xbf16>
    %6 = arith.maximumf %4, %5 : vector<128x128xbf16>
    %c0_7 = arith.constant 0 : index
    %c0_8 = arith.constant 0 : index
    %7 = vector.load %arg5[%c0_7, %c0_8] : memref<128x128xbf16, #tpu.memory_space<vmem>>, vector<128x128xbf16>
    %8 = arith.maximumf %6, %7 : vector<128x128xbf16>
    %c0_9 = arith.constant 0 : index
    %c0_10 = arith.constant 0 : index
    %9 = vector.load %arg6[%c0_9, %c0_10] : memref<128x128xbf16, #tpu.memory_space<vmem>>, vector<128x128xbf16>
    %10 = arith.maximumf %8, %9 : vector<128x128xbf16>
    %c0_11 = arith.constant 0 : index
    %c0_12 = arith.constant 0 : index
    %11 = vector.load %arg7[%c0_11, %c0_12] : memref<128x128xbf16, #tpu.memory_space<vmem>>, vector<128x128xbf16>
    %12 = arith.maximumf %10, %11 : vector<128x128xbf16>
    %c0_13 = arith.constant 0 : index
    %c0_14 = arith.constant 0 : index
    %13 = vector.load %arg8[%c0_13, %c0_14] : memref<128x128xbf16, #tpu.memory_space<vmem>>, vector<128x128xbf16>
    %14 = arith.maximumf %12, %13 : vector<128x128xbf16>
    %c0_15 = arith.constant 0 : index
    %c0_16 = arith.constant 0 : index
    %15 = vector.load %arg9[%c0_15, %c0_16] : memref<128x128xbf16, #tpu.memory_space<vmem>>, vector<128x128xbf16>
    %16 = arith.maximumf %14, %15 : vector<128x128xbf16>
    %c0_17 = arith.constant 0 : index
    %c0_18 = arith.constant 0 : index
    %17 = vector.load %arg10[%c0_17, %c0_18] : memref<128x128xbf16, #tpu.memory_space<vmem>>, vector<128x128xbf16>
    tpu.vector_store %arg10[%c0_17, %c0_18], %16 {strides = array<i32>} : memref<128x128xbf16, #tpu.memory_space<vmem>>, vector<128x128xbf16>,
    return
  }
  func.func @transform_0(%arg0: i32) -> (i32, i32) {
    %c0_i32 = arith.constant 0 : i32
    %c0_i32_0 = arith.constant 0 : i32
    return %arg0, %c0_i32 : i32, i32
  }
  func.func @transform_1(%arg0: i32) -> (i32, i32) {
    %c0_i32 = arith.constant 0 : i32
    %c0_i32_0 = arith.constant 0 : i32
    return %arg0, %c0_i32 : i32, i32
  }
  func.func @transform_2(%arg0: i32) -> (i32, i32) {
    %c0_i32 = arith.constant 0 : i32
    %c0_i32_0 = arith.constant 0 : i32
    return %arg0, %c0_i32 : i32, i32
  }
  func.func @transform_3(%arg0: i32) -> (i32, i32) {
    %c0_i32 = arith.constant 0 : i32
    %c0_i32_0 = arith.constant 0 : i32
    return %arg0, %c0_i32 : i32, i32
  }
  func.func @transform_4(%arg0: i32) -> (i32, i32) {
    %c0_i32 = arith.constant 0 : i32
    %c0_i32_0 = arith.constant 0 : i32
    return %arg0, %c0_i32 : i32, i32
  }
  func.func @transform_5(%arg0: i32) -> (i32, i32) {
    %c0_i32 = arith.constant 0 : i32
    %c0_i32_0 = arith.constant 0 : i32
    return %arg0, %c0_i32 : i32, i32
  }
  func.func @transform_6(%arg0: i32) -> (i32, i32) {
    %c0_i32 = arith.constant 0 : i32
    %c0_i32_0 = arith.constant 0 : i32
    return %arg0, %c0_i32 : i32, i32
  }
  func.func @transform_7(%arg0: i32) -> (i32, i32) {
    %c0_i32 = arith.constant 0 : i32
    %c0_i32_0 = arith.constant 0 : i32
    return %arg0, %c0_i32 : i32, i32
  }
  func.func @transform_8(%arg0: i32) -> (i32, i32) {
    %c0_i32 = arith.constant 0 : i32
    %c0_i32_0 = arith.constant 0 : i32
    return %arg0, %c0_i32 : i32, i32
  }
  func.func @transform_9(%arg0: i32) -> (i32, i32) {
    %c0_i32 = arith.constant 0 : i32
    %c0_i32_0 = arith.constant 0 : i32
    return %arg0, %c0_i32 : i32, i32
  }
}

module attributes {stable_mosaic.version = 11 : i64} {
  func.func @kernel(%arg0: i32, %arg1: i32, %arg2: i32, %arg3: memref<128x128xbf16, #tpu.memory_space<vmem>>, %arg4: memref<128x128xbf16, #tpu.memory_space<vmem>>, %arg5: memref<1x128xf32, #tpu.memory_space<vmem>>, %arg6: memref<128x128xbf16, #tpu.memory_space<vmem>>, %arg7: memref<128x128xf32, #tpu.memory_space<vmem>>) attributes {dimension_semantics = [#tpu.dimension_semantics<parallel>, #tpu.dimension_semantics<parallel>, #tpu.dimension_semantics<arbitrary>], iteration_bounds = array<i64: 2, 1, 1>, scalar_prefetch = 0 : i64, scratch_operands = 1 : i64, tpu.core_type = #tpu.core_type<tc>, window_params = [{transform_indices = @transform_0, window_bounds = array<i64: 128, 128>}, {transform_indices = @transform_1, window_bounds = array<i64: 128, 128>}, {transform_indices = @transform_2, window_bounds = array<i64: 1, 128>}, {transform_indices = @transform_3, window_bounds = array<i64: 128, 128>}]} {
    %c0_i32 = arith.constant 0 : i32
    %0 = arith.cmpi eq, %arg2, %c0_i32 : i32
    %1 = arith.extui %0 : i1 to i32
    %c0_i32_0 = arith.constant 0 : i32
    %2 = arith.cmpi ne, %1, %c0_i32_0 : i32
    scf.if %2 {
      %cst_10 = arith.constant 0.000000e+00 : f32
      %12 = vector.broadcast %cst_10 : f32 to vector<128x128xf32>
      %c0_11 = arith.constant 0 : index
      %c0_12 = arith.constant 0 : index
      %13 = vector.load %arg7[%c0_11, %c0_12] : memref<128x128xf32, #tpu.memory_space<vmem>>, vector<128x128xf32>
      tpu.vector_store %arg7[%c0_11, %c0_12], %12 {strides = array<i32>} : memref<128x128xf32, #tpu.memory_space<vmem>>, vector<128x128xf32>,
    } else {
    }
    %c0 = arith.constant 0 : index
    %c0_1 = arith.constant 0 : index
    %3 = vector.load %arg7[%c0, %c0_1] : memref<128x128xf32, #tpu.memory_space<vmem>>, vector<128x128xf32>
    %c0_2 = arith.constant 0 : index
    %c0_3 = arith.constant 0 : index
    %4 = vector.load %arg3[%c0_2, %c0_3] : memref<128x128xbf16, #tpu.memory_space<vmem>>, vector<128x128xbf16>
    %c0_4 = arith.constant 0 : index
    %c0_5 = arith.constant 0 : index
    %5 = vector.load %arg4[%c0_4, %c0_5] : memref<128x128xbf16, #tpu.memory_space<vmem>>, vector<128x128xbf16>
    %cst = arith.constant dense<0.000000e+00> : vector<128x128xf32>
    %6 = tpu.matmul %4, %5, %cst {dimension_numbers = #tpu.dot_dimension_numbers<[1], [0], [0], [1], [0, 0, 1, 1], [], []>} : vector<128x128xbf16>, vector<128x128xbf16>, vector<128x128xf32> -> vector<128x128xf32>
    %7 = arith.addf %3, %6 : vector<128x128xf32>
    %c0_6 = arith.constant 0 : index
    %c0_7 = arith.constant 0 : index
    %8 = vector.load %arg7[%c0_6, %c0_7] : memref<128x128xf32, #tpu.memory_space<vmem>>, vector<128x128xf32>
    tpu.vector_store %arg7[%c0_6, %c0_7], %7 {strides = array<i32>} : memref<128x128xf32, #tpu.memory_space<vmem>>, vector<128x128xf32>,
    %c0_i32_8 = arith.constant 0 : i32
    %9 = arith.cmpi eq, %arg2, %c0_i32_8 : i32
    %10 = arith.extui %9 : i1 to i32
    %c0_i32_9 = arith.constant 0 : i32
    %11 = arith.cmpi ne, %10, %c0_i32_9 : i32
    scf.if %11 {
      %c0_10 = arith.constant 0 : index
      %c0_11 = arith.constant 0 : index
      %12 = vector.load %arg7[%c0_10, %c0_11] : memref<128x128xf32, #tpu.memory_space<vmem>>, vector<128x128xf32>
      %c0_12 = arith.constant 0 : index
      %c0_13 = arith.constant 0 : index
      %13 = vector.load %arg5[%c0_12, %c0_13] : memref<1x128xf32, #tpu.memory_space<vmem>>, vector<1x128xf32>
      %14 = vector.broadcast %13 : vector<1x128xf32> to vector<128x128xf32>
      %15 = arith.addf %12, %14 : vector<128x128xf32>
      %cst_14 = arith.constant 0.000000e+00 : f32
      %16 = vector.broadcast %cst_14 : f32 to vector<128x128xf32>
      %17 = arith.maximumf %15, %16 : vector<128x128xf32>
      %18 = arith.truncf %17 : vector<128x128xf32> to vector<128x128xbf16>
      %c0_15 = arith.constant 0 : index
      %c0_16 = arith.constant 0 : index
      %19 = vector.load %arg6[%c0_15, %c0_16] : memref<128x128xbf16, #tpu.memory_space<vmem>>, vector<128x128xbf16>
      tpu.vector_store %arg6[%c0_15, %c0_16], %18 {strides = array<i32>} : memref<128x128xbf16, #tpu.memory_space<vmem>>, vector<128x128xbf16>,
    } else {
    }
    return
  }
  func.func @transform_0(%arg0: i32, %arg1: i32, %arg2: i32) -> (i32, i32) {
    %c0_i32 = arith.constant 0 : i32
    return %arg0, %arg2 : i32, i32
  }
  func.func @transform_1(%arg0: i32, %arg1: i32, %arg2: i32) -> (i32, i32) {
    %c0_i32 = arith.constant 0 : i32
    return %arg2, %arg1 : i32, i32
  }
  func.func @transform_2(%arg0: i32, %arg1: i32, %arg2: i32) -> (i32, i32) {
    %c0_i32 = arith.constant 0 : i32
    %c0_i32_0 = arith.constant 0 : i32
    return %c0_i32, %arg1 : i32, i32
  }
  func.func @transform_3(%arg0: i32, %arg1: i32, %arg2: i32) -> (i32, i32) {
    %c0_i32 = arith.constant 0 : i32
    return %arg0, %arg1 : i32, i32
  }
}

module attributes {stable_mosaic.version = 11 : i64} {
  func.func @kernel(%arg0: i32, %arg1: i32, %arg2: i32, %arg3: memref<128x128xbf16, #tpu.memory_space<vmem>>, %arg4: memref<128x128xbf16, #tpu.memory_space<vmem>>, %arg5: memref<1x128xf32, #tpu.memory_space<vmem>>, %arg6: memref<128x128xbf16, #tpu.memory_space<vmem>>, %arg7: memref<128x128xf32, #tpu.memory_space<vmem>>) attributes {dimension_semantics = [#tpu.dimension_semantics<parallel>, #tpu.dimension_semantics<parallel>, #tpu.dimension_semantics<arbitrary>], iteration_bounds = array<i64: 2, 1, 9>, scalar_prefetch = 0 : i64, scratch_operands = 1 : i64, tpu.core_type = #tpu.core_type<tc>, window_params = [{transform_indices = @transform_0, window_bounds = array<i64: 128, 128>}, {transform_indices = @transform_1, window_bounds = array<i64: 128, 128>}, {transform_indices = @transform_2, window_bounds = array<i64: 1, 128>}, {transform_indices = @transform_3, window_bounds = array<i64: 128, 128>}]} {
    %c0_i32 = arith.constant 0 : i32
    %0 = arith.cmpi eq, %arg2, %c0_i32 : i32
    %1 = arith.extui %0 : i1 to i32
    %c0_i32_0 = arith.constant 0 : i32
    %2 = arith.cmpi ne, %1, %c0_i32_0 : i32
    scf.if %2 {
      %cst_9 = arith.constant 0.000000e+00 : f32
      %12 = vector.broadcast %cst_9 : f32 to vector<128x128xf32>
      %c0_10 = arith.constant 0 : index
      %c0_11 = arith.constant 0 : index
      %13 = vector.load %arg7[%c0_10, %c0_11] : memref<128x128xf32, #tpu.memory_space<vmem>>, vector<128x128xf32>
      tpu.vector_store %arg7[%c0_10, %c0_11], %12 {strides = array<i32>} : memref<128x128xf32, #tpu.memory_space<vmem>>, vector<128x128xf32>,
    } else {
    }
    %c0 = arith.constant 0 : index
    %c0_1 = arith.constant 0 : index
    %3 = vector.load %arg7[%c0, %c0_1] : memref<128x128xf32, #tpu.memory_space<vmem>>, vector<128x128xf32>
    %c0_2 = arith.constant 0 : index
    %c0_3 = arith.constant 0 : index
    %4 = vector.load %arg3[%c0_2, %c0_3] : memref<128x128xbf16, #tpu.memory_space<vmem>>, vector<128x128xbf16>
    %c0_4 = arith.constant 0 : index
    %c0_5 = arith.constant 0 : index
    %5 = vector.load %arg4[%c0_4, %c0_5] : memref<128x128xbf16, #tpu.memory_space<vmem>>, vector<128x128xbf16>
    %cst = arith.constant dense<0.000000e+00> : vector<128x128xf32>
    %6 = tpu.matmul %4, %5, %cst {dimension_numbers = #tpu.dot_dimension_numbers<[1], [0], [0], [1], [0, 0, 1, 1], [], []>} : vector<128x128xbf16>, vector<128x128xbf16>, vector<128x128xf32> -> vector<128x128xf32>
    %7 = arith.addf %3, %6 : vector<128x128xf32>
    %c0_6 = arith.constant 0 : index
    %c0_7 = arith.constant 0 : index
    %8 = vector.load %arg7[%c0_6, %c0_7] : memref<128x128xf32, #tpu.memory_space<vmem>>, vector<128x128xf32>
    tpu.vector_store %arg7[%c0_6, %c0_7], %7 {strides = array<i32>} : memref<128x128xf32, #tpu.memory_space<vmem>>, vector<128x128xf32>,
    %c8_i32 = arith.constant 8 : i32
    %9 = arith.cmpi eq, %arg2, %c8_i32 : i32
    %10 = arith.extui %9 : i1 to i32
    %c0_i32_8 = arith.constant 0 : i32
    %11 = arith.cmpi ne, %10, %c0_i32_8 : i32
    scf.if %11 {
      %c0_9 = arith.constant 0 : index
      %c0_10 = arith.constant 0 : index
      %12 = vector.load %arg7[%c0_9, %c0_10] : memref<128x128xf32, #tpu.memory_space<vmem>>, vector<128x128xf32>
      %c0_11 = arith.constant 0 : index
      %c0_12 = arith.constant 0 : index
      %13 = vector.load %arg5[%c0_11, %c0_12] : memref<1x128xf32, #tpu.memory_space<vmem>>, vector<1x128xf32>
      %14 = vector.broadcast %13 : vector<1x128xf32> to vector<128x128xf32>
      %15 = arith.addf %12, %14 : vector<128x128xf32>
      %cst_13 = arith.constant 0.000000e+00 : f32
      %16 = vector.broadcast %cst_13 : f32 to vector<128x128xf32>
      %17 = arith.maximumf %15, %16 : vector<128x128xf32>
      %18 = arith.truncf %17 : vector<128x128xf32> to vector<128x128xbf16>
      %c0_14 = arith.constant 0 : index
      %c0_15 = arith.constant 0 : index
      %19 = vector.load %arg6[%c0_14, %c0_15] : memref<128x128xbf16, #tpu.memory_space<vmem>>, vector<128x128xbf16>
      tpu.vector_store %arg6[%c0_14, %c0_15], %18 {strides = array<i32>} : memref<128x128xbf16, #tpu.memory_space<vmem>>, vector<128x128xbf16>,
    } else {
    }
    return
  }
  func.func @transform_0(%arg0: i32, %arg1: i32, %arg2: i32) -> (i32, i32) {
    %c0_i32 = arith.constant 0 : i32
    return %arg0, %arg2 : i32, i32
  }
  func.func @transform_1(%arg0: i32, %arg1: i32, %arg2: i32) -> (i32, i32) {
    %c0_i32 = arith.constant 0 : i32
    return %arg2, %arg1 : i32, i32
  }
  func.func @transform_2(%arg0: i32, %arg1: i32, %arg2: i32) -> (i32, i32) {
    %c0_i32 = arith.constant 0 : i32
    %c0_i32_0 = arith.constant 0 : i32
    return %c0_i32, %arg1 : i32, i32
  }
  func.func @transform_3(%arg0: i32, %arg1: i32, %arg2: i32) -> (i32, i32) {
    %c0_i32 = arith.constant 0 : i32
    return %arg0, %arg1 : i32, i32
  }
}

module attributes {stable_mosaic.version = 11 : i64} {
  func.func @kernel(%arg0: i32, %arg1: i32, %arg2: i32, %arg3: memref<128x128xbf16, #tpu.memory_space<vmem>>, %arg4: memref<128x128xbf16, #tpu.memory_space<vmem>>, %arg5: memref<1x128xf32, #tpu.memory_space<vmem>>, %arg6: memref<128x128xbf16, #tpu.memory_space<vmem>>, %arg7: memref<128x128xbf16, #tpu.memory_space<vmem>>, %arg8: memref<128x128xf32, #tpu.memory_space<vmem>>) attributes {dimension_semantics = [#tpu.dimension_semantics<parallel>, #tpu.dimension_semantics<parallel>, #tpu.dimension_semantics<arbitrary>], iteration_bounds = array<i64: 2, 1, 1>, scalar_prefetch = 0 : i64, scratch_operands = 1 : i64, tpu.core_type = #tpu.core_type<tc>, window_params = [{transform_indices = @transform_0, window_bounds = array<i64: 128, 128>}, {transform_indices = @transform_1, window_bounds = array<i64: 128, 128>}, {transform_indices = @transform_2, window_bounds = array<i64: 1, 128>}, {transform_indices = @transform_3, window_bounds = array<i64: 128, 128>}, {transform_indices = @transform_4, window_bounds = array<i64: 128, 128>}]} {
    %c0_i32 = arith.constant 0 : i32
    %0 = arith.cmpi eq, %arg2, %c0_i32 : i32
    %1 = arith.extui %0 : i1 to i32
    %c0_i32_0 = arith.constant 0 : i32
    %2 = arith.cmpi ne, %1, %c0_i32_0 : i32
    scf.if %2 {
      %cst_10 = arith.constant 0.000000e+00 : f32
      %12 = vector.broadcast %cst_10 : f32 to vector<128x128xf32>
      %c0_11 = arith.constant 0 : index
      %c0_12 = arith.constant 0 : index
      %13 = vector.load %arg8[%c0_11, %c0_12] : memref<128x128xf32, #tpu.memory_space<vmem>>, vector<128x128xf32>
      tpu.vector_store %arg8[%c0_11, %c0_12], %12 {strides = array<i32>} : memref<128x128xf32, #tpu.memory_space<vmem>>, vector<128x128xf32>,
    } else {
    }
    %c0 = arith.constant 0 : index
    %c0_1 = arith.constant 0 : index
    %3 = vector.load %arg8[%c0, %c0_1] : memref<128x128xf32, #tpu.memory_space<vmem>>, vector<128x128xf32>
    %c0_2 = arith.constant 0 : index
    %c0_3 = arith.constant 0 : index
    %4 = vector.load %arg3[%c0_2, %c0_3] : memref<128x128xbf16, #tpu.memory_space<vmem>>, vector<128x128xbf16>
    %c0_4 = arith.constant 0 : index
    %c0_5 = arith.constant 0 : index
    %5 = vector.load %arg4[%c0_4, %c0_5] : memref<128x128xbf16, #tpu.memory_space<vmem>>, vector<128x128xbf16>
    %cst = arith.constant dense<0.000000e+00> : vector<128x128xf32>
    %6 = tpu.matmul %4, %5, %cst {dimension_numbers = #tpu.dot_dimension_numbers<[1], [0], [0], [1], [0, 0, 1, 1], [], []>} : vector<128x128xbf16>, vector<128x128xbf16>, vector<128x128xf32> -> vector<128x128xf32>
    %7 = arith.addf %3, %6 : vector<128x128xf32>
    %c0_6 = arith.constant 0 : index
    %c0_7 = arith.constant 0 : index
    %8 = vector.load %arg8[%c0_6, %c0_7] : memref<128x128xf32, #tpu.memory_space<vmem>>, vector<128x128xf32>
    tpu.vector_store %arg8[%c0_6, %c0_7], %7 {strides = array<i32>} : memref<128x128xf32, #tpu.memory_space<vmem>>, vector<128x128xf32>,
    %c0_i32_8 = arith.constant 0 : i32
    %9 = arith.cmpi eq, %arg2, %c0_i32_8 : i32
    %10 = arith.extui %9 : i1 to i32
    %c0_i32_9 = arith.constant 0 : i32
    %11 = arith.cmpi ne, %10, %c0_i32_9 : i32
    scf.if %11 {
      %c0_10 = arith.constant 0 : index
      %c0_11 = arith.constant 0 : index
      %12 = vector.load %arg8[%c0_10, %c0_11] : memref<128x128xf32, #tpu.memory_space<vmem>>, vector<128x128xf32>
      %c0_12 = arith.constant 0 : index
      %c0_13 = arith.constant 0 : index
      %13 = vector.load %arg5[%c0_12, %c0_13] : memref<1x128xf32, #tpu.memory_space<vmem>>, vector<1x128xf32>
      %14 = vector.broadcast %13 : vector<1x128xf32> to vector<128x128xf32>
      %15 = arith.addf %12, %14 : vector<128x128xf32>
      %c0_14 = arith.constant 0 : index
      %c0_15 = arith.constant 0 : index
      %16 = vector.load %arg6[%c0_14, %c0_15] : memref<128x128xbf16, #tpu.memory_space<vmem>>, vector<128x128xbf16>
      %17 = arith.extf %16 : vector<128x128xbf16> to vector<128x128xf32>
      %18 = arith.addf %15, %17 : vector<128x128xf32>
      %cst_16 = arith.constant 0.000000e+00 : f32
      %19 = vector.broadcast %cst_16 : f32 to vector<128x128xf32>
      %20 = arith.maximumf %18, %19 : vector<128x128xf32>
      %21 = arith.truncf %20 : vector<128x128xf32> to vector<128x128xbf16>
      %c0_17 = arith.constant 0 : index
      %c0_18 = arith.constant 0 : index
      %22 = vector.load %arg7[%c0_17, %c0_18] : memref<128x128xbf16, #tpu.memory_space<vmem>>, vector<128x128xbf16>
      tpu.vector_store %arg7[%c0_17, %c0_18], %21 {strides = array<i32>} : memref<128x128xbf16, #tpu.memory_space<vmem>>, vector<128x128xbf16>,
    } else {
    }
    return
  }
  func.func @transform_0(%arg0: i32, %arg1: i32, %arg2: i32) -> (i32, i32) {
    %c0_i32 = arith.constant 0 : i32
    return %arg0, %arg2 : i32, i32
  }
  func.func @transform_1(%arg0: i32, %arg1: i32, %arg2: i32) -> (i32, i32) {
    %c0_i32 = arith.constant 0 : i32
    return %arg2, %arg1 : i32, i32
  }
  func.func @transform_2(%arg0: i32, %arg1: i32, %arg2: i32) -> (i32, i32) {
    %c0_i32 = arith.constant 0 : i32
    %c0_i32_0 = arith.constant 0 : i32
    return %c0_i32, %arg1 : i32, i32
  }
  func.func @transform_3(%arg0: i32, %arg1: i32, %arg2: i32) -> (i32, i32) {
    %c0_i32 = arith.constant 0 : i32
    return %arg0, %arg1 : i32, i32
  }
  func.func @transform_4(%arg0: i32, %arg1: i32, %arg2: i32) -> (i32, i32) {
    %c0_i32 = arith.constant 0 : i32
    return %arg0, %arg1 : i32, i32
  }
}

module attributes {stable_mosaic.version = 11 : i64} {
  func.func @kernel(%arg0: i32, %arg1: i32, %arg2: i32, %arg3: memref<128x128xbf16, #tpu.memory_space<vmem>>, %arg4: memref<128x128xbf16, #tpu.memory_space<vmem>>, %arg5: memref<1x128xf32, #tpu.memory_space<vmem>>, %arg6: memref<128x128xbf16, #tpu.memory_space<vmem>>, %arg7: memref<128x128xf32, #tpu.memory_space<vmem>>) attributes {dimension_semantics = [#tpu.dimension_semantics<parallel>, #tpu.dimension_semantics<parallel>, #tpu.dimension_semantics<arbitrary>], iteration_bounds = array<i64: 2, 1, 1>, scalar_prefetch = 0 : i64, scratch_operands = 1 : i64, tpu.core_type = #tpu.core_type<tc>, window_params = [{transform_indices = @transform_0, window_bounds = array<i64: 128, 128>}, {transform_indices = @transform_1, window_bounds = array<i64: 128, 128>}, {transform_indices = @transform_2, window_bounds = array<i64: 1, 128>}, {transform_indices = @transform_3, window_bounds = array<i64: 128, 128>}]} {
    %c0_i32 = arith.constant 0 : i32
    %0 = arith.cmpi eq, %arg2, %c0_i32 : i32
    %1 = arith.extui %0 : i1 to i32
    %c0_i32_0 = arith.constant 0 : i32
    %2 = arith.cmpi ne, %1, %c0_i32_0 : i32
    scf.if %2 {
      %cst_10 = arith.constant 0.000000e+00 : f32
      %12 = vector.broadcast %cst_10 : f32 to vector<128x128xf32>
      %c0_11 = arith.constant 0 : index
      %c0_12 = arith.constant 0 : index
      %13 = vector.load %arg7[%c0_11, %c0_12] : memref<128x128xf32, #tpu.memory_space<vmem>>, vector<128x128xf32>
      tpu.vector_store %arg7[%c0_11, %c0_12], %12 {strides = array<i32>} : memref<128x128xf32, #tpu.memory_space<vmem>>, vector<128x128xf32>,
    } else {
    }
    %c0 = arith.constant 0 : index
    %c0_1 = arith.constant 0 : index
    %3 = vector.load %arg7[%c0, %c0_1] : memref<128x128xf32, #tpu.memory_space<vmem>>, vector<128x128xf32>
    %c0_2 = arith.constant 0 : index
    %c0_3 = arith.constant 0 : index
    %4 = vector.load %arg3[%c0_2, %c0_3] : memref<128x128xbf16, #tpu.memory_space<vmem>>, vector<128x128xbf16>
    %c0_4 = arith.constant 0 : index
    %c0_5 = arith.constant 0 : index
    %5 = vector.load %arg4[%c0_4, %c0_5] : memref<128x128xbf16, #tpu.memory_space<vmem>>, vector<128x128xbf16>
    %cst = arith.constant dense<0.000000e+00> : vector<128x128xf32>
    %6 = tpu.matmul %4, %5, %cst {dimension_numbers = #tpu.dot_dimension_numbers<[1], [0], [0], [1], [0, 0, 1, 1], [], []>} : vector<128x128xbf16>, vector<128x128xbf16>, vector<128x128xf32> -> vector<128x128xf32>
    %7 = arith.addf %3, %6 : vector<128x128xf32>
    %c0_6 = arith.constant 0 : index
    %c0_7 = arith.constant 0 : index
    %8 = vector.load %arg7[%c0_6, %c0_7] : memref<128x128xf32, #tpu.memory_space<vmem>>, vector<128x128xf32>
    tpu.vector_store %arg7[%c0_6, %c0_7], %7 {strides = array<i32>} : memref<128x128xf32, #tpu.memory_space<vmem>>, vector<128x128xf32>,
    %c0_i32_8 = arith.constant 0 : i32
    %9 = arith.cmpi eq, %arg2, %c0_i32_8 : i32
    %10 = arith.extui %9 : i1 to i32
    %c0_i32_9 = arith.constant 0 : i32
    %11 = arith.cmpi ne, %10, %c0_i32_9 : i32
    scf.if %11 {
      %c0_10 = arith.constant 0 : index
      %c0_11 = arith.constant 0 : index
      %12 = vector.load %arg7[%c0_10, %c0_11] : memref<128x128xf32, #tpu.memory_space<vmem>>, vector<128x128xf32>
      %c0_12 = arith.constant 0 : index
      %c0_13 = arith.constant 0 : index
      %13 = vector.load %arg5[%c0_12, %c0_13] : memref<1x128xf32, #tpu.memory_space<vmem>>, vector<1x128xf32>
      %14 = vector.broadcast %13 : vector<1x128xf32> to vector<128x128xf32>
      %15 = arith.addf %12, %14 : vector<128x128xf32>
      %16 = arith.truncf %15 : vector<128x128xf32> to vector<128x128xbf16>
      %c0_14 = arith.constant 0 : index
      %c0_15 = arith.constant 0 : index
      %17 = vector.load %arg6[%c0_14, %c0_15] : memref<128x128xbf16, #tpu.memory_space<vmem>>, vector<128x128xbf16>
      tpu.vector_store %arg6[%c0_14, %c0_15], %16 {strides = array<i32>} : memref<128x128xbf16, #tpu.memory_space<vmem>>, vector<128x128xbf16>,
    } else {
    }
    return
  }
  func.func @transform_0(%arg0: i32, %arg1: i32, %arg2: i32) -> (i32, i32) {
    %c0_i32 = arith.constant 0 : i32
    return %arg0, %arg2 : i32, i32
  }
  func.func @transform_1(%arg0: i32, %arg1: i32, %arg2: i32) -> (i32, i32) {
    %c0_i32 = arith.constant 0 : i32
    return %arg2, %arg1 : i32, i32
  }
  func.func @transform_2(%arg0: i32, %arg1: i32, %arg2: i32) -> (i32, i32) {
    %c0_i32 = arith.constant 0 : i32
    %c0_i32_0 = arith.constant 0 : i32
    return %c0_i32, %arg1 : i32, i32
  }
  func.func @transform_3(%arg0: i32, %arg1: i32, %arg2: i32) -> (i32, i32) {
    %c0_i32 = arith.constant 0 : i32
    return %arg0, %arg1 : i32, i32
  }
}

module attributes {stable_mosaic.version = 11 : i64} {
  func.func @kernel(%arg0: i32, %arg1: i32, %arg2: i32, %arg3: memref<128x128xbf16, #tpu.memory_space<vmem>>, %arg4: memref<128x128xbf16, #tpu.memory_space<vmem>>, %arg5: memref<1x128xf32, #tpu.memory_space<vmem>>, %arg6: memref<128x128xbf16, #tpu.memory_space<vmem>>, %arg7: memref<128x128xf32, #tpu.memory_space<vmem>>) attributes {dimension_semantics = [#tpu.dimension_semantics<parallel>, #tpu.dimension_semantics<parallel>, #tpu.dimension_semantics<arbitrary>], iteration_bounds = array<i64: 1, 1, 9>, scalar_prefetch = 0 : i64, scratch_operands = 1 : i64, tpu.core_type = #tpu.core_type<tc>, window_params = [{transform_indices = @transform_0, window_bounds = array<i64: 128, 128>}, {transform_indices = @transform_1, window_bounds = array<i64: 128, 128>}, {transform_indices = @transform_2, window_bounds = array<i64: 1, 128>}, {transform_indices = @transform_3, window_bounds = array<i64: 128, 128>}]} {
    %c0_i32 = arith.constant 0 : i32
    %0 = arith.cmpi eq, %arg2, %c0_i32 : i32
    %1 = arith.extui %0 : i1 to i32
    %c0_i32_0 = arith.constant 0 : i32
    %2 = arith.cmpi ne, %1, %c0_i32_0 : i32
    scf.if %2 {
      %cst_9 = arith.constant 0.000000e+00 : f32
      %12 = vector.broadcast %cst_9 : f32 to vector<128x128xf32>
      %c0_10 = arith.constant 0 : index
      %c0_11 = arith.constant 0 : index
      %13 = vector.load %arg7[%c0_10, %c0_11] : memref<128x128xf32, #tpu.memory_space<vmem>>, vector<128x128xf32>
      tpu.vector_store %arg7[%c0_10, %c0_11], %12 {strides = array<i32>} : memref<128x128xf32, #tpu.memory_space<vmem>>, vector<128x128xf32>,
    } else {
    }
    %c0 = arith.constant 0 : index
    %c0_1 = arith.constant 0 : index
    %3 = vector.load %arg7[%c0, %c0_1] : memref<128x128xf32, #tpu.memory_space<vmem>>, vector<128x128xf32>
    %c0_2 = arith.constant 0 : index
    %c0_3 = arith.constant 0 : index
    %4 = vector.load %arg3[%c0_2, %c0_3] : memref<128x128xbf16, #tpu.memory_space<vmem>>, vector<128x128xbf16>
    %c0_4 = arith.constant 0 : index
    %c0_5 = arith.constant 0 : index
    %5 = vector.load %arg4[%c0_4, %c0_5] : memref<128x128xbf16, #tpu.memory_space<vmem>>, vector<128x128xbf16>
    %cst = arith.constant dense<0.000000e+00> : vector<128x128xf32>
    %6 = tpu.matmul %4, %5, %cst {dimension_numbers = #tpu.dot_dimension_numbers<[1], [0], [0], [1], [0, 0, 1, 1], [], []>} : vector<128x128xbf16>, vector<128x128xbf16>, vector<128x128xf32> -> vector<128x128xf32>
    %7 = arith.addf %3, %6 : vector<128x128xf32>
    %c0_6 = arith.constant 0 : index
    %c0_7 = arith.constant 0 : index
    %8 = vector.load %arg7[%c0_6, %c0_7] : memref<128x128xf32, #tpu.memory_space<vmem>>, vector<128x128xf32>
    tpu.vector_store %arg7[%c0_6, %c0_7], %7 {strides = array<i32>} : memref<128x128xf32, #tpu.memory_space<vmem>>, vector<128x128xf32>,
    %c8_i32 = arith.constant 8 : i32
    %9 = arith.cmpi eq, %arg2, %c8_i32 : i32
    %10 = arith.extui %9 : i1 to i32
    %c0_i32_8 = arith.constant 0 : i32
    %11 = arith.cmpi ne, %10, %c0_i32_8 : i32
    scf.if %11 {
      %c0_9 = arith.constant 0 : index
      %c0_10 = arith.constant 0 : index
      %12 = vector.load %arg7[%c0_9, %c0_10] : memref<128x128xf32, #tpu.memory_space<vmem>>, vector<128x128xf32>
      %c0_11 = arith.constant 0 : index
      %c0_12 = arith.constant 0 : index
      %13 = vector.load %arg5[%c0_11, %c0_12] : memref<1x128xf32, #tpu.memory_space<vmem>>, vector<1x128xf32>
      %14 = vector.broadcast %13 : vector<1x128xf32> to vector<128x128xf32>
      %15 = arith.addf %12, %14 : vector<128x128xf32>
      %cst_13 = arith.constant 0.000000e+00 : f32
      %16 = vector.broadcast %cst_13 : f32 to vector<128x128xf32>
      %17 = arith.maximumf %15, %16 : vector<128x128xf32>
      %18 = arith.truncf %17 : vector<128x128xf32> to vector<128x128xbf16>
      %c0_14 = arith.constant 0 : index
      %c0_15 = arith.constant 0 : index
      %19 = vector.load %arg6[%c0_14, %c0_15] : memref<128x128xbf16, #tpu.memory_space<vmem>>, vector<128x128xbf16>
      tpu.vector_store %arg6[%c0_14, %c0_15], %18 {strides = array<i32>} : memref<128x128xbf16, #tpu.memory_space<vmem>>, vector<128x128xbf16>,
    } else {
    }
    return
  }
  func.func @transform_0(%arg0: i32, %arg1: i32, %arg2: i32) -> (i32, i32) {
    %c0_i32 = arith.constant 0 : i32
    return %arg0, %arg2 : i32, i32
  }
  func.func @transform_1(%arg0: i32, %arg1: i32, %arg2: i32) -> (i32, i32) {
    %c0_i32 = arith.constant 0 : i32
    return %arg2, %arg1 : i32, i32
  }
  func.func @transform_2(%arg0: i32, %arg1: i32, %arg2: i32) -> (i32, i32) {
    %c0_i32 = arith.constant 0 : i32
    %c0_i32_0 = arith.constant 0 : i32
    return %c0_i32, %arg1 : i32, i32
  }
  func.func @transform_3(%arg0: i32, %arg1: i32, %arg2: i32) -> (i32, i32) {
    %c0_i32 = arith.constant 0 : i32
    return %arg0, %arg1 : i32, i32
  }
}

module attributes {stable_mosaic.version = 11 : i64} {
  func.func @kernel(%arg0: i32, %arg1: i32, %arg2: i32, %arg3: memref<128x128xbf16, #tpu.memory_space<vmem>>, %arg4: memref<128x128xbf16, #tpu.memory_space<vmem>>, %arg5: memref<1x128xf32, #tpu.memory_space<vmem>>, %arg6: memref<128x128xbf16, #tpu.memory_space<vmem>>, %arg7: memref<128x128xf32, #tpu.memory_space<vmem>>) attributes {dimension_semantics = [#tpu.dimension_semantics<parallel>, #tpu.dimension_semantics<parallel>, #tpu.dimension_semantics<arbitrary>], iteration_bounds = array<i64: 1, 1, 1>, scalar_prefetch = 0 : i64, scratch_operands = 1 : i64, tpu.core_type = #tpu.core_type<tc>, window_params = [{transform_indices = @transform_0, window_bounds = array<i64: 128, 128>}, {transform_indices = @transform_1, window_bounds = array<i64: 128, 128>}, {transform_indices = @transform_2, window_bounds = array<i64: 1, 128>}, {transform_indices = @transform_3, window_bounds = array<i64: 128, 128>}]} {
    %c0_i32 = arith.constant 0 : i32
    %0 = arith.cmpi eq, %arg2, %c0_i32 : i32
    %1 = arith.extui %0 : i1 to i32
    %c0_i32_0 = arith.constant 0 : i32
    %2 = arith.cmpi ne, %1, %c0_i32_0 : i32
    scf.if %2 {
      %cst_10 = arith.constant 0.000000e+00 : f32
      %12 = vector.broadcast %cst_10 : f32 to vector<128x128xf32>
      %c0_11 = arith.constant 0 : index
      %c0_12 = arith.constant 0 : index
      %13 = vector.load %arg7[%c0_11, %c0_12] : memref<128x128xf32, #tpu.memory_space<vmem>>, vector<128x128xf32>
      tpu.vector_store %arg7[%c0_11, %c0_12], %12 {strides = array<i32>} : memref<128x128xf32, #tpu.memory_space<vmem>>, vector<128x128xf32>,
    } else {
    }
    %c0 = arith.constant 0 : index
    %c0_1 = arith.constant 0 : index
    %3 = vector.load %arg7[%c0, %c0_1] : memref<128x128xf32, #tpu.memory_space<vmem>>, vector<128x128xf32>
    %c0_2 = arith.constant 0 : index
    %c0_3 = arith.constant 0 : index
    %4 = vector.load %arg3[%c0_2, %c0_3] : memref<128x128xbf16, #tpu.memory_space<vmem>>, vector<128x128xbf16>
    %c0_4 = arith.constant 0 : index
    %c0_5 = arith.constant 0 : index
    %5 = vector.load %arg4[%c0_4, %c0_5] : memref<128x128xbf16, #tpu.memory_space<vmem>>, vector<128x128xbf16>
    %cst = arith.constant dense<0.000000e+00> : vector<128x128xf32>
    %6 = tpu.matmul %4, %5, %cst {dimension_numbers = #tpu.dot_dimension_numbers<[1], [0], [0], [1], [0, 0, 1, 1], [], []>} : vector<128x128xbf16>, vector<128x128xbf16>, vector<128x128xf32> -> vector<128x128xf32>
    %7 = arith.addf %3, %6 : vector<128x128xf32>
    %c0_6 = arith.constant 0 : index
    %c0_7 = arith.constant 0 : index
    %8 = vector.load %arg7[%c0_6, %c0_7] : memref<128x128xf32, #tpu.memory_space<vmem>>, vector<128x128xf32>
    tpu.vector_store %arg7[%c0_6, %c0_7], %7 {strides = array<i32>} : memref<128x128xf32, #tpu.memory_space<vmem>>, vector<128x128xf32>,
    %c0_i32_8 = arith.constant 0 : i32
    %9 = arith.cmpi eq, %arg2, %c0_i32_8 : i32
    %10 = arith.extui %9 : i1 to i32
    %c0_i32_9 = arith.constant 0 : i32
    %11 = arith.cmpi ne, %10, %c0_i32_9 : i32
    scf.if %11 {
      %c0_10 = arith.constant 0 : index
      %c0_11 = arith.constant 0 : index
      %12 = vector.load %arg7[%c0_10, %c0_11] : memref<128x128xf32, #tpu.memory_space<vmem>>, vector<128x128xf32>
      %c0_12 = arith.constant 0 : index
      %c0_13 = arith.constant 0 : index
      %13 = vector.load %arg5[%c0_12, %c0_13] : memref<1x128xf32, #tpu.memory_space<vmem>>, vector<1x128xf32>
      %14 = vector.broadcast %13 : vector<1x128xf32> to vector<128x128xf32>
      %15 = arith.addf %12, %14 : vector<128x128xf32>
      %16 = arith.truncf %15 : vector<128x128xf32> to vector<128x128xbf16>
      %c0_14 = arith.constant 0 : index
      %c0_15 = arith.constant 0 : index
      %17 = vector.load %arg6[%c0_14, %c0_15] : memref<128x128xbf16, #tpu.memory_space<vmem>>, vector<128x128xbf16>
      tpu.vector_store %arg6[%c0_14, %c0_15], %16 {strides = array<i32>} : memref<128x128xbf16, #tpu.memory_space<vmem>>, vector<128x128xbf16>,
    } else {
    }
    return
  }
  func.func @transform_0(%arg0: i32, %arg1: i32, %arg2: i32) -> (i32, i32) {
    %c0_i32 = arith.constant 0 : i32
    return %arg0, %arg2 : i32, i32
  }
  func.func @transform_1(%arg0: i32, %arg1: i32, %arg2: i32) -> (i32, i32) {
    %c0_i32 = arith.constant 0 : i32
    return %arg2, %arg1 : i32, i32
  }
  func.func @transform_2(%arg0: i32, %arg1: i32, %arg2: i32) -> (i32, i32) {
    %c0_i32 = arith.constant 0 : i32
    %c0_i32_0 = arith.constant 0 : i32
    return %c0_i32, %arg1 : i32, i32
  }
  func.func @transform_3(%arg0: i32, %arg1: i32, %arg2: i32) -> (i32, i32) {
    %c0_i32 = arith.constant 0 : i32
    return %arg0, %arg1 : i32, i32
  }
}

module attributes {stable_mosaic.version = 11 : i64} {
  func.func @kernel(%arg0: i32, %arg1: i32, %arg2: i32, %arg3: memref<128x128xbf16, #tpu.memory_space<vmem>>, %arg4: memref<128x128xbf16, #tpu.memory_space<vmem>>, %arg5: memref<1x128xf32, #tpu.memory_space<vmem>>, %arg6: memref<128x128xbf16, #tpu.memory_space<vmem>>, %arg7: memref<128x128xbf16, #tpu.memory_space<vmem>>, %arg8: memref<128x128xf32, #tpu.memory_space<vmem>>) attributes {dimension_semantics = [#tpu.dimension_semantics<parallel>, #tpu.dimension_semantics<parallel>, #tpu.dimension_semantics<arbitrary>], iteration_bounds = array<i64: 1, 1, 1>, scalar_prefetch = 0 : i64, scratch_operands = 1 : i64, tpu.core_type = #tpu.core_type<tc>, window_params = [{transform_indices = @transform_0, window_bounds = array<i64: 128, 128>}, {transform_indices = @transform_1, window_bounds = array<i64: 128, 128>}, {transform_indices = @transform_2, window_bounds = array<i64: 1, 128>}, {transform_indices = @transform_3, window_bounds = array<i64: 128, 128>}, {transform_indices = @transform_4, window_bounds = array<i64: 128, 128>}]} {
    %c0_i32 = arith.constant 0 : i32
    %0 = arith.cmpi eq, %arg2, %c0_i32 : i32
    %1 = arith.extui %0 : i1 to i32
    %c0_i32_0 = arith.constant 0 : i32
    %2 = arith.cmpi ne, %1, %c0_i32_0 : i32
    scf.if %2 {
      %cst_10 = arith.constant 0.000000e+00 : f32
      %12 = vector.broadcast %cst_10 : f32 to vector<128x128xf32>
      %c0_11 = arith.constant 0 : index
      %c0_12 = arith.constant 0 : index
      %13 = vector.load %arg8[%c0_11, %c0_12] : memref<128x128xf32, #tpu.memory_space<vmem>>, vector<128x128xf32>
      tpu.vector_store %arg8[%c0_11, %c0_12], %12 {strides = array<i32>} : memref<128x128xf32, #tpu.memory_space<vmem>>, vector<128x128xf32>,
    } else {
    }
    %c0 = arith.constant 0 : index
    %c0_1 = arith.constant 0 : index
    %3 = vector.load %arg8[%c0, %c0_1] : memref<128x128xf32, #tpu.memory_space<vmem>>, vector<128x128xf32>
    %c0_2 = arith.constant 0 : index
    %c0_3 = arith.constant 0 : index
    %4 = vector.load %arg3[%c0_2, %c0_3] : memref<128x128xbf16, #tpu.memory_space<vmem>>, vector<128x128xbf16>
    %c0_4 = arith.constant 0 : index
    %c0_5 = arith.constant 0 : index
    %5 = vector.load %arg4[%c0_4, %c0_5] : memref<128x128xbf16, #tpu.memory_space<vmem>>, vector<128x128xbf16>
    %cst = arith.constant dense<0.000000e+00> : vector<128x128xf32>
    %6 = tpu.matmul %4, %5, %cst {dimension_numbers = #tpu.dot_dimension_numbers<[1], [0], [0], [1], [0, 0, 1, 1], [], []>} : vector<128x128xbf16>, vector<128x128xbf16>, vector<128x128xf32> -> vector<128x128xf32>
    %7 = arith.addf %3, %6 : vector<128x128xf32>
    %c0_6 = arith.constant 0 : index
    %c0_7 = arith.constant 0 : index
    %8 = vector.load %arg8[%c0_6, %c0_7] : memref<128x128xf32, #tpu.memory_space<vmem>>, vector<128x128xf32>
    tpu.vector_store %arg8[%c0_6, %c0_7], %7 {strides = array<i32>} : memref<128x128xf32, #tpu.memory_space<vmem>>, vector<128x128xf32>,
    %c0_i32_8 = arith.constant 0 : i32
    %9 = arith.cmpi eq, %arg2, %c0_i32_8 : i32
    %10 = arith.extui %9 : i1 to i32
    %c0_i32_9 = arith.constant 0 : i32
    %11 = arith.cmpi ne, %10, %c0_i32_9 : i32
    scf.if %11 {
      %c0_10 = arith.constant 0 : index
      %c0_11 = arith.constant 0 : index
      %12 = vector.load %arg8[%c0_10, %c0_11] : memref<128x128xf32, #tpu.memory_space<vmem>>, vector<128x128xf32>
      %c0_12 = arith.constant 0 : index
      %c0_13 = arith.constant 0 : index
      %13 = vector.load %arg5[%c0_12, %c0_13] : memref<1x128xf32, #tpu.memory_space<vmem>>, vector<1x128xf32>
      %14 = vector.broadcast %13 : vector<1x128xf32> to vector<128x128xf32>
      %15 = arith.addf %12, %14 : vector<128x128xf32>
      %c0_14 = arith.constant 0 : index
      %c0_15 = arith.constant 0 : index
      %16 = vector.load %arg6[%c0_14, %c0_15] : memref<128x128xbf16, #tpu.memory_space<vmem>>, vector<128x128xbf16>
      %17 = arith.extf %16 : vector<128x128xbf16> to vector<128x128xf32>
      %18 = arith.addf %15, %17 : vector<128x128xf32>
      %cst_16 = arith.constant 0.000000e+00 : f32
      %19 = vector.broadcast %cst_16 : f32 to vector<128x128xf32>
      %20 = arith.maximumf %18, %19 : vector<128x128xf32>
      %21 = arith.truncf %20 : vector<128x128xf32> to vector<128x128xbf16>
      %c0_17 = arith.constant 0 : index
      %c0_18 = arith.constant 0 : index
      %22 = vector.load %arg7[%c0_17, %c0_18] : memref<128x128xbf16, #tpu.memory_space<vmem>>, vector<128x128xbf16>
      tpu.vector_store %arg7[%c0_17, %c0_18], %21 {strides = array<i32>} : memref<128x128xbf16, #tpu.memory_space<vmem>>, vector<128x128xbf16>,
    } else {
    }
    return
  }
  func.func @transform_0(%arg0: i32, %arg1: i32, %arg2: i32) -> (i32, i32) {
    %c0_i32 = arith.constant 0 : i32
    return %arg0, %arg2 : i32, i32
  }
  func.func @transform_1(%arg0: i32, %arg1: i32, %arg2: i32) -> (i32, i32) {
    %c0_i32 = arith.constant 0 : i32
    return %arg2, %arg1 : i32, i32
  }
  func.func @transform_2(%arg0: i32, %arg1: i32, %arg2: i32) -> (i32, i32) {
    %c0_i32 = arith.constant 0 : i32
    %c0_i32_0 = arith.constant 0 : i32
    return %c0_i32, %arg1 : i32, i32
  }
  func.func @transform_3(%arg0: i32, %arg1: i32, %arg2: i32) -> (i32, i32) {
    %c0_i32 = arith.constant 0 : i32
    return %arg0, %arg1 : i32, i32
  }
  func.func @transform_4(%arg0: i32, %arg1: i32, %arg2: i32) -> (i32, i32) {
    %c0_i32 = arith.constant 0 : i32
    return %arg0, %arg1 : i32, i32
  }
}

module attributes {stable_mosaic.version = 11 : i64} {
  func.func @kernel(%arg0: i32, %arg1: i32, %arg2: i32, %arg3: memref<128x128xbf16, #tpu.memory_space<vmem>>, %arg4: memref<128x128xbf16, #tpu.memory_space<vmem>>, %arg5: memref<1x128xf32, #tpu.memory_space<vmem>>, %arg6: memref<128x128xbf16, #tpu.memory_space<vmem>>, %arg7: memref<128x128xf32, #tpu.memory_space<vmem>>) attributes {dimension_semantics = [#tpu.dimension_semantics<parallel>, #tpu.dimension_semantics<parallel>, #tpu.dimension_semantics<arbitrary>], iteration_bounds = array<i64: 1, 1, 1>, scalar_prefetch = 0 : i64, scratch_operands = 1 : i64, tpu.core_type = #tpu.core_type<tc>, window_params = [{transform_indices = @transform_0, window_bounds = array<i64: 128, 128>}, {transform_indices = @transform_1, window_bounds = array<i64: 128, 128>}, {transform_indices = @transform_2, window_bounds = array<i64: 1, 128>}, {transform_indices = @transform_3, window_bounds = array<i64: 128, 128>}]} {
    %c0_i32 = arith.constant 0 : i32
    %0 = arith.cmpi eq, %arg2, %c0_i32 : i32
    %1 = arith.extui %0 : i1 to i32
    %c0_i32_0 = arith.constant 0 : i32
    %2 = arith.cmpi ne, %1, %c0_i32_0 : i32
    scf.if %2 {
      %cst_10 = arith.constant 0.000000e+00 : f32
      %12 = vector.broadcast %cst_10 : f32 to vector<128x128xf32>
      %c0_11 = arith.constant 0 : index
      %c0_12 = arith.constant 0 : index
      %13 = vector.load %arg7[%c0_11, %c0_12] : memref<128x128xf32, #tpu.memory_space<vmem>>, vector<128x128xf32>
      tpu.vector_store %arg7[%c0_11, %c0_12], %12 {strides = array<i32>} : memref<128x128xf32, #tpu.memory_space<vmem>>, vector<128x128xf32>,
    } else {
    }
    %c0 = arith.constant 0 : index
    %c0_1 = arith.constant 0 : index
    %3 = vector.load %arg7[%c0, %c0_1] : memref<128x128xf32, #tpu.memory_space<vmem>>, vector<128x128xf32>
    %c0_2 = arith.constant 0 : index
    %c0_3 = arith.constant 0 : index
    %4 = vector.load %arg3[%c0_2, %c0_3] : memref<128x128xbf16, #tpu.memory_space<vmem>>, vector<128x128xbf16>
    %c0_4 = arith.constant 0 : index
    %c0_5 = arith.constant 0 : index
    %5 = vector.load %arg4[%c0_4, %c0_5] : memref<128x128xbf16, #tpu.memory_space<vmem>>, vector<128x128xbf16>
    %cst = arith.constant dense<0.000000e+00> : vector<128x128xf32>
    %6 = tpu.matmul %4, %5, %cst {dimension_numbers = #tpu.dot_dimension_numbers<[1], [0], [0], [1], [0, 0, 1, 1], [], []>} : vector<128x128xbf16>, vector<128x128xbf16>, vector<128x128xf32> -> vector<128x128xf32>
    %7 = arith.addf %3, %6 : vector<128x128xf32>
    %c0_6 = arith.constant 0 : index
    %c0_7 = arith.constant 0 : index
    %8 = vector.load %arg7[%c0_6, %c0_7] : memref<128x128xf32, #tpu.memory_space<vmem>>, vector<128x128xf32>
    tpu.vector_store %arg7[%c0_6, %c0_7], %7 {strides = array<i32>} : memref<128x128xf32, #tpu.memory_space<vmem>>, vector<128x128xf32>,
    %c0_i32_8 = arith.constant 0 : i32
    %9 = arith.cmpi eq, %arg2, %c0_i32_8 : i32
    %10 = arith.extui %9 : i1 to i32
    %c0_i32_9 = arith.constant 0 : i32
    %11 = arith.cmpi ne, %10, %c0_i32_9 : i32
    scf.if %11 {
      %c0_10 = arith.constant 0 : index
      %c0_11 = arith.constant 0 : index
      %12 = vector.load %arg7[%c0_10, %c0_11] : memref<128x128xf32, #tpu.memory_space<vmem>>, vector<128x128xf32>
      %c0_12 = arith.constant 0 : index
      %c0_13 = arith.constant 0 : index
      %13 = vector.load %arg5[%c0_12, %c0_13] : memref<1x128xf32, #tpu.memory_space<vmem>>, vector<1x128xf32>
      %14 = vector.broadcast %13 : vector<1x128xf32> to vector<128x128xf32>
      %15 = arith.addf %12, %14 : vector<128x128xf32>
      %cst_14 = arith.constant 0.000000e+00 : f32
      %16 = vector.broadcast %cst_14 : f32 to vector<128x128xf32>
      %17 = arith.maximumf %15, %16 : vector<128x128xf32>
      %18 = arith.truncf %17 : vector<128x128xf32> to vector<128x128xbf16>
      %c0_15 = arith.constant 0 : index
      %c0_16 = arith.constant 0 : index
      %19 = vector.load %arg6[%c0_15, %c0_16] : memref<128x128xbf16, #tpu.memory_space<vmem>>, vector<128x128xbf16>
      tpu.vector_store %arg6[%c0_15, %c0_16], %18 {strides = array<i32>} : memref<128x128xbf16, #tpu.memory_space<vmem>>, vector<128x128xbf16>,
    } else {
    }
    return
  }
  func.func @transform_0(%arg0: i32, %arg1: i32, %arg2: i32) -> (i32, i32) {
    %c0_i32 = arith.constant 0 : i32
    return %arg0, %arg2 : i32, i32
  }
  func.func @transform_1(%arg0: i32, %arg1: i32, %arg2: i32) -> (i32, i32) {
    %c0_i32 = arith.constant 0 : i32
    return %arg2, %arg1 : i32, i32
  }
  func.func @transform_2(%arg0: i32, %arg1: i32, %arg2: i32) -> (i32, i32) {
    %c0_i32 = arith.constant 0 : i32
    %c0_i32_0 = arith.constant 0 : i32
    return %c0_i32, %arg1 : i32, i32
  }
  func.func @transform_3(%arg0: i32, %arg1: i32, %arg2: i32) -> (i32, i32) {
    %c0_i32 = arith.constant 0 : i32
    return %arg0, %arg1 : i32, i32
  }
}

module attributes {stable_mosaic.version = 11 : i64} {
  func.func @kernel(%arg0: i32, %arg1: i32, %arg2: i32, %arg3: memref<128x128xbf16, #tpu.memory_space<vmem>>, %arg4: memref<128x128xbf16, #tpu.memory_space<vmem>>, %arg5: memref<1x128xf32, #tpu.memory_space<vmem>>, %arg6: memref<128x128xbf16, #tpu.memory_space<vmem>>, %arg7: memref<128x128xf32, #tpu.memory_space<vmem>>) attributes {dimension_semantics = [#tpu.dimension_semantics<parallel>, #tpu.dimension_semantics<parallel>, #tpu.dimension_semantics<arbitrary>], iteration_bounds = array<i64: 1, 2, 1>, scalar_prefetch = 0 : i64, scratch_operands = 1 : i64, tpu.core_type = #tpu.core_type<tc>, window_params = [{transform_indices = @transform_0, window_bounds = array<i64: 128, 128>}, {transform_indices = @transform_1, window_bounds = array<i64: 128, 128>}, {transform_indices = @transform_2, window_bounds = array<i64: 1, 128>}, {transform_indices = @transform_3, window_bounds = array<i64: 128, 128>}]} {
    %c0_i32 = arith.constant 0 : i32
    %0 = arith.cmpi eq, %arg2, %c0_i32 : i32
    %1 = arith.extui %0 : i1 to i32
    %c0_i32_0 = arith.constant 0 : i32
    %2 = arith.cmpi ne, %1, %c0_i32_0 : i32
    scf.if %2 {
      %cst_10 = arith.constant 0.000000e+00 : f32
      %12 = vector.broadcast %cst_10 : f32 to vector<128x128xf32>
      %c0_11 = arith.constant 0 : index
      %c0_12 = arith.constant 0 : index
      %13 = vector.load %arg7[%c0_11, %c0_12] : memref<128x128xf32, #tpu.memory_space<vmem>>, vector<128x128xf32>
      tpu.vector_store %arg7[%c0_11, %c0_12], %12 {strides = array<i32>} : memref<128x128xf32, #tpu.memory_space<vmem>>, vector<128x128xf32>,
    } else {
    }
    %c0 = arith.constant 0 : index
    %c0_1 = arith.constant 0 : index
    %3 = vector.load %arg7[%c0, %c0_1] : memref<128x128xf32, #tpu.memory_space<vmem>>, vector<128x128xf32>
    %c0_2 = arith.constant 0 : index
    %c0_3 = arith.constant 0 : index
    %4 = vector.load %arg3[%c0_2, %c0_3] : memref<128x128xbf16, #tpu.memory_space<vmem>>, vector<128x128xbf16>
    %c0_4 = arith.constant 0 : index
    %c0_5 = arith.constant 0 : index
    %5 = vector.load %arg4[%c0_4, %c0_5] : memref<128x128xbf16, #tpu.memory_space<vmem>>, vector<128x128xbf16>
    %cst = arith.constant dense<0.000000e+00> : vector<128x128xf32>
    %6 = tpu.matmul %4, %5, %cst {dimension_numbers = #tpu.dot_dimension_numbers<[1], [0], [0], [1], [0, 0, 1, 1], [], []>} : vector<128x128xbf16>, vector<128x128xbf16>, vector<128x128xf32> -> vector<128x128xf32>
    %7 = arith.addf %3, %6 : vector<128x128xf32>
    %c0_6 = arith.constant 0 : index
    %c0_7 = arith.constant 0 : index
    %8 = vector.load %arg7[%c0_6, %c0_7] : memref<128x128xf32, #tpu.memory_space<vmem>>, vector<128x128xf32>
    tpu.vector_store %arg7[%c0_6, %c0_7], %7 {strides = array<i32>} : memref<128x128xf32, #tpu.memory_space<vmem>>, vector<128x128xf32>,
    %c0_i32_8 = arith.constant 0 : i32
    %9 = arith.cmpi eq, %arg2, %c0_i32_8 : i32
    %10 = arith.extui %9 : i1 to i32
    %c0_i32_9 = arith.constant 0 : i32
    %11 = arith.cmpi ne, %10, %c0_i32_9 : i32
    scf.if %11 {
      %c0_10 = arith.constant 0 : index
      %c0_11 = arith.constant 0 : index
      %12 = vector.load %arg7[%c0_10, %c0_11] : memref<128x128xf32, #tpu.memory_space<vmem>>, vector<128x128xf32>
      %c0_12 = arith.constant 0 : index
      %c0_13 = arith.constant 0 : index
      %13 = vector.load %arg5[%c0_12, %c0_13] : memref<1x128xf32, #tpu.memory_space<vmem>>, vector<1x128xf32>
      %14 = vector.broadcast %13 : vector<1x128xf32> to vector<128x128xf32>
      %15 = arith.addf %12, %14 : vector<128x128xf32>
      %16 = arith.truncf %15 : vector<128x128xf32> to vector<128x128xbf16>
      %c0_14 = arith.constant 0 : index
      %c0_15 = arith.constant 0 : index
      %17 = vector.load %arg6[%c0_14, %c0_15] : memref<128x128xbf16, #tpu.memory_space<vmem>>, vector<128x128xbf16>
      tpu.vector_store %arg6[%c0_14, %c0_15], %16 {strides = array<i32>} : memref<128x128xbf16, #tpu.memory_space<vmem>>, vector<128x128xbf16>,
    } else {
    }
    return
  }
  func.func @transform_0(%arg0: i32, %arg1: i32, %arg2: i32) -> (i32, i32) {
    %c0_i32 = arith.constant 0 : i32
    return %arg0, %arg2 : i32, i32
  }
  func.func @transform_1(%arg0: i32, %arg1: i32, %arg2: i32) -> (i32, i32) {
    %c0_i32 = arith.constant 0 : i32
    return %arg2, %arg1 : i32, i32
  }
  func.func @transform_2(%arg0: i32, %arg1: i32, %arg2: i32) -> (i32, i32) {
    %c0_i32 = arith.constant 0 : i32
    %c0_i32_0 = arith.constant 0 : i32
    return %c0_i32, %arg1 : i32, i32
  }
  func.func @transform_3(%arg0: i32, %arg1: i32, %arg2: i32) -> (i32, i32) {
    %c0_i32 = arith.constant 0 : i32
    return %arg0, %arg1 : i32, i32
  }
}

module attributes {stable_mosaic.version = 11 : i64} {
  func.func @kernel(%arg0: i32, %arg1: i32, %arg2: i32, %arg3: memref<128x128xbf16, #tpu.memory_space<vmem>>, %arg4: memref<128x128xbf16, #tpu.memory_space<vmem>>, %arg5: memref<1x128xf32, #tpu.memory_space<vmem>>, %arg6: memref<128x128xbf16, #tpu.memory_space<vmem>>, %arg7: memref<128x128xbf16, #tpu.memory_space<vmem>>, %arg8: memref<128x128xf32, #tpu.memory_space<vmem>>) attributes {dimension_semantics = [#tpu.dimension_semantics<parallel>, #tpu.dimension_semantics<parallel>, #tpu.dimension_semantics<arbitrary>], iteration_bounds = array<i64: 1, 2, 1>, scalar_prefetch = 0 : i64, scratch_operands = 1 : i64, tpu.core_type = #tpu.core_type<tc>, window_params = [{transform_indices = @transform_0, window_bounds = array<i64: 128, 128>}, {transform_indices = @transform_1, window_bounds = array<i64: 128, 128>}, {transform_indices = @transform_2, window_bounds = array<i64: 1, 128>}, {transform_indices = @transform_3, window_bounds = array<i64: 128, 128>}, {transform_indices = @transform_4, window_bounds = array<i64: 128, 128>}]} {
    %c0_i32 = arith.constant 0 : i32
    %0 = arith.cmpi eq, %arg2, %c0_i32 : i32
    %1 = arith.extui %0 : i1 to i32
    %c0_i32_0 = arith.constant 0 : i32
    %2 = arith.cmpi ne, %1, %c0_i32_0 : i32
    scf.if %2 {
      %cst_10 = arith.constant 0.000000e+00 : f32
      %12 = vector.broadcast %cst_10 : f32 to vector<128x128xf32>
      %c0_11 = arith.constant 0 : index
      %c0_12 = arith.constant 0 : index
      %13 = vector.load %arg8[%c0_11, %c0_12] : memref<128x128xf32, #tpu.memory_space<vmem>>, vector<128x128xf32>
      tpu.vector_store %arg8[%c0_11, %c0_12], %12 {strides = array<i32>} : memref<128x128xf32, #tpu.memory_space<vmem>>, vector<128x128xf32>,
    } else {
    }
    %c0 = arith.constant 0 : index
    %c0_1 = arith.constant 0 : index
    %3 = vector.load %arg8[%c0, %c0_1] : memref<128x128xf32, #tpu.memory_space<vmem>>, vector<128x128xf32>
    %c0_2 = arith.constant 0 : index
    %c0_3 = arith.constant 0 : index
    %4 = vector.load %arg3[%c0_2, %c0_3] : memref<128x128xbf16, #tpu.memory_space<vmem>>, vector<128x128xbf16>
    %c0_4 = arith.constant 0 : index
    %c0_5 = arith.constant 0 : index
    %5 = vector.load %arg4[%c0_4, %c0_5] : memref<128x128xbf16, #tpu.memory_space<vmem>>, vector<128x128xbf16>
    %cst = arith.constant dense<0.000000e+00> : vector<128x128xf32>
    %6 = tpu.matmul %4, %5, %cst {dimension_numbers = #tpu.dot_dimension_numbers<[1], [0], [0], [1], [0, 0, 1, 1], [], []>} : vector<128x128xbf16>, vector<128x128xbf16>, vector<128x128xf32> -> vector<128x128xf32>
    %7 = arith.addf %3, %6 : vector<128x128xf32>
    %c0_6 = arith.constant 0 : index
    %c0_7 = arith.constant 0 : index
    %8 = vector.load %arg8[%c0_6, %c0_7] : memref<128x128xf32, #tpu.memory_space<vmem>>, vector<128x128xf32>
    tpu.vector_store %arg8[%c0_6, %c0_7], %7 {strides = array<i32>} : memref<128x128xf32, #tpu.memory_space<vmem>>, vector<128x128xf32>,
    %c0_i32_8 = arith.constant 0 : i32
    %9 = arith.cmpi eq, %arg2, %c0_i32_8 : i32
    %10 = arith.extui %9 : i1 to i32
    %c0_i32_9 = arith.constant 0 : i32
    %11 = arith.cmpi ne, %10, %c0_i32_9 : i32
    scf.if %11 {
      %c0_10 = arith.constant 0 : index
      %c0_11 = arith.constant 0 : index
      %12 = vector.load %arg8[%c0_10, %c0_11] : memref<128x128xf32, #tpu.memory_space<vmem>>, vector<128x128xf32>
      %c0_12 = arith.constant 0 : index
      %c0_13 = arith.constant 0 : index
      %13 = vector.load %arg5[%c0_12, %c0_13] : memref<1x128xf32, #tpu.memory_space<vmem>>, vector<1x128xf32>
      %14 = vector.broadcast %13 : vector<1x128xf32> to vector<128x128xf32>
      %15 = arith.addf %12, %14 : vector<128x128xf32>
      %c0_14 = arith.constant 0 : index
      %c0_15 = arith.constant 0 : index
      %16 = vector.load %arg6[%c0_14, %c0_15] : memref<128x128xbf16, #tpu.memory_space<vmem>>, vector<128x128xbf16>
      %17 = arith.extf %16 : vector<128x128xbf16> to vector<128x128xf32>
      %18 = arith.addf %15, %17 : vector<128x128xf32>
      %cst_16 = arith.constant 0.000000e+00 : f32
      %19 = vector.broadcast %cst_16 : f32 to vector<128x128xf32>
      %20 = arith.maximumf %18, %19 : vector<128x128xf32>
      %21 = arith.truncf %20 : vector<128x128xf32> to vector<128x128xbf16>
      %c0_17 = arith.constant 0 : index
      %c0_18 = arith.constant 0 : index
      %22 = vector.load %arg7[%c0_17, %c0_18] : memref<128x128xbf16, #tpu.memory_space<vmem>>, vector<128x128xbf16>
      tpu.vector_store %arg7[%c0_17, %c0_18], %21 {strides = array<i32>} : memref<128x128xbf16, #tpu.memory_space<vmem>>, vector<128x128xbf16>,
    } else {
    }
    return
  }
  func.func @transform_0(%arg0: i32, %arg1: i32, %arg2: i32) -> (i32, i32) {
    %c0_i32 = arith.constant 0 : i32
    return %arg0, %arg2 : i32, i32
  }
  func.func @transform_1(%arg0: i32, %arg1: i32, %arg2: i32) -> (i32, i32) {
    %c0_i32 = arith.constant 0 : i32
    return %arg2, %arg1 : i32, i32
  }
  func.func @transform_2(%arg0: i32, %arg1: i32, %arg2: i32) -> (i32, i32) {
    %c0_i32 = arith.constant 0 : i32
    %c0_i32_0 = arith.constant 0 : i32
    return %c0_i32, %arg1 : i32, i32
  }
  func.func @transform_3(%arg0: i32, %arg1: i32, %arg2: i32) -> (i32, i32) {
    %c0_i32 = arith.constant 0 : i32
    return %arg0, %arg1 : i32, i32
  }
  func.func @transform_4(%arg0: i32, %arg1: i32, %arg2: i32) -> (i32, i32) {
    %c0_i32 = arith.constant 0 : i32
    return %arg0, %arg1 : i32, i32
  }
}

module attributes {stable_mosaic.version = 11 : i64} {
  func.func @_mean_kernel(%arg0: i32, %arg1: memref<4x4x256xbf16, #tpu.memory_space<vmem>>, %arg2: memref<4x256xf32, #tpu.memory_space<vmem>>) attributes {dimension_semantics = [#tpu.dimension_semantics<arbitrary>], iteration_bounds = array<i64: 1>, scalar_prefetch = 0 : i64, scratch_operands = 0 : i64, tpu.core_type = #tpu.core_type<tc>, window_params = [{pipeline_mode = #tpu.pipeline_mode<synchronous>, transform_indices = @transform_0, window_bounds = array<i64: 4, 4, 256>}, {pipeline_mode = #tpu.pipeline_mode<synchronous>, transform_indices = @transform_1, window_bounds = array<i64: 4, 256>}]} {
    %c0 = arith.constant 0 : index
    %c0_0 = arith.constant 0 : index
    %c0_1 = arith.constant 0 : index
    %0 = vector.load %arg1[%c0, %c0_0, %c0_1] : memref<4x4x256xbf16, #tpu.memory_space<vmem>>, vector<4x4x256xbf16>
    %1 = arith.extf %0 : vector<4x4x256xbf16> to vector<4x4x256xf32>
    %cst = arith.constant dense<0.000000e+00> : vector<4x256xf32>
    %2 = vector.multi_reduction <add>, %1, %cst [0] : vector<4x4x256xf32> to vector<4x256xf32>
    %cst_2 = arith.constant 4.000000e+00 : f32
    %3 = vector.broadcast %cst_2 : f32 to vector<4x256xf32>
    %4 = arith.divf %2, %3 : vector<4x256xf32>
    %c0_3 = arith.constant 0 : index
    %c0_4 = arith.constant 0 : index
    %5 = vector.load %arg2[%c0_3, %c0_4] : memref<4x256xf32, #tpu.memory_space<vmem>>, vector<4x256xf32>
    tpu.vector_store %arg2[%c0_3, %c0_4], %4 {strides = array<i32>} : memref<4x256xf32, #tpu.memory_space<vmem>>, vector<4x256xf32>,
    return
  }
  func.func @transform_0(%arg0: i32) -> (i32, i32, i32) {
    %c0_i32 = arith.constant 0 : i32
    %c0_i32_0 = arith.constant 0 : i32
    %c0_i32_1 = arith.constant 0 : i32
    %c0_i32_2 = arith.constant 0 : i32
    return %c0_i32, %c0_i32_0, %c0_i32_1 : i32, i32, i32
  }
  func.func @transform_1(%arg0: i32) -> (i32, i32) {
    %c0_i32 = arith.constant 0 : i32
    %c0_i32_0 = arith.constant 0 : i32
    %c0_i32_1 = arith.constant 0 : i32
    return %c0_i32, %c0_i32_0 : i32, i32
  }
}

</mosaic_0001>

<llo_original>
// kernel: pcb_test_forward.19
$region0: #{pcb_test_forward.19}
  #allocation0 [shape = 'u32[]', space=smem, size = 0x4, offset = 0x4, fixed_abs, tag = 'smem constant byte address 0x4 - core index']
  #allocation1 [shape = 'u32[144,128]{1,0:T(1,128)}', space=vmem, size = 0x12000, scoped, tag = 'internal scratch']
  #allocation2 [shape = 'f32[128,128]{1,0:T(8,128)}', space=vmem, size = 0x10000, scoped, tag = 'scratch operand']
  %s0 = inlined_call_operand.vmem [shape: bf16[1024,256], index: 0, kind: input, shape index: {}]
  %s1 = inlined_call_operand.vmem [shape: bf16[256,128], index: 1, kind: input, shape index: {}]
  %s2 = inlined_call_operand.vmem [shape: f32[1,128], index: 2, kind: input, shape index: {}]
  %s3 = inlined_call_operand.vmem [shape: bf16[1024,128], index: 3, kind: output, shape index: {}]
  %s4 = sld [smem:[#allocation0]]
  $region94: #{pcb_test_forward.19} parent=0
    _
  %s6 = ssub.s32 1, %s4
  %s7 = scalar_select 0, %s6, %s4
  $region1: #{pcb_test_forward.19} parent=0
    #allocation3 [shape = 'u8[65536]{0}', space=vmem, size = 0x10000, scoped, tag = 'input window, operand 0']
    loop: start=0, step=1, limit=18
    $region2: #{pcb_test_forward.19} parent=1 // loop_pre_header
      _
    $region3: #{pcb_test_forward.19} parent=1 // loop_header
      %s9 = sphi 0, %s13
      %p10 = scmp.ge.s32.totalorder %s9, 18
      %s16 = sphi 0, %s35
      %s17 = sphi 0, %s31
      %s18 = sphi 0, %s27
      %s19 = sphi 0, %s16
      %s20 = sphi 0, %s17
      %s21 = sphi 0, %s18
      %s22 = sphi 0, %s19
      %s23 = sphi 0, %s20
      %s24 = sphi 0, %s21
      %s40 = sphi 0, %s42
      %s43 = sphi 0, %s40
      %s44 = sphi 0, %s43
      %s60 = sphi 0, %s44
      %s68 = sphi 0, %s70
      %s71 = sphi 0, %s68
      %s72 = sphi 0, %s71
      %s88 = sphi 0, %s72
      %s94 = sphi 0, %s96
      %s97 = sphi 0, %s94
      %s98 = sphi 0, %s97
      %s114 = sphi 0, %s98
      %s122 = sphi 0, %s124
      %s125 = sphi 0, %s122
      %s126 = sphi 0, %s125
      %s142 = sphi 0, %s126
    $region4: #{pcb_test_forward.19} parent=1 // loop_header_branch
      %12 = sbr.rel (%p10) target = $region8
    $region5: #{pcb_test_forward.19} parent=1 // loop_body
      %s14 = ssub.s32 %s9, 1
      %s15 = ssub.s32 %s9, 2
      %s25 = sadd.s32 1, %s18
      %p26 = scmp.ge.s32.totalorder %s25, 2
      %s27 = scalar_select %p26, 0, %s25
      %s28 = sadd.s32 1, %s17
      %s29 = scalar_select %p26, %s28, %s17
      %p30 = scmp.ge.s32.totalorder %s29, 1
      %s31 = scalar_select %p30, 0, %s29
      %s32 = sadd.s32 1, %s16
      %s33 = scalar_select %p30, %s32, %s16
      %p34 = scmp.ge.s32.totalorder %s33, 8
      %s35 = scalar_select %p34, 0, %s33
      %s36 = ssub.s32 %s16, %s35
      %s37 = ssub.s32 %s18, %s27
      %s38 = sor.u32 %s36, %s37
      %p39 = scmp.eq.s32.totalorder %s38, 0
      %s41 = sadd.s32 %s40, 1
      %s42 = scalar_select %p39, %s40, %s41
      %p45 = pneg %p39
      %p46 = scmp.eq.s32.totalorder %s9, 15
      %p47 = por %p45, %p46
      %p48 = scmp.ne.s32.totalorder %s40, %s43
      %p49 = scmp.eq.s32.totalorder %s9, 0
      %p50 = por %p48, %p49
      %p51 = scmp.ne.s32.totalorder %s40, %s43
      %p52 = scmp.eq.s32.totalorder %s14, 15
      %p53 = por %p51, %p52
      %p54 = scmp.ne.s32.totalorder %s43, %s44
      %p55 = scmp.eq.s32.totalorder %s14, 0
      %p56 = por %p54, %p55
      %p57 = scmp.ne.s32.totalorder %s43, %s44
      %p58 = scmp.eq.s32.totalorder %s15, 15
      %p59 = por %p57, %p58
      %p61 = scmp.ne.s32.totalorder %s44, %s60
      %p62 = scmp.eq.s32.totalorder %s15, 0
      %p63 = por %p61, %p62
      %s64 = ssub.s32 %s18, %s27
      %s65 = ssub.s32 %s17, %s31
      %s66 = sor.u32 %s64, %s65
      %p67 = scmp.eq.s32.totalorder %s66, 0
      %s69 = sadd.s32 %s68, 1
      %s70 = scalar_select %p67, %s68, %s69
      %p73 = pneg %p67
      %p74 = scmp.eq.s32.totalorder %s9, 15
      %p75 = por %p73, %p74
      %p76 = scmp.ne.s32.totalorder %s68, %s71
      %p77 = scmp.eq.s32.totalorder %s9, 0
      %p78 = por %p76, %p77
      %p79 = scmp.ne.s32.totalorder %s68, %s71
      %p80 = scmp.eq.s32.totalorder %s14, 15
      %p81 = por %p79, %p80
      %p82 = scmp.ne.s32.totalorder %s71, %s72
      %p83 = scmp.eq.s32.totalorder %s14, 0
      %p84 = por %p82, %p83
      %p85 = scmp.ne.s32.totalorder %s71, %s72
      %p86 = scmp.eq.s32.totalorder %s15, 15
      %p87 = por %p85, %p86
      %p89 = scmp.ne.s32.totalorder %s72, %s88
      %p90 = scmp.eq.s32.totalorder %s15, 0
      %p91 = por %p89, %p90
      %s92 = ssub.s32 %s17, %s31
      %p93 = scmp.eq.s32.totalorder %s92, 0
      %s95 = sadd.s32 %s94, 1
      %s96 = scalar_select %p93, %s94, %s95
      %p99 = pneg %p93
      %p100 = scmp.eq.s32.totalorder %s9, 15
      %p101 = por %p99, %p100
      %p102 = scmp.ne.s32.totalorder %s94, %s97
      %p103 = scmp.eq.s32.totalorder %s9, 0
      %p104 = por %p102, %p103
      %p105 = scmp.ne.s32.totalorder %s94, %s97
      %p106 = scmp.eq.s32.totalorder %s14, 15
      %p107 = por %p105, %p106
      %p108 = scmp.ne.s32.totalorder %s97, %s98
      %p109 = scmp.eq.s32.totalorder %s14, 0
      %p110 = por %p108, %p109
      %p111 = scmp.ne.s32.totalorder %s97, %s98
      %p112 = scmp.eq.s32.totalorder %s15, 15
      %p113 = por %p111, %p112
      %p115 = scmp.ne.s32.totalorder %s98, %s114
      %p116 = scmp.eq.s32.totalorder %s15, 0
      %p117 = por %p115, %p116
      %s118 = ssub.s32 %s16, %s35
      %s119 = ssub.s32 %s17, %s31
      %s120 = sor.u32 %s118, %s119
      %p121 = scmp.eq.s32.totalorder %s120, 0
      %s123 = sadd.s32 %s122, 1
      %s124 = scalar_select %p121, %s122, %s123
      %p127 = pneg %p121
      %p128 = scmp.eq.s32.totalorder %s9, 15
      %p129 = por %p127, %p128
      %p130 = scmp.ne.s32.totalorder %s122, %s125
      %p131 = scmp.eq.s32.totalorder %s9, 0
      %p132 = por %p130, %p131
      %p133 = scmp.ne.s32.totalorder %s122, %s125
      %p134 = scmp.eq.s32.totalorder %s14, 15
      %p135 = por %p133, %p134
      %p136 = scmp.ne.s32.totalorder %s125, %s126
      %p137 = scmp.eq.s32.totalorder %s14, 0
      %p138 = por %p136, %p137
      %p139 = scmp.ne.s32.totalorder %s125, %s126
      %p140 = scmp.eq.s32.totalorder %s15, 15
      %p141 = por %p139, %p140
      %p143 = scmp.ne.s32.totalorder %s126, %s142
      %p144 = scmp.eq.s32.totalorder %s15, 0
      %p145 = por %p143, %p144
      %p146 = scmp.le.s32.totalorder 1, %s9
      %p147 = scmp.lt.s32.totalorder %s9, 17
      %p148 = pnand %p146, %p147
      %p149 = pneg %p148
      // Predicated region
      $region9: #{pcb_test_forward.19} parent=5 // pred_check
        _
      $region10: #{pcb_test_forward.19} parent=5 // pred_check_branch
        %151 = sbr.rel (%p148) target = $region12
      $region11: #{pcb_test_forward.19} parent=5 // pred_region
        %s152 = ssub.s32 %s9, 1
        // Predicated region
        $region13: #{pcb_test_forward.19} parent=11 // pred_check
          %p153 = pneg %p110
        $region14: #{pcb_test_forward.19} parent=11 // pred_check_branch
          %155 = sbr.rel (%p153) target = $region16
        $region15: #{pcb_test_forward.19} parent=11 // pred_region
          %p156 = scmp.lt.s32.totalorder %s20, 0
          %s157 = scalar_select %p156, %s20, 0
          %s158 = scalar_lea.vmem %s2, %s157
        $region16: #{pcb_test_forward.19} parent=11 // pred_fallthru
          _
      $region12: #{pcb_test_forward.19} parent=5 // pred_fallthru
        _
      %p159 = scmp.lt.s32.totalorder %s9, 16
      // Predicated region
      $region17: #{pcb_test_forward.19} parent=5 // pred_check
        %p160 = pneg %p159
      $region18: #{pcb_test_forward.19} parent=5 // pred_check_branch
        %162 = sbr.rel (%p160) target = $region20
      $region19: #{pcb_test_forward.19} parent=5 // pred_region
        // Predicated region
        $region21: #{pcb_test_forward.19} parent=19 // pred_check
          %p163 = pneg %p50
        $region22: #{pcb_test_forward.19} parent=19 // pred_check_branch
          %165 = sbr.rel (%p163) target = $region24
        $region23: #{pcb_test_forward.19} parent=19 // pred_region
          %s166 = sand.u32 %s40, 1
          %s167 = sand.u32 %s40, 1
          %s168 = smul.addr %s167, 64
          %s169 = scalar_lea.vmem [#allocation3], %s168
          %s170 = smul.u32 16, %s16
          %s171 = smul.addr %s170, 2
          %s172 = sadd.s32 %s18, %s171
          %s173 = smul.addr %s172, 4
          %s174 = scalar_lea.vmem %s0, %s173
          // Predicated region
          $region25: #{pcb_test_forward.19} parent=23 // pred_check
            _
          $region26: #{pcb_test_forward.19} parent=23 // pred_check_branch
            %176 = sbr.rel (0) target = $region28
          $region27: #{pcb_test_forward.19} parent=23 // pred_region
            // Predicated region
            $region29: #{pcb_test_forward.19} parent=27 // pred_check
              _
            $region30: #{pcb_test_forward.19} parent=27 // pred_check_branch
              %178 = sbr.rel target = $region32
            $region31: #{pcb_test_forward.19} parent=27 // pred_region
              // Predicated region
              $region44: #{pcb_test_forward.19} parent=31 // pred_check
                _
              $region45: #{pcb_test_forward.19} parent=31 // pred_check_branch
                %224 = sbr.rel (0) target = $region47
              $region46: #{pcb_test_forward.19} parent=31 // pred_region
                loop: start=0, step=1, limit=1
                $region48: #{pcb_test_forward.19} parent=46 // loop_pre_header
                  _
                $region49: #{pcb_test_forward.19} parent=46 // loop_header
                  %s226 = sphi 0, %s230
                  %p227 = scmp.ge.s32.totalorder %s226, 1
                  %s231 = sphi %s174, %s174
                  %s232 = sphi %s169, %s169
                $region50: #{pcb_test_forward.19} parent=46 // loop_header_branch
                  %229 = sbr.rel (%p227) target = $region54
                $region51: #{pcb_test_forward.19} parent=46 // loop_body
                  _
                $region52: #{pcb_test_forward.19} parent=46 // loop_footer
                  %s230 = sadd.s32 1, %s226
                $region53: #{pcb_test_forward.19} parent=46 // loop_footer_branch
                  %225 = sbr.rel target = $region49
                $region54: #{pcb_test_forward.19} parent=46 // loop_exit
                  _
                %s234 = ssub.s32 16, 1
                loop: start=0, step=1, limit=1
                $region55: #{pcb_test_forward.19} parent=46 // loop_pre_header
                  _
                $region56: #{pcb_test_forward.19} parent=46 // loop_header
                  %s236 = sphi 0, %s240
                  %p237 = scmp.ge.s32.totalorder %s236, 1
                  %s241 = sphi %s174, %s174
                  %s242 = sphi %s169, %s169
                $region57: #{pcb_test_forward.19} parent=46 // loop_header_branch
                  %239 = sbr.rel (%p237) target = $region61
                $region58: #{pcb_test_forward.19} parent=46 // loop_body
                  %v243 = vld [vmem:[%s241] sm:%s234]
                  %244 = vst [vmem:[%s242] sm:%s234] %v243
                  %v245 = vld [vmem:[%s241 + $0x8] sm:%s234]
                  %246 = vst [vmem:[%s242 + $0x4] sm:%s234] %v245
                  %v247 = vld [vmem:[%s241 + $0x10] sm:%s234]
                  %248 = vst [vmem:[%s242 + $0x8] sm:%s234] %v247
                  %v249 = vld [vmem:[%s241 + $0x18] sm:%s234]
                  %250 = vst [vmem:[%s242 + $0xc] sm:%s234] %v249
                  %v251 = vld [vmem:[%s241 + $0x20] sm:%s234]
                  %252 = vst [vmem:[%s242 + $0x10] sm:%s234] %v251
                  %v253 = vld [vmem:[%s241 + $0x28] sm:%s234]
                  %254 = vst [vmem:[%s242 + $0x14] sm:%s234] %v253
                  %v255 = vld [vmem:[%s241 + $0x30] sm:%s234]
                  %256 = vst [vmem:[%s242 + $0x18] sm:%s234] %v255
                  %v257 = vld [vmem:[%s241 + $0x38] sm:%s234]
                  %258 = vst [vmem:[%s242 + $0x1c] sm:%s234] %v257
                  %v259 = vld [vmem:[%s241 + $0x40] sm:%s234]
                  %260 = vst [vmem:[%s242 + $0x20] sm:%s234] %v259
                  %v261 = vld [vmem:[%s241 + $0x48] sm:%s234]
                  %262 = vst [vmem:[%s242 + $0x24] sm:%s234] %v261
                  %v263 = vld [vmem:[%s241 + $0x50] sm:%s234]
                  %264 = vst [vmem:[%s242 + $0x28] sm:%s234] %v263
                  %v265 = vld [vmem:[%s241 + $0x58] sm:%s234]
                  %266 = vst [vmem:[%s242 + $0x2c] sm:%s234] %v265
                  %v267 = vld [vmem:[%s241 + $0x60] sm:%s234]
                  %268 = vst [vmem:[%s242 + $0x30] sm:%s234] %v267
                  %v269 = vld [vmem:[%s241 + $0x68] sm:%s234]
                  %270 = vst [vmem:[%s242 + $0x34] sm:%s234] %v269
                  %v271 = vld [vmem:[%s241 + $0x70] sm:%s234]
                  %272 = vst [vmem:[%s242 + $0x38] sm:%s234] %v271
                  %v273 = vld [vmem:[%s241 + $0x78] sm:%s234]
                  %274 = vst [vmem:[%s242 + $0x3c] sm:%s234] %v273
                $region59: #{pcb_test_forward.19} parent=46 // loop_footer
                  %s240 = sadd.s32 1, %s236
                $region60: #{pcb_test_forward.19} parent=46 // loop_footer_branch
                  %235 = sbr.rel target = $region56
                $region61: #{pcb_test_forward.19} parent=46 // loop_exit
                  _
              $region47: #{pcb_test_forward.19} parent=31 // pred_fallthru
                _
            $region32: #{pcb_test_forward.19} parent=27 // pred_fallthru
              _
            // Predicated region
            $region33: #{pcb_test_forward.19} parent=27 // pred_check
              _
            $region34: #{pcb_test_forward.19} parent=27 // pred_check_branch
              %180 = sbr.rel (0) target = $region36
            $region35: #{pcb_test_forward.19} parent=27 // pred_region
              %s182 = ssub.s32 16, 1
              loop: start=0, step=1, limit=1
              $region37: #{pcb_test_forward.19} parent=35 // loop_pre_header
                _
              $region38: #{pcb_test_forward.19} parent=35 // loop_header
                %s184 = sphi 0, %s188
                %p185 = scmp.ge.s32.totalorder %s184, 1
                %s189 = sphi %s174, %s174
                %s190 = sphi %s169, %s169
              $region39: #{pcb_test_forward.19} parent=35 // loop_header_branch
                %187 = sbr.rel (%p185) target = $region43
              $region40: #{pcb_test_forward.19} parent=35 // loop_body
                %v191 = vld [vmem:[%s189] sm:%s182]
                %192 = vst [vmem:[%s190] sm:%s182] %v191
                %v193 = vld [vmem:[%s189 + $0x8] sm:%s182]
                %194 = vst [vmem:[%s190 + $0x4] sm:%s182] %v193
                %v195 = vld [vmem:[%s189 + $0x10] sm:%s182]
                %196 = vst [vmem:[%s190 + $0x8] sm:%s182] %v195
                %v197 = vld [vmem:[%s189 + $0x18] sm:%s182]
                %198 = vst [vmem:[%s190 + $0xc] sm:%s182] %v197
                %v199 = vld [vmem:[%s189 + $0x20] sm:%s182]
                %200 = vst [vmem:[%s190 + $0x10] sm:%s182] %v199
                %v201 = vld [vmem:[%s189 + $0x28] sm:%s182]
                %202 = vst [vmem:[%s190 + $0x14] sm:%s182] %v201
                %v203 = vld [vmem:[%s189 + $0x30] sm:%s182]
                %204 = vst [vmem:[%s190 + $0x18] sm:%s182] %v203
                %v205 = vld [vmem:[%s189 + $0x38] sm:%s182]
                %206 = vst [vmem:[%s190 + $0x1c] sm:%s182] %v205
                %v207 = vld [vmem:[%s189 + $0x40] sm:%s182]
                %208 = vst [vmem:[%s190 + $0x20] sm:%s182] %v207
                %v209 = vld [vmem:[%s189 + $0x48] sm:%s182]
                %210 = vst [vmem:[%s190 + $0x24] sm:%s182] %v209
                %v211 = vld [vmem:[%s189 + $0x50] sm:%s182]
                %212 = vst [vmem:[%s190 + $0x28] sm:%s182] %v211
                %v213 = vld [vmem:[%s189 + $0x58] sm:%s182]
                %214 = vst [vmem:[%s190 + $0x2c] sm:%s182] %v213
                %v215 = vld [vmem:[%s189 + $0x60] sm:%s182]
                %216 = vst [vmem:[%s190 + $0x30] sm:%s182] %v215
                %v217 = vld [vmem:[%s189 + $0x68] sm:%s182]
                %218 = vst [vmem:[%s190 + $0x34] sm:%s182] %v217
                %v219 = vld [vmem:[%s189 + $0x70] sm:%s182]
                %220 = vst [vmem:[%s190 + $0x38] sm:%s182] %v219
                %v221 = vld [vmem:[%s189 + $0x78] sm:%s182]
                %222 = vst [vmem:[%s190 + $0x3c] sm:%s182] %v221
              $region41: #{pcb_test_forward.19} parent=35 // loop_footer
                %s188 = sadd.s32 1, %s184
              $region42: #{pcb_test_forward.19} parent=35 // loop_footer_branch
                %183 = sbr.rel target = $region38
              $region43: #{pcb_test_forward.19} parent=35 // loop_exit
                _
            $region36: #{pcb_test_forward.19} parent=27 // pred_fallthru
              _
          $region28: #{pcb_test_forward.19} parent=23 // pred_fallthru
            _
          %275 = vnop
        $region24: #{pcb_test_forward.19} parent=19 // pred_fallthru
          _
        // Predicated region
        $region62: #{pcb_test_forward.19} parent=19 // pred_check
          %p276 = pneg %p78
        $region63: #{pcb_test_forward.19} parent=19 // pred_check_branch
          %278 = sbr.rel (%p276) target = $region65
        $region64: #{pcb_test_forward.19} parent=19 // pred_region
          %s279 = smul.u32 16, %s18
          %p280 = scmp.lt.s32.totalorder %s279, 31
          %s281 = scalar_select %p280, %s279, 31
          %p282 = scmp.lt.s32.totalorder %s17, 0
          %s283 = scalar_select %p282, %s17, 0
          %s284 = sadd.s32 %s283, %s281
          %s285 = smul.addr %s284, 4
          %s286 = scalar_lea.vmem %s1, %s285
          %s287 = smul.u32 16, %s18
        $region65: #{pcb_test_forward.19} parent=19 // pred_fallthru
          _
      $region20: #{pcb_test_forward.19} parent=5 // pred_fallthru
        _
      %p288 = scmp.le.s32.totalorder 1, %s9
      %p289 = scmp.lt.s32.totalorder %s9, 17
      %p290 = pnand %p288, %p289
      %p291 = pneg %p290
      // Predicated region
      $region66: #{pcb_test_forward.19} parent=5 // pred_check
        _
      $region67: #{pcb_test_forward.19} parent=5 // pred_check_branch
        %293 = sbr.rel (%p290) target = $region69
      $region68: #{pcb_test_forward.19} parent=5 // pred_region
        %s294 = ssub.s32 %s9, 1
        %s295 = sand.u32 %s43, 1
        %s296 = sand.u32 %s43, 1
        %s297 = smul.addr %s296, 64
        %s298 = scalar_lea.vmem [#allocation3], %s297
        // Predicated region
        $region70: #{pcb_test_forward.19} parent=68 // pred_check
          %p299 = pneg %p56
        $region71: #{pcb_test_forward.19} parent=68 // pred_check_branch
          %301 = sbr.rel (%p299) target = $region73
        $region72: #{pcb_test_forward.19} parent=68 // pred_region
          _
        $region73: #{pcb_test_forward.19} parent=68 // pred_fallthru
          _
        %s302 = sand.u32 %s43, 1
        %s303 = sand.u32 %s43, 1
        %s304 = smul.addr %s303, 64
        %s305 = scalar_lea.vmem [#allocation3], %s304
        %p306 = pneg %p56
        %p307 = pneg %p53
        %s308 = smul.u32 16, %s21
        %p309 = scmp.lt.s32.totalorder %s308, 31
        %s310 = scalar_select %p309, %s308, 31
        %p311 = scmp.lt.s32.totalorder %s20, 0
        %s312 = scalar_select %p311, %s20, 0
        %s313 = sadd.s32 %s312, %s310
        %s314 = smul.addr %s313, 4
        %s315 = scalar_lea.vmem %s1, %s314
        %p316 = pneg %p84
        %p317 = pneg %p81
        %p318 = scmp.lt.s32.totalorder %s20, 0
        %s319 = scalar_select %p318, %s20, 0
        %s320 = scalar_lea.vmem %s2, %s319
        %p321 = pneg %p110
        %p322 = pneg %p107
        %p323 = pneg %p138
        %p324 = pneg %p135
        %s325 = smul.u32 16, %s19
        %p326 = scmp.lt.s32.totalorder %s325, 127
        %s327 = scalar_select %p326, %s325, 127
        %p328 = scmp.lt.s32.totalorder %s20, 0
        %s329 = scalar_select %p328, %s20, 0
        %s330 = sadd.s32 %s329, %s327
        %s331 = smul.addr %s330, 4
        %s332 = scalar_lea.vmem %s3, %s331
        %s333 = smul.u32 16, %s19
        %s334 = smul.u32 16, %s21
        %p335 = scmp.lt.s32.totalorder %s334, 31
        %s336 = scalar_select %p335, %s334, 31
        %p337 = scmp.lt.s32.totalorder %s20, 0
        %s338 = scalar_select %p337, %s20, 0
        %s339 = sadd.s32 %s338, %s336
        %s340 = smul.addr %s339, 4
        %s341 = scalar_lea.vmem %s1, %s340
        %s342 = smul.u32 16, %s21
        %p343 = scmp.lt.s32.totalorder %s20, 0
        %s344 = scalar_select %p343, %s20, 0
        %s345 = scalar_lea.vmem %s2, %s344
        %s346 = smul.u32 16, %s19
        %p347 = scmp.lt.s32.totalorder %s346, 127
        %s348 = scalar_select %p347, %s346, 127
        %p349 = scmp.lt.s32.totalorder %s20, 0
        %s350 = scalar_select %p349, %s20, 0
        %s351 = sadd.s32 %s350, %s348
        %s352 = smul.addr %s351, 4
        %s353 = scalar_lea.vmem %s3, %s352
        %s354 = smul.u32 16, %s19
        %p356 = scmp.eq.s32.totalorder %s21, 0
        // Predicated region
        $region74: #{pcb_test_forward.19} parent=68 // pred_check
          %p357 = pneg %p356
        $region75: #{pcb_test_forward.19} parent=68 // pred_check_branch
          %359 = sbr.rel (%p357) target = $region77
        $region76: #{pcb_test_forward.19} parent=68 // pred_region
          %360 = vst [vmem:[#allocation2] sm:$0xff] 0.0
          %361 = vst [vmem:[#allocation2 + $0x8] sm:$0xff] 0.0
          %362 = vst [vmem:[#allocation2 + $0x10] sm:$0xff] 0.0
          %363 = vst [vmem:[#allocation2 + $0x18] sm:$0xff] 0.0
          %364 = vst [vmem:[#allocation2 + $0x20] sm:$0xff] 0.0
          %365 = vst [vmem:[#allocation2 + $0x28] sm:$0xff] 0.0
          %366 = vst [vmem:[#allocation2 + $0x30] sm:$0xff] 0.0
          %367 = vst [vmem:[#allocation2 + $0x38] sm:$0xff] 0.0
          %368 = vst [vmem:[#allocation2 + $0x40] sm:$0xff] 0.0
          %369 = vst [vmem:[#allocation2 + $0x48] sm:$0xff] 0.0
          %370 = vst [vmem:[#allocation2 + $0x50] sm:$0xff] 0.0
          %371 = vst [vmem:[#allocation2 + $0x58] sm:$0xff] 0.0
          %372 = vst [vmem:[#allocation2 + $0x60] sm:$0xff] 0.0
          %373 = vst [vmem:[#allocation2 + $0x68] sm:$0xff] 0.0
          %374 = vst [vmem:[#allocation2 + $0x70] sm:$0xff] 0.0
          %375 = vst [vmem:[#allocation2 + $0x78] sm:$0xff] 0.0
        $region77: #{pcb_test_forward.19} parent=68 // pred_fallthru
          _
        %v376 = vld [vmem:[#allocation2] sm:$0xff]
        %v377 = vld [vmem:[#allocation2 + $0x8] sm:$0xff]
        %v378 = vld [vmem:[#allocation2 + $0x10] sm:$0xff]
        %v379 = vld [vmem:[#allocation2 + $0x18] sm:$0xff]
        %v380 = vld [vmem:[#allocation2 + $0x20] sm:$0xff]
        %v381 = vld [vmem:[#allocation2 + $0x28] sm:$0xff]
        %v382 = vld [vmem:[#allocation2 + $0x30] sm:$0xff]
        %v383 = vld [vmem:[#allocation2 + $0x38] sm:$0xff]
        %v384 = vld [vmem:[#allocation2 + $0x40] sm:$0xff]
        %v385 = vld [vmem:[#allocation2 + $0x48] sm:$0xff]
        %v386 = vld [vmem:[#allocation2 + $0x50] sm:$0xff]
        %v387 = vld [vmem:[#allocation2 + $0x58] sm:$0xff]
        %v388 = vld [vmem:[#allocation2 + $0x60] sm:$0xff]
        %v389 = vld [vmem:[#allocation2 + $0x68] sm:$0xff]
        %v390 = vld [vmem:[#allocation2 + $0x70] sm:$0xff]
        %v391 = vld [vmem:[#allocation2 + $0x78] sm:$0xff]
        %v392 = vld [vmem:[%s298] sm:$0xf]
        %v393 = vld [vmem:[%s298 + $0x4] sm:$0xf]
        %v394 = vld [vmem:[%s298 + $0x8] sm:$0xf]
        %v395 = vld [vmem:[%s298 + $0xc] sm:$0xf]
        %v396 = vld [vmem:[%s298 + $0x10] sm:$0xf]
        %v397 = vld [vmem:[%s298 + $0x14] sm:$0xf]
        %v398 = vld [vmem:[%s298 + $0x18] sm:$0xf]
        %v399 = vld [vmem:[%s298 + $0x1c] sm:$0xf]
        %v400 = vld [vmem:[%s298 + $0x20] sm:$0xf]
        %v401 = vld [vmem:[%s298 + $0x24] sm:$0xf]
        %v402 = vld [vmem:[%s298 + $0x28] sm:$0xf]
        %v403 = vld [vmem:[%s298 + $0x2c] sm:$0xf]
        %v404 = vld [vmem:[%s298 + $0x30] sm:$0xf]
        %v405 = vld [vmem:[%s298 + $0x34] sm:$0xf]
        %v406 = vld [vmem:[%s298 + $0x38] sm:$0xf]
        %v407 = vld [vmem:[%s298 + $0x3c] sm:$0xf]
        %v408 = vld [vmem:[%s341] sm:$0xf]
        %v409 = vld [vmem:[%s341 + $0x4] sm:$0xf]
        %v410 = vld [vmem:[%s341 + $0x8] sm:$0xf]
        %v411 = vld [vmem:[%s341 + $0xc] sm:$0xf]
        %v412 = vld [vmem:[%s341 + $0x10] sm:$0xf]
        %v413 = vld [vmem:[%s341 + $0x14] sm:$0xf]
        %v414 = vld [vmem:[%s341 + $0x18] sm:$0xf]
        %v415 = vld [vmem:[%s341 + $0x1c] sm:$0xf]
        %v416 = vld [vmem:[%s341 + $0x20] sm:$0xf]
        %v417 = vld [vmem:[%s341 + $0x24] sm:$0xf]
        %v418 = vld [vmem:[%s341 + $0x28] sm:$0xf]
        %v419 = vld [vmem:[%s341 + $0x2c] sm:$0xf]
        %v420 = vld [vmem:[%s341 + $0x30] sm:$0xf]
        %v421 = vld [vmem:[%s341 + $0x34] sm:$0xf]
        %v422 = vld [vmem:[%s341 + $0x38] sm:$0xf]
        %v423 = vld [vmem:[%s341 + $0x3c] sm:$0xf]
        %v440 = vunpack.c.l.b16 %v392
        %v441 = vunpack.c.l.b16 %v393
        %v442 = vunpack.c.l.b16 %v394
        %v443 = vunpack.c.l.b16 %v395
        %v444 = vunpack.c.l.b16 %v396
        %v445 = vunpack.c.l.b16 %v397
        %v446 = vunpack.c.l.b16 %v398
        %v447 = vunpack.c.l.b16 %v399
        %v448 = vunpack.c.l.b16 %v400
        %v449 = vunpack.c.l.b16 %v401
        %v450 = vunpack.c.l.b16 %v402
        %v451 = vunpack.c.l.b16 %v403
        %v452 = vunpack.c.l.b16 %v404
        %v453 = vunpack.c.l.b16 %v405
        %v454 = vunpack.c.l.b16 %v406
        %v455 = vunpack.c.l.b16 %v407
        %v456 = vpack.c.b16 %v441, %v440
        %v457 = vpack.c.b16 %v443, %v442
        %v458 = vpack.c.b16 %v445, %v444
        %v459 = vpack.c.b16 %v447, %v446
        %v460 = vpack.c.b16 %v449, %v448
        %v461 = vpack.c.b16 %v451, %v450
        %v462 = vpack.c.b16 %v453, %v452
        %v463 = vpack.c.b16 %v455, %v454
        %v488 = vunpack.c.l.b16 %v408
        %v489 = vunpack.c.l.b16 %v409
        %v490 = vunpack.c.l.b16 %v410
        %v491 = vunpack.c.l.b16 %v411
        %v492 = vunpack.c.l.b16 %v412
        %v493 = vunpack.c.l.b16 %v413
        %v494 = vunpack.c.l.b16 %v414
        %v495 = vunpack.c.l.b16 %v415
        %v496 = vunpack.c.l.b16 %v416
        %v497 = vunpack.c.l.b16 %v417
        %v498 = vunpack.c.l.b16 %v418
        %v499 = vunpack.c.l.b16 %v419
        %v500 = vunpack.c.l.b16 %v420
        %v501 = vunpack.c.l.b16 %v421
        %v502 = vunpack.c.l.b16 %v422
        %v503 = vunpack.c.l.b16 %v423
        %v504 = vpack.c.b16 %v489, %v488
        %v505 = vpack.c.b16 %v491, %v490
        %v506 = vpack.c.b16 %v493, %v492
        %v507 = vpack.c.b16 %v495, %v494
        %v508 = vpack.c.b16 %v497, %v496
        %v509 = vpack.c.b16 %v499, %v498
        %v510 = vpack.c.b16 %v501, %v500
        %v511 = vpack.c.b16 %v503, %v502
        %520 = vmatprep.subr.bf16.mxu0 0
        %521 = vmatpush1.bf16.msra.mxu0 %v511
        %522 = vmatprep.subr.bf16.mxu0 0
        %523 = vmatpush1.bf16.msra.mxu0 %v510
        %524 = vmatprep.subr.bf16.mxu0 0
        %525 = vmatpush1.bf16.msra.mxu0 %v509
        %526 = vmatprep.subr.bf16.mxu0 0
        %527 = vmatpush1.bf16.msra.mxu0 %v508
        %528 = vmatprep.subr.bf16.mxu0 0
        %529 = vmatpush1.bf16.msra.mxu0 %v507
        %530 = vmatprep.subr.bf16.mxu0 0
        %531 = vmatpush1.bf16.msra.mxu0 %v506
        %532 = vmatprep.subr.bf16.mxu0 0
        %533 = vmatpush1.bf16.msra.mxu0 %v505
        %534 = vmatprep.subr.bf16.mxu0 0
        %535 = vmatpush1.bf16.msra.mxu0 %v504
        %536 = vmatprep.subr.bf16.mxu0 0
        %537 = vmatpush2.bf16.msra.mxu0 0
        %538 = vmatprep.subr.bf16.mxu0 0
        %539 = vmatpush2.bf16.msra.mxu0 0
        %540 = vmatprep.subr.bf16.mxu0 0
        %541 = vmatpush2.bf16.msra.mxu0 0
        %542 = vmatprep.subr.bf16.mxu0 0
        %543 = vmatpush2.bf16.msra.mxu0 0
        %544 = vmatprep.subr.bf16.mxu0 0
        %545 = vmatpush2.bf16.msra.mxu0 0
        %546 = vmatprep.subr.bf16.mxu0 0
        %547 = vmatpush2.bf16.msra.mxu0 0
        %548 = vmatprep.subr.bf16.mxu0 0
        %549 = vmatpush2.bf16.msra.mxu0 0
        %550 = vmatprep.subr.bf16.mxu0 0
        %551 = vmatpush2.bf16.msra.mxu0 0
        %552 = vmatprep.mubr.bf16.mxu0 0
        %553 = vmatmul.mubr.bf16.gmra.mxu0 %v456
        %v554 = vpop.f32.mrf.mxu0
        %v555 = vadd.f32 0.0, %v554
        %v556 = vpop.f32.mrf.mxu0
        %v557 = vpop.f32.mrf.mxu0
        %v558 = vadd.f32 0.0, %v557
        %v559 = vpop.f32.mrf.mxu0
        %560 = vmatprep.mubr.bf16.mxu0 0
        %561 = vmatmul.mubr.bf16.gmra.mxu0 %v457
        %v562 = vpop.f32.mrf.mxu0
        %v563 = vadd.f32 0.0, %v562
        %v564 = vpop.f32.mrf.mxu0
        %v565 = vpop.f32.mrf.mxu0
        %v566 = vadd.f32 0.0, %v565
        %v567 = vpop.f32.mrf.mxu0
        %568 = vmatprep.mubr.bf16.mxu0 0
        %569 = vmatmul.mubr.bf16.gmra.mxu0 %v458
        %v570 = vpop.f32.mrf.mxu0
        %v571 = vadd.f32 0.0, %v570
        %v572 = vpop.f32.mrf.mxu0
        %v573 = vpop.f32.mrf.mxu0
        %v574 = vadd.f32 0.0, %v573
        %v575 = vpop.f32.mrf.mxu0
        %576 = vmatprep.mubr.bf16.mxu0 0
        %577 = vmatmul.mubr.bf16.gmra.mxu0 %v459
        %v578 = vpop.f32.mrf.mxu0
        %v579 = vadd.f32 0.0, %v578
        %v580 = vpop.f32.mrf.mxu0
        %v581 = vpop.f32.mrf.mxu0
        %v582 = vadd.f32 0.0, %v581
        %v583 = vpop.f32.mrf.mxu0
        %584 = vmatprep.mubr.bf16.mxu0 0
        %585 = vmatmul.mubr.bf16.gmra.mxu0 %v460
        %v586 = vpop.f32.mrf.mxu0
        %v587 = vadd.f32 0.0, %v586
        %v588 = vpop.f32.mrf.mxu0
        %v589 = vpop.f32.mrf.mxu0
        %v590 = vadd.f32 0.0, %v589
        %v591 = vpop.f32.mrf.mxu0
        %592 = vmatprep.mubr.bf16.mxu0 0
        %593 = vmatmul.mubr.bf16.gmra.mxu0 %v461
        %v594 = vpop.f32.mrf.mxu0
        %v595 = vadd.f32 0.0, %v594
        %v596 = vpop.f32.mrf.mxu0
        %v597 = vpop.f32.mrf.mxu0
        %v598 = vadd.f32 0.0, %v597
        %v599 = vpop.f32.mrf.mxu0
        %600 = vmatprep.mubr.bf16.mxu0 0
        %601 = vmatmul.mubr.bf16.gmra.mxu0 %v462
        %v602 = vpop.f32.mrf.mxu0
        %v603 = vadd.f32 0.0, %v602
        %v604 = vpop.f32.mrf.mxu0
        %v605 = vpop.f32.mrf.mxu0
        %v606 = vadd.f32 0.0, %v605
        %v607 = vpop.f32.mrf.mxu0
        %608 = vmatprep.mubr.bf16.mxu0 0
        %609 = vmatmul.mubr.bf16.gmra.mxu0 %v463
        %v610 = vpop.f32.mrf.mxu0
        %v611 = vadd.f32 0.0, %v610
        %v612 = vpop.f32.mrf.mxu0
        %v613 = vpop.f32.mrf.mxu0
        %v614 = vadd.f32 0.0, %v613
        %v615 = vpop.f32.mrf.mxu0
        %616 = vdwg.mxu0
        %v617 = vadd.f32 %v376, %v555
        %v618 = vadd.f32 %v377, %v558
        %v619 = vadd.f32 %v378, %v563
        %v620 = vadd.f32 %v379, %v566
        %v621 = vadd.f32 %v380, %v571
        %v622 = vadd.f32 %v381, %v574
        %v623 = vadd.f32 %v382, %v579
        %v624 = vadd.f32 %v383, %v582
        %v625 = vadd.f32 %v384, %v587
        %v626 = vadd.f32 %v385, %v590
        %v627 = vadd.f32 %v386, %v595
        %v628 = vadd.f32 %v387, %v598
        %v629 = vadd.f32 %v388, %v603
        %v630 = vadd.f32 %v389, %v606
        %v631 = vadd.f32 %v390, %v611
        %v632 = vadd.f32 %v391, %v614
        %633 = vst [vmem:[#allocation2] sm:$0xff] %v617
        %634 = vst [vmem:[#allocation2 + $0x8] sm:$0xff] %v618
        %635 = vst [vmem:[#allocation2 + $0x10] sm:$0xff] %v619
        %636 = vst [vmem:[#allocation2 + $0x18] sm:$0xff] %v620
        %637 = vst [vmem:[#allocation2 + $0x20] sm:$0xff] %v621
        %638 = vst [vmem:[#allocation2 + $0x28] sm:$0xff] %v622
        %639 = vst [vmem:[#allocation2 + $0x30] sm:$0xff] %v623
        %640 = vst [vmem:[#allocation2 + $0x38] sm:$0xff] %v624
        %641 = vst [vmem:[#allocation2 + $0x40] sm:$0xff] %v625
        %642 = vst [vmem:[#allocation2 + $0x48] sm:$0xff] %v626
        %643 = vst [vmem:[#allocation2 + $0x50] sm:$0xff] %v627
        %644 = vst [vmem:[#allocation2 + $0x58] sm:$0xff] %v628
        %645 = vst [vmem:[#allocation2 + $0x60] sm:$0xff] %v629
        %646 = vst [vmem:[#allocation2 + $0x68] sm:$0xff] %v630
        %647 = vst [vmem:[#allocation2 + $0x70] sm:$0xff] %v631
        %648 = vst [vmem:[#allocation2 + $0x78] sm:$0xff] %v632
        %p649 = scmp.eq.s32.totalorder %s21, 1
        // Predicated region
        $region78: #{pcb_test_forward.19} parent=68 // pred_check
          %p650 = pneg %p649
        $region79: #{pcb_test_forward.19} parent=68 // pred_check_branch
          %652 = sbr.rel (%p650) target = $region81
        $region80: #{pcb_test_forward.19} parent=68 // pred_region
          %v653 = vld [vmem:[#allocation2] sm:$0xff]
          %v654 = vld [vmem:[#allocation2 + $0x8] sm:$0xff]
          %v655 = vld [vmem:[#allocation2 + $0x10] sm:$0xff]
          %v656 = vld [vmem:[#allocation2 + $0x18] sm:$0xff]
          %v657 = vld [vmem:[#allocation2 + $0x20] sm:$0xff]
          %v658 = vld [vmem:[#allocation2 + $0x28] sm:$0xff]
          %v659 = vld [vmem:[#allocation2 + $0x30] sm:$0xff]
          %v660 = vld [vmem:[#allocation2 + $0x38] sm:$0xff]
          %v661 = vld [vmem:[#allocation2 + $0x40] sm:$0xff]
          %v662 = vld [vmem:[#allocation2 + $0x48] sm:$0xff]
          %v663 = vld [vmem:[#allocation2 + $0x50] sm:$0xff]
          %v664 = vld [vmem:[#allocation2 + $0x58] sm:$0xff]
          %v665 = vld [vmem:[#allocation2 + $0x60] sm:$0xff]
          %v666 = vld [vmem:[#allocation2 + $0x68] sm:$0xff]
          %v667 = vld [vmem:[#allocation2 + $0x70] sm:$0xff]
          %v668 = vld [vmem:[#allocation2 + $0x78] sm:$0xff]
          %v669 = vld [vmem:[%s345] sm:$0x1]
          %v671 = vlaneseq
          %v672 = vshrl.u32 %v671, 7
          %v673 = vsub.s32 0, %v672
          %v674 = vrot.slane %v669, %v673
          %v676 = vadd.f32 %v653, %v674
          %v677 = vadd.f32 %v654, %v674
          %v678 = vadd.f32 %v655, %v674
          %v679 = vadd.f32 %v656, %v674
          %v680 = vadd.f32 %v657, %v674
          %v681 = vadd.f32 %v658, %v674
          %v682 = vadd.f32 %v659, %v674
          %v683 = vadd.f32 %v660, %v674
          %v684 = vadd.f32 %v661, %v674
          %v685 = vadd.f32 %v662, %v674
          %v686 = vadd.f32 %v663, %v674
          %v687 = vadd.f32 %v664, %v674
          %v688 = vadd.f32 %v665, %v674
          %v689 = vadd.f32 %v666, %v674
          %v690 = vadd.f32 %v667, %v674
          %v691 = vadd.f32 %v668, %v674
          %v692 = vmax.f32 %v676, 0.0
          %v693 = vmax.f32 %v677, 0.0
          %v694 = vmax.f32 %v678, 0.0
          %v695 = vmax.f32 %v679, 0.0
          %v696 = vmax.f32 %v680, 0.0
          %v697 = vmax.f32 %v681, 0.0
          %v698 = vmax.f32 %v682, 0.0
          %v699 = vmax.f32 %v683, 0.0
          %v700 = vmax.f32 %v684, 0.0
          %v701 = vmax.f32 %v685, 0.0
          %v702 = vmax.f32 %v686, 0.0
          %v703 = vmax.f32 %v687, 0.0
          %v704 = vmax.f32 %v688, 0.0
          %v705 = vmax.f32 %v689, 0.0
          %v706 = vmax.f32 %v690, 0.0
          %v707 = vmax.f32 %v691, 0.0
          %v708 = vpack.c.bf16 %v693, %v692
          %v709 = vpack.c.bf16 %v695, %v694
          %v710 = vpack.c.bf16 %v697, %v696
          %v711 = vpack.c.bf16 %v699, %v698
          %v712 = vpack.c.bf16 %v701, %v700
          %v713 = vpack.c.bf16 %v703, %v702
          %v714 = vpack.c.bf16 %v705, %v704
          %v715 = vpack.c.bf16 %v707, %v706
          %v724 = vunpack.c.l.b16 %v708
          %v725 = vunpack.c.h.b16 %v708
          %v726 = vunpack.c.l.b16 %v709
          %v727 = vunpack.c.h.b16 %v709
          %v728 = vunpack.c.l.b16 %v710
          %v729 = vunpack.c.h.b16 %v710
          %v730 = vunpack.c.l.b16 %v711
          %v731 = vunpack.c.h.b16 %v711
          %v732 = vunpack.c.l.b16 %v712
          %v733 = vunpack.c.h.b16 %v712
          %v734 = vunpack.c.l.b16 %v713
          %v735 = vunpack.c.h.b16 %v713
          %v736 = vunpack.c.l.b16 %v714
          %v737 = vunpack.c.h.b16 %v714
          %v738 = vunpack.c.l.b16 %v715
          %v739 = vunpack.c.h.b16 %v715
          %v740 = vpack.c.b16 %v724, %v724
          %v741 = vpack.c.b16 %v725, %v725
          %v742 = vpack.c.b16 %v726, %v726
          %v743 = vpack.c.b16 %v727, %v727
          %v744 = vpack.c.b16 %v728, %v728
          %v745 = vpack.c.b16 %v729, %v729
          %v746 = vpack.c.b16 %v730, %v730
          %v747 = vpack.c.b16 %v731, %v731
          %v748 = vpack.c.b16 %v732, %v732
          %v749 = vpack.c.b16 %v733, %v733
          %v750 = vpack.c.b16 %v734, %v734
          %v751 = vpack.c.b16 %v735, %v735
          %v752 = vpack.c.b16 %v736, %v736
          %v753 = vpack.c.b16 %v737, %v737
          %v754 = vpack.c.b16 %v738, %v738
          %v755 = vpack.c.b16 %v739, %v739
          %772 = vst [vmem:[%s353] sm:$0xf] %v740
          %773 = vst [vmem:[%s353 + $0x4] sm:$0xf] %v741
          %774 = vst [vmem:[%s353 + $0x8] sm:$0xf] %v742
          %775 = vst [vmem:[%s353 + $0xc] sm:$0xf] %v743
          %776 = vst [vmem:[%s353 + $0x10] sm:$0xf] %v744
          %777 = vst [vmem:[%s353 + $0x14] sm:$0xf] %v745
          %778 = vst [vmem:[%s353 + $0x18] sm:$0xf] %v746
          %779 = vst [vmem:[%s353 + $0x1c] sm:$0xf] %v747
          %780 = vst [vmem:[%s353 + $0x20] sm:$0xf] %v748
          %781 = vst [vmem:[%s353 + $0x24] sm:$0xf] %v749
          %782 = vst [vmem:[%s353 + $0x28] sm:$0xf] %v750
          %783 = vst [vmem:[%s353 + $0x2c] sm:$0xf] %v751
          %784 = vst [vmem:[%s353 + $0x30] sm:$0xf] %v752
          %785 = vst [vmem:[%s353 + $0x34] sm:$0xf] %v753
          %786 = vst [vmem:[%s353 + $0x38] sm:$0xf] %v754
          %787 = vst [vmem:[%s353 + $0x3c] sm:$0xf] %v755
        $region81: #{pcb_test_forward.19} parent=68 // pred_fallthru
          _
        %s788 = smul.u32 16, %s19
        %p789 = scmp.lt.s32.totalorder %s788, 127
        %s790 = scalar_select %p789, %s788, 127
        %p791 = scmp.lt.s32.totalorder %s20, 0
        %s792 = scalar_select %p791, %s20, 0
        %s793 = sadd.s32 %s792, %s790
        %s794 = smul.addr %s793, 4
        %s795 = scalar_lea.vmem %s3, %s794
        // Predicated region
        $region82: #{pcb_test_forward.19} parent=68 // pred_check
          %p796 = pneg %p135
        $region83: #{pcb_test_forward.19} parent=68 // pred_check_branch
          %798 = sbr.rel (%p796) target = $region85
        $region84: #{pcb_test_forward.19} parent=68 // pred_region
          %s799 = smul.u32 16, %s19
        $region85: #{pcb_test_forward.19} parent=68 // pred_fallthru
          _
      $region69: #{pcb_test_forward.19} parent=5 // pred_fallthru
        _
      %p800 = scmp.le.s32.totalorder 2, %s9
      // Predicated region
      $region86: #{pcb_test_forward.19} parent=5 // pred_check
        %p801 = pneg %p800
      $region87: #{pcb_test_forward.19} parent=5 // pred_check_branch
        %803 = sbr.rel (%p801) target = $region89
      $region88: #{pcb_test_forward.19} parent=5 // pred_region
        %s804 = ssub.s32 %s9, 2
        // Predicated region
        $region90: #{pcb_test_forward.19} parent=88 // pred_check
          %p805 = pneg %p141
        $region91: #{pcb_test_forward.19} parent=88 // pred_check_branch
          %807 = sbr.rel (%p805) target = $region93
        $region92: #{pcb_test_forward.19} parent=88 // pred_region
          %s808 = smul.u32 16, %s22
          %p809 = scmp.lt.s32.totalorder %s808, 127
          %s810 = scalar_select %p809, %s808, 127
          %p811 = scmp.lt.s32.totalorder %s23, 0
          %s812 = scalar_select %p811, %s23, 0
          %s813 = sadd.s32 %s812, %s810
          %s814 = smul.addr %s813, 4
          %s815 = scalar_lea.vmem %s3, %s814
        $region93: #{pcb_test_forward.19} parent=88 // pred_fallthru
          _
      $region89: #{pcb_test_forward.19} parent=5 // pred_fallthru
        _
    $region6: #{pcb_test_forward.19} parent=1 // loop_footer
      %s13 = sadd.s32 1, %s9
    $region7: #{pcb_test_forward.19} parent=1 // loop_footer_branch
      %8 = sbr.rel target = $region3
    $region8: #{pcb_test_forward.19} parent=1 // loop_exit
      _

// kernel: pcb_test_forward.22
$region0: #{pcb_test_forward.22}
  #allocation0 [shape = 'u32[]', space=smem, size = 0x4, offset = 0x4, fixed_abs, tag = 'smem constant byte address 0x4 - core index']
  #allocation1 [shape = 'u32[144,128]{1,0:T(1,128)}', space=vmem, size = 0x12000, scoped, tag = 'internal scratch']
  #allocation2 [shape = 'f32[128,128]{1,0:T(8,128)}', space=vmem, size = 0x10000, scoped, tag = 'scratch operand']
  %s0 = inlined_call_operand.vmem [shape: bf16[256,128], index: 0, kind: input, shape index: {}]
  %s1 = inlined_call_operand.vmem [shape: bf16[128,128], index: 1, kind: input, shape index: {}]
  %s2 = inlined_call_operand.vmem [shape: f32[1,128], index: 2, kind: input, shape index: {}]
  %s3 = inlined_call_operand.vmem [shape: bf16[256,128], index: 3, kind: output, shape index: {}]
  %s4 = sld [smem:[#allocation0]]
  $region53: #{pcb_test_forward.22} parent=0
    _
  %s6 = ssub.s32 1, %s4
  %s7 = scalar_select 0, %s6, %s4
  loop: start=0, step=1, limit=4
  $region2: #{pcb_test_forward.22} parent=0 // loop_pre_header
    _
  $region3: #{pcb_test_forward.22} parent=0 // loop_header
    %s9 = sphi 0, %s13
    %p10 = scmp.ge.s32.totalorder %s9, 4
    %s16 = sphi 0, %s35
    %s17 = sphi 0, %s31
    %s18 = sphi 0, %s27
    %s19 = sphi 0, %s16
    %s20 = sphi 0, %s17
    %s21 = sphi 0, %s18
    %s22 = sphi 0, %s19
    %s23 = sphi 0, %s20
    %s24 = sphi 0, %s21
    %s40 = sphi 0, %s42
    %s43 = sphi 0, %s40
    %s44 = sphi 0, %s43
    %s60 = sphi 0, %s44
    %s68 = sphi 0, %s70
    %s71 = sphi 0, %s68
    %s72 = sphi 0, %s71
    %s88 = sphi 0, %s72
    %s94 = sphi 0, %s96
    %s97 = sphi 0, %s94
    %s98 = sphi 0, %s97
    %s114 = sphi 0, %s98
    %s122 = sphi 0, %s124
    %s125 = sphi 0, %s122
    %s126 = sphi 0, %s125
    %s142 = sphi 0, %s126
  $region4: #{pcb_test_forward.22} parent=0 // loop_header_branch
    %12 = sbr.rel (%p10) target = $region8
  $region5: #{pcb_test_forward.22} parent=0 // loop_body
    %s14 = ssub.s32 %s9, 1
    %s15 = ssub.s32 %s9, 2
    %s25 = sadd.s32 1, %s18
    %p26 = scmp.ge.s32.totalorder %s25, 1
    %s27 = scalar_select %p26, 0, %s25
    %s28 = sadd.s32 1, %s17
    %s29 = scalar_select %p26, %s28, %s17
    %p30 = scmp.ge.s32.totalorder %s29, 1
    %s31 = scalar_select %p30, 0, %s29
    %s32 = sadd.s32 1, %s16
    %s33 = scalar_select %p30, %s32, %s16
    %p34 = scmp.ge.s32.totalorder %s33, 2
    %s35 = scalar_select %p34, 0, %s33
    %s36 = ssub.s32 %s16, %s35
    %s37 = ssub.s32 %s18, %s27
    %s38 = sor.u32 %s36, %s37
    %p39 = scmp.eq.s32.totalorder %s38, 0
    %s41 = sadd.s32 %s40, 1
    %s42 = scalar_select %p39, %s40, %s41
    %p45 = pneg %p39
    %p46 = scmp.eq.s32.totalorder %s9, 1
    %p47 = por %p45, %p46
    %p48 = scmp.ne.s32.totalorder %s40, %s43
    %p49 = scmp.eq.s32.totalorder %s9, 0
    %p50 = por %p48, %p49
    %p51 = scmp.ne.s32.totalorder %s40, %s43
    %p52 = scmp.eq.s32.totalorder %s14, 1
    %p53 = por %p51, %p52
    %p54 = scmp.ne.s32.totalorder %s43, %s44
    %p55 = scmp.eq.s32.totalorder %s14, 0
    %p56 = por %p54, %p55
    %p57 = scmp.ne.s32.totalorder %s43, %s44
    %p58 = scmp.eq.s32.totalorder %s15, 1
    %p59 = por %p57, %p58
    %p61 = scmp.ne.s32.totalorder %s44, %s60
    %p62 = scmp.eq.s32.totalorder %s15, 0
    %p63 = por %p61, %p62
    %s64 = ssub.s32 %s18, %s27
    %s65 = ssub.s32 %s17, %s31
    %s66 = sor.u32 %s64, %s65
    %p67 = scmp.eq.s32.totalorder %s66, 0
    %s69 = sadd.s32 %s68, 1
    %s70 = scalar_select %p67, %s68, %s69
    %p73 = pneg %p67
    %p74 = scmp.eq.s32.totalorder %s9, 1
    %p75 = por %p73, %p74
    %p76 = scmp.ne.s32.totalorder %s68, %s71
    %p77 = scmp.eq.s32.totalorder %s9, 0
    %p78 = por %p76, %p77
    %p79 = scmp.ne.s32.totalorder %s68, %s71
    %p80 = scmp.eq.s32.totalorder %s14, 1
    %p81 = por %p79, %p80
    %p82 = scmp.ne.s32.totalorder %s71, %s72
    %p83 = scmp.eq.s32.totalorder %s14, 0
    %p84 = por %p82, %p83
    %p85 = scmp.ne.s32.totalorder %s71, %s72
    %p86 = scmp.eq.s32.totalorder %s15, 1
    %p87 = por %p85, %p86
    %p89 = scmp.ne.s32.totalorder %s72, %s88
    %p90 = scmp.eq.s32.totalorder %s15, 0
    %p91 = por %p89, %p90
    %s92 = ssub.s32 %s17, %s31
    %p93 = scmp.eq.s32.totalorder %s92, 0
    %s95 = sadd.s32 %s94, 1
    %s96 = scalar_select %p93, %s94, %s95
    %p99 = pneg %p93
    %p100 = scmp.eq.s32.totalorder %s9, 1
    %p101 = por %p99, %p100
    %p102 = scmp.ne.s32.totalorder %s94, %s97
    %p103 = scmp.eq.s32.totalorder %s9, 0
    %p104 = por %p102, %p103
    %p105 = scmp.ne.s32.totalorder %s94, %s97
    %p106 = scmp.eq.s32.totalorder %s14, 1
    %p107 = por %p105, %p106
    %p108 = scmp.ne.s32.totalorder %s97, %s98
    %p109 = scmp.eq.s32.totalorder %s14, 0
    %p110 = por %p108, %p109
    %p111 = scmp.ne.s32.totalorder %s97, %s98
    %p112 = scmp.eq.s32.totalorder %s15, 1
    %p113 = por %p111, %p112
    %p115 = scmp.ne.s32.totalorder %s98, %s114
    %p116 = scmp.eq.s32.totalorder %s15, 0
    %p117 = por %p115, %p116
    %s118 = ssub.s32 %s16, %s35
    %s119 = ssub.s32 %s17, %s31
    %s120 = sor.u32 %s118, %s119
    %p121 = scmp.eq.s32.totalorder %s120, 0
    %s123 = sadd.s32 %s122, 1
    %s124 = scalar_select %p121, %s122, %s123
    %p127 = pneg %p121
    %p128 = scmp.eq.s32.totalorder %s9, 1
    %p129 = por %p127, %p128
    %p130 = scmp.ne.s32.totalorder %s122, %s125
    %p131 = scmp.eq.s32.totalorder %s9, 0
    %p132 = por %p130, %p131
    %p133 = scmp.ne.s32.totalorder %s122, %s125
    %p134 = scmp.eq.s32.totalorder %s14, 1
    %p135 = por %p133, %p134
    %p136 = scmp.ne.s32.totalorder %s125, %s126
    %p137 = scmp.eq.s32.totalorder %s14, 0
    %p138 = por %p136, %p137
    %p139 = scmp.ne.s32.totalorder %s125, %s126
    %p140 = scmp.eq.s32.totalorder %s15, 1
    %p141 = por %p139, %p140
    %p143 = scmp.ne.s32.totalorder %s126, %s142
    %p144 = scmp.eq.s32.totalorder %s15, 0
    %p145 = por %p143, %p144
    %p146 = scmp.le.s32.totalorder 1, %s9
    %p147 = scmp.lt.s32.totalorder %s9, 3
    %p148 = pnand %p146, %p147
    %p149 = pneg %p148
    // Predicated region
    $region9: #{pcb_test_forward.22} parent=5 // pred_check
      _
    $region10: #{pcb_test_forward.22} parent=5 // pred_check_branch
      %151 = sbr.rel (%p148) target = $region12
    $region11: #{pcb_test_forward.22} parent=5 // pred_region
      %s152 = ssub.s32 %s9, 1
      // Predicated region
      $region13: #{pcb_test_forward.22} parent=11 // pred_check
        %p153 = pneg %p84
      $region14: #{pcb_test_forward.22} parent=11 // pred_check_branch
        %155 = sbr.rel (%p153) target = $region16
      $region15: #{pcb_test_forward.22} parent=11 // pred_region
        %s156 = smul.u32 16, %s21
        %p157 = scmp.lt.s32.totalorder %s156, 15
        %s158 = scalar_select %p157, %s156, 15
        %p159 = scmp.lt.s32.totalorder %s20, 0
        %s160 = scalar_select %p159, %s20, 0
        %s161 = sadd.s32 %s160, %s158
        %s162 = smul.addr %s161, 4
        %s163 = scalar_lea.vmem %s1, %s162
        %s164 = smul.u32 16, %s21
      $region16: #{pcb_test_forward.22} parent=11 // pred_fallthru
        _
      // Predicated region
      $region17: #{pcb_test_forward.22} parent=11 // pred_check
        %p165 = pneg %p110
      $region18: #{pcb_test_forward.22} parent=11 // pred_check_branch
        %167 = sbr.rel (%p165) target = $region20
      $region19: #{pcb_test_forward.22} parent=11 // pred_region
        %p168 = scmp.lt.s32.totalorder %s20, 0
        %s169 = scalar_select %p168, %s20, 0
        %s170 = scalar_lea.vmem %s2, %s169
      $region20: #{pcb_test_forward.22} parent=11 // pred_fallthru
        _
    $region12: #{pcb_test_forward.22} parent=5 // pred_fallthru
      _
    %p171 = scmp.lt.s32.totalorder %s9, 2
    // Predicated region
    $region21: #{pcb_test_forward.22} parent=5 // pred_check
      %p172 = pneg %p171
    $region22: #{pcb_test_forward.22} parent=5 // pred_check_branch
      %174 = sbr.rel (%p172) target = $region24
    $region23: #{pcb_test_forward.22} parent=5 // pred_region
      // Predicated region
      $region25: #{pcb_test_forward.22} parent=23 // pred_check
        %p175 = pneg %p50
      $region26: #{pcb_test_forward.22} parent=23 // pred_check_branch
        %177 = sbr.rel (%p175) target = $region28
      $region27: #{pcb_test_forward.22} parent=23 // pred_region
        %s178 = smul.u32 16, %s16
        %p179 = scmp.lt.s32.totalorder %s178, 31
        %s180 = scalar_select %p179, %s178, 31
        %p181 = scmp.lt.s32.totalorder %s18, 0
        %s182 = scalar_select %p181, %s18, 0
        %s183 = sadd.s32 %s182, %s180
        %s184 = smul.addr %s183, 4
        %s185 = scalar_lea.vmem %s0, %s184
        %s186 = smul.u32 16, %s16
      $region28: #{pcb_test_forward.22} parent=23 // pred_fallthru
        _
    $region24: #{pcb_test_forward.22} parent=5 // pred_fallthru
      _
    %p187 = scmp.le.s32.totalorder 1, %s9
    %p188 = scmp.lt.s32.totalorder %s9, 3
    %p189 = pnand %p187, %p188
    %p190 = pneg %p189
    // Predicated region
    $region29: #{pcb_test_forward.22} parent=5 // pred_check
      _
    $region30: #{pcb_test_forward.22} parent=5 // pred_check_branch
      %192 = sbr.rel (%p189) target = $region32
    $region31: #{pcb_test_forward.22} parent=5 // pred_region
      %s193 = ssub.s32 %s9, 1
      %s194 = smul.u32 16, %s19
      %p195 = scmp.lt.s32.totalorder %s194, 31
      %s196 = scalar_select %p195, %s194, 31
      %p197 = scmp.lt.s32.totalorder %s21, 0
      %s198 = scalar_select %p197, %s21, 0
      %s199 = sadd.s32 %s198, %s196
      %s200 = smul.addr %s199, 4
      %s201 = scalar_lea.vmem %s0, %s200
      %p202 = pneg %p56
      %p203 = pneg %p53
      %s204 = smul.u32 16, %s21
      %p205 = scmp.lt.s32.totalorder %s204, 15
      %s206 = scalar_select %p205, %s204, 15
      %p207 = scmp.lt.s32.totalorder %s20, 0
      %s208 = scalar_select %p207, %s20, 0
      %s209 = sadd.s32 %s208, %s206
      %s210 = smul.addr %s209, 4
      %s211 = scalar_lea.vmem %s1, %s210
      %p212 = pneg %p84
      %p213 = pneg %p81
      %p214 = scmp.lt.s32.totalorder %s20, 0
      %s215 = scalar_select %p214, %s20, 0
      %s216 = scalar_lea.vmem %s2, %s215
      %p217 = pneg %p110
      %p218 = pneg %p107
      %p219 = pneg %p138
      %p220 = pneg %p135
      %s221 = smul.u32 16, %s19
      %p222 = scmp.lt.s32.totalorder %s221, 31
      %s223 = scalar_select %p222, %s221, 31
      %p224 = scmp.lt.s32.totalorder %s20, 0
      %s225 = scalar_select %p224, %s20, 0
      %s226 = sadd.s32 %s225, %s223
      %s227 = smul.addr %s226, 4
      %s228 = scalar_lea.vmem %s3, %s227
      %s229 = smul.u32 16, %s19
      %p230 = scmp.lt.s32.totalorder %s229, 31
      %s231 = scalar_select %p230, %s229, 31
      %p232 = scmp.lt.s32.totalorder %s21, 0
      %s233 = scalar_select %p232, %s21, 0
      %s234 = sadd.s32 %s233, %s231
      %s235 = smul.addr %s234, 4
      %s236 = scalar_lea.vmem %s0, %s235
      %s237 = smul.u32 16, %s19
      %s238 = smul.u32 16, %s21
      %p239 = scmp.lt.s32.totalorder %s238, 15
      %s240 = scalar_select %p239, %s238, 15
      %p241 = scmp.lt.s32.totalorder %s20, 0
      %s242 = scalar_select %p241, %s20, 0
      %s243 = sadd.s32 %s242, %s240
      %s244 = smul.addr %s243, 4
      %s245 = scalar_lea.vmem %s1, %s244
      %s246 = smul.u32 16, %s21
      %p247 = scmp.lt.s32.totalorder %s20, 0
      %s248 = scalar_select %p247, %s20, 0
      %s249 = scalar_lea.vmem %s2, %s248
      %s250 = smul.u32 16, %s19
      %p251 = scmp.lt.s32.totalorder %s250, 31
      %s252 = scalar_select %p251, %s250, 31
      %p253 = scmp.lt.s32.totalorder %s20, 0
      %s254 = scalar_select %p253, %s20, 0
      %s255 = sadd.s32 %s254, %s252
      %s256 = smul.addr %s255, 4
      %s257 = scalar_lea.vmem %s3, %s256
      %s258 = smul.u32 16, %s19
      %p260 = scmp.eq.s32.totalorder %s21, 0
      // Predicated region
      $region33: #{pcb_test_forward.22} parent=31 // pred_check
        %p261 = pneg %p260
      $region34: #{pcb_test_forward.22} parent=31 // pred_check_branch
        %263 = sbr.rel (%p261) target = $region36
      $region35: #{pcb_test_forward.22} parent=31 // pred_region
        %264 = vst [vmem:[#allocation2] sm:$0xff] 0.0
        %265 = vst [vmem:[#allocation2 + $0x8] sm:$0xff] 0.0
        %266 = vst [vmem:[#allocation2 + $0x10] sm:$0xff] 0.0
        %267 = vst [vmem:[#allocation2 + $0x18] sm:$0xff] 0.0
        %268 = vst [vmem:[#allocation2 + $0x20] sm:$0xff] 0.0
        %269 = vst [vmem:[#allocation2 + $0x28] sm:$0xff] 0.0
        %270 = vst [vmem:[#allocation2 + $0x30] sm:$0xff] 0.0
        %271 = vst [vmem:[#allocation2 + $0x38] sm:$0xff] 0.0
        %272 = vst [vmem:[#allocation2 + $0x40] sm:$0xff] 0.0
        %273 = vst [vmem:[#allocation2 + $0x48] sm:$0xff] 0.0
        %274 = vst [vmem:[#allocation2 + $0x50] sm:$0xff] 0.0
        %275 = vst [vmem:[#allocation2 + $0x58] sm:$0xff] 0.0
        %276 = vst [vmem:[#allocation2 + $0x60] sm:$0xff] 0.0
        %277 = vst [vmem:[#allocation2 + $0x68] sm:$0xff] 0.0
        %278 = vst [vmem:[#allocation2 + $0x70] sm:$0xff] 0.0
        %279 = vst [vmem:[#allocation2 + $0x78] sm:$0xff] 0.0
      $region36: #{pcb_test_forward.22} parent=31 // pred_fallthru
        _
      %v280 = vld [vmem:[#allocation2] sm:$0xff]
      %v281 = vld [vmem:[#allocation2 + $0x8] sm:$0xff]
      %v282 = vld [vmem:[#allocation2 + $0x10] sm:$0xff]
      %v283 = vld [vmem:[#allocation2 + $0x18] sm:$0xff]
      %v284 = vld [vmem:[#allocation2 + $0x20] sm:$0xff]
      %v285 = vld [vmem:[#allocation2 + $0x28] sm:$0xff]
      %v286 = vld [vmem:[#allocation2 + $0x30] sm:$0xff]
      %v287 = vld [vmem:[#allocation2 + $0x38] sm:$0xff]
      %v288 = vld [vmem:[#allocation2 + $0x40] sm:$0xff]
      %v289 = vld [vmem:[#allocation2 + $0x48] sm:$0xff]
      %v290 = vld [vmem:[#allocation2 + $0x50] sm:$0xff]
      %v291 = vld [vmem:[#allocation2 + $0x58] sm:$0xff]
      %v292 = vld [vmem:[#allocation2 + $0x60] sm:$0xff]
      %v293 = vld [vmem:[#allocation2 + $0x68] sm:$0xff]
      %v294 = vld [vmem:[#allocation2 + $0x70] sm:$0xff]
      %v295 = vld [vmem:[#allocation2 + $0x78] sm:$0xff]
      %v296 = vld [vmem:[%s236] sm:$0xf]
      %v297 = vld [vmem:[%s236 + $0x4] sm:$0xf]
      %v298 = vld [vmem:[%s236 + $0x8] sm:$0xf]
      %v299 = vld [vmem:[%s236 + $0xc] sm:$0xf]
      %v300 = vld [vmem:[%s236 + $0x10] sm:$0xf]
      %v301 = vld [vmem:[%s236 + $0x14] sm:$0xf]
      %v302 = vld [vmem:[%s236 + $0x18] sm:$0xf]
      %v303 = vld [vmem:[%s236 + $0x1c] sm:$0xf]
      %v304 = vld [vmem:[%s236 + $0x20] sm:$0xf]
      %v305 = vld [vmem:[%s236 + $0x24] sm:$0xf]
      %v306 = vld [vmem:[%s236 + $0x28] sm:$0xf]
      %v307 = vld [vmem:[%s236 + $0x2c] sm:$0xf]
      %v308 = vld [vmem:[%s236 + $0x30] sm:$0xf]
      %v309 = vld [vmem:[%s236 + $0x34] sm:$0xf]
      %v310 = vld [vmem:[%s236 + $0x38] sm:$0xf]
      %v311 = vld [vmem:[%s236 + $0x3c] sm:$0xf]
      %v312 = vld [vmem:[%s245] sm:$0xf]
      %v313 = vld [vmem:[%s245 + $0x4] sm:$0xf]
      %v314 = vld [vmem:[%s245 + $0x8] sm:$0xf]
      %v315 = vld [vmem:[%s245 + $0xc] sm:$0xf]
      %v316 = vld [vmem:[%s245 + $0x10] sm:$0xf]
      %v317 = vld [vmem:[%s245 + $0x14] sm:$0xf]
      %v318 = vld [vmem:[%s245 + $0x18] sm:$0xf]
      %v319 = vld [vmem:[%s245 + $0x1c] sm:$0xf]
      %v320 = vld [vmem:[%s245 + $0x20] sm:$0xf]
      %v321 = vld [vmem:[%s245 + $0x24] sm:$0xf]
      %v322 = vld [vmem:[%s245 + $0x28] sm:$0xf]
      %v323 = vld [vmem:[%s245 + $0x2c] sm:$0xf]
      %v324 = vld [vmem:[%s245 + $0x30] sm:$0xf]
      %v325 = vld [vmem:[%s245 + $0x34] sm:$0xf]
      %v326 = vld [vmem:[%s245 + $0x38] sm:$0xf]
      %v327 = vld [vmem:[%s245 + $0x3c] sm:$0xf]
      %v344 = vunpack.c.l.b16 %v296
      %v345 = vunpack.c.l.b16 %v297
      %v346 = vunpack.c.l.b16 %v298
      %v347 = vunpack.c.l.b16 %v299
      %v348 = vunpack.c.l.b16 %v300
      %v349 = vunpack.c.l.b16 %v301
      %v350 = vunpack.c.l.b16 %v302
      %v351 = vunpack.c.l.b16 %v303
      %v352 = vunpack.c.l.b16 %v304
      %v353 = vunpack.c.l.b16 %v305
      %v354 = vunpack.c.l.b16 %v306
      %v355 = vunpack.c.l.b16 %v307
      %v356 = vunpack.c.l.b16 %v308
      %v357 = vunpack.c.l.b16 %v309
      %v358 = vunpack.c.l.b16 %v310
      %v359 = vunpack.c.l.b16 %v311
      %v360 = vpack.c.b16 %v345, %v344
      %v361 = vpack.c.b16 %v347, %v346
      %v362 = vpack.c.b16 %v349, %v348
      %v363 = vpack.c.b16 %v351, %v350
      %v364 = vpack.c.b16 %v353, %v352
      %v365 = vpack.c.b16 %v355, %v354
      %v366 = vpack.c.b16 %v357, %v356
      %v367 = vpack.c.b16 %v359, %v358
      %v392 = vunpack.c.l.b16 %v312
      %v393 = vunpack.c.l.b16 %v313
      %v394 = vunpack.c.l.b16 %v314
      %v395 = vunpack.c.l.b16 %v315
      %v396 = vunpack.c.l.b16 %v316
      %v397 = vunpack.c.l.b16 %v317
      %v398 = vunpack.c.l.b16 %v318
      %v399 = vunpack.c.l.b16 %v319
      %v400 = vunpack.c.l.b16 %v320
      %v401 = vunpack.c.l.b16 %v321
      %v402 = vunpack.c.l.b16 %v322
      %v403 = vunpack.c.l.b16 %v323
      %v404 = vunpack.c.l.b16 %v324
      %v405 = vunpack.c.l.b16 %v325
      %v406 = vunpack.c.l.b16 %v326
      %v407 = vunpack.c.l.b16 %v327
      %v408 = vpack.c.b16 %v393, %v392
      %v409 = vpack.c.b16 %v395, %v394
      %v410 = vpack.c.b16 %v397, %v396
      %v411 = vpack.c.b16 %v399, %v398
      %v412 = vpack.c.b16 %v401, %v400
      %v413 = vpack.c.b16 %v403, %v402
      %v414 = vpack.c.b16 %v405, %v404
      %v415 = vpack.c.b16 %v407, %v406
      %424 = vmatprep.subr.bf16.mxu0 0
      %425 = vmatpush1.bf16.msra.mxu0 %v415
      %426 = vmatprep.subr.bf16.mxu0 0
      %427 = vmatpush1.bf16.msra.mxu0 %v414
      %428 = vmatprep.subr.bf16.mxu0 0
      %429 = vmatpush1.bf16.msra.mxu0 %v413
      %430 = vmatprep.subr.bf16.mxu0 0
      %431 = vmatpush1.bf16.msra.mxu0 %v412
      %432 = vmatprep.subr.bf16.mxu0 0
      %433 = vmatpush1.bf16.msra.mxu0 %v411
      %434 = vmatprep.subr.bf16.mxu0 0
      %435 = vmatpush1.bf16.msra.mxu0 %v410
      %436 = vmatprep.subr.bf16.mxu0 0
      %437 = vmatpush1.bf16.msra.mxu0 %v409
      %438 = vmatprep.subr.bf16.mxu0 0
      %439 = vmatpush1.bf16.msra.mxu0 %v408
      %440 = vmatprep.subr.bf16.mxu0 0
      %441 = vmatpush2.bf16.msra.mxu0 0
      %442 = vmatprep.subr.bf16.mxu0 0
      %443 = vmatpush2.bf16.msra.mxu0 0
      %444 = vmatprep.subr.bf16.mxu0 0
      %445 = vmatpush2.bf16.msra.mxu0 0
      %446 = vmatprep.subr.bf16.mxu0 0
      %447 = vmatpush2.bf16.msra.mxu0 0
      %448 = vmatprep.subr.bf16.mxu0 0
      %449 = vmatpush2.bf16.msra.mxu0 0
      %450 = vmatprep.subr.bf16.mxu0 0
      %451 = vmatpush2.bf16.msra.mxu0 0
      %452 = vmatprep.subr.bf16.mxu0 0
      %453 = vmatpush2.bf16.msra.mxu0 0
      %454 = vmatprep.subr.bf16.mxu0 0
      %455 = vmatpush2.bf16.msra.mxu0 0
      %456 = vmatprep.mubr.bf16.mxu0 0
      %457 = vmatmul.mubr.bf16.gmra.mxu0 %v360
      %v458 = vpop.f32.mrf.mxu0
      %v459 = vadd.f32 0.0, %v458
      %v460 = vpop.f32.mrf.mxu0
      %v461 = vpop.f32.mrf.mxu0
      %v462 = vadd.f32 0.0, %v461
      %v463 = vpop.f32.mrf.mxu0
      %464 = vmatprep.mubr.bf16.mxu0 0
      %465 = vmatmul.mubr.bf16.gmra.mxu0 %v361
      %v466 = vpop.f32.mrf.mxu0
      %v467 = vadd.f32 0.0, %v466
      %v468 = vpop.f32.mrf.mxu0
      %v469 = vpop.f32.mrf.mxu0
      %v470 = vadd.f32 0.0, %v469
      %v471 = vpop.f32.mrf.mxu0
      %472 = vmatprep.mubr.bf16.mxu0 0
      %473 = vmatmul.mubr.bf16.gmra.mxu0 %v362
      %v474 = vpop.f32.mrf.mxu0
      %v475 = vadd.f32 0.0, %v474
      %v476 = vpop.f32.mrf.mxu0
      %v477 = vpop.f32.mrf.mxu0
      %v478 = vadd.f32 0.0, %v477
      %v479 = vpop.f32.mrf.mxu0
      %480 = vmatprep.mubr.bf16.mxu0 0
      %481 = vmatmul.mubr.bf16.gmra.mxu0 %v363
      %v482 = vpop.f32.mrf.mxu0
      %v483 = vadd.f32 0.0, %v482
      %v484 = vpop.f32.mrf.mxu0
      %v485 = vpop.f32.mrf.mxu0
      %v486 = vadd.f32 0.0, %v485
      %v487 = vpop.f32.mrf.mxu0
      %488 = vmatprep.mubr.bf16.mxu0 0
      %489 = vmatmul.mubr.bf16.gmra.mxu0 %v364
      %v490 = vpop.f32.mrf.mxu0
      %v491 = vadd.f32 0.0, %v490
      %v492 = vpop.f32.mrf.mxu0
      %v493 = vpop.f32.mrf.mxu0
      %v494 = vadd.f32 0.0, %v493
      %v495 = vpop.f32.mrf.mxu0
      %496 = vmatprep.mubr.bf16.mxu0 0
      %497 = vmatmul.mubr.bf16.gmra.mxu0 %v365
      %v498 = vpop.f32.mrf.mxu0
      %v499 = vadd.f32 0.0, %v498
      %v500 = vpop.f32.mrf.mxu0
      %v501 = vpop.f32.mrf.mxu0
      %v502 = vadd.f32 0.0, %v501
      %v503 = vpop.f32.mrf.mxu0
      %504 = vmatprep.mubr.bf16.mxu0 0
      %505 = vmatmul.mubr.bf16.gmra.mxu0 %v366
      %v506 = vpop.f32.mrf.mxu0
      %v507 = vadd.f32 0.0, %v506
      %v508 = vpop.f32.mrf.mxu0
      %v509 = vpop.f32.mrf.mxu0
      %v510 = vadd.f32 0.0, %v509
      %v511 = vpop.f32.mrf.mxu0
      %512 = vmatprep.mubr.bf16.mxu0 0
      %513 = vmatmul.mubr.bf16.gmra.mxu0 %v367
      %v514 = vpop.f32.mrf.mxu0
      %v515 = vadd.f32 0.0, %v514
      %v516 = vpop.f32.mrf.mxu0
      %v517 = vpop.f32.mrf.mxu0
      %v518 = vadd.f32 0.0, %v517
      %v519 = vpop.f32.mrf.mxu0
      %520 = vdwg.mxu0
      %v521 = vadd.f32 %v280, %v459
      %v522 = vadd.f32 %v281, %v462
      %v523 = vadd.f32 %v282, %v467
      %v524 = vadd.f32 %v283, %v470
      %v525 = vadd.f32 %v284, %v475
      %v526 = vadd.f32 %v285, %v478
      %v527 = vadd.f32 %v286, %v483
      %v528 = vadd.f32 %v287, %v486
      %v529 = vadd.f32 %v288, %v491
      %v530 = vadd.f32 %v289, %v494
      %v531 = vadd.f32 %v290, %v499
      %v532 = vadd.f32 %v291, %v502
      %v533 = vadd.f32 %v292, %v507
      %v534 = vadd.f32 %v293, %v510
      %v535 = vadd.f32 %v294, %v515
      %v536 = vadd.f32 %v295, %v518
      %537 = vst [vmem:[#allocation2] sm:$0xff] %v521
      %538 = vst [vmem:[#allocation2 + $0x8] sm:$0xff] %v522
      %539 = vst [vmem:[#allocation2 + $0x10] sm:$0xff] %v523
      %540 = vst [vmem:[#allocation2 + $0x18] sm:$0xff] %v524
      %541 = vst [vmem:[#allocation2 + $0x20] sm:$0xff] %v525
      %542 = vst [vmem:[#allocation2 + $0x28] sm:$0xff] %v526
      %543 = vst [vmem:[#allocation2 + $0x30] sm:$0xff] %v527
      %544 = vst [vmem:[#allocation2 + $0x38] sm:$0xff] %v528
      %545 = vst [vmem:[#allocation2 + $0x40] sm:$0xff] %v529
      %546 = vst [vmem:[#allocation2 + $0x48] sm:$0xff] %v530
      %547 = vst [vmem:[#allocation2 + $0x50] sm:$0xff] %v531
      %548 = vst [vmem:[#allocation2 + $0x58] sm:$0xff] %v532
      %549 = vst [vmem:[#allocation2 + $0x60] sm:$0xff] %v533
      %550 = vst [vmem:[#allocation2 + $0x68] sm:$0xff] %v534
      %551 = vst [vmem:[#allocation2 + $0x70] sm:$0xff] %v535
      %552 = vst [vmem:[#allocation2 + $0x78] sm:$0xff] %v536
      // Predicated region
      $region37: #{pcb_test_forward.22} parent=31 // pred_check
        %p553 = pneg %p260
      $region38: #{pcb_test_forward.22} parent=31 // pred_check_branch
        %555 = sbr.rel (%p553) target = $region40
      $region39: #{pcb_test_forward.22} parent=31 // pred_region
        %v556 = vld [vmem:[#allocation2] sm:$0xff]
        %v557 = vld [vmem:[#allocation2 + $0x8] sm:$0xff]
        %v558 = vld [vmem:[#allocation2 + $0x10] sm:$0xff]
        %v559 = vld [vmem:[#allocation2 + $0x18] sm:$0xff]
        %v560 = vld [vmem:[#allocation2 + $0x20] sm:$0xff]
        %v561 = vld [vmem:[#allocation2 + $0x28] sm:$0xff]
        %v562 = vld [vmem:[#allocation2 + $0x30] sm:$0xff]
        %v563 = vld [vmem:[#allocation2 + $0x38] sm:$0xff]
        %v564 = vld [vmem:[#allocation2 + $0x40] sm:$0xff]
        %v565 = vld [vmem:[#allocation2 + $0x48] sm:$0xff]
        %v566 = vld [vmem:[#allocation2 + $0x50] sm:$0xff]
        %v567 = vld [vmem:[#allocation2 + $0x58] sm:$0xff]
        %v568 = vld [vmem:[#allocation2 + $0x60] sm:$0xff]
        %v569 = vld [vmem:[#allocation2 + $0x68] sm:$0xff]
        %v570 = vld [vmem:[#allocation2 + $0x70] sm:$0xff]
        %v571 = vld [vmem:[#allocation2 + $0x78] sm:$0xff]
        %v572 = vld [vmem:[%s249] sm:$0x1]
        %v574 = vlaneseq
        %v575 = vshrl.u32 %v574, 7
        %v576 = vsub.s32 0, %v575
        %v577 = vrot.slane %v572, %v576
        %v579 = vadd.f32 %v556, %v577
        %v580 = vadd.f32 %v557, %v577
        %v581 = vadd.f32 %v558, %v577
        %v582 = vadd.f32 %v559, %v577
        %v583 = vadd.f32 %v560, %v577
        %v584 = vadd.f32 %v561, %v577
        %v585 = vadd.f32 %v562, %v577
        %v586 = vadd.f32 %v563, %v577
        %v587 = vadd.f32 %v564, %v577
        %v588 = vadd.f32 %v565, %v577
        %v589 = vadd.f32 %v566, %v577
        %v590 = vadd.f32 %v567, %v577
        %v591 = vadd.f32 %v568, %v577
        %v592 = vadd.f32 %v569, %v577
        %v593 = vadd.f32 %v570, %v577
        %v594 = vadd.f32 %v571, %v577
        %v595 = vmax.f32 %v579, 0.0
        %v596 = vmax.f32 %v580, 0.0
        %v597 = vmax.f32 %v581, 0.0
        %v598 = vmax.f32 %v582, 0.0
        %v599 = vmax.f32 %v583, 0.0
        %v600 = vmax.f32 %v584, 0.0
        %v601 = vmax.f32 %v585, 0.0
        %v602 = vmax.f32 %v586, 0.0
        %v603 = vmax.f32 %v587, 0.0
        %v604 = vmax.f32 %v588, 0.0
        %v605 = vmax.f32 %v589, 0.0
        %v606 = vmax.f32 %v590, 0.0
        %v607 = vmax.f32 %v591, 0.0
        %v608 = vmax.f32 %v592, 0.0
        %v609 = vmax.f32 %v593, 0.0
        %v610 = vmax.f32 %v594, 0.0
        %v611 = vpack.c.bf16 %v596, %v595
        %v612 = vpack.c.bf16 %v598, %v597
        %v613 = vpack.c.bf16 %v600, %v599
        %v614 = vpack.c.bf16 %v602, %v601
        %v615 = vpack.c.bf16 %v604, %v603
        %v616 = vpack.c.bf16 %v606, %v605
        %v617 = vpack.c.bf16 %v608, %v607
        %v618 = vpack.c.bf16 %v610, %v609
        %v627 = vunpack.c.l.b16 %v611
        %v628 = vunpack.c.h.b16 %v611
        %v629 = vunpack.c.l.b16 %v612
        %v630 = vunpack.c.h.b16 %v612
        %v631 = vunpack.c.l.b16 %v613
        %v632 = vunpack.c.h.b16 %v613
        %v633 = vunpack.c.l.b16 %v614
        %v634 = vunpack.c.h.b16 %v614
        %v635 = vunpack.c.l.b16 %v615
        %v636 = vunpack.c.h.b16 %v615
        %v637 = vunpack.c.l.b16 %v616
        %v638 = vunpack.c.h.b16 %v616
        %v639 = vunpack.c.l.b16 %v617
        %v640 = vunpack.c.h.b16 %v617
        %v641 = vunpack.c.l.b16 %v618
        %v642 = vunpack.c.h.b16 %v618
        %v643 = vpack.c.b16 %v627, %v627
        %v644 = vpack.c.b16 %v628, %v628
        %v645 = vpack.c.b16 %v629, %v629
        %v646 = vpack.c.b16 %v630, %v630
        %v647 = vpack.c.b16 %v631, %v631
        %v648 = vpack.c.b16 %v632, %v632
        %v649 = vpack.c.b16 %v633, %v633
        %v650 = vpack.c.b16 %v634, %v634
        %v651 = vpack.c.b16 %v635, %v635
        %v652 = vpack.c.b16 %v636, %v636
        %v653 = vpack.c.b16 %v637, %v637
        %v654 = vpack.c.b16 %v638, %v638
        %v655 = vpack.c.b16 %v639, %v639
        %v656 = vpack.c.b16 %v640, %v640
        %v657 = vpack.c.b16 %v641, %v641
        %v658 = vpack.c.b16 %v642, %v642
        %675 = vst [vmem:[%s257] sm:$0xf] %v643
        %676 = vst [vmem:[%s257 + $0x4] sm:$0xf] %v644
        %677 = vst [vmem:[%s257 + $0x8] sm:$0xf] %v645
        %678 = vst [vmem:[%s257 + $0xc] sm:$0xf] %v646
        %679 = vst [vmem:[%s257 + $0x10] sm:$0xf] %v647
        %680 = vst [vmem:[%s257 + $0x14] sm:$0xf] %v648
        %681 = vst [vmem:[%s257 + $0x18] sm:$0xf] %v649
        %682 = vst [vmem:[%s257 + $0x1c] sm:$0xf] %v650
        %683 = vst [vmem:[%s257 + $0x20] sm:$0xf] %v651
        %684 = vst [vmem:[%s257 + $0x24] sm:$0xf] %v652
        %685 = vst [vmem:[%s257 + $0x28] sm:$0xf] %v653
        %686 = vst [vmem:[%s257 + $0x2c] sm:$0xf] %v654
        %687 = vst [vmem:[%s257 + $0x30] sm:$0xf] %v655
        %688 = vst [vmem:[%s257 + $0x34] sm:$0xf] %v656
        %689 = vst [vmem:[%s257 + $0x38] sm:$0xf] %v657
        %690 = vst [vmem:[%s257 + $0x3c] sm:$0xf] %v658
      $region40: #{pcb_test_forward.22} parent=31 // pred_fallthru
        _
      %s691 = smul.u32 16, %s19
      %p692 = scmp.lt.s32.totalorder %s691, 31
      %s693 = scalar_select %p692, %s691, 31
      %p694 = scmp.lt.s32.totalorder %s20, 0
      %s695 = scalar_select %p694, %s20, 0
      %s696 = sadd.s32 %s695, %s693
      %s697 = smul.addr %s696, 4
      %s698 = scalar_lea.vmem %s3, %s697
      // Predicated region
      $region41: #{pcb_test_forward.22} parent=31 // pred_check
        %p699 = pneg %p135
      $region42: #{pcb_test_forward.22} parent=31 // pred_check_branch
        %701 = sbr.rel (%p699) target = $region44
      $region43: #{pcb_test_forward.22} parent=31 // pred_region
        %s702 = smul.u32 16, %s19
      $region44: #{pcb_test_forward.22} parent=31 // pred_fallthru
        _
    $region32: #{pcb_test_forward.22} parent=5 // pred_fallthru
      _
    %p703 = scmp.le.s32.totalorder 2, %s9
    // Predicated region
    $region45: #{pcb_test_forward.22} parent=5 // pred_check
      %p704 = pneg %p703
    $region46: #{pcb_test_forward.22} parent=5 // pred_check_branch
      %706 = sbr.rel (%p704) target = $region48
    $region47: #{pcb_test_forward.22} parent=5 // pred_region
      %s707 = ssub.s32 %s9, 2
      // Predicated region
      $region49: #{pcb_test_forward.22} parent=47 // pred_check
        %p708 = pneg %p141
      $region50: #{pcb_test_forward.22} parent=47 // pred_check_branch
        %710 = sbr.rel (%p708) target = $region52
      $region51: #{pcb_test_forward.22} parent=47 // pred_region
        %s711 = smul.u32 16, %s22
        %p712 = scmp.lt.s32.totalorder %s711, 31
        %s713 = scalar_select %p712, %s711, 31
        %p714 = scmp.lt.s32.totalorder %s23, 0
        %s715 = scalar_select %p714, %s23, 0
        %s716 = sadd.s32 %s715, %s713
        %s717 = smul.addr %s716, 4
        %s718 = scalar_lea.vmem %s3, %s717
      $region52: #{pcb_test_forward.22} parent=47 // pred_fallthru
        _
    $region48: #{pcb_test_forward.22} parent=5 // pred_fallthru
      _
  $region6: #{pcb_test_forward.22} parent=0 // loop_footer
    %s13 = sadd.s32 1, %s9
  $region7: #{pcb_test_forward.22} parent=0 // loop_footer_branch
    %8 = sbr.rel target = $region3
  $region8: #{pcb_test_forward.22} parent=0 // loop_exit
    _

// kernel: pcb_test_forward.20
$region0: #{pcb_test_forward.20}
  #allocation0 [shape = 'u32[]', space=smem, size = 0x4, offset = 0x4, fixed_abs, tag = 'smem constant byte address 0x4 - core index']
  #allocation1 [shape = 'u32[144,128]{1,0:T(1,128)}', space=vmem, size = 0x12000, scoped, tag = 'internal scratch']
  %s0 = inlined_call_operand.vmem [shape: bf16[256,128], index: 0, kind: input, shape index: {}]
  %s1 = inlined_call_operand.vmem [shape: bf16[256,128], index: 1, kind: input, shape index: {}]
  %s2 = inlined_call_operand.vmem [shape: bf16[256,128], index: 2, kind: input, shape index: {}]
  %s3 = inlined_call_operand.vmem [shape: bf16[256,128], index: 3, kind: input, shape index: {}]
  %s4 = inlined_call_operand.vmem [shape: bf16[256,128], index: 4, kind: input, shape index: {}]
  %s5 = inlined_call_operand.vmem [shape: bf16[256,128], index: 5, kind: input, shape index: {}]
  %s6 = inlined_call_operand.vmem [shape: bf16[256,128], index: 6, kind: input, shape index: {}]
  %s7 = inlined_call_operand.vmem [shape: bf16[256,128], index: 7, kind: input, shape index: {}]
  %s8 = inlined_call_operand.vmem [shape: bf16[256,128], index: 8, kind: input, shape index: {}]
  %s9 = inlined_call_operand.vmem [shape: bf16[256,128], index: 9, kind: output, shape index: {}]
  %s10 = sld [smem:[#allocation0]]
  $region69: #{pcb_test_forward.20} parent=0
    _
  %s12 = ssub.s32 1, %s10
  %s13 = scalar_select 0, %s12, %s10
  loop: start=0, step=1, limit=4
  $region2: #{pcb_test_forward.20} parent=0 // loop_pre_header
    _
  $region3: #{pcb_test_forward.20} parent=0 // loop_header
    %s15 = sphi 0, %s19
    %p16 = scmp.ge.s32.totalorder %s15, 4
    %s25 = sphi 0, %s27
    %s28 = sphi 0, %s25
    %s29 = sphi 0, %s28
    %s45 = sphi 0, %s29
    %s51 = sphi 0, %s53
    %s54 = sphi 0, %s51
    %s55 = sphi 0, %s54
    %s71 = sphi 0, %s55
    %s77 = sphi 0, %s79
    %s80 = sphi 0, %s77
    %s81 = sphi 0, %s80
    %s97 = sphi 0, %s81
    %s103 = sphi 0, %s105
    %s106 = sphi 0, %s103
    %s107 = sphi 0, %s106
    %s123 = sphi 0, %s107
    %s129 = sphi 0, %s131
    %s132 = sphi 0, %s129
    %s133 = sphi 0, %s132
    %s149 = sphi 0, %s133
    %s155 = sphi 0, %s157
    %s158 = sphi 0, %s155
    %s159 = sphi 0, %s158
    %s175 = sphi 0, %s159
    %s181 = sphi 0, %s183
    %s184 = sphi 0, %s181
    %s185 = sphi 0, %s184
    %s201 = sphi 0, %s185
    %s207 = sphi 0, %s209
    %s210 = sphi 0, %s207
    %s211 = sphi 0, %s210
    %s227 = sphi 0, %s211
    %s233 = sphi 0, %s235
    %s236 = sphi 0, %s233
    %s237 = sphi 0, %s236
    %s253 = sphi 0, %s237
    %s259 = sphi 0, %s261
    %s262 = sphi 0, %s259
    %s263 = sphi 0, %s262
    %s279 = sphi 0, %s263
  $region4: #{pcb_test_forward.20} parent=0 // loop_header_branch
    %18 = sbr.rel (%p16) target = $region8
  $region5: #{pcb_test_forward.20} parent=0 // loop_body
    %s20 = ssub.s32 %s15, 1
    %s21 = ssub.s32 %s15, 2
    %s22 = sadd.s32 %s15, 1
    %s23 = ssub.s32 %s15, %s22
    %p24 = scmp.eq.s32.totalorder %s23, 0
    %s26 = sadd.s32 %s25, 1
    %s27 = scalar_select %p24, %s25, %s26
    %p30 = pneg %p24
    %p31 = scmp.eq.s32.totalorder %s15, 1
    %p32 = por %p30, %p31
    %p33 = scmp.ne.s32.totalorder %s25, %s28
    %p34 = scmp.eq.s32.totalorder %s15, 0
    %p35 = por %p33, %p34
    %p36 = scmp.ne.s32.totalorder %s25, %s28
    %p37 = scmp.eq.s32.totalorder %s20, 1
    %p38 = por %p36, %p37
    %p39 = scmp.ne.s32.totalorder %s28, %s29
    %p40 = scmp.eq.s32.totalorder %s20, 0
    %p41 = por %p39, %p40
    %p42 = scmp.ne.s32.totalorder %s28, %s29
    %p43 = scmp.eq.s32.totalorder %s21, 1
    %p44 = por %p42, %p43
    %p46 = scmp.ne.s32.totalorder %s29, %s45
    %p47 = scmp.eq.s32.totalorder %s21, 0
    %p48 = por %p46, %p47
    %s49 = ssub.s32 %s15, %s22
    %p50 = scmp.eq.s32.totalorder %s49, 0
    %s52 = sadd.s32 %s51, 1
    %s53 = scalar_select %p50, %s51, %s52
    %p56 = pneg %p50
    %p57 = scmp.eq.s32.totalorder %s15, 1
    %p58 = por %p56, %p57
    %p59 = scmp.ne.s32.totalorder %s51, %s54
    %p60 = scmp.eq.s32.totalorder %s15, 0
    %p61 = por %p59, %p60
    %p62 = scmp.ne.s32.totalorder %s51, %s54
    %p63 = scmp.eq.s32.totalorder %s20, 1
    %p64 = por %p62, %p63
    %p65 = scmp.ne.s32.totalorder %s54, %s55
    %p66 = scmp.eq.s32.totalorder %s20, 0
    %p67 = por %p65, %p66
    %p68 = scmp.ne.s32.totalorder %s54, %s55
    %p69 = scmp.eq.s32.totalorder %s21, 1
    %p70 = por %p68, %p69
    %p72 = scmp.ne.s32.totalorder %s55, %s71
    %p73 = scmp.eq.s32.totalorder %s21, 0
    %p74 = por %p72, %p73
    %s75 = ssub.s32 %s15, %s22
    %p76 = scmp.eq.s32.totalorder %s75, 0
    %s78 = sadd.s32 %s77, 1
    %s79 = scalar_select %p76, %s77, %s78
    %p82 = pneg %p76
    %p83 = scmp.eq.s32.totalorder %s15, 1
    %p84 = por %p82, %p83
    %p85 = scmp.ne.s32.totalorder %s77, %s80
    %p86 = scmp.eq.s32.totalorder %s15, 0
    %p87 = por %p85, %p86
    %p88 = scmp.ne.s32.totalorder %s77, %s80
    %p89 = scmp.eq.s32.totalorder %s20, 1
    %p90 = por %p88, %p89
    %p91 = scmp.ne.s32.totalorder %s80, %s81
    %p92 = scmp.eq.s32.totalorder %s20, 0
    %p93 = por %p91, %p92
    %p94 = scmp.ne.s32.totalorder %s80, %s81
    %p95 = scmp.eq.s32.totalorder %s21, 1
    %p96 = por %p94, %p95
    %p98 = scmp.ne.s32.totalorder %s81, %s97
    %p99 = scmp.eq.s32.totalorder %s21, 0
    %p100 = por %p98, %p99
    %s101 = ssub.s32 %s15, %s22
    %p102 = scmp.eq.s32.totalorder %s101, 0
    %s104 = sadd.s32 %s103, 1
    %s105 = scalar_select %p102, %s103, %s104
    %p108 = pneg %p102
    %p109 = scmp.eq.s32.totalorder %s15, 1
    %p110 = por %p108, %p109
    %p111 = scmp.ne.s32.totalorder %s103, %s106
    %p112 = scmp.eq.s32.totalorder %s15, 0
    %p113 = por %p111, %p112
    %p114 = scmp.ne.s32.totalorder %s103, %s106
    %p115 = scmp.eq.s32.totalorder %s20, 1
    %p116 = por %p114, %p115
    %p117 = scmp.ne.s32.totalorder %s106, %s107
    %p118 = scmp.eq.s32.totalorder %s20, 0
    %p119 = por %p117, %p118
    %p120 = scmp.ne.s32.totalorder %s106, %s107
    %p121 = scmp.eq.s32.totalorder %s21, 1
    %p122 = por %p120, %p121
    %p124 = scmp.ne.s32.totalorder %s107, %s123
    %p125 = scmp.eq.s32.totalorder %s21, 0
    %p126 = por %p124, %p125
    %s127 = ssub.s32 %s15, %s22
    %p128 = scmp.eq.s32.totalorder %s127, 0
    %s130 = sadd.s32 %s129, 1
    %s131 = scalar_select %p128, %s129, %s130
    %p134 = pneg %p128
    %p135 = scmp.eq.s32.totalorder %s15, 1
    %p136 = por %p134, %p135
    %p137 = scmp.ne.s32.totalorder %s129, %s132
    %p138 = scmp.eq.s32.totalorder %s15, 0
    %p139 = por %p137, %p138
    %p140 = scmp.ne.s32.totalorder %s129, %s132
    %p141 = scmp.eq.s32.totalorder %s20, 1
    %p142 = por %p140, %p141
    %p143 = scmp.ne.s32.totalorder %s132, %s133
    %p144 = scmp.eq.s32.totalorder %s20, 0
    %p145 = por %p143, %p144
    %p146 = scmp.ne.s32.totalorder %s132, %s133
    %p147 = scmp.eq.s32.totalorder %s21, 1
    %p148 = por %p146, %p147
    %p150 = scmp.ne.s32.totalorder %s133, %s149
    %p151 = scmp.eq.s32.totalorder %s21, 0
    %p152 = por %p150, %p151
    %s153 = ssub.s32 %s15, %s22
    %p154 = scmp.eq.s32.totalorder %s153, 0
    %s156 = sadd.s32 %s155, 1
    %s157 = scalar_select %p154, %s155, %s156
    %p160 = pneg %p154
    %p161 = scmp.eq.s32.totalorder %s15, 1
    %p162 = por %p160, %p161
    %p163 = scmp.ne.s32.totalorder %s155, %s158
    %p164 = scmp.eq.s32.totalorder %s15, 0
    %p165 = por %p163, %p164
    %p166 = scmp.ne.s32.totalorder %s155, %s158
    %p167 = scmp.eq.s32.totalorder %s20, 1
    %p168 = por %p166, %p167
    %p169 = scmp.ne.s32.totalorder %s158, %s159
    %p170 = scmp.eq.s32.totalorder %s20, 0
    %p171 = por %p169, %p170
    %p172 = scmp.ne.s32.totalorder %s158, %s159
    %p173 = scmp.eq.s32.totalorder %s21, 1
    %p174 = por %p172, %p173
    %p176 = scmp.ne.s32.totalorder %s159, %s175
    %p177 = scmp.eq.s32.totalorder %s21, 0
    %p178 = por %p176, %p177
    %s179 = ssub.s32 %s15, %s22
    %p180 = scmp.eq.s32.totalorder %s179, 0
    %s182 = sadd.s32 %s181, 1
    %s183 = scalar_select %p180, %s181, %s182
    %p186 = pneg %p180
    %p187 = scmp.eq.s32.totalorder %s15, 1
    %p188 = por %p186, %p187
    %p189 = scmp.ne.s32.totalorder %s181, %s184
    %p190 = scmp.eq.s32.totalorder %s15, 0
    %p191 = por %p189, %p190
    %p192 = scmp.ne.s32.totalorder %s181, %s184
    %p193 = scmp.eq.s32.totalorder %s20, 1
    %p194 = por %p192, %p193
    %p195 = scmp.ne.s32.totalorder %s184, %s185
    %p196 = scmp.eq.s32.totalorder %s20, 0
    %p197 = por %p195, %p196
    %p198 = scmp.ne.s32.totalorder %s184, %s185
    %p199 = scmp.eq.s32.totalorder %s21, 1
    %p200 = por %p198, %p199
    %p202 = scmp.ne.s32.totalorder %s185, %s201
    %p203 = scmp.eq.s32.totalorder %s21, 0
    %p204 = por %p202, %p203
    %s205 = ssub.s32 %s15, %s22
    %p206 = scmp.eq.s32.totalorder %s205, 0
    %s208 = sadd.s32 %s207, 1
    %s209 = scalar_select %p206, %s207, %s208
    %p212 = pneg %p206
    %p213 = scmp.eq.s32.totalorder %s15, 1
    %p214 = por %p212, %p213
    %p215 = scmp.ne.s32.totalorder %s207, %s210
    %p216 = scmp.eq.s32.totalorder %s15, 0
    %p217 = por %p215, %p216
    %p218 = scmp.ne.s32.totalorder %s207, %s210
    %p219 = scmp.eq.s32.totalorder %s20, 1
    %p220 = por %p218, %p219
    %p221 = scmp.ne.s32.totalorder %s210, %s211
    %p222 = scmp.eq.s32.totalorder %s20, 0
    %p223 = por %p221, %p222
    %p224 = scmp.ne.s32.totalorder %s210, %s211
    %p225 = scmp.eq.s32.totalorder %s21, 1
    %p226 = por %p224, %p225
    %p228 = scmp.ne.s32.totalorder %s211, %s227
    %p229 = scmp.eq.s32.totalorder %s21, 0
    %p230 = por %p228, %p229
    %s231 = ssub.s32 %s15, %s22
    %p232 = scmp.eq.s32.totalorder %s231, 0
    %s234 = sadd.s32 %s233, 1
    %s235 = scalar_select %p232, %s233, %s234
    %p238 = pneg %p232
    %p239 = scmp.eq.s32.totalorder %s15, 1
    %p240 = por %p238, %p239
    %p241 = scmp.ne.s32.totalorder %s233, %s236
    %p242 = scmp.eq.s32.totalorder %s15, 0
    %p243 = por %p241, %p242
    %p244 = scmp.ne.s32.totalorder %s233, %s236
    %p245 = scmp.eq.s32.totalorder %s20, 1
    %p246 = por %p244, %p245
    %p247 = scmp.ne.s32.totalorder %s236, %s237
    %p248 = scmp.eq.s32.totalorder %s20, 0
    %p249 = por %p247, %p248
    %p250 = scmp.ne.s32.totalorder %s236, %s237
    %p251 = scmp.eq.s32.totalorder %s21, 1
    %p252 = por %p250, %p251
    %p254 = scmp.ne.s32.totalorder %s237, %s253
    %p255 = scmp.eq.s32.totalorder %s21, 0
    %p256 = por %p254, %p255
    %s257 = ssub.s32 %s15, %s22
    %p258 = scmp.eq.s32.totalorder %s257, 0
    %s260 = sadd.s32 %s259, 1
    %s261 = scalar_select %p258, %s259, %s260
    %p264 = pneg %p258
    %p265 = scmp.eq.s32.totalorder %s15, 1
    %p266 = por %p264, %p265
    %p267 = scmp.ne.s32.totalorder %s259, %s262
    %p268 = scmp.eq.s32.totalorder %s15, 0
    %p269 = por %p267, %p268
    %p270 = scmp.ne.s32.totalorder %s259, %s262
    %p271 = scmp.eq.s32.totalorder %s20, 1
    %p272 = por %p270, %p271
    %p273 = scmp.ne.s32.totalorder %s262, %s263
    %p274 = scmp.eq.s32.totalorder %s20, 0
    %p275 = por %p273, %p274
    %p276 = scmp.ne.s32.totalorder %s262, %s263
    %p277 = scmp.eq.s32.totalorder %s21, 1
    %p278 = por %p276, %p277
    %p280 = scmp.ne.s32.totalorder %s263, %s279
    %p281 = scmp.eq.s32.totalorder %s21, 0
    %p282 = por %p280, %p281
    %p283 = scmp.le.s32.totalorder 1, %s15
    %p284 = scmp.lt.s32.totalorder %s15, 3
    %p285 = pnand %p283, %p284
    %p286 = pneg %p285
    // Predicated region
    $region9: #{pcb_test_forward.20} parent=5 // pred_check
      _
    $region10: #{pcb_test_forward.20} parent=5 // pred_check_branch
      %288 = sbr.rel (%p285) target = $region12
    $region11: #{pcb_test_forward.20} parent=5 // pred_region
      %s289 = ssub.s32 %s15, 1
    $region12: #{pcb_test_forward.20} parent=5 // pred_fallthru
      _
    %p290 = scmp.lt.s32.totalorder %s15, 2
    // Predicated region
    $region13: #{pcb_test_forward.20} parent=5 // pred_check
      %p291 = pneg %p290
    $region14: #{pcb_test_forward.20} parent=5 // pred_check_branch
      %293 = sbr.rel (%p291) target = $region16
    $region15: #{pcb_test_forward.20} parent=5 // pred_region
      // Predicated region
      $region17: #{pcb_test_forward.20} parent=15 // pred_check
        %p294 = pneg %p35
      $region18: #{pcb_test_forward.20} parent=15 // pred_check_branch
        %296 = sbr.rel (%p294) target = $region20
      $region19: #{pcb_test_forward.20} parent=15 // pred_region
        %s297 = smul.u32 16, %s15
        %p298 = scmp.lt.s32.totalorder %s297, 31
        %s299 = scalar_select %p298, %s297, 31
        %s300 = smul.addr %s299, 4
        %s301 = scalar_lea.vmem %s0, %s300
        %s302 = smul.u32 16, %s15
      $region20: #{pcb_test_forward.20} parent=15 // pred_fallthru
        _
      // Predicated region
      $region21: #{pcb_test_forward.20} parent=15 // pred_check
        %p303 = pneg %p61
      $region22: #{pcb_test_forward.20} parent=15 // pred_check_branch
        %305 = sbr.rel (%p303) target = $region24
      $region23: #{pcb_test_forward.20} parent=15 // pred_region
        %s306 = smul.u32 16, %s15
        %p307 = scmp.lt.s32.totalorder %s306, 31
        %s308 = scalar_select %p307, %s306, 31
        %s309 = smul.addr %s308, 4
        %s310 = scalar_lea.vmem %s1, %s309
        %s311 = smul.u32 16, %s15
      $region24: #{pcb_test_forward.20} parent=15 // pred_fallthru
        _
      // Predicated region
      $region25: #{pcb_test_forward.20} parent=15 // pred_check
        %p312 = pneg %p87
      $region26: #{pcb_test_forward.20} parent=15 // pred_check_branch
        %314 = sbr.rel (%p312) target = $region28
      $region27: #{pcb_test_forward.20} parent=15 // pred_region
        %s315 = smul.u32 16, %s15
        %p316 = scmp.lt.s32.totalorder %s315, 31
        %s317 = scalar_select %p316, %s315, 31
        %s318 = smul.addr %s317, 4
        %s319 = scalar_lea.vmem %s2, %s318
        %s320 = smul.u32 16, %s15
      $region28: #{pcb_test_forward.20} parent=15 // pred_fallthru
        _
      // Predicated region
      $region29: #{pcb_test_forward.20} parent=15 // pred_check
        %p321 = pneg %p113
      $region30: #{pcb_test_forward.20} parent=15 // pred_check_branch
        %323 = sbr.rel (%p321) target = $region32
      $region31: #{pcb_test_forward.20} parent=15 // pred_region
        %s324 = smul.u32 16, %s15
        %p325 = scmp.lt.s32.totalorder %s324, 31
        %s326 = scalar_select %p325, %s324, 31
        %s327 = smul.addr %s326, 4
        %s328 = scalar_lea.vmem %s3, %s327
        %s329 = smul.u32 16, %s15
      $region32: #{pcb_test_forward.20} parent=15 // pred_fallthru
        _
      // Predicated region
      $region33: #{pcb_test_forward.20} parent=15 // pred_check
        %p330 = pneg %p139
      $region34: #{pcb_test_forward.20} parent=15 // pred_check_branch
        %332 = sbr.rel (%p330) target = $region36
      $region35: #{pcb_test_forward.20} parent=15 // pred_region
        %s333 = smul.u32 16, %s15
        %p334 = scmp.lt.s32.totalorder %s333, 31
        %s335 = scalar_select %p334, %s333, 31
        %s336 = smul.addr %s335, 4
        %s337 = scalar_lea.vmem %s4, %s336
        %s338 = smul.u32 16, %s15
      $region36: #{pcb_test_forward.20} parent=15 // pred_fallthru
        _
      // Predicated region
      $region37: #{pcb_test_forward.20} parent=15 // pred_check
        %p339 = pneg %p165
      $region38: #{pcb_test_forward.20} parent=15 // pred_check_branch
        %341 = sbr.rel (%p339) target = $region40
      $region39: #{pcb_test_forward.20} parent=15 // pred_region
        %s342 = smul.u32 16, %s15
        %p343 = scmp.lt.s32.totalorder %s342, 31
        %s344 = scalar_select %p343, %s342, 31
        %s345 = smul.addr %s344, 4
        %s346 = scalar_lea.vmem %s5, %s345
        %s347 = smul.u32 16, %s15
      $region40: #{pcb_test_forward.20} parent=15 // pred_fallthru
        _
      // Predicated region
      $region41: #{pcb_test_forward.20} parent=15 // pred_check
        %p348 = pneg %p191
      $region42: #{pcb_test_forward.20} parent=15 // pred_check_branch
        %350 = sbr.rel (%p348) target = $region44
      $region43: #{pcb_test_forward.20} parent=15 // pred_region
        %s351 = smul.u32 16, %s15
        %p352 = scmp.lt.s32.totalorder %s351, 31
        %s353 = scalar_select %p352, %s351, 31
        %s354 = smul.addr %s353, 4
        %s355 = scalar_lea.vmem %s6, %s354
        %s356 = smul.u32 16, %s15
      $region44: #{pcb_test_forward.20} parent=15 // pred_fallthru
        _
      // Predicated region
      $region45: #{pcb_test_forward.20} parent=15 // pred_check
        %p357 = pneg %p217
      $region46: #{pcb_test_forward.20} parent=15 // pred_check_branch
        %359 = sbr.rel (%p357) target = $region48
      $region47: #{pcb_test_forward.20} parent=15 // pred_region
        %s360 = smul.u32 16, %s15
        %p361 = scmp.lt.s32.totalorder %s360, 31
        %s362 = scalar_select %p361, %s360, 31
        %s363 = smul.addr %s362, 4
        %s364 = scalar_lea.vmem %s7, %s363
        %s365 = smul.u32 16, %s15
      $region48: #{pcb_test_forward.20} parent=15 // pred_fallthru
        _
      // Predicated region
      $region49: #{pcb_test_forward.20} parent=15 // pred_check
        %p366 = pneg %p243
      $region50: #{pcb_test_forward.20} parent=15 // pred_check_branch
        %368 = sbr.rel (%p366) target = $region52
      $region51: #{pcb_test_forward.20} parent=15 // pred_region
        %s369 = smul.u32 16, %s15
        %p370 = scmp.lt.s32.totalorder %s369, 31
        %s371 = scalar_select %p370, %s369, 31
        %s372 = smul.addr %s371, 4
        %s373 = scalar_lea.vmem %s8, %s372
        %s374 = smul.u32 16, %s15
      $region52: #{pcb_test_forward.20} parent=15 // pred_fallthru
        _
    $region16: #{pcb_test_forward.20} parent=5 // pred_fallthru
      _
    %p375 = scmp.le.s32.totalorder 1, %s15
    %p376 = scmp.lt.s32.totalorder %s15, 3
    %p377 = pnand %p375, %p376
    %p378 = pneg %p377
    // Predicated region
    $region53: #{pcb_test_forward.20} parent=5 // pred_check
      _
    $region54: #{pcb_test_forward.20} parent=5 // pred_check_branch
      %380 = sbr.rel (%p377) target = $region56
    $region55: #{pcb_test_forward.20} parent=5 // pred_region
      %s381 = ssub.s32 %s15, 1
      %s382 = smul.u32 16, %s20
      %p383 = scmp.lt.s32.totalorder %s382, 31
      %s384 = scalar_select %p383, %s382, 31
      %s385 = smul.addr %s384, 4
      %s386 = scalar_lea.vmem %s0, %s385
      %p387 = pneg %p41
      %p388 = pneg %p38
      %s389 = smul.u32 16, %s20
      %p390 = scmp.lt.s32.totalorder %s389, 31
      %s391 = scalar_select %p390, %s389, 31
      %s392 = smul.addr %s391, 4
      %s393 = scalar_lea.vmem %s1, %s392
      %p394 = pneg %p67
      %p395 = pneg %p64
      %s396 = smul.u32 16, %s20
      %p397 = scmp.lt.s32.totalorder %s396, 31
      %s398 = scalar_select %p397, %s396, 31
      %s399 = smul.addr %s398, 4
      %s400 = scalar_lea.vmem %s2, %s399
      %p401 = pneg %p93
      %p402 = pneg %p90
      %s403 = smul.u32 16, %s20
      %p404 = scmp.lt.s32.totalorder %s403, 31
      %s405 = scalar_select %p404, %s403, 31
      %s406 = smul.addr %s405, 4
      %s407 = scalar_lea.vmem %s3, %s406
      %p408 = pneg %p119
      %p409 = pneg %p116
      %s410 = smul.u32 16, %s20
      %p411 = scmp.lt.s32.totalorder %s410, 31
      %s412 = scalar_select %p411, %s410, 31
      %s413 = smul.addr %s412, 4
      %s414 = scalar_lea.vmem %s4, %s413
      %p415 = pneg %p145
      %p416 = pneg %p142
      %s417 = smul.u32 16, %s20
      %p418 = scmp.lt.s32.totalorder %s417, 31
      %s419 = scalar_select %p418, %s417, 31
      %s420 = smul.addr %s419, 4
      %s421 = scalar_lea.vmem %s5, %s420
      %p422 = pneg %p171
      %p423 = pneg %p168
      %s424 = smul.u32 16, %s20
      %p425 = scmp.lt.s32.totalorder %s424, 31
      %s426 = scalar_select %p425, %s424, 31
      %s427 = smul.addr %s426, 4
      %s428 = scalar_lea.vmem %s6, %s427
      %p429 = pneg %p197
      %p430 = pneg %p194
      %s431 = smul.u32 16, %s20
      %p432 = scmp.lt.s32.totalorder %s431, 31
      %s433 = scalar_select %p432, %s431, 31
      %s434 = smul.addr %s433, 4
      %s435 = scalar_lea.vmem %s7, %s434
      %p436 = pneg %p223
      %p437 = pneg %p220
      %s438 = smul.u32 16, %s20
      %p439 = scmp.lt.s32.totalorder %s438, 31
      %s440 = scalar_select %p439, %s438, 31
      %s441 = smul.addr %s440, 4
      %s442 = scalar_lea.vmem %s8, %s441
      %p443 = pneg %p249
      %p444 = pneg %p246
      %p445 = pneg %p275
      %p446 = pneg %p272
      %s447 = smul.u32 16, %s20
      %p448 = scmp.lt.s32.totalorder %s447, 31
      %s449 = scalar_select %p448, %s447, 31
      %s450 = smul.addr %s449, 4
      %s451 = scalar_lea.vmem %s9, %s450
      %s452 = smul.u32 16, %s20
      %p453 = scmp.lt.s32.totalorder %s452, 31
      %s454 = scalar_select %p453, %s452, 31
      %s455 = smul.addr %s454, 4
      %s456 = scalar_lea.vmem %s0, %s455
      %s457 = smul.u32 16, %s20
      %s458 = smul.u32 16, %s20
      %p459 = scmp.lt.s32.totalorder %s458, 31
      %s460 = scalar_select %p459, %s458, 31
      %s461 = smul.addr %s460, 4
      %s462 = scalar_lea.vmem %s1, %s461
      %s463 = smul.u32 16, %s20
      %s464 = smul.u32 16, %s20
      %p465 = scmp.lt.s32.totalorder %s464, 31
      %s466 = scalar_select %p465, %s464, 31
      %s467 = smul.addr %s466, 4
      %s468 = scalar_lea.vmem %s2, %s467
      %s469 = smul.u32 16, %s20
      %s470 = smul.u32 16, %s20
      %p471 = scmp.lt.s32.totalorder %s470, 31
      %s472 = scalar_select %p471, %s470, 31
      %s473 = smul.addr %s472, 4
      %s474 = scalar_lea.vmem %s3, %s473
      %s475 = smul.u32 16, %s20
      %s476 = smul.u32 16, %s20
      %p477 = scmp.lt.s32.totalorder %s476, 31
      %s478 = scalar_select %p477, %s476, 31
      %s479 = smul.addr %s478, 4
      %s480 = scalar_lea.vmem %s4, %s479
      %s481 = smul.u32 16, %s20
      %s482 = smul.u32 16, %s20
      %p483 = scmp.lt.s32.totalorder %s482, 31
      %s484 = scalar_select %p483, %s482, 31
      %s485 = smul.addr %s484, 4
      %s486 = scalar_lea.vmem %s5, %s485
      %s487 = smul.u32 16, %s20
      %s488 = smul.u32 16, %s20
      %p489 = scmp.lt.s32.totalorder %s488, 31
      %s490 = scalar_select %p489, %s488, 31
      %s491 = smul.addr %s490, 4
      %s492 = scalar_lea.vmem %s6, %s491
      %s493 = smul.u32 16, %s20
      %s494 = smul.u32 16, %s20
      %p495 = scmp.lt.s32.totalorder %s494, 31
      %s496 = scalar_select %p495, %s494, 31
      %s497 = smul.addr %s496, 4
      %s498 = scalar_lea.vmem %s7, %s497
      %s499 = smul.u32 16, %s20
      %s500 = smul.u32 16, %s20
      %p501 = scmp.lt.s32.totalorder %s500, 31
      %s502 = scalar_select %p501, %s500, 31
      %s503 = smul.addr %s502, 4
      %s504 = scalar_lea.vmem %s8, %s503
      %s505 = smul.u32 16, %s20
      %s506 = smul.u32 16, %s20
      %p507 = scmp.lt.s32.totalorder %s506, 31
      %s508 = scalar_select %p507, %s506, 31
      %s509 = smul.addr %s508, 4
      %s510 = scalar_lea.vmem %s9, %s509
      %s511 = smul.u32 16, %s20
      %v512 = vld [vmem:[%s456] sm:$0xf]
      %v513 = vld [vmem:[%s456 + $0x4] sm:$0xf]
      %v514 = vld [vmem:[%s456 + $0x8] sm:$0xf]
      %v515 = vld [vmem:[%s456 + $0xc] sm:$0xf]
      %v516 = vld [vmem:[%s456 + $0x10] sm:$0xf]
      %v517 = vld [vmem:[%s456 + $0x14] sm:$0xf]
      %v518 = vld [vmem:[%s456 + $0x18] sm:$0xf]
      %v519 = vld [vmem:[%s456 + $0x1c] sm:$0xf]
      %v520 = vld [vmem:[%s456 + $0x20] sm:$0xf]
      %v521 = vld [vmem:[%s456 + $0x24] sm:$0xf]
      %v522 = vld [vmem:[%s456 + $0x28] sm:$0xf]
      %v523 = vld [vmem:[%s456 + $0x2c] sm:$0xf]
      %v524 = vld [vmem:[%s456 + $0x30] sm:$0xf]
      %v525 = vld [vmem:[%s456 + $0x34] sm:$0xf]
      %v526 = vld [vmem:[%s456 + $0x38] sm:$0xf]
      %v527 = vld [vmem:[%s456 + $0x3c] sm:$0xf]
      %v528 = vld [vmem:[%s462] sm:$0xf]
      %v529 = vld [vmem:[%s462 + $0x4] sm:$0xf]
      %v530 = vld [vmem:[%s462 + $0x8] sm:$0xf]
      %v531 = vld [vmem:[%s462 + $0xc] sm:$0xf]
      %v532 = vld [vmem:[%s462 + $0x10] sm:$0xf]
      %v533 = vld [vmem:[%s462 + $0x14] sm:$0xf]
      %v534 = vld [vmem:[%s462 + $0x18] sm:$0xf]
      %v535 = vld [vmem:[%s462 + $0x1c] sm:$0xf]
      %v536 = vld [vmem:[%s462 + $0x20] sm:$0xf]
      %v537 = vld [vmem:[%s462 + $0x24] sm:$0xf]
      %v538 = vld [vmem:[%s462 + $0x28] sm:$0xf]
      %v539 = vld [vmem:[%s462 + $0x2c] sm:$0xf]
      %v540 = vld [vmem:[%s462 + $0x30] sm:$0xf]
      %v541 = vld [vmem:[%s462 + $0x34] sm:$0xf]
      %v542 = vld [vmem:[%s462 + $0x38] sm:$0xf]
      %v543 = vld [vmem:[%s462 + $0x3c] sm:$0xf]
      %v544 = vmax.bf16 %v512, %v528
      %v545 = vmax.bf16 %v513, %v529
      %v546 = vmax.bf16 %v514, %v530
      %v547 = vmax.bf16 %v515, %v531
      %v548 = vmax.bf16 %v516, %v532
      %v549 = vmax.bf16 %v517, %v533
      %v550 = vmax.bf16 %v518, %v534
      %v551 = vmax.bf16 %v519, %v535
      %v552 = vmax.bf16 %v520, %v536
      %v553 = vmax.bf16 %v521, %v537
      %v554 = vmax.bf16 %v522, %v538
      %v555 = vmax.bf16 %v523, %v539
      %v556 = vmax.bf16 %v524, %v540
      %v557 = vmax.bf16 %v525, %v541
      %v558 = vmax.bf16 %v526, %v542
      %v559 = vmax.bf16 %v527, %v543
      %v560 = vld [vmem:[%s468] sm:$0xf]
      %v561 = vld [vmem:[%s468 + $0x4] sm:$0xf]
      %v562 = vld [vmem:[%s468 + $0x8] sm:$0xf]
      %v563 = vld [vmem:[%s468 + $0xc] sm:$0xf]
      %v564 = vld [vmem:[%s468 + $0x10] sm:$0xf]
      %v565 = vld [vmem:[%s468 + $0x14] sm:$0xf]
      %v566 = vld [vmem:[%s468 + $0x18] sm:$0xf]
      %v567 = vld [vmem:[%s468 + $0x1c] sm:$0xf]
      %v568 = vld [vmem:[%s468 + $0x20] sm:$0xf]
      %v569 = vld [vmem:[%s468 + $0x24] sm:$0xf]
      %v570 = vld [vmem:[%s468 + $0x28] sm:$0xf]
      %v571 = vld [vmem:[%s468 + $0x2c] sm:$0xf]
      %v572 = vld [vmem:[%s468 + $0x30] sm:$0xf]
      %v573 = vld [vmem:[%s468 + $0x34] sm:$0xf]
      %v574 = vld [vmem:[%s468 + $0x38] sm:$0xf]
      %v575 = vld [vmem:[%s468 + $0x3c] sm:$0xf]
      %v576 = vmax.bf16 %v544, %v560
      %v577 = vmax.bf16 %v545, %v561
      %v578 = vmax.bf16 %v546, %v562
      %v579 = vmax.bf16 %v547, %v563
      %v580 = vmax.bf16 %v548, %v564
      %v581 = vmax.bf16 %v549, %v565
      %v582 = vmax.bf16 %v550, %v566
      %v583 = vmax.bf16 %v551, %v567
      %v584 = vmax.bf16 %v552, %v568
      %v585 = vmax.bf16 %v553, %v569
      %v586 = vmax.bf16 %v554, %v570
      %v587 = vmax.bf16 %v555, %v571
      %v588 = vmax.bf16 %v556, %v572
      %v589 = vmax.bf16 %v557, %v573
      %v590 = vmax.bf16 %v558, %v574
      %v591 = vmax.bf16 %v559, %v575
      %v592 = vld [vmem:[%s474] sm:$0xf]
      %v593 = vld [vmem:[%s474 + $0x4] sm:$0xf]
      %v594 = vld [vmem:[%s474 + $0x8] sm:$0xf]
      %v595 = vld [vmem:[%s474 + $0xc] sm:$0xf]
      %v596 = vld [vmem:[%s474 + $0x10] sm:$0xf]
      %v597 = vld [vmem:[%s474 + $0x14] sm:$0xf]
      %v598 = vld [vmem:[%s474 + $0x18] sm:$0xf]
      %v599 = vld [vmem:[%s474 + $0x1c] sm:$0xf]
      %v600 = vld [vmem:[%s474 + $0x20] sm:$0xf]
      %v601 = vld [vmem:[%s474 + $0x24] sm:$0xf]
      %v602 = vld [vmem:[%s474 + $0x28] sm:$0xf]
      %v603 = vld [vmem:[%s474 + $0x2c] sm:$0xf]
      %v604 = vld [vmem:[%s474 + $0x30] sm:$0xf]
      %v605 = vld [vmem:[%s474 + $0x34] sm:$0xf]
      %v606 = vld [vmem:[%s474 + $0x38] sm:$0xf]
      %v607 = vld [vmem:[%s474 + $0x3c] sm:$0xf]
      %v608 = vmax.bf16 %v576, %v592
      %v609 = vmax.bf16 %v577, %v593
      %v610 = vmax.bf16 %v578, %v594
      %v611 = vmax.bf16 %v579, %v595
      %v612 = vmax.bf16 %v580, %v596
      %v613 = vmax.bf16 %v581, %v597
      %v614 = vmax.bf16 %v582, %v598
      %v615 = vmax.bf16 %v583, %v599
      %v616 = vmax.bf16 %v584, %v600
      %v617 = vmax.bf16 %v585, %v601
      %v618 = vmax.bf16 %v586, %v602
      %v619 = vmax.bf16 %v587, %v603
      %v620 = vmax.bf16 %v588, %v604
      %v621 = vmax.bf16 %v589, %v605
      %v622 = vmax.bf16 %v590, %v606
      %v623 = vmax.bf16 %v591, %v607
      %v624 = vld [vmem:[%s480] sm:$0xf]
      %v625 = vld [vmem:[%s480 + $0x4] sm:$0xf]
      %v626 = vld [vmem:[%s480 + $0x8] sm:$0xf]
      %v627 = vld [vmem:[%s480 + $0xc] sm:$0xf]
      %v628 = vld [vmem:[%s480 + $0x10] sm:$0xf]
      %v629 = vld [vmem:[%s480 + $0x14] sm:$0xf]
      %v630 = vld [vmem:[%s480 + $0x18] sm:$0xf]
      %v631 = vld [vmem:[%s480 + $0x1c] sm:$0xf]
      %v632 = vld [vmem:[%s480 + $0x20] sm:$0xf]
      %v633 = vld [vmem:[%s480 + $0x24] sm:$0xf]
      %v634 = vld [vmem:[%s480 + $0x28] sm:$0xf]
      %v635 = vld [vmem:[%s480 + $0x2c] sm:$0xf]
      %v636 = vld [vmem:[%s480 + $0x30] sm:$0xf]
      %v637 = vld [vmem:[%s480 + $0x34] sm:$0xf]
      %v638 = vld [vmem:[%s480 + $0x38] sm:$0xf]
      %v639 = vld [vmem:[%s480 + $0x3c] sm:$0xf]
      %v640 = vmax.bf16 %v608, %v624
      %v641 = vmax.bf16 %v609, %v625
      %v642 = vmax.bf16 %v610, %v626
      %v643 = vmax.bf16 %v611, %v627
      %v644 = vmax.bf16 %v612, %v628
      %v645 = vmax.bf16 %v613, %v629
      %v646 = vmax.bf16 %v614, %v630
      %v647 = vmax.bf16 %v615, %v631
      %v648 = vmax.bf16 %v616, %v632
      %v649 = vmax.bf16 %v617, %v633
      %v650 = vmax.bf16 %v618, %v634
      %v651 = vmax.bf16 %v619, %v635
      %v652 = vmax.bf16 %v620, %v636
      %v653 = vmax.bf16 %v621, %v637
      %v654 = vmax.bf16 %v622, %v638
      %v655 = vmax.bf16 %v623, %v639
      %v656 = vld [vmem:[%s486] sm:$0xf]
      %v657 = vld [vmem:[%s486 + $0x4] sm:$0xf]
      %v658 = vld [vmem:[%s486 + $0x8] sm:$0xf]
      %v659 = vld [vmem:[%s486 + $0xc] sm:$0xf]
      %v660 = vld [vmem:[%s486 + $0x10] sm:$0xf]
      %v661 = vld [vmem:[%s486 + $0x14] sm:$0xf]
      %v662 = vld [vmem:[%s486 + $0x18] sm:$0xf]
      %v663 = vld [vmem:[%s486 + $0x1c] sm:$0xf]
      %v664 = vld [vmem:[%s486 + $0x20] sm:$0xf]
      %v665 = vld [vmem:[%s486 + $0x24] sm:$0xf]
      %v666 = vld [vmem:[%s486 + $0x28] sm:$0xf]
      %v667 = vld [vmem:[%s486 + $0x2c] sm:$0xf]
      %v668 = vld [vmem:[%s486 + $0x30] sm:$0xf]
      %v669 = vld [vmem:[%s486 + $0x34] sm:$0xf]
      %v670 = vld [vmem:[%s486 + $0x38] sm:$0xf]
      %v671 = vld [vmem:[%s486 + $0x3c] sm:$0xf]
      %v672 = vmax.bf16 %v640, %v656
      %v673 = vmax.bf16 %v641, %v657
      %v674 = vmax.bf16 %v642, %v658
      %v675 = vmax.bf16 %v643, %v659
      %v676 = vmax.bf16 %v644, %v660
      %v677 = vmax.bf16 %v645, %v661
      %v678 = vmax.bf16 %v646, %v662
      %v679 = vmax.bf16 %v647, %v663
      %v680 = vmax.bf16 %v648, %v664
      %v681 = vmax.bf16 %v649, %v665
      %v682 = vmax.bf16 %v650, %v666
      %v683 = vmax.bf16 %v651, %v667
      %v684 = vmax.bf16 %v652, %v668
      %v685 = vmax.bf16 %v653, %v669
      %v686 = vmax.bf16 %v654, %v670
      %v687 = vmax.bf16 %v655, %v671
      %v688 = vld [vmem:[%s492] sm:$0xf]
      %v689 = vld [vmem:[%s492 + $0x4] sm:$0xf]
      %v690 = vld [vmem:[%s492 + $0x8] sm:$0xf]
      %v691 = vld [vmem:[%s492 + $0xc] sm:$0xf]
      %v692 = vld [vmem:[%s492 + $0x10] sm:$0xf]
      %v693 = vld [vmem:[%s492 + $0x14] sm:$0xf]
      %v694 = vld [vmem:[%s492 + $0x18] sm:$0xf]
      %v695 = vld [vmem:[%s492 + $0x1c] sm:$0xf]
      %v696 = vld [vmem:[%s492 + $0x20] sm:$0xf]
      %v697 = vld [vmem:[%s492 + $0x24] sm:$0xf]
      %v698 = vld [vmem:[%s492 + $0x28] sm:$0xf]
      %v699 = vld [vmem:[%s492 + $0x2c] sm:$0xf]
      %v700 = vld [vmem:[%s492 + $0x30] sm:$0xf]
      %v701 = vld [vmem:[%s492 + $0x34] sm:$0xf]
      %v702 = vld [vmem:[%s492 + $0x38] sm:$0xf]
      %v703 = vld [vmem:[%s492 + $0x3c] sm:$0xf]
      %v704 = vmax.bf16 %v672, %v688
      %v705 = vmax.bf16 %v673, %v689
      %v706 = vmax.bf16 %v674, %v690
      %v707 = vmax.bf16 %v675, %v691
      %v708 = vmax.bf16 %v676, %v692
      %v709 = vmax.bf16 %v677, %v693
      %v710 = vmax.bf16 %v678, %v694
      %v711 = vmax.bf16 %v679, %v695
      %v712 = vmax.bf16 %v680, %v696
      %v713 = vmax.bf16 %v681, %v697
      %v714 = vmax.bf16 %v682, %v698
      %v715 = vmax.bf16 %v683, %v699
      %v716 = vmax.bf16 %v684, %v700
      %v717 = vmax.bf16 %v685, %v701
      %v718 = vmax.bf16 %v686, %v702
      %v719 = vmax.bf16 %v687, %v703
      %v720 = vld [vmem:[%s498] sm:$0xf]
      %v721 = vld [vmem:[%s498 + $0x4] sm:$0xf]
      %v722 = vld [vmem:[%s498 + $0x8] sm:$0xf]
      %v723 = vld [vmem:[%s498 + $0xc] sm:$0xf]
      %v724 = vld [vmem:[%s498 + $0x10] sm:$0xf]
      %v725 = vld [vmem:[%s498 + $0x14] sm:$0xf]
      %v726 = vld [vmem:[%s498 + $0x18] sm:$0xf]
      %v727 = vld [vmem:[%s498 + $0x1c] sm:$0xf]
      %v728 = vld [vmem:[%s498 + $0x20] sm:$0xf]
      %v729 = vld [vmem:[%s498 + $0x24] sm:$0xf]
      %v730 = vld [vmem:[%s498 + $0x28] sm:$0xf]
      %v731 = vld [vmem:[%s498 + $0x2c] sm:$0xf]
      %v732 = vld [vmem:[%s498 + $0x30] sm:$0xf]
      %v733 = vld [vmem:[%s498 + $0x34] sm:$0xf]
      %v734 = vld [vmem:[%s498 + $0x38] sm:$0xf]
      %v735 = vld [vmem:[%s498 + $0x3c] sm:$0xf]
      %v736 = vmax.bf16 %v704, %v720
      %v737 = vmax.bf16 %v705, %v721
      %v738 = vmax.bf16 %v706, %v722
      %v739 = vmax.bf16 %v707, %v723
      %v740 = vmax.bf16 %v708, %v724
      %v741 = vmax.bf16 %v709, %v725
      %v742 = vmax.bf16 %v710, %v726
      %v743 = vmax.bf16 %v711, %v727
      %v744 = vmax.bf16 %v712, %v728
      %v745 = vmax.bf16 %v713, %v729
      %v746 = vmax.bf16 %v714, %v730
      %v747 = vmax.bf16 %v715, %v731
      %v748 = vmax.bf16 %v716, %v732
      %v749 = vmax.bf16 %v717, %v733
      %v750 = vmax.bf16 %v718, %v734
      %v751 = vmax.bf16 %v719, %v735
      %v752 = vld [vmem:[%s504] sm:$0xf]
      %v753 = vld [vmem:[%s504 + $0x4] sm:$0xf]
      %v754 = vld [vmem:[%s504 + $0x8] sm:$0xf]
      %v755 = vld [vmem:[%s504 + $0xc] sm:$0xf]
      %v756 = vld [vmem:[%s504 + $0x10] sm:$0xf]
      %v757 = vld [vmem:[%s504 + $0x14] sm:$0xf]
      %v758 = vld [vmem:[%s504 + $0x18] sm:$0xf]
      %v759 = vld [vmem:[%s504 + $0x1c] sm:$0xf]
      %v760 = vld [vmem:[%s504 + $0x20] sm:$0xf]
      %v761 = vld [vmem:[%s504 + $0x24] sm:$0xf]
      %v762 = vld [vmem:[%s504 + $0x28] sm:$0xf]
      %v763 = vld [vmem:[%s504 + $0x2c] sm:$0xf]
      %v764 = vld [vmem:[%s504 + $0x30] sm:$0xf]
      %v765 = vld [vmem:[%s504 + $0x34] sm:$0xf]
      %v766 = vld [vmem:[%s504 + $0x38] sm:$0xf]
      %v767 = vld [vmem:[%s504 + $0x3c] sm:$0xf]
      %v768 = vmax.bf16 %v736, %v752
      %v769 = vmax.bf16 %v737, %v753
      %v770 = vmax.bf16 %v738, %v754
      %v771 = vmax.bf16 %v739, %v755
      %v772 = vmax.bf16 %v740, %v756
      %v773 = vmax.bf16 %v741, %v757
      %v774 = vmax.bf16 %v742, %v758
      %v775 = vmax.bf16 %v743, %v759
      %v776 = vmax.bf16 %v744, %v760
      %v777 = vmax.bf16 %v745, %v761
      %v778 = vmax.bf16 %v746, %v762
      %v779 = vmax.bf16 %v747, %v763
      %v780 = vmax.bf16 %v748, %v764
      %v781 = vmax.bf16 %v749, %v765
      %v782 = vmax.bf16 %v750, %v766
      %v783 = vmax.bf16 %v751, %v767
      %784 = vst [vmem:[%s510] sm:$0xf] %v768
      %785 = vst [vmem:[%s510 + $0x4] sm:$0xf] %v769
      %786 = vst [vmem:[%s510 + $0x8] sm:$0xf] %v770
      %787 = vst [vmem:[%s510 + $0xc] sm:$0xf] %v771
      %788 = vst [vmem:[%s510 + $0x10] sm:$0xf] %v772
      %789 = vst [vmem:[%s510 + $0x14] sm:$0xf] %v773
      %790 = vst [vmem:[%s510 + $0x18] sm:$0xf] %v774
      %791 = vst [vmem:[%s510 + $0x1c] sm:$0xf] %v775
      %792 = vst [vmem:[%s510 + $0x20] sm:$0xf] %v776
      %793 = vst [vmem:[%s510 + $0x24] sm:$0xf] %v777
      %794 = vst [vmem:[%s510 + $0x28] sm:$0xf] %v778
      %795 = vst [vmem:[%s510 + $0x2c] sm:$0xf] %v779
      %796 = vst [vmem:[%s510 + $0x30] sm:$0xf] %v780
      %797 = vst [vmem:[%s510 + $0x34] sm:$0xf] %v781
      %798 = vst [vmem:[%s510 + $0x38] sm:$0xf] %v782
      %799 = vst [vmem:[%s510 + $0x3c] sm:$0xf] %v783
      %s800 = smul.u32 16, %s20
      %p801 = scmp.lt.s32.totalorder %s800, 31
      %s802 = scalar_select %p801, %s800, 31
      %s803 = smul.addr %s802, 4
      %s804 = scalar_lea.vmem %s9, %s803
      // Predicated region
      $region57: #{pcb_test_forward.20} parent=55 // pred_check
        %p805 = pneg %p272
      $region58: #{pcb_test_forward.20} parent=55 // pred_check_branch
        %807 = sbr.rel (%p805) target = $region60
      $region59: #{pcb_test_forward.20} parent=55 // pred_region
        %s808 = smul.u32 16, %s20
      $region60: #{pcb_test_forward.20} parent=55 // pred_fallthru
        _
    $region56: #{pcb_test_forward.20} parent=5 // pred_fallthru
      _
    %p809 = scmp.le.s32.totalorder 2, %s15
    // Predicated region
    $region61: #{pcb_test_forward.20} parent=5 // pred_check
      %p810 = pneg %p809
    $region62: #{pcb_test_forward.20} parent=5 // pred_check_branch
      %812 = sbr.rel (%p810) target = $region64
    $region63: #{pcb_test_forward.20} parent=5 // pred_region
      %s813 = ssub.s32 %s15, 2
      // Predicated region
      $region65: #{pcb_test_forward.20} parent=63 // pred_check
        %p814 = pneg %p278
      $region66: #{pcb_test_forward.20} parent=63 // pred_check_branch
        %816 = sbr.rel (%p814) target = $region68
      $region67: #{pcb_test_forward.20} parent=63 // pred_region
        %s817 = smul.u32 16, %s21
        %p818 = scmp.lt.s32.totalorder %s817, 31
        %s819 = scalar_select %p818, %s817, 31
        %s820 = smul.addr %s819, 4
        %s821 = scalar_lea.vmem %s9, %s820
      $region68: #{pcb_test_forward.20} parent=63 // pred_fallthru
        _
    $region64: #{pcb_test_forward.20} parent=5 // pred_fallthru
      _
  $region6: #{pcb_test_forward.20} parent=0 // loop_footer
    %s19 = sadd.s32 1, %s15
  $region7: #{pcb_test_forward.20} parent=0 // loop_footer_branch
    %14 = sbr.rel target = $region3
  $region8: #{pcb_test_forward.20} parent=0 // loop_exit
    _

// kernel: pcb_test_forward.23
$region0: #{pcb_test_forward.23}
  #allocation0 [shape = 'u32[]', space=smem, size = 0x4, offset = 0x4, fixed_abs, tag = 'smem constant byte address 0x4 - core index']
  #allocation1 [shape = 'u32[144,128]{1,0:T(1,128)}', space=vmem, size = 0x12000, scoped, tag = 'internal scratch']
  #allocation2 [shape = 'f32[128,128]{1,0:T(8,128)}', space=vmem, size = 0x10000, scoped, tag = 'scratch operand']
  %s0 = inlined_call_operand.vmem [shape: bf16[256,1152], index: 0, kind: input, shape index: {}]
  %s1 = inlined_call_operand.vmem [shape: bf16[1152,128], index: 1, kind: input, shape index: {}]
  %s2 = inlined_call_operand.vmem [shape: f32[1,128], index: 2, kind: input, shape index: {}]
  %s3 = inlined_call_operand.vmem [shape: bf16[256,128], index: 3, kind: output, shape index: {}]
  %s4 = sld [smem:[#allocation0]]
  $region94: #{pcb_test_forward.23} parent=0
    _
  %s6 = ssub.s32 1, %s4
  %s7 = scalar_select 0, %s6, %s4
  $region1: #{pcb_test_forward.23} parent=0
    #allocation3 [shape = 'u8[65536]{0}', space=vmem, size = 0x10000, scoped, tag = 'input window, operand 0']
    loop: start=0, step=1, limit=20
    $region2: #{pcb_test_forward.23} parent=1 // loop_pre_header
      _
    $region3: #{pcb_test_forward.23} parent=1 // loop_header
      %s9 = sphi 0, %s13
      %p10 = scmp.ge.s32.totalorder %s9, 20
      %s16 = sphi 0, %s35
      %s17 = sphi 0, %s31
      %s18 = sphi 0, %s27
      %s19 = sphi 0, %s16
      %s20 = sphi 0, %s17
      %s21 = sphi 0, %s18
      %s22 = sphi 0, %s19
      %s23 = sphi 0, %s20
      %s24 = sphi 0, %s21
      %s40 = sphi 0, %s42
      %s43 = sphi 0, %s40
      %s44 = sphi 0, %s43
      %s60 = sphi 0, %s44
      %s68 = sphi 0, %s70
      %s71 = sphi 0, %s68
      %s72 = sphi 0, %s71
      %s88 = sphi 0, %s72
      %s94 = sphi 0, %s96
      %s97 = sphi 0, %s94
      %s98 = sphi 0, %s97
      %s114 = sphi 0, %s98
      %s122 = sphi 0, %s124
      %s125 = sphi 0, %s122
      %s126 = sphi 0, %s125
      %s142 = sphi 0, %s126
    $region4: #{pcb_test_forward.23} parent=1 // loop_header_branch
      %12 = sbr.rel (%p10) target = $region8
    $region5: #{pcb_test_forward.23} parent=1 // loop_body
      %s14 = ssub.s32 %s9, 1
      %s15 = ssub.s32 %s9, 2
      %s25 = sadd.s32 1, %s18
      %p26 = scmp.ge.s32.totalorder %s25, 9
      %s27 = scalar_select %p26, 0, %s25
      %s28 = sadd.s32 1, %s17
      %s29 = scalar_select %p26, %s28, %s17
      %p30 = scmp.ge.s32.totalorder %s29, 1
      %s31 = scalar_select %p30, 0, %s29
      %s32 = sadd.s32 1, %s16
      %s33 = scalar_select %p30, %s32, %s16
      %p34 = scmp.ge.s32.totalorder %s33, 2
      %s35 = scalar_select %p34, 0, %s33
      %s36 = ssub.s32 %s16, %s35
      %s37 = ssub.s32 %s18, %s27
      %s38 = sor.u32 %s36, %s37
      %p39 = scmp.eq.s32.totalorder %s38, 0
      %s41 = sadd.s32 %s40, 1
      %s42 = scalar_select %p39, %s40, %s41
      %p45 = pneg %p39
      %p46 = scmp.eq.s32.totalorder %s9, 17
      %p47 = por %p45, %p46
      %p48 = scmp.ne.s32.totalorder %s40, %s43
      %p49 = scmp.eq.s32.totalorder %s9, 0
      %p50 = por %p48, %p49
      %p51 = scmp.ne.s32.totalorder %s40, %s43
      %p52 = scmp.eq.s32.totalorder %s14, 17
      %p53 = por %p51, %p52
      %p54 = scmp.ne.s32.totalorder %s43, %s44
      %p55 = scmp.eq.s32.totalorder %s14, 0
      %p56 = por %p54, %p55
      %p57 = scmp.ne.s32.totalorder %s43, %s44
      %p58 = scmp.eq.s32.totalorder %s15, 17
      %p59 = por %p57, %p58
      %p61 = scmp.ne.s32.totalorder %s44, %s60
      %p62 = scmp.eq.s32.totalorder %s15, 0
      %p63 = por %p61, %p62
      %s64 = ssub.s32 %s18, %s27
      %s65 = ssub.s32 %s17, %s31
      %s66 = sor.u32 %s64, %s65
      %p67 = scmp.eq.s32.totalorder %s66, 0
      %s69 = sadd.s32 %s68, 1
      %s70 = scalar_select %p67, %s68, %s69
      %p73 = pneg %p67
      %p74 = scmp.eq.s32.totalorder %s9, 17
      %p75 = por %p73, %p74
      %p76 = scmp.ne.s32.totalorder %s68, %s71
      %p77 = scmp.eq.s32.totalorder %s9, 0
      %p78 = por %p76, %p77
      %p79 = scmp.ne.s32.totalorder %s68, %s71
      %p80 = scmp.eq.s32.totalorder %s14, 17
      %p81 = por %p79, %p80
      %p82 = scmp.ne.s32.totalorder %s71, %s72
      %p83 = scmp.eq.s32.totalorder %s14, 0
      %p84 = por %p82, %p83
      %p85 = scmp.ne.s32.totalorder %s71, %s72
      %p86 = scmp.eq.s32.totalorder %s15, 17
      %p87 = por %p85, %p86
      %p89 = scmp.ne.s32.totalorder %s72, %s88
      %p90 = scmp.eq.s32.totalorder %s15, 0
      %p91 = por %p89, %p90
      %s92 = ssub.s32 %s17, %s31
      %p93 = scmp.eq.s32.totalorder %s92, 0
      %s95 = sadd.s32 %s94, 1
      %s96 = scalar_select %p93, %s94, %s95
      %p99 = pneg %p93
      %p100 = scmp.eq.s32.totalorder %s9, 17
      %p101 = por %p99, %p100
      %p102 = scmp.ne.s32.totalorder %s94, %s97
      %p103 = scmp.eq.s32.totalorder %s9, 0
      %p104 = por %p102, %p103
      %p105 = scmp.ne.s32.totalorder %s94, %s97
      %p106 = scmp.eq.s32.totalorder %s14, 17
      %p107 = por %p105, %p106
      %p108 = scmp.ne.s32.totalorder %s97, %s98
      %p109 = scmp.eq.s32.totalorder %s14, 0
      %p110 = por %p108, %p109
      %p111 = scmp.ne.s32.totalorder %s97, %s98
      %p112 = scmp.eq.s32.totalorder %s15, 17
      %p113 = por %p111, %p112
      %p115 = scmp.ne.s32.totalorder %s98, %s114
      %p116 = scmp.eq.s32.totalorder %s15, 0
      %p117 = por %p115, %p116
      %s118 = ssub.s32 %s16, %s35
      %s119 = ssub.s32 %s17, %s31
      %s120 = sor.u32 %s118, %s119
      %p121 = scmp.eq.s32.totalorder %s120, 0
      %s123 = sadd.s32 %s122, 1
      %s124 = scalar_select %p121, %s122, %s123
      %p127 = pneg %p121
      %p128 = scmp.eq.s32.totalorder %s9, 17
      %p129 = por %p127, %p128
      %p130 = scmp.ne.s32.totalorder %s122, %s125
      %p131 = scmp.eq.s32.totalorder %s9, 0
      %p132 = por %p130, %p131
      %p133 = scmp.ne.s32.totalorder %s122, %s125
      %p134 = scmp.eq.s32.totalorder %s14, 17
      %p135 = por %p133, %p134
      %p136 = scmp.ne.s32.totalorder %s125, %s126
      %p137 = scmp.eq.s32.totalorder %s14, 0
      %p138 = por %p136, %p137
      %p139 = scmp.ne.s32.totalorder %s125, %s126
      %p140 = scmp.eq.s32.totalorder %s15, 17
      %p141 = por %p139, %p140
      %p143 = scmp.ne.s32.totalorder %s126, %s142
      %p144 = scmp.eq.s32.totalorder %s15, 0
      %p145 = por %p143, %p144
      %p146 = scmp.le.s32.totalorder 1, %s9
      %p147 = scmp.lt.s32.totalorder %s9, 19
      %p148 = pnand %p146, %p147
      %p149 = pneg %p148
      // Predicated region
      $region9: #{pcb_test_forward.23} parent=5 // pred_check
        _
      $region10: #{pcb_test_forward.23} parent=5 // pred_check_branch
        %151 = sbr.rel (%p148) target = $region12
      $region11: #{pcb_test_forward.23} parent=5 // pred_region
        %s152 = ssub.s32 %s9, 1
        // Predicated region
        $region13: #{pcb_test_forward.23} parent=11 // pred_check
          %p153 = pneg %p110
        $region14: #{pcb_test_forward.23} parent=11 // pred_check_branch
          %155 = sbr.rel (%p153) target = $region16
        $region15: #{pcb_test_forward.23} parent=11 // pred_region
          %p156 = scmp.lt.s32.totalorder %s20, 0
          %s157 = scalar_select %p156, %s20, 0
          %s158 = scalar_lea.vmem %s2, %s157
        $region16: #{pcb_test_forward.23} parent=11 // pred_fallthru
          _
      $region12: #{pcb_test_forward.23} parent=5 // pred_fallthru
        _
      %p159 = scmp.lt.s32.totalorder %s9, 18
      // Predicated region
      $region17: #{pcb_test_forward.23} parent=5 // pred_check
        %p160 = pneg %p159
      $region18: #{pcb_test_forward.23} parent=5 // pred_check_branch
        %162 = sbr.rel (%p160) target = $region20
      $region19: #{pcb_test_forward.23} parent=5 // pred_region
        // Predicated region
        $region21: #{pcb_test_forward.23} parent=19 // pred_check
          %p163 = pneg %p50
        $region22: #{pcb_test_forward.23} parent=19 // pred_check_branch
          %165 = sbr.rel (%p163) target = $region24
        $region23: #{pcb_test_forward.23} parent=19 // pred_region
          %s166 = sand.u32 %s40, 1
          %s167 = sand.u32 %s40, 1
          %s168 = smul.addr %s167, 64
          %s169 = scalar_lea.vmem [#allocation3], %s168
          %s170 = smul.u32 16, %s16
          %s171 = smul.addr %s170, 9
          %s172 = sadd.s32 %s18, %s171
          %s173 = smul.addr %s172, 4
          %s174 = scalar_lea.vmem %s0, %s173
          // Predicated region
          $region25: #{pcb_test_forward.23} parent=23 // pred_check
            _
          $region26: #{pcb_test_forward.23} parent=23 // pred_check_branch
            %176 = sbr.rel (0) target = $region28
          $region27: #{pcb_test_forward.23} parent=23 // pred_region
            // Predicated region
            $region29: #{pcb_test_forward.23} parent=27 // pred_check
              _
            $region30: #{pcb_test_forward.23} parent=27 // pred_check_branch
              %178 = sbr.rel target = $region32
            $region31: #{pcb_test_forward.23} parent=27 // pred_region
              // Predicated region
              $region44: #{pcb_test_forward.23} parent=31 // pred_check
                _
              $region45: #{pcb_test_forward.23} parent=31 // pred_check_branch
                %224 = sbr.rel (0) target = $region47
              $region46: #{pcb_test_forward.23} parent=31 // pred_region
                loop: start=0, step=1, limit=1
                $region48: #{pcb_test_forward.23} parent=46 // loop_pre_header
                  _
                $region49: #{pcb_test_forward.23} parent=46 // loop_header
                  %s226 = sphi 0, %s230
                  %p227 = scmp.ge.s32.totalorder %s226, 1
                  %s231 = sphi %s174, %s174
                  %s232 = sphi %s169, %s169
                $region50: #{pcb_test_forward.23} parent=46 // loop_header_branch
                  %229 = sbr.rel (%p227) target = $region54
                $region51: #{pcb_test_forward.23} parent=46 // loop_body
                  _
                $region52: #{pcb_test_forward.23} parent=46 // loop_footer
                  %s230 = sadd.s32 1, %s226
                $region53: #{pcb_test_forward.23} parent=46 // loop_footer_branch
                  %225 = sbr.rel target = $region49
                $region54: #{pcb_test_forward.23} parent=46 // loop_exit
                  _
                %s234 = ssub.s32 16, 1
                loop: start=0, step=1, limit=1
                $region55: #{pcb_test_forward.23} parent=46 // loop_pre_header
                  _
                $region56: #{pcb_test_forward.23} parent=46 // loop_header
                  %s236 = sphi 0, %s240
                  %p237 = scmp.ge.s32.totalorder %s236, 1
                  %s241 = sphi %s174, %s174
                  %s242 = sphi %s169, %s169
                $region57: #{pcb_test_forward.23} parent=46 // loop_header_branch
                  %239 = sbr.rel (%p237) target = $region61
                $region58: #{pcb_test_forward.23} parent=46 // loop_body
                  %v243 = vld [vmem:[%s241] sm:%s234]
                  %244 = vst [vmem:[%s242] sm:%s234] %v243
                  %v245 = vld [vmem:[%s241 + $0x24] sm:%s234]
                  %246 = vst [vmem:[%s242 + $0x4] sm:%s234] %v245
                  %v247 = vld [vmem:[%s241 + $0x48] sm:%s234]
                  %248 = vst [vmem:[%s242 + $0x8] sm:%s234] %v247
                  %v249 = vld [vmem:[%s241 + $0x6c] sm:%s234]
                  %250 = vst [vmem:[%s242 + $0xc] sm:%s234] %v249
                  %v251 = vld [vmem:[%s241 + $0x90] sm:%s234]
                  %252 = vst [vmem:[%s242 + $0x10] sm:%s234] %v251
                  %v253 = vld [vmem:[%s241 + $0xb4] sm:%s234]
                  %254 = vst [vmem:[%s242 + $0x14] sm:%s234] %v253
                  %v255 = vld [vmem:[%s241 + $0xd8] sm:%s234]
                  %256 = vst [vmem:[%s242 + $0x18] sm:%s234] %v255
                  %v257 = vld [vmem:[%s241 + $0xfc] sm:%s234]
                  %258 = vst [vmem:[%s242 + $0x1c] sm:%s234] %v257
                  %v259 = vld [vmem:[%s241 + $0x120] sm:%s234]
                  %260 = vst [vmem:[%s242 + $0x20] sm:%s234] %v259
                  %v261 = vld [vmem:[%s241 + $0x144] sm:%s234]
                  %262 = vst [vmem:[%s242 + $0x24] sm:%s234] %v261
                  %v263 = vld [vmem:[%s241 + $0x168] sm:%s234]
                  %264 = vst [vmem:[%s242 + $0x28] sm:%s234] %v263
                  %v265 = vld [vmem:[%s241 + $0x18c] sm:%s234]
                  %266 = vst [vmem:[%s242 + $0x2c] sm:%s234] %v265
                  %v267 = vld [vmem:[%s241 + $0x1b0] sm:%s234]
                  %268 = vst [vmem:[%s242 + $0x30] sm:%s234] %v267
                  %v269 = vld [vmem:[%s241 + $0x1d4] sm:%s234]
                  %270 = vst [vmem:[%s242 + $0x34] sm:%s234] %v269
                  %v271 = vld [vmem:[%s241 + $0x1f8] sm:%s234]
                  %272 = vst [vmem:[%s242 + $0x38] sm:%s234] %v271
                  %v273 = vld [vmem:[%s241 + $0x21c] sm:%s234]
                  %274 = vst [vmem:[%s242 + $0x3c] sm:%s234] %v273
                $region59: #{pcb_test_forward.23} parent=46 // loop_footer
                  %s240 = sadd.s32 1, %s236
                $region60: #{pcb_test_forward.23} parent=46 // loop_footer_branch
                  %235 = sbr.rel target = $region56
                $region61: #{pcb_test_forward.23} parent=46 // loop_exit
                  _
              $region47: #{pcb_test_forward.23} parent=31 // pred_fallthru
                _
            $region32: #{pcb_test_forward.23} parent=27 // pred_fallthru
              _
            // Predicated region
            $region33: #{pcb_test_forward.23} parent=27 // pred_check
              _
            $region34: #{pcb_test_forward.23} parent=27 // pred_check_branch
              %180 = sbr.rel (0) target = $region36
            $region35: #{pcb_test_forward.23} parent=27 // pred_region
              %s182 = ssub.s32 16, 1
              loop: start=0, step=1, limit=1
              $region37: #{pcb_test_forward.23} parent=35 // loop_pre_header
                _
              $region38: #{pcb_test_forward.23} parent=35 // loop_header
                %s184 = sphi 0, %s188
                %p185 = scmp.ge.s32.totalorder %s184, 1
                %s189 = sphi %s174, %s174
                %s190 = sphi %s169, %s169
              $region39: #{pcb_test_forward.23} parent=35 // loop_header_branch
                %187 = sbr.rel (%p185) target = $region43
              $region40: #{pcb_test_forward.23} parent=35 // loop_body
                %v191 = vld [vmem:[%s189] sm:%s182]
                %192 = vst [vmem:[%s190] sm:%s182] %v191
                %v193 = vld [vmem:[%s189 + $0x24] sm:%s182]
                %194 = vst [vmem:[%s190 + $0x4] sm:%s182] %v193
                %v195 = vld [vmem:[%s189 + $0x48] sm:%s182]
                %196 = vst [vmem:[%s190 + $0x8] sm:%s182] %v195
                %v197 = vld [vmem:[%s189 + $0x6c] sm:%s182]
                %198 = vst [vmem:[%s190 + $0xc] sm:%s182] %v197
                %v199 = vld [vmem:[%s189 + $0x90] sm:%s182]
                %200 = vst [vmem:[%s190 + $0x10] sm:%s182] %v199
                %v201 = vld [vmem:[%s189 + $0xb4] sm:%s182]
                %202 = vst [vmem:[%s190 + $0x14] sm:%s182] %v201
                %v203 = vld [vmem:[%s189 + $0xd8] sm:%s182]
                %204 = vst [vmem:[%s190 + $0x18] sm:%s182] %v203
                %v205 = vld [vmem:[%s189 + $0xfc] sm:%s182]
                %206 = vst [vmem:[%s190 + $0x1c] sm:%s182] %v205
                %v207 = vld [vmem:[%s189 + $0x120] sm:%s182]
                %208 = vst [vmem:[%s190 + $0x20] sm:%s182] %v207
                %v209 = vld [vmem:[%s189 + $0x144] sm:%s182]
                %210 = vst [vmem:[%s190 + $0x24] sm:%s182] %v209
                %v211 = vld [vmem:[%s189 + $0x168] sm:%s182]
                %212 = vst [vmem:[%s190 + $0x28] sm:%s182] %v211
                %v213 = vld [vmem:[%s189 + $0x18c] sm:%s182]
                %214 = vst [vmem:[%s190 + $0x2c] sm:%s182] %v213
                %v215 = vld [vmem:[%s189 + $0x1b0] sm:%s182]
                %216 = vst [vmem:[%s190 + $0x30] sm:%s182] %v215
                %v217 = vld [vmem:[%s189 + $0x1d4] sm:%s182]
                %218 = vst [vmem:[%s190 + $0x34] sm:%s182] %v217
                %v219 = vld [vmem:[%s189 + $0x1f8] sm:%s182]
                %220 = vst [vmem:[%s190 + $0x38] sm:%s182] %v219
                %v221 = vld [vmem:[%s189 + $0x21c] sm:%s182]
                %222 = vst [vmem:[%s190 + $0x3c] sm:%s182] %v221
              $region41: #{pcb_test_forward.23} parent=35 // loop_footer
                %s188 = sadd.s32 1, %s184
              $region42: #{pcb_test_forward.23} parent=35 // loop_footer_branch
                %183 = sbr.rel target = $region38
              $region43: #{pcb_test_forward.23} parent=35 // loop_exit
                _
            $region36: #{pcb_test_forward.23} parent=27 // pred_fallthru
              _
          $region28: #{pcb_test_forward.23} parent=23 // pred_fallthru
            _
          %275 = vnop
        $region24: #{pcb_test_forward.23} parent=19 // pred_fallthru
          _
        // Predicated region
        $region62: #{pcb_test_forward.23} parent=19 // pred_check
          %p276 = pneg %p78
        $region63: #{pcb_test_forward.23} parent=19 // pred_check_branch
          %278 = sbr.rel (%p276) target = $region65
        $region64: #{pcb_test_forward.23} parent=19 // pred_region
          %s279 = smul.u32 16, %s18
          %p280 = scmp.lt.s32.totalorder %s279, 143
          %s281 = scalar_select %p280, %s279, 143
          %p282 = scmp.lt.s32.totalorder %s17, 0
          %s283 = scalar_select %p282, %s17, 0
          %s284 = sadd.s32 %s283, %s281
          %s285 = smul.addr %s284, 4
          %s286 = scalar_lea.vmem %s1, %s285
          %s287 = smul.u32 16, %s18
        $region65: #{pcb_test_forward.23} parent=19 // pred_fallthru
          _
      $region20: #{pcb_test_forward.23} parent=5 // pred_fallthru
        _
      %p288 = scmp.le.s32.totalorder 1, %s9
      %p289 = scmp.lt.s32.totalorder %s9, 19
      %p290 = pnand %p288, %p289
      %p291 = pneg %p290
      // Predicated region
      $region66: #{pcb_test_forward.23} parent=5 // pred_check
        _
      $region67: #{pcb_test_forward.23} parent=5 // pred_check_branch
        %293 = sbr.rel (%p290) target = $region69
      $region68: #{pcb_test_forward.23} parent=5 // pred_region
        %s294 = ssub.s32 %s9, 1
        %s295 = sand.u32 %s43, 1
        %s296 = sand.u32 %s43, 1
        %s297 = smul.addr %s296, 64
        %s298 = scalar_lea.vmem [#allocation3], %s297
        // Predicated region
        $region70: #{pcb_test_forward.23} parent=68 // pred_check
          %p299 = pneg %p56
        $region71: #{pcb_test_forward.23} parent=68 // pred_check_branch
          %301 = sbr.rel (%p299) target = $region73
        $region72: #{pcb_test_forward.23} parent=68 // pred_region
          _
        $region73: #{pcb_test_forward.23} parent=68 // pred_fallthru
          _
        %s302 = sand.u32 %s43, 1
        %s303 = sand.u32 %s43, 1
        %s304 = smul.addr %s303, 64
        %s305 = scalar_lea.vmem [#allocation3], %s304
        %p306 = pneg %p56
        %p307 = pneg %p53
        %s308 = smul.u32 16, %s21
        %p309 = scmp.lt.s32.totalorder %s308, 143
        %s310 = scalar_select %p309, %s308, 143
        %p311 = scmp.lt.s32.totalorder %s20, 0
        %s312 = scalar_select %p311, %s20, 0
        %s313 = sadd.s32 %s312, %s310
        %s314 = smul.addr %s313, 4
        %s315 = scalar_lea.vmem %s1, %s314
        %p316 = pneg %p84
        %p317 = pneg %p81
        %p318 = scmp.lt.s32.totalorder %s20, 0
        %s319 = scalar_select %p318, %s20, 0
        %s320 = scalar_lea.vmem %s2, %s319
        %p321 = pneg %p110
        %p322 = pneg %p107
        %p323 = pneg %p138
        %p324 = pneg %p135
        %s325 = smul.u32 16, %s19
        %p326 = scmp.lt.s32.totalorder %s325, 31
        %s327 = scalar_select %p326, %s325, 31
        %p328 = scmp.lt.s32.totalorder %s20, 0
        %s329 = scalar_select %p328, %s20, 0
        %s330 = sadd.s32 %s329, %s327
        %s331 = smul.addr %s330, 4
        %s332 = scalar_lea.vmem %s3, %s331
        %s333 = smul.u32 16, %s19
        %s334 = smul.u32 16, %s21
        %p335 = scmp.lt.s32.totalorder %s334, 143
        %s336 = scalar_select %p335, %s334, 143
        %p337 = scmp.lt.s32.totalorder %s20, 0
        %s338 = scalar_select %p337, %s20, 0
        %s339 = sadd.s32 %s338, %s336
        %s340 = smul.addr %s339, 4
        %s341 = scalar_lea.vmem %s1, %s340
        %s342 = smul.u32 16, %s21
        %p343 = scmp.lt.s32.totalorder %s20, 0
        %s344 = scalar_select %p343, %s20, 0
        %s345 = scalar_lea.vmem %s2, %s344
        %s346 = smul.u32 16, %s19
        %p347 = scmp.lt.s32.totalorder %s346, 31
        %s348 = scalar_select %p347, %s346, 31
        %p349 = scmp.lt.s32.totalorder %s20, 0
        %s350 = scalar_select %p349, %s20, 0
        %s351 = sadd.s32 %s350, %s348
        %s352 = smul.addr %s351, 4
        %s353 = scalar_lea.vmem %s3, %s352
        %s354 = smul.u32 16, %s19
        %p356 = scmp.eq.s32.totalorder %s21, 0
        // Predicated region
        $region74: #{pcb_test_forward.23} parent=68 // pred_check
          %p357 = pneg %p356
        $region75: #{pcb_test_forward.23} parent=68 // pred_check_branch
          %359 = sbr.rel (%p357) target = $region77
        $region76: #{pcb_test_forward.23} parent=68 // pred_region
          %360 = vst [vmem:[#allocation2] sm:$0xff] 0.0
          %361 = vst [vmem:[#allocation2 + $0x8] sm:$0xff] 0.0
          %362 = vst [vmem:[#allocation2 + $0x10] sm:$0xff] 0.0
          %363 = vst [vmem:[#allocation2 + $0x18] sm:$0xff] 0.0
          %364 = vst [vmem:[#allocation2 + $0x20] sm:$0xff] 0.0
          %365 = vst [vmem:[#allocation2 + $0x28] sm:$0xff] 0.0
          %366 = vst [vmem:[#allocation2 + $0x30] sm:$0xff] 0.0
          %367 = vst [vmem:[#allocation2 + $0x38] sm:$0xff] 0.0
          %368 = vst [vmem:[#allocation2 + $0x40] sm:$0xff] 0.0
          %369 = vst [vmem:[#allocation2 + $0x48] sm:$0xff] 0.0
          %370 = vst [vmem:[#allocation2 + $0x50] sm:$0xff] 0.0
          %371 = vst [vmem:[#allocation2 + $0x58] sm:$0xff] 0.0
          %372 = vst [vmem:[#allocation2 + $0x60] sm:$0xff] 0.0
          %373 = vst [vmem:[#allocation2 + $0x68] sm:$0xff] 0.0
          %374 = vst [vmem:[#allocation2 + $0x70] sm:$0xff] 0.0
          %375 = vst [vmem:[#allocation2 + $0x78] sm:$0xff] 0.0
        $region77: #{pcb_test_forward.23} parent=68 // pred_fallthru
          _
        %v376 = vld [vmem:[#allocation2] sm:$0xff]
        %v377 = vld [vmem:[#allocation2 + $0x8] sm:$0xff]
        %v378 = vld [vmem:[#allocation2 + $0x10] sm:$0xff]
        %v379 = vld [vmem:[#allocation2 + $0x18] sm:$0xff]
        %v380 = vld [vmem:[#allocation2 + $0x20] sm:$0xff]
        %v381 = vld [vmem:[#allocation2 + $0x28] sm:$0xff]
        %v382 = vld [vmem:[#allocation2 + $0x30] sm:$0xff]
        %v383 = vld [vmem:[#allocation2 + $0x38] sm:$0xff]
        %v384 = vld [vmem:[#allocation2 + $0x40] sm:$0xff]
        %v385 = vld [vmem:[#allocation2 + $0x48] sm:$0xff]
        %v386 = vld [vmem:[#allocation2 + $0x50] sm:$0xff]
        %v387 = vld [vmem:[#allocation2 + $0x58] sm:$0xff]
        %v388 = vld [vmem:[#allocation2 + $0x60] sm:$0xff]
        %v389 = vld [vmem:[#allocation2 + $0x68] sm:$0xff]
        %v390 = vld [vmem:[#allocation2 + $0x70] sm:$0xff]
        %v391 = vld [vmem:[#allocation2 + $0x78] sm:$0xff]
        %v392 = vld [vmem:[%s298] sm:$0xf]
        %v393 = vld [vmem:[%s298 + $0x4] sm:$0xf]
        %v394 = vld [vmem:[%s298 + $0x8] sm:$0xf]
        %v395 = vld [vmem:[%s298 + $0xc] sm:$0xf]
        %v396 = vld [vmem:[%s298 + $0x10] sm:$0xf]
        %v397 = vld [vmem:[%s298 + $0x14] sm:$0xf]
        %v398 = vld [vmem:[%s298 + $0x18] sm:$0xf]
        %v399 = vld [vmem:[%s298 + $0x1c] sm:$0xf]
        %v400 = vld [vmem:[%s298 + $0x20] sm:$0xf]
        %v401 = vld [vmem:[%s298 + $0x24] sm:$0xf]
        %v402 = vld [vmem:[%s298 + $0x28] sm:$0xf]
        %v403 = vld [vmem:[%s298 + $0x2c] sm:$0xf]
        %v404 = vld [vmem:[%s298 + $0x30] sm:$0xf]
        %v405 = vld [vmem:[%s298 + $0x34] sm:$0xf]
        %v406 = vld [vmem:[%s298 + $0x38] sm:$0xf]
        %v407 = vld [vmem:[%s298 + $0x3c] sm:$0xf]
        %v408 = vld [vmem:[%s341] sm:$0xf]
        %v409 = vld [vmem:[%s341 + $0x4] sm:$0xf]
        %v410 = vld [vmem:[%s341 + $0x8] sm:$0xf]
        %v411 = vld [vmem:[%s341 + $0xc] sm:$0xf]
        %v412 = vld [vmem:[%s341 + $0x10] sm:$0xf]
        %v413 = vld [vmem:[%s341 + $0x14] sm:$0xf]
        %v414 = vld [vmem:[%s341 + $0x18] sm:$0xf]
        %v415 = vld [vmem:[%s341 + $0x1c] sm:$0xf]
        %v416 = vld [vmem:[%s341 + $0x20] sm:$0xf]
        %v417 = vld [vmem:[%s341 + $0x24] sm:$0xf]
        %v418 = vld [vmem:[%s341 + $0x28] sm:$0xf]
        %v419 = vld [vmem:[%s341 + $0x2c] sm:$0xf]
        %v420 = vld [vmem:[%s341 + $0x30] sm:$0xf]
        %v421 = vld [vmem:[%s341 + $0x34] sm:$0xf]
        %v422 = vld [vmem:[%s341 + $0x38] sm:$0xf]
        %v423 = vld [vmem:[%s341 + $0x3c] sm:$0xf]
        %v440 = vunpack.c.l.b16 %v392
        %v441 = vunpack.c.l.b16 %v393
        %v442 = vunpack.c.l.b16 %v394
        %v443 = vunpack.c.l.b16 %v395
        %v444 = vunpack.c.l.b16 %v396
        %v445 = vunpack.c.l.b16 %v397
        %v446 = vunpack.c.l.b16 %v398
        %v447 = vunpack.c.l.b16 %v399
        %v448 = vunpack.c.l.b16 %v400
        %v449 = vunpack.c.l.b16 %v401
        %v450 = vunpack.c.l.b16 %v402
        %v451 = vunpack.c.l.b16 %v403
        %v452 = vunpack.c.l.b16 %v404
        %v453 = vunpack.c.l.b16 %v405
        %v454 = vunpack.c.l.b16 %v406
        %v455 = vunpack.c.l.b16 %v407
        %v456 = vpack.c.b16 %v441, %v440
        %v457 = vpack.c.b16 %v443, %v442
        %v458 = vpack.c.b16 %v445, %v444
        %v459 = vpack.c.b16 %v447, %v446
        %v460 = vpack.c.b16 %v449, %v448
        %v461 = vpack.c.b16 %v451, %v450
        %v462 = vpack.c.b16 %v453, %v452
        %v463 = vpack.c.b16 %v455, %v454
        %v488 = vunpack.c.l.b16 %v408
        %v489 = vunpack.c.l.b16 %v409
        %v490 = vunpack.c.l.b16 %v410
        %v491 = vunpack.c.l.b16 %v411
        %v492 = vunpack.c.l.b16 %v412
        %v493 = vunpack.c.l.b16 %v413
        %v494 = vunpack.c.l.b16 %v414
        %v495 = vunpack.c.l.b16 %v415
        %v496 = vunpack.c.l.b16 %v416
        %v497 = vunpack.c.l.b16 %v417
        %v498 = vunpack.c.l.b16 %v418
        %v499 = vunpack.c.l.b16 %v419
        %v500 = vunpack.c.l.b16 %v420
        %v501 = vunpack.c.l.b16 %v421
        %v502 = vunpack.c.l.b16 %v422
        %v503 = vunpack.c.l.b16 %v423
        %v504 = vpack.c.b16 %v489, %v488
        %v505 = vpack.c.b16 %v491, %v490
        %v506 = vpack.c.b16 %v493, %v492
        %v507 = vpack.c.b16 %v495, %v494
        %v508 = vpack.c.b16 %v497, %v496
        %v509 = vpack.c.b16 %v499, %v498
        %v510 = vpack.c.b16 %v501, %v500
        %v511 = vpack.c.b16 %v503, %v502
        %520 = vmatprep.subr.bf16.mxu0 0
        %521 = vmatpush1.bf16.msra.mxu0 %v511
        %522 = vmatprep.subr.bf16.mxu0 0
        %523 = vmatpush1.bf16.msra.mxu0 %v510
        %524 = vmatprep.subr.bf16.mxu0 0
        %525 = vmatpush1.bf16.msra.mxu0 %v509
        %526 = vmatprep.subr.bf16.mxu0 0
        %527 = vmatpush1.bf16.msra.mxu0 %v508
        %528 = vmatprep.subr.bf16.mxu0 0
        %529 = vmatpush1.bf16.msra.mxu0 %v507
        %530 = vmatprep.subr.bf16.mxu0 0
        %531 = vmatpush1.bf16.msra.mxu0 %v506
        %532 = vmatprep.subr.bf16.mxu0 0
        %533 = vmatpush1.bf16.msra.mxu0 %v505
        %534 = vmatprep.subr.bf16.mxu0 0
        %535 = vmatpush1.bf16.msra.mxu0 %v504
        %536 = vmatprep.subr.bf16.mxu0 0
        %537 = vmatpush2.bf16.msra.mxu0 0
        %538 = vmatprep.subr.bf16.mxu0 0
        %539 = vmatpush2.bf16.msra.mxu0 0
        %540 = vmatprep.subr.bf16.mxu0 0
        %541 = vmatpush2.bf16.msra.mxu0 0
        %542 = vmatprep.subr.bf16.mxu0 0
        %543 = vmatpush2.bf16.msra.mxu0 0
        %544 = vmatprep.subr.bf16.mxu0 0
        %545 = vmatpush2.bf16.msra.mxu0 0
        %546 = vmatprep.subr.bf16.mxu0 0
        %547 = vmatpush2.bf16.msra.mxu0 0
        %548 = vmatprep.subr.bf16.mxu0 0
        %549 = vmatpush2.bf16.msra.mxu0 0
        %550 = vmatprep.subr.bf16.mxu0 0
        %551 = vmatpush2.bf16.msra.mxu0 0
        %552 = vmatprep.mubr.bf16.mxu0 0
        %553 = vmatmul.mubr.bf16.gmra.mxu0 %v456
        %v554 = vpop.f32.mrf.mxu0
        %v555 = vadd.f32 0.0, %v554
        %v556 = vpop.f32.mrf.mxu0
        %v557 = vpop.f32.mrf.mxu0
        %v558 = vadd.f32 0.0, %v557
        %v559 = vpop.f32.mrf.mxu0
        %560 = vmatprep.mubr.bf16.mxu0 0
        %561 = vmatmul.mubr.bf16.gmra.mxu0 %v457
        %v562 = vpop.f32.mrf.mxu0
        %v563 = vadd.f32 0.0, %v562
        %v564 = vpop.f32.mrf.mxu0
        %v565 = vpop.f32.mrf.mxu0
        %v566 = vadd.f32 0.0, %v565
        %v567 = vpop.f32.mrf.mxu0
        %568 = vmatprep.mubr.bf16.mxu0 0
        %569 = vmatmul.mubr.bf16.gmra.mxu0 %v458
        %v570 = vpop.f32.mrf.mxu0
        %v571 = vadd.f32 0.0, %v570
        %v572 = vpop.f32.mrf.mxu0
        %v573 = vpop.f32.mrf.mxu0
        %v574 = vadd.f32 0.0, %v573
        %v575 = vpop.f32.mrf.mxu0
        %576 = vmatprep.mubr.bf16.mxu0 0
        %577 = vmatmul.mubr.bf16.gmra.mxu0 %v459
        %v578 = vpop.f32.mrf.mxu0
        %v579 = vadd.f32 0.0, %v578
        %v580 = vpop.f32.mrf.mxu0
        %v581 = vpop.f32.mrf.mxu0
        %v582 = vadd.f32 0.0, %v581
        %v583 = vpop.f32.mrf.mxu0
        %584 = vmatprep.mubr.bf16.mxu0 0
        %585 = vmatmul.mubr.bf16.gmra.mxu0 %v460
        %v586 = vpop.f32.mrf.mxu0
        %v587 = vadd.f32 0.0, %v586
        %v588 = vpop.f32.mrf.mxu0
        %v589 = vpop.f32.mrf.mxu0
        %v590 = vadd.f32 0.0, %v589
        %v591 = vpop.f32.mrf.mxu0
        %592 = vmatprep.mubr.bf16.mxu0 0
        %593 = vmatmul.mubr.bf16.gmra.mxu0 %v461
        %v594 = vpop.f32.mrf.mxu0
        %v595 = vadd.f32 0.0, %v594
        %v596 = vpop.f32.mrf.mxu0
        %v597 = vpop.f32.mrf.mxu0
        %v598 = vadd.f32 0.0, %v597
        %v599 = vpop.f32.mrf.mxu0
        %600 = vmatprep.mubr.bf16.mxu0 0
        %601 = vmatmul.mubr.bf16.gmra.mxu0 %v462
        %v602 = vpop.f32.mrf.mxu0
        %v603 = vadd.f32 0.0, %v602
        %v604 = vpop.f32.mrf.mxu0
        %v605 = vpop.f32.mrf.mxu0
        %v606 = vadd.f32 0.0, %v605
        %v607 = vpop.f32.mrf.mxu0
        %608 = vmatprep.mubr.bf16.mxu0 0
        %609 = vmatmul.mubr.bf16.gmra.mxu0 %v463
        %v610 = vpop.f32.mrf.mxu0
        %v611 = vadd.f32 0.0, %v610
        %v612 = vpop.f32.mrf.mxu0
        %v613 = vpop.f32.mrf.mxu0
        %v614 = vadd.f32 0.0, %v613
        %v615 = vpop.f32.mrf.mxu0
        %616 = vdwg.mxu0
        %v617 = vadd.f32 %v376, %v555
        %v618 = vadd.f32 %v377, %v558
        %v619 = vadd.f32 %v378, %v563
        %v620 = vadd.f32 %v379, %v566
        %v621 = vadd.f32 %v380, %v571
        %v622 = vadd.f32 %v381, %v574
        %v623 = vadd.f32 %v382, %v579
        %v624 = vadd.f32 %v383, %v582
        %v625 = vadd.f32 %v384, %v587
        %v626 = vadd.f32 %v385, %v590
        %v627 = vadd.f32 %v386, %v595
        %v628 = vadd.f32 %v387, %v598
        %v629 = vadd.f32 %v388, %v603
        %v630 = vadd.f32 %v389, %v606
        %v631 = vadd.f32 %v390, %v611
        %v632 = vadd.f32 %v391, %v614
        %633 = vst [vmem:[#allocation2] sm:$0xff] %v617
        %634 = vst [vmem:[#allocation2 + $0x8] sm:$0xff] %v618
        %635 = vst [vmem:[#allocation2 + $0x10] sm:$0xff] %v619
        %636 = vst [vmem:[#allocation2 + $0x18] sm:$0xff] %v620
        %637 = vst [vmem:[#allocation2 + $0x20] sm:$0xff] %v621
        %638 = vst [vmem:[#allocation2 + $0x28] sm:$0xff] %v622
        %639 = vst [vmem:[#allocation2 + $0x30] sm:$0xff] %v623
        %640 = vst [vmem:[#allocation2 + $0x38] sm:$0xff] %v624
        %641 = vst [vmem:[#allocation2 + $0x40] sm:$0xff] %v625
        %642 = vst [vmem:[#allocation2 + $0x48] sm:$0xff] %v626
        %643 = vst [vmem:[#allocation2 + $0x50] sm:$0xff] %v627
        %644 = vst [vmem:[#allocation2 + $0x58] sm:$0xff] %v628
        %645 = vst [vmem:[#allocation2 + $0x60] sm:$0xff] %v629
        %646 = vst [vmem:[#allocation2 + $0x68] sm:$0xff] %v630
        %647 = vst [vmem:[#allocation2 + $0x70] sm:$0xff] %v631
        %648 = vst [vmem:[#allocation2 + $0x78] sm:$0xff] %v632
        %p649 = scmp.eq.s32.totalorder %s21, 8
        // Predicated region
        $region78: #{pcb_test_forward.23} parent=68 // pred_check
          %p650 = pneg %p649
        $region79: #{pcb_test_forward.23} parent=68 // pred_check_branch
          %652 = sbr.rel (%p650) target = $region81
        $region80: #{pcb_test_forward.23} parent=68 // pred_region
          %v653 = vld [vmem:[#allocation2] sm:$0xff]
          %v654 = vld [vmem:[#allocation2 + $0x8] sm:$0xff]
          %v655 = vld [vmem:[#allocation2 + $0x10] sm:$0xff]
          %v656 = vld [vmem:[#allocation2 + $0x18] sm:$0xff]
          %v657 = vld [vmem:[#allocation2 + $0x20] sm:$0xff]
          %v658 = vld [vmem:[#allocation2 + $0x28] sm:$0xff]
          %v659 = vld [vmem:[#allocation2 + $0x30] sm:$0xff]
          %v660 = vld [vmem:[#allocation2 + $0x38] sm:$0xff]
          %v661 = vld [vmem:[#allocation2 + $0x40] sm:$0xff]
          %v662 = vld [vmem:[#allocation2 + $0x48] sm:$0xff]
          %v663 = vld [vmem:[#allocation2 + $0x50] sm:$0xff]
          %v664 = vld [vmem:[#allocation2 + $0x58] sm:$0xff]
          %v665 = vld [vmem:[#allocation2 + $0x60] sm:$0xff]
          %v666 = vld [vmem:[#allocation2 + $0x68] sm:$0xff]
          %v667 = vld [vmem:[#allocation2 + $0x70] sm:$0xff]
          %v668 = vld [vmem:[#allocation2 + $0x78] sm:$0xff]
          %v669 = vld [vmem:[%s345] sm:$0x1]
          %v671 = vlaneseq
          %v672 = vshrl.u32 %v671, 7
          %v673 = vsub.s32 0, %v672
          %v674 = vrot.slane %v669, %v673
          %v676 = vadd.f32 %v653, %v674
          %v677 = vadd.f32 %v654, %v674
          %v678 = vadd.f32 %v655, %v674
          %v679 = vadd.f32 %v656, %v674
          %v680 = vadd.f32 %v657, %v674
          %v681 = vadd.f32 %v658, %v674
          %v682 = vadd.f32 %v659, %v674
          %v683 = vadd.f32 %v660, %v674
          %v684 = vadd.f32 %v661, %v674
          %v685 = vadd.f32 %v662, %v674
          %v686 = vadd.f32 %v663, %v674
          %v687 = vadd.f32 %v664, %v674
          %v688 = vadd.f32 %v665, %v674
          %v689 = vadd.f32 %v666, %v674
          %v690 = vadd.f32 %v667, %v674
          %v691 = vadd.f32 %v668, %v674
          %v692 = vmax.f32 %v676, 0.0
          %v693 = vmax.f32 %v677, 0.0
          %v694 = vmax.f32 %v678, 0.0
          %v695 = vmax.f32 %v679, 0.0
          %v696 = vmax.f32 %v680, 0.0
          %v697 = vmax.f32 %v681, 0.0
          %v698 = vmax.f32 %v682, 0.0
          %v699 = vmax.f32 %v683, 0.0
          %v700 = vmax.f32 %v684, 0.0
          %v701 = vmax.f32 %v685, 0.0
          %v702 = vmax.f32 %v686, 0.0
          %v703 = vmax.f32 %v687, 0.0
          %v704 = vmax.f32 %v688, 0.0
          %v705 = vmax.f32 %v689, 0.0
          %v706 = vmax.f32 %v690, 0.0
          %v707 = vmax.f32 %v691, 0.0
          %v708 = vpack.c.bf16 %v693, %v692
          %v709 = vpack.c.bf16 %v695, %v694
          %v710 = vpack.c.bf16 %v697, %v696
          %v711 = vpack.c.bf16 %v699, %v698
          %v712 = vpack.c.bf16 %v701, %v700
          %v713 = vpack.c.bf16 %v703, %v702
          %v714 = vpack.c.bf16 %v705, %v704
          %v715 = vpack.c.bf16 %v707, %v706
          %v724 = vunpack.c.l.b16 %v708
          %v725 = vunpack.c.h.b16 %v708
          %v726 = vunpack.c.l.b16 %v709
          %v727 = vunpack.c.h.b16 %v709
          %v728 = vunpack.c.l.b16 %v710
          %v729 = vunpack.c.h.b16 %v710
          %v730 = vunpack.c.l.b16 %v711
          %v731 = vunpack.c.h.b16 %v711
          %v732 = vunpack.c.l.b16 %v712
          %v733 = vunpack.c.h.b16 %v712
          %v734 = vunpack.c.l.b16 %v713
          %v735 = vunpack.c.h.b16 %v713
          %v736 = vunpack.c.l.b16 %v714
          %v737 = vunpack.c.h.b16 %v714
          %v738 = vunpack.c.l.b16 %v715
          %v739 = vunpack.c.h.b16 %v715
          %v740 = vpack.c.b16 %v724, %v724
          %v741 = vpack.c.b16 %v725, %v725
          %v742 = vpack.c.b16 %v726, %v726
          %v743 = vpack.c.b16 %v727, %v727
          %v744 = vpack.c.b16 %v728, %v728
          %v745 = vpack.c.b16 %v729, %v729
          %v746 = vpack.c.b16 %v730, %v730
          %v747 = vpack.c.b16 %v731, %v731
          %v748 = vpack.c.b16 %v732, %v732
          %v749 = vpack.c.b16 %v733, %v733
          %v750 = vpack.c.b16 %v734, %v734
          %v751 = vpack.c.b16 %v735, %v735
          %v752 = vpack.c.b16 %v736, %v736
          %v753 = vpack.c.b16 %v737, %v737
          %v754 = vpack.c.b16 %v738, %v738
          %v755 = vpack.c.b16 %v739, %v739
          %772 = vst [vmem:[%s353] sm:$0xf] %v740
          %773 = vst [vmem:[%s353 + $0x4] sm:$0xf] %v741
          %774 = vst [vmem:[%s353 + $0x8] sm:$0xf] %v742
          %775 = vst [vmem:[%s353 + $0xc] sm:$0xf] %v743
          %776 = vst [vmem:[%s353 + $0x10] sm:$0xf] %v744
          %777 = vst [vmem:[%s353 + $0x14] sm:$0xf] %v745
          %778 = vst [vmem:[%s353 + $0x18] sm:$0xf] %v746
          %779 = vst [vmem:[%s353 + $0x1c] sm:$0xf] %v747
          %780 = vst [vmem:[%s353 + $0x20] sm:$0xf] %v748
          %781 = vst [vmem:[%s353 + $0x24] sm:$0xf] %v749
          %782 = vst [vmem:[%s353 + $0x28] sm:$0xf] %v750
          %783 = vst [vmem:[%s353 + $0x2c] sm:$0xf] %v751
          %784 = vst [vmem:[%s353 + $0x30] sm:$0xf] %v752
          %785 = vst [vmem:[%s353 + $0x34] sm:$0xf] %v753
          %786 = vst [vmem:[%s353 + $0x38] sm:$0xf] %v754
          %787 = vst [vmem:[%s353 + $0x3c] sm:$0xf] %v755
        $region81: #{pcb_test_forward.23} parent=68 // pred_fallthru
          _
        %s788 = smul.u32 16, %s19
        %p789 = scmp.lt.s32.totalorder %s788, 31
        %s790 = scalar_select %p789, %s788, 31
        %p791 = scmp.lt.s32.totalorder %s20, 0
        %s792 = scalar_select %p791, %s20, 0
        %s793 = sadd.s32 %s792, %s790
        %s794 = smul.addr %s793, 4
        %s795 = scalar_lea.vmem %s3, %s794
        // Predicated region
        $region82: #{pcb_test_forward.23} parent=68 // pred_check
          %p796 = pneg %p135
        $region83: #{pcb_test_forward.23} parent=68 // pred_check_branch
          %798 = sbr.rel (%p796) target = $region85
        $region84: #{pcb_test_forward.23} parent=68 // pred_region
          %s799 = smul.u32 16, %s19
        $region85: #{pcb_test_forward.23} parent=68 // pred_fallthru
          _
      $region69: #{pcb_test_forward.23} parent=5 // pred_fallthru
        _
      %p800 = scmp.le.s32.totalorder 2, %s9
      // Predicated region
      $region86: #{pcb_test_forward.23} parent=5 // pred_check
        %p801 = pneg %p800
      $region87: #{pcb_test_forward.23} parent=5 // pred_check_branch
        %803 = sbr.rel (%p801) target = $region89
      $region88: #{pcb_test_forward.23} parent=5 // pred_region
        %s804 = ssub.s32 %s9, 2
        // Predicated region
        $region90: #{pcb_test_forward.23} parent=88 // pred_check
          %p805 = pneg %p141
        $region91: #{pcb_test_forward.23} parent=88 // pred_check_branch
          %807 = sbr.rel (%p805) target = $region93
        $region92: #{pcb_test_forward.23} parent=88 // pred_region
          %s808 = smul.u32 16, %s22
          %p809 = scmp.lt.s32.totalorder %s808, 31
          %s810 = scalar_select %p809, %s808, 31
          %p811 = scmp.lt.s32.totalorder %s23, 0
          %s812 = scalar_select %p811, %s23, 0
          %s813 = sadd.s32 %s812, %s810
          %s814 = smul.addr %s813, 4
          %s815 = scalar_lea.vmem %s3, %s814
        $region93: #{pcb_test_forward.23} parent=88 // pred_fallthru
          _
      $region89: #{pcb_test_forward.23} parent=5 // pred_fallthru
        _
    $region6: #{pcb_test_forward.23} parent=1 // loop_footer
      %s13 = sadd.s32 1, %s9
    $region7: #{pcb_test_forward.23} parent=1 // loop_footer_branch
      %8 = sbr.rel target = $region3
    $region8: #{pcb_test_forward.23} parent=1 // loop_exit
      _

// kernel: pcb_test_forward.24
$region0: #{pcb_test_forward.24}
  #allocation0 [shape = 'u32[]', space=smem, size = 0x4, offset = 0x4, fixed_abs, tag = 'smem constant byte address 0x4 - core index']
  #allocation1 [shape = 'u32[144,128]{1,0:T(1,128)}', space=vmem, size = 0x12000, scoped, tag = 'internal scratch']
  #allocation2 [shape = 'f32[128,128]{1,0:T(8,128)}', space=vmem, size = 0x10000, scoped, tag = 'scratch operand']
  %s0 = inlined_call_operand.vmem [shape: bf16[256,128], index: 0, kind: input, shape index: {}]
  %s1 = inlined_call_operand.vmem [shape: bf16[128,128], index: 1, kind: input, shape index: {}]
  %s2 = inlined_call_operand.vmem [shape: f32[1,128], index: 2, kind: input, shape index: {}]
  %s3 = inlined_call_operand.vmem [shape: bf16[256,128], index: 3, kind: input, shape index: {}]
  %s4 = inlined_call_operand.vmem [shape: bf16[256,128], index: 4, kind: output, shape index: {}]
  %s5 = sld [smem:[#allocation0]]
  $region57: #{pcb_test_forward.24} parent=0
    _
  %s7 = ssub.s32 1, %s5
  %s8 = scalar_select 0, %s7, %s5
  loop: start=0, step=1, limit=4
  $region2: #{pcb_test_forward.24} parent=0 // loop_pre_header
    _
  $region3: #{pcb_test_forward.24} parent=0 // loop_header
    %s10 = sphi 0, %s14
    %p11 = scmp.ge.s32.totalorder %s10, 4
    %s17 = sphi 0, %s36
    %s18 = sphi 0, %s32
    %s19 = sphi 0, %s28
    %s20 = sphi 0, %s17
    %s21 = sphi 0, %s18
    %s22 = sphi 0, %s19
    %s23 = sphi 0, %s20
    %s24 = sphi 0, %s21
    %s25 = sphi 0, %s22
    %s41 = sphi 0, %s43
    %s44 = sphi 0, %s41
    %s45 = sphi 0, %s44
    %s61 = sphi 0, %s45
    %s69 = sphi 0, %s71
    %s72 = sphi 0, %s69
    %s73 = sphi 0, %s72
    %s89 = sphi 0, %s73
    %s95 = sphi 0, %s97
    %s98 = sphi 0, %s95
    %s99 = sphi 0, %s98
    %s115 = sphi 0, %s99
    %s123 = sphi 0, %s125
    %s126 = sphi 0, %s123
    %s127 = sphi 0, %s126
    %s143 = sphi 0, %s127
    %s151 = sphi 0, %s153
    %s154 = sphi 0, %s151
    %s155 = sphi 0, %s154
    %s171 = sphi 0, %s155
  $region4: #{pcb_test_forward.24} parent=0 // loop_header_branch
    %13 = sbr.rel (%p11) target = $region8
  $region5: #{pcb_test_forward.24} parent=0 // loop_body
    %s15 = ssub.s32 %s10, 1
    %s16 = ssub.s32 %s10, 2
    %s26 = sadd.s32 1, %s19
    %p27 = scmp.ge.s32.totalorder %s26, 1
    %s28 = scalar_select %p27, 0, %s26
    %s29 = sadd.s32 1, %s18
    %s30 = scalar_select %p27, %s29, %s18
    %p31 = scmp.ge.s32.totalorder %s30, 1
    %s32 = scalar_select %p31, 0, %s30
    %s33 = sadd.s32 1, %s17
    %s34 = scalar_select %p31, %s33, %s17
    %p35 = scmp.ge.s32.totalorder %s34, 2
    %s36 = scalar_select %p35, 0, %s34
    %s37 = ssub.s32 %s17, %s36
    %s38 = ssub.s32 %s19, %s28
    %s39 = sor.u32 %s37, %s38
    %p40 = scmp.eq.s32.totalorder %s39, 0
    %s42 = sadd.s32 %s41, 1
    %s43 = scalar_select %p40, %s41, %s42
    %p46 = pneg %p40
    %p47 = scmp.eq.s32.totalorder %s10, 1
    %p48 = por %p46, %p47
    %p49 = scmp.ne.s32.totalorder %s41, %s44
    %p50 = scmp.eq.s32.totalorder %s10, 0
    %p51 = por %p49, %p50
    %p52 = scmp.ne.s32.totalorder %s41, %s44
    %p53 = scmp.eq.s32.totalorder %s15, 1
    %p54 = por %p52, %p53
    %p55 = scmp.ne.s32.totalorder %s44, %s45
    %p56 = scmp.eq.s32.totalorder %s15, 0
    %p57 = por %p55, %p56
    %p58 = scmp.ne.s32.totalorder %s44, %s45
    %p59 = scmp.eq.s32.totalorder %s16, 1
    %p60 = por %p58, %p59
    %p62 = scmp.ne.s32.totalorder %s45, %s61
    %p63 = scmp.eq.s32.totalorder %s16, 0
    %p64 = por %p62, %p63
    %s65 = ssub.s32 %s19, %s28
    %s66 = ssub.s32 %s18, %s32
    %s67 = sor.u32 %s65, %s66
    %p68 = scmp.eq.s32.totalorder %s67, 0
    %s70 = sadd.s32 %s69, 1
    %s71 = scalar_select %p68, %s69, %s70
    %p74 = pneg %p68
    %p75 = scmp.eq.s32.totalorder %s10, 1
    %p76 = por %p74, %p75
    %p77 = scmp.ne.s32.totalorder %s69, %s72
    %p78 = scmp.eq.s32.totalorder %s10, 0
    %p79 = por %p77, %p78
    %p80 = scmp.ne.s32.totalorder %s69, %s72
    %p81 = scmp.eq.s32.totalorder %s15, 1
    %p82 = por %p80, %p81
    %p83 = scmp.ne.s32.totalorder %s72, %s73
    %p84 = scmp.eq.s32.totalorder %s15, 0
    %p85 = por %p83, %p84
    %p86 = scmp.ne.s32.totalorder %s72, %s73
    %p87 = scmp.eq.s32.totalorder %s16, 1
    %p88 = por %p86, %p87
    %p90 = scmp.ne.s32.totalorder %s73, %s89
    %p91 = scmp.eq.s32.totalorder %s16, 0
    %p92 = por %p90, %p91
    %s93 = ssub.s32 %s18, %s32
    %p94 = scmp.eq.s32.totalorder %s93, 0
    %s96 = sadd.s32 %s95, 1
    %s97 = scalar_select %p94, %s95, %s96
    %p100 = pneg %p94
    %p101 = scmp.eq.s32.totalorder %s10, 1
    %p102 = por %p100, %p101
    %p103 = scmp.ne.s32.totalorder %s95, %s98
    %p104 = scmp.eq.s32.totalorder %s10, 0
    %p105 = por %p103, %p104
    %p106 = scmp.ne.s32.totalorder %s95, %s98
    %p107 = scmp.eq.s32.totalorder %s15, 1
    %p108 = por %p106, %p107
    %p109 = scmp.ne.s32.totalorder %s98, %s99
    %p110 = scmp.eq.s32.totalorder %s15, 0
    %p111 = por %p109, %p110
    %p112 = scmp.ne.s32.totalorder %s98, %s99
    %p113 = scmp.eq.s32.totalorder %s16, 1
    %p114 = por %p112, %p113
    %p116 = scmp.ne.s32.totalorder %s99, %s115
    %p117 = scmp.eq.s32.totalorder %s16, 0
    %p118 = por %p116, %p117
    %s119 = ssub.s32 %s17, %s36
    %s120 = ssub.s32 %s18, %s32
    %s121 = sor.u32 %s119, %s120
    %p122 = scmp.eq.s32.totalorder %s121, 0
    %s124 = sadd.s32 %s123, 1
    %s125 = scalar_select %p122, %s123, %s124
    %p128 = pneg %p122
    %p129 = scmp.eq.s32.totalorder %s10, 1
    %p130 = por %p128, %p129
    %p131 = scmp.ne.s32.totalorder %s123, %s126
    %p132 = scmp.eq.s32.totalorder %s10, 0
    %p133 = por %p131, %p132
    %p134 = scmp.ne.s32.totalorder %s123, %s126
    %p135 = scmp.eq.s32.totalorder %s15, 1
    %p136 = por %p134, %p135
    %p137 = scmp.ne.s32.totalorder %s126, %s127
    %p138 = scmp.eq.s32.totalorder %s15, 0
    %p139 = por %p137, %p138
    %p140 = scmp.ne.s32.totalorder %s126, %s127
    %p141 = scmp.eq.s32.totalorder %s16, 1
    %p142 = por %p140, %p141
    %p144 = scmp.ne.s32.totalorder %s127, %s143
    %p145 = scmp.eq.s32.totalorder %s16, 0
    %p146 = por %p144, %p145
    %s147 = ssub.s32 %s17, %s36
    %s148 = ssub.s32 %s18, %s32
    %s149 = sor.u32 %s147, %s148
    %p150 = scmp.eq.s32.totalorder %s149, 0
    %s152 = sadd.s32 %s151, 1
    %s153 = scalar_select %p150, %s151, %s152
    %p156 = pneg %p150
    %p157 = scmp.eq.s32.totalorder %s10, 1
    %p158 = por %p156, %p157
    %p159 = scmp.ne.s32.totalorder %s151, %s154
    %p160 = scmp.eq.s32.totalorder %s10, 0
    %p161 = por %p159, %p160
    %p162 = scmp.ne.s32.totalorder %s151, %s154
    %p163 = scmp.eq.s32.totalorder %s15, 1
    %p164 = por %p162, %p163
    %p165 = scmp.ne.s32.totalorder %s154, %s155
    %p166 = scmp.eq.s32.totalorder %s15, 0
    %p167 = por %p165, %p166
    %p168 = scmp.ne.s32.totalorder %s154, %s155
    %p169 = scmp.eq.s32.totalorder %s16, 1
    %p170 = por %p168, %p169
    %p172 = scmp.ne.s32.totalorder %s155, %s171
    %p173 = scmp.eq.s32.totalorder %s16, 0
    %p174 = por %p172, %p173
    %p175 = scmp.le.s32.totalorder 1, %s10
    %p176 = scmp.lt.s32.totalorder %s10, 3
    %p177 = pnand %p175, %p176
    %p178 = pneg %p177
    // Predicated region
    $region9: #{pcb_test_forward.24} parent=5 // pred_check
      _
    $region10: #{pcb_test_forward.24} parent=5 // pred_check_branch
      %180 = sbr.rel (%p177) target = $region12
    $region11: #{pcb_test_forward.24} parent=5 // pred_region
      %s181 = ssub.s32 %s10, 1
      // Predicated region
      $region13: #{pcb_test_forward.24} parent=11 // pred_check
        %p182 = pneg %p85
      $region14: #{pcb_test_forward.24} parent=11 // pred_check_branch
        %184 = sbr.rel (%p182) target = $region16
      $region15: #{pcb_test_forward.24} parent=11 // pred_region
        %s185 = smul.u32 16, %s22
        %p186 = scmp.lt.s32.totalorder %s185, 15
        %s187 = scalar_select %p186, %s185, 15
        %p188 = scmp.lt.s32.totalorder %s21, 0
        %s189 = scalar_select %p188, %s21, 0
        %s190 = sadd.s32 %s189, %s187
        %s191 = smul.addr %s190, 4
        %s192 = scalar_lea.vmem %s1, %s191
        %s193 = smul.u32 16, %s22
      $region16: #{pcb_test_forward.24} parent=11 // pred_fallthru
        _
      // Predicated region
      $region17: #{pcb_test_forward.24} parent=11 // pred_check
        %p194 = pneg %p111
      $region18: #{pcb_test_forward.24} parent=11 // pred_check_branch
        %196 = sbr.rel (%p194) target = $region20
      $region19: #{pcb_test_forward.24} parent=11 // pred_region
        %p197 = scmp.lt.s32.totalorder %s21, 0
        %s198 = scalar_select %p197, %s21, 0
        %s199 = scalar_lea.vmem %s2, %s198
      $region20: #{pcb_test_forward.24} parent=11 // pred_fallthru
        _
    $region12: #{pcb_test_forward.24} parent=5 // pred_fallthru
      _
    %p200 = scmp.lt.s32.totalorder %s10, 2
    // Predicated region
    $region21: #{pcb_test_forward.24} parent=5 // pred_check
      %p201 = pneg %p200
    $region22: #{pcb_test_forward.24} parent=5 // pred_check_branch
      %203 = sbr.rel (%p201) target = $region24
    $region23: #{pcb_test_forward.24} parent=5 // pred_region
      // Predicated region
      $region25: #{pcb_test_forward.24} parent=23 // pred_check
        %p204 = pneg %p51
      $region26: #{pcb_test_forward.24} parent=23 // pred_check_branch
        %206 = sbr.rel (%p204) target = $region28
      $region27: #{pcb_test_forward.24} parent=23 // pred_region
        %s207 = smul.u32 16, %s17
        %p208 = scmp.lt.s32.totalorder %s207, 31
        %s209 = scalar_select %p208, %s207, 31
        %p210 = scmp.lt.s32.totalorder %s19, 0
        %s211 = scalar_select %p210, %s19, 0
        %s212 = sadd.s32 %s211, %s209
        %s213 = smul.addr %s212, 4
        %s214 = scalar_lea.vmem %s0, %s213
        %s215 = smul.u32 16, %s17
      $region28: #{pcb_test_forward.24} parent=23 // pred_fallthru
        _
      // Predicated region
      $region29: #{pcb_test_forward.24} parent=23 // pred_check
        %p216 = pneg %p133
      $region30: #{pcb_test_forward.24} parent=23 // pred_check_branch
        %218 = sbr.rel (%p216) target = $region32
      $region31: #{pcb_test_forward.24} parent=23 // pred_region
        %s219 = smul.u32 16, %s17
        %p220 = scmp.lt.s32.totalorder %s219, 31
        %s221 = scalar_select %p220, %s219, 31
        %p222 = scmp.lt.s32.totalorder %s18, 0
        %s223 = scalar_select %p222, %s18, 0
        %s224 = sadd.s32 %s223, %s221
        %s225 = smul.addr %s224, 4
        %s226 = scalar_lea.vmem %s3, %s225
        %s227 = smul.u32 16, %s17
      $region32: #{pcb_test_forward.24} parent=23 // pred_fallthru
        _
    $region24: #{pcb_test_forward.24} parent=5 // pred_fallthru
      _
    %p228 = scmp.le.s32.totalorder 1, %s10
    %p229 = scmp.lt.s32.totalorder %s10, 3
    %p230 = pnand %p228, %p229
    %p231 = pneg %p230
    // Predicated region
    $region33: #{pcb_test_forward.24} parent=5 // pred_check
      _
    $region34: #{pcb_test_forward.24} parent=5 // pred_check_branch
      %233 = sbr.rel (%p230) target = $region36
    $region35: #{pcb_test_forward.24} parent=5 // pred_region
      %s234 = ssub.s32 %s10, 1
      %s235 = smul.u32 16, %s20
      %p236 = scmp.lt.s32.totalorder %s235, 31
      %s237 = scalar_select %p236, %s235, 31
      %p238 = scmp.lt.s32.totalorder %s22, 0
      %s239 = scalar_select %p238, %s22, 0
      %s240 = sadd.s32 %s239, %s237
      %s241 = smul.addr %s240, 4
      %s242 = scalar_lea.vmem %s0, %s241
      %p243 = pneg %p57
      %p244 = pneg %p54
      %s245 = smul.u32 16, %s22
      %p246 = scmp.lt.s32.totalorder %s245, 15
      %s247 = scalar_select %p246, %s245, 15
      %p248 = scmp.lt.s32.totalorder %s21, 0
      %s249 = scalar_select %p248, %s21, 0
      %s250 = sadd.s32 %s249, %s247
      %s251 = smul.addr %s250, 4
      %s252 = scalar_lea.vmem %s1, %s251
      %p253 = pneg %p85
      %p254 = pneg %p82
      %p255 = scmp.lt.s32.totalorder %s21, 0
      %s256 = scalar_select %p255, %s21, 0
      %s257 = scalar_lea.vmem %s2, %s256
      %p258 = pneg %p111
      %p259 = pneg %p108
      %s260 = smul.u32 16, %s20
      %p261 = scmp.lt.s32.totalorder %s260, 31
      %s262 = scalar_select %p261, %s260, 31
      %p263 = scmp.lt.s32.totalorder %s21, 0
      %s264 = scalar_select %p263, %s21, 0
      %s265 = sadd.s32 %s264, %s262
      %s266 = smul.addr %s265, 4
      %s267 = scalar_lea.vmem %s3, %s266
      %p268 = pneg %p139
      %p269 = pneg %p136
      %p270 = pneg %p167
      %p271 = pneg %p164
      %s272 = smul.u32 16, %s20
      %p273 = scmp.lt.s32.totalorder %s272, 31
      %s274 = scalar_select %p273, %s272, 31
      %p275 = scmp.lt.s32.totalorder %s21, 0
      %s276 = scalar_select %p275, %s21, 0
      %s277 = sadd.s32 %s276, %s274
      %s278 = smul.addr %s277, 4
      %s279 = scalar_lea.vmem %s4, %s278
      %s280 = smul.u32 16, %s20
      %p281 = scmp.lt.s32.totalorder %s280, 31
      %s282 = scalar_select %p281, %s280, 31
      %p283 = scmp.lt.s32.totalorder %s22, 0
      %s284 = scalar_select %p283, %s22, 0
      %s285 = sadd.s32 %s284, %s282
      %s286 = smul.addr %s285, 4
      %s287 = scalar_lea.vmem %s0, %s286
      %s288 = smul.u32 16, %s20
      %s289 = smul.u32 16, %s22
      %p290 = scmp.lt.s32.totalorder %s289, 15
      %s291 = scalar_select %p290, %s289, 15
      %p292 = scmp.lt.s32.totalorder %s21, 0
      %s293 = scalar_select %p292, %s21, 0
      %s294 = sadd.s32 %s293, %s291
      %s295 = smul.addr %s294, 4
      %s296 = scalar_lea.vmem %s1, %s295
      %s297 = smul.u32 16, %s22
      %p298 = scmp.lt.s32.totalorder %s21, 0
      %s299 = scalar_select %p298, %s21, 0
      %s300 = scalar_lea.vmem %s2, %s299
      %s301 = smul.u32 16, %s20
      %p302 = scmp.lt.s32.totalorder %s301, 31
      %s303 = scalar_select %p302, %s301, 31
      %p304 = scmp.lt.s32.totalorder %s21, 0
      %s305 = scalar_select %p304, %s21, 0
      %s306 = sadd.s32 %s305, %s303
      %s307 = smul.addr %s306, 4
      %s308 = scalar_lea.vmem %s3, %s307
      %s309 = smul.u32 16, %s20
      %s310 = smul.u32 16, %s20
      %p311 = scmp.lt.s32.totalorder %s310, 31
      %s312 = scalar_select %p311, %s310, 31
      %p313 = scmp.lt.s32.totalorder %s21, 0
      %s314 = scalar_select %p313, %s21, 0
      %s315 = sadd.s32 %s314, %s312
      %s316 = smul.addr %s315, 4
      %s317 = scalar_lea.vmem %s4, %s316
      %s318 = smul.u32 16, %s20
      %p320 = scmp.eq.s32.totalorder %s22, 0
      // Predicated region
      $region37: #{pcb_test_forward.24} parent=35 // pred_check
        %p321 = pneg %p320
      $region38: #{pcb_test_forward.24} parent=35 // pred_check_branch
        %323 = sbr.rel (%p321) target = $region40
      $region39: #{pcb_test_forward.24} parent=35 // pred_region
        %324 = vst [vmem:[#allocation2] sm:$0xff] 0.0
        %325 = vst [vmem:[#allocation2 + $0x8] sm:$0xff] 0.0
        %326 = vst [vmem:[#allocation2 + $0x10] sm:$0xff] 0.0
        %327 = vst [vmem:[#allocation2 + $0x18] sm:$0xff] 0.0
        %328 = vst [vmem:[#allocation2 + $0x20] sm:$0xff] 0.0
        %329 = vst [vmem:[#allocation2 + $0x28] sm:$0xff] 0.0
        %330 = vst [vmem:[#allocation2 + $0x30] sm:$0xff] 0.0
        %331 = vst [vmem:[#allocation2 + $0x38] sm:$0xff] 0.0
        %332 = vst [vmem:[#allocation2 + $0x40] sm:$0xff] 0.0
        %333 = vst [vmem:[#allocation2 + $0x48] sm:$0xff] 0.0
        %334 = vst [vmem:[#allocation2 + $0x50] sm:$0xff] 0.0
        %335 = vst [vmem:[#allocation2 + $0x58] sm:$0xff] 0.0
        %336 = vst [vmem:[#allocation2 + $0x60] sm:$0xff] 0.0
        %337 = vst [vmem:[#allocation2 + $0x68] sm:$0xff] 0.0
        %338 = vst [vmem:[#allocation2 + $0x70] sm:$0xff] 0.0
        %339 = vst [vmem:[#allocation2 + $0x78] sm:$0xff] 0.0
      $region40: #{pcb_test_forward.24} parent=35 // pred_fallthru
        _
      %v340 = vld [vmem:[#allocation2] sm:$0xff]
      %v341 = vld [vmem:[#allocation2 + $0x8] sm:$0xff]
      %v342 = vld [vmem:[#allocation2 + $0x10] sm:$0xff]
      %v343 = vld [vmem:[#allocation2 + $0x18] sm:$0xff]
      %v344 = vld [vmem:[#allocation2 + $0x20] sm:$0xff]
      %v345 = vld [vmem:[#allocation2 + $0x28] sm:$0xff]
      %v346 = vld [vmem:[#allocation2 + $0x30] sm:$0xff]
      %v347 = vld [vmem:[#allocation2 + $0x38] sm:$0xff]
      %v348 = vld [vmem:[#allocation2 + $0x40] sm:$0xff]
      %v349 = vld [vmem:[#allocation2 + $0x48] sm:$0xff]
      %v350 = vld [vmem:[#allocation2 + $0x50] sm:$0xff]
      %v351 = vld [vmem:[#allocation2 + $0x58] sm:$0xff]
      %v352 = vld [vmem:[#allocation2 + $0x60] sm:$0xff]
      %v353 = vld [vmem:[#allocation2 + $0x68] sm:$0xff]
      %v354 = vld [vmem:[#allocation2 + $0x70] sm:$0xff]
      %v355 = vld [vmem:[#allocation2 + $0x78] sm:$0xff]
      %v356 = vld [vmem:[%s287] sm:$0xf]
      %v357 = vld [vmem:[%s287 + $0x4] sm:$0xf]
      %v358 = vld [vmem:[%s287 + $0x8] sm:$0xf]
      %v359 = vld [vmem:[%s287 + $0xc] sm:$0xf]
      %v360 = vld [vmem:[%s287 + $0x10] sm:$0xf]
      %v361 = vld [vmem:[%s287 + $0x14] sm:$0xf]
      %v362 = vld [vmem:[%s287 + $0x18] sm:$0xf]
      %v363 = vld [vmem:[%s287 + $0x1c] sm:$0xf]
      %v364 = vld [vmem:[%s287 + $0x20] sm:$0xf]
      %v365 = vld [vmem:[%s287 + $0x24] sm:$0xf]
      %v366 = vld [vmem:[%s287 + $0x28] sm:$0xf]
      %v367 = vld [vmem:[%s287 + $0x2c] sm:$0xf]
      %v368 = vld [vmem:[%s287 + $0x30] sm:$0xf]
      %v369 = vld [vmem:[%s287 + $0x34] sm:$0xf]
      %v370 = vld [vmem:[%s287 + $0x38] sm:$0xf]
      %v371 = vld [vmem:[%s287 + $0x3c] sm:$0xf]
      %v372 = vld [vmem:[%s296] sm:$0xf]
      %v373 = vld [vmem:[%s296 + $0x4] sm:$0xf]
      %v374 = vld [vmem:[%s296 + $0x8] sm:$0xf]
      %v375 = vld [vmem:[%s296 + $0xc] sm:$0xf]
      %v376 = vld [vmem:[%s296 + $0x10] sm:$0xf]
      %v377 = vld [vmem:[%s296 + $0x14] sm:$0xf]
      %v378 = vld [vmem:[%s296 + $0x18] sm:$0xf]
      %v379 = vld [vmem:[%s296 + $0x1c] sm:$0xf]
      %v380 = vld [vmem:[%s296 + $0x20] sm:$0xf]
      %v381 = vld [vmem:[%s296 + $0x24] sm:$0xf]
      %v382 = vld [vmem:[%s296 + $0x28] sm:$0xf]
      %v383 = vld [vmem:[%s296 + $0x2c] sm:$0xf]
      %v384 = vld [vmem:[%s296 + $0x30] sm:$0xf]
      %v385 = vld [vmem:[%s296 + $0x34] sm:$0xf]
      %v386 = vld [vmem:[%s296 + $0x38] sm:$0xf]
      %v387 = vld [vmem:[%s296 + $0x3c] sm:$0xf]
      %v404 = vunpack.c.l.b16 %v356
      %v405 = vunpack.c.l.b16 %v357
      %v406 = vunpack.c.l.b16 %v358
      %v407 = vunpack.c.l.b16 %v359
      %v408 = vunpack.c.l.b16 %v360
      %v409 = vunpack.c.l.b16 %v361
      %v410 = vunpack.c.l.b16 %v362
      %v411 = vunpack.c.l.b16 %v363
      %v412 = vunpack.c.l.b16 %v364
      %v413 = vunpack.c.l.b16 %v365
      %v414 = vunpack.c.l.b16 %v366
      %v415 = vunpack.c.l.b16 %v367
      %v416 = vunpack.c.l.b16 %v368
      %v417 = vunpack.c.l.b16 %v369
      %v418 = vunpack.c.l.b16 %v370
      %v419 = vunpack.c.l.b16 %v371
      %v420 = vpack.c.b16 %v405, %v404
      %v421 = vpack.c.b16 %v407, %v406
      %v422 = vpack.c.b16 %v409, %v408
      %v423 = vpack.c.b16 %v411, %v410
      %v424 = vpack.c.b16 %v413, %v412
      %v425 = vpack.c.b16 %v415, %v414
      %v426 = vpack.c.b16 %v417, %v416
      %v427 = vpack.c.b16 %v419, %v418
      %v452 = vunpack.c.l.b16 %v372
      %v453 = vunpack.c.l.b16 %v373
      %v454 = vunpack.c.l.b16 %v374
      %v455 = vunpack.c.l.b16 %v375
      %v456 = vunpack.c.l.b16 %v376
      %v457 = vunpack.c.l.b16 %v377
      %v458 = vunpack.c.l.b16 %v378
      %v459 = vunpack.c.l.b16 %v379
      %v460 = vunpack.c.l.b16 %v380
      %v461 = vunpack.c.l.b16 %v381
      %v462 = vunpack.c.l.b16 %v382
      %v463 = vunpack.c.l.b16 %v383
      %v464 = vunpack.c.l.b16 %v384
      %v465 = vunpack.c.l.b16 %v385
      %v466 = vunpack.c.l.b16 %v386
      %v467 = vunpack.c.l.b16 %v387
      %v468 = vpack.c.b16 %v453, %v452
      %v469 = vpack.c.b16 %v455, %v454
      %v470 = vpack.c.b16 %v457, %v456
      %v471 = vpack.c.b16 %v459, %v458
      %v472 = vpack.c.b16 %v461, %v460
      %v473 = vpack.c.b16 %v463, %v462
      %v474 = vpack.c.b16 %v465, %v464
      %v475 = vpack.c.b16 %v467, %v466
      %484 = vmatprep.subr.bf16.mxu0 0
      %485 = vmatpush1.bf16.msra.mxu0 %v475
      %486 = vmatprep.subr.bf16.mxu0 0
      %487 = vmatpush1.bf16.msra.mxu0 %v474
      %488 = vmatprep.subr.bf16.mxu0 0
      %489 = vmatpush1.bf16.msra.mxu0 %v473
      %490 = vmatprep.subr.bf16.mxu0 0
      %491 = vmatpush1.bf16.msra.mxu0 %v472
      %492 = vmatprep.subr.bf16.mxu0 0
      %493 = vmatpush1.bf16.msra.mxu0 %v471
      %494 = vmatprep.subr.bf16.mxu0 0
      %495 = vmatpush1.bf16.msra.mxu0 %v470
      %496 = vmatprep.subr.bf16.mxu0 0
      %497 = vmatpush1.bf16.msra.mxu0 %v469
      %498 = vmatprep.subr.bf16.mxu0 0
      %499 = vmatpush1.bf16.msra.mxu0 %v468
      %500 = vmatprep.subr.bf16.mxu0 0
      %501 = vmatpush2.bf16.msra.mxu0 0
      %502 = vmatprep.subr.bf16.mxu0 0
      %503 = vmatpush2.bf16.msra.mxu0 0
      %504 = vmatprep.subr.bf16.mxu0 0
      %505 = vmatpush2.bf16.msra.mxu0 0
      %506 = vmatprep.subr.bf16.mxu0 0
      %507 = vmatpush2.bf16.msra.mxu0 0
      %508 = vmatprep.subr.bf16.mxu0 0
      %509 = vmatpush2.bf16.msra.mxu0 0
      %510 = vmatprep.subr.bf16.mxu0 0
      %511 = vmatpush2.bf16.msra.mxu0 0
      %512 = vmatprep.subr.bf16.mxu0 0
      %513 = vmatpush2.bf16.msra.mxu0 0
      %514 = vmatprep.subr.bf16.mxu0 0
      %515 = vmatpush2.bf16.msra.mxu0 0
      %516 = vmatprep.mubr.bf16.mxu0 0
      %517 = vmatmul.mubr.bf16.gmra.mxu0 %v420
      %v518 = vpop.f32.mrf.mxu0
      %v519 = vadd.f32 0.0, %v518
      %v520 = vpop.f32.mrf.mxu0
      %v521 = vpop.f32.mrf.mxu0
      %v522 = vadd.f32 0.0, %v521
      %v523 = vpop.f32.mrf.mxu0
      %524 = vmatprep.mubr.bf16.mxu0 0
      %525 = vmatmul.mubr.bf16.gmra.mxu0 %v421
      %v526 = vpop.f32.mrf.mxu0
      %v527 = vadd.f32 0.0, %v526
      %v528 = vpop.f32.mrf.mxu0
      %v529 = vpop.f32.mrf.mxu0
      %v530 = vadd.f32 0.0, %v529
      %v531 = vpop.f32.mrf.mxu0
      %532 = vmatprep.mubr.bf16.mxu0 0
      %533 = vmatmul.mubr.bf16.gmra.mxu0 %v422
      %v534 = vpop.f32.mrf.mxu0
      %v535 = vadd.f32 0.0, %v534
      %v536 = vpop.f32.mrf.mxu0
      %v537 = vpop.f32.mrf.mxu0
      %v538 = vadd.f32 0.0, %v537
      %v539 = vpop.f32.mrf.mxu0
      %540 = vmatprep.mubr.bf16.mxu0 0
      %541 = vmatmul.mubr.bf16.gmra.mxu0 %v423
      %v542 = vpop.f32.mrf.mxu0
      %v543 = vadd.f32 0.0, %v542
      %v544 = vpop.f32.mrf.mxu0
      %v545 = vpop.f32.mrf.mxu0
      %v546 = vadd.f32 0.0, %v545
      %v547 = vpop.f32.mrf.mxu0
      %548 = vmatprep.mubr.bf16.mxu0 0
      %549 = vmatmul.mubr.bf16.gmra.mxu0 %v424
      %v550 = vpop.f32.mrf.mxu0
      %v551 = vadd.f32 0.0, %v550
      %v552 = vpop.f32.mrf.mxu0
      %v553 = vpop.f32.mrf.mxu0
      %v554 = vadd.f32 0.0, %v553
      %v555 = vpop.f32.mrf.mxu0
      %556 = vmatprep.mubr.bf16.mxu0 0
      %557 = vmatmul.mubr.bf16.gmra.mxu0 %v425
      %v558 = vpop.f32.mrf.mxu0
      %v559 = vadd.f32 0.0, %v558
      %v560 = vpop.f32.mrf.mxu0
      %v561 = vpop.f32.mrf.mxu0
      %v562 = vadd.f32 0.0, %v561
      %v563 = vpop.f32.mrf.mxu0
      %564 = vmatprep.mubr.bf16.mxu0 0
      %565 = vmatmul.mubr.bf16.gmra.mxu0 %v426
      %v566 = vpop.f32.mrf.mxu0
      %v567 = vadd.f32 0.0, %v566
      %v568 = vpop.f32.mrf.mxu0
      %v569 = vpop.f32.mrf.mxu0
      %v570 = vadd.f32 0.0, %v569
      %v571 = vpop.f32.mrf.mxu0
      %572 = vmatprep.mubr.bf16.mxu0 0
      %573 = vmatmul.mubr.bf16.gmra.mxu0 %v427
      %v574 = vpop.f32.mrf.mxu0
      %v575 = vadd.f32 0.0, %v574
      %v576 = vpop.f32.mrf.mxu0
      %v577 = vpop.f32.mrf.mxu0
      %v578 = vadd.f32 0.0, %v577
      %v579 = vpop.f32.mrf.mxu0
      %580 = vdwg.mxu0
      %v581 = vadd.f32 %v340, %v519
      %v582 = vadd.f32 %v341, %v522
      %v583 = vadd.f32 %v342, %v527
      %v584 = vadd.f32 %v343, %v530
      %v585 = vadd.f32 %v344, %v535
      %v586 = vadd.f32 %v345, %v538
      %v587 = vadd.f32 %v346, %v543
      %v588 = vadd.f32 %v347, %v546
      %v589 = vadd.f32 %v348, %v551
      %v590 = vadd.f32 %v349, %v554
      %v591 = vadd.f32 %v350, %v559
      %v592 = vadd.f32 %v351, %v562
      %v593 = vadd.f32 %v352, %v567
      %v594 = vadd.f32 %v353, %v570
      %v595 = vadd.f32 %v354, %v575
      %v596 = vadd.f32 %v355, %v578
      %597 = vst [vmem:[#allocation2] sm:$0xff] %v581
      %598 = vst [vmem:[#allocation2 + $0x8] sm:$0xff] %v582
      %599 = vst [vmem:[#allocation2 + $0x10] sm:$0xff] %v583
      %600 = vst [vmem:[#allocation2 + $0x18] sm:$0xff] %v584
      %601 = vst [vmem:[#allocation2 + $0x20] sm:$0xff] %v585
      %602 = vst [vmem:[#allocation2 + $0x28] sm:$0xff] %v586
      %603 = vst [vmem:[#allocation2 + $0x30] sm:$0xff] %v587
      %604 = vst [vmem:[#allocation2 + $0x38] sm:$0xff] %v588
      %605 = vst [vmem:[#allocation2 + $0x40] sm:$0xff] %v589
      %606 = vst [vmem:[#allocation2 + $0x48] sm:$0xff] %v590
      %607 = vst [vmem:[#allocation2 + $0x50] sm:$0xff] %v591
      %608 = vst [vmem:[#allocation2 + $0x58] sm:$0xff] %v592
      %609 = vst [vmem:[#allocation2 + $0x60] sm:$0xff] %v593
      %610 = vst [vmem:[#allocation2 + $0x68] sm:$0xff] %v594
      %611 = vst [vmem:[#allocation2 + $0x70] sm:$0xff] %v595
      %612 = vst [vmem:[#allocation2 + $0x78] sm:$0xff] %v596
      // Predicated region
      $region41: #{pcb_test_forward.24} parent=35 // pred_check
        %p613 = pneg %p320
      $region42: #{pcb_test_forward.24} parent=35 // pred_check_branch
        %615 = sbr.rel (%p613) target = $region44
      $region43: #{pcb_test_forward.24} parent=35 // pred_region
        %v616 = vld [vmem:[#allocation2] sm:$0xff]
        %v617 = vld [vmem:[#allocation2 + $0x8] sm:$0xff]
        %v618 = vld [vmem:[#allocation2 + $0x10] sm:$0xff]
        %v619 = vld [vmem:[#allocation2 + $0x18] sm:$0xff]
        %v620 = vld [vmem:[#allocation2 + $0x20] sm:$0xff]
        %v621 = vld [vmem:[#allocation2 + $0x28] sm:$0xff]
        %v622 = vld [vmem:[#allocation2 + $0x30] sm:$0xff]
        %v623 = vld [vmem:[#allocation2 + $0x38] sm:$0xff]
        %v624 = vld [vmem:[#allocation2 + $0x40] sm:$0xff]
        %v625 = vld [vmem:[#allocation2 + $0x48] sm:$0xff]
        %v626 = vld [vmem:[#allocation2 + $0x50] sm:$0xff]
        %v627 = vld [vmem:[#allocation2 + $0x58] sm:$0xff]
        %v628 = vld [vmem:[#allocation2 + $0x60] sm:$0xff]
        %v629 = vld [vmem:[#allocation2 + $0x68] sm:$0xff]
        %v630 = vld [vmem:[#allocation2 + $0x70] sm:$0xff]
        %v631 = vld [vmem:[#allocation2 + $0x78] sm:$0xff]
        %v632 = vld [vmem:[%s300] sm:$0x1]
        %v634 = vlaneseq
        %v635 = vshrl.u32 %v634, 7
        %v636 = vsub.s32 0, %v635
        %v637 = vrot.slane %v632, %v636
        %v639 = vadd.f32 %v616, %v637
        %v640 = vadd.f32 %v617, %v637
        %v641 = vadd.f32 %v618, %v637
        %v642 = vadd.f32 %v619, %v637
        %v643 = vadd.f32 %v620, %v637
        %v644 = vadd.f32 %v621, %v637
        %v645 = vadd.f32 %v622, %v637
        %v646 = vadd.f32 %v623, %v637
        %v647 = vadd.f32 %v624, %v637
        %v648 = vadd.f32 %v625, %v637
        %v649 = vadd.f32 %v626, %v637
        %v650 = vadd.f32 %v627, %v637
        %v651 = vadd.f32 %v628, %v637
        %v652 = vadd.f32 %v629, %v637
        %v653 = vadd.f32 %v630, %v637
        %v654 = vadd.f32 %v631, %v637
        %v655 = vld [vmem:[%s308] sm:$0xf]
        %v656 = vld [vmem:[%s308 + $0x4] sm:$0xf]
        %v657 = vld [vmem:[%s308 + $0x8] sm:$0xf]
        %v658 = vld [vmem:[%s308 + $0xc] sm:$0xf]
        %v659 = vld [vmem:[%s308 + $0x10] sm:$0xf]
        %v660 = vld [vmem:[%s308 + $0x14] sm:$0xf]
        %v661 = vld [vmem:[%s308 + $0x18] sm:$0xf]
        %v662 = vld [vmem:[%s308 + $0x1c] sm:$0xf]
        %v663 = vld [vmem:[%s308 + $0x20] sm:$0xf]
        %v664 = vld [vmem:[%s308 + $0x24] sm:$0xf]
        %v665 = vld [vmem:[%s308 + $0x28] sm:$0xf]
        %v666 = vld [vmem:[%s308 + $0x2c] sm:$0xf]
        %v667 = vld [vmem:[%s308 + $0x30] sm:$0xf]
        %v668 = vld [vmem:[%s308 + $0x34] sm:$0xf]
        %v669 = vld [vmem:[%s308 + $0x38] sm:$0xf]
        %v670 = vld [vmem:[%s308 + $0x3c] sm:$0xf]
        %v671 = vunpack.c.l.bf16 %v655
        %v672 = vunpack.c.l.bf16 %v656
        %v673 = vunpack.c.l.bf16 %v657
        %v674 = vunpack.c.l.bf16 %v658
        %v675 = vunpack.c.l.bf16 %v659
        %v676 = vunpack.c.l.bf16 %v660
        %v677 = vunpack.c.l.bf16 %v661
        %v678 = vunpack.c.l.bf16 %v662
        %v679 = vunpack.c.l.bf16 %v663
        %v680 = vunpack.c.l.bf16 %v664
        %v681 = vunpack.c.l.bf16 %v665
        %v682 = vunpack.c.l.bf16 %v666
        %v683 = vunpack.c.l.bf16 %v667
        %v684 = vunpack.c.l.bf16 %v668
        %v685 = vunpack.c.l.bf16 %v669
        %v686 = vunpack.c.l.bf16 %v670
        %v687 = vadd.f32 %v639, %v671
        %v688 = vadd.f32 %v640, %v672
        %v689 = vadd.f32 %v641, %v673
        %v690 = vadd.f32 %v642, %v674
        %v691 = vadd.f32 %v643, %v675
        %v692 = vadd.f32 %v644, %v676
        %v693 = vadd.f32 %v645, %v677
        %v694 = vadd.f32 %v646, %v678
        %v695 = vadd.f32 %v647, %v679
        %v696 = vadd.f32 %v648, %v680
        %v697 = vadd.f32 %v649, %v681
        %v698 = vadd.f32 %v650, %v682
        %v699 = vadd.f32 %v651, %v683
        %v700 = vadd.f32 %v652, %v684
        %v701 = vadd.f32 %v653, %v685
        %v702 = vadd.f32 %v654, %v686
        %v703 = vmax.f32 %v687, 0.0
        %v704 = vmax.f32 %v688, 0.0
        %v705 = vmax.f32 %v689, 0.0
        %v706 = vmax.f32 %v690, 0.0
        %v707 = vmax.f32 %v691, 0.0
        %v708 = vmax.f32 %v692, 0.0
        %v709 = vmax.f32 %v693, 0.0
        %v710 = vmax.f32 %v694, 0.0
        %v711 = vmax.f32 %v695, 0.0
        %v712 = vmax.f32 %v696, 0.0
        %v713 = vmax.f32 %v697, 0.0
        %v714 = vmax.f32 %v698, 0.0
        %v715 = vmax.f32 %v699, 0.0
        %v716 = vmax.f32 %v700, 0.0
        %v717 = vmax.f32 %v701, 0.0
        %v718 = vmax.f32 %v702, 0.0
        %v719 = vpack.c.bf16 %v704, %v703
        %v720 = vpack.c.bf16 %v706, %v705
        %v721 = vpack.c.bf16 %v708, %v707
        %v722 = vpack.c.bf16 %v710, %v709
        %v723 = vpack.c.bf16 %v712, %v711
        %v724 = vpack.c.bf16 %v714, %v713
        %v725 = vpack.c.bf16 %v716, %v715
        %v726 = vpack.c.bf16 %v718, %v717
        %v735 = vunpack.c.l.b16 %v719
        %v736 = vunpack.c.h.b16 %v719
        %v737 = vunpack.c.l.b16 %v720
        %v738 = vunpack.c.h.b16 %v720
        %v739 = vunpack.c.l.b16 %v721
        %v740 = vunpack.c.h.b16 %v721
        %v741 = vunpack.c.l.b16 %v722
        %v742 = vunpack.c.h.b16 %v722
        %v743 = vunpack.c.l.b16 %v723
        %v744 = vunpack.c.h.b16 %v723
        %v745 = vunpack.c.l.b16 %v724
        %v746 = vunpack.c.h.b16 %v724
        %v747 = vunpack.c.l.b16 %v725
        %v748 = vunpack.c.h.b16 %v725
        %v749 = vunpack.c.l.b16 %v726
        %v750 = vunpack.c.h.b16 %v726
        %v751 = vpack.c.b16 %v735, %v735
        %v752 = vpack.c.b16 %v736, %v736
        %v753 = vpack.c.b16 %v737, %v737
        %v754 = vpack.c.b16 %v738, %v738
        %v755 = vpack.c.b16 %v739, %v739
        %v756 = vpack.c.b16 %v740, %v740
        %v757 = vpack.c.b16 %v741, %v741
        %v758 = vpack.c.b16 %v742, %v742
        %v759 = vpack.c.b16 %v743, %v743
        %v760 = vpack.c.b16 %v744, %v744
        %v761 = vpack.c.b16 %v745, %v745
        %v762 = vpack.c.b16 %v746, %v746
        %v763 = vpack.c.b16 %v747, %v747
        %v764 = vpack.c.b16 %v748, %v748
        %v765 = vpack.c.b16 %v749, %v749
        %v766 = vpack.c.b16 %v750, %v750
        %783 = vst [vmem:[%s317] sm:$0xf] %v751
        %784 = vst [vmem:[%s317 + $0x4] sm:$0xf] %v752
        %785 = vst [vmem:[%s317 + $0x8] sm:$0xf] %v753
        %786 = vst [vmem:[%s317 + $0xc] sm:$0xf] %v754
        %787 = vst [vmem:[%s317 + $0x10] sm:$0xf] %v755
        %788 = vst [vmem:[%s317 + $0x14] sm:$0xf] %v756
        %789 = vst [vmem:[%s317 + $0x18] sm:$0xf] %v757
        %790 = vst [vmem:[%s317 + $0x1c] sm:$0xf] %v758
        %791 = vst [vmem:[%s317 + $0x20] sm:$0xf] %v759
        %792 = vst [vmem:[%s317 + $0x24] sm:$0xf] %v760
        %793 = vst [vmem:[%s317 + $0x28] sm:$0xf] %v761
        %794 = vst [vmem:[%s317 + $0x2c] sm:$0xf] %v762
        %795 = vst [vmem:[%s317 + $0x30] sm:$0xf] %v763
        %796 = vst [vmem:[%s317 + $0x34] sm:$0xf] %v764
        %797 = vst [vmem:[%s317 + $0x38] sm:$0xf] %v765
        %798 = vst [vmem:[%s317 + $0x3c] sm:$0xf] %v766
      $region44: #{pcb_test_forward.24} parent=35 // pred_fallthru
        _
      %s799 = smul.u32 16, %s20
      %p800 = scmp.lt.s32.totalorder %s799, 31
      %s801 = scalar_select %p800, %s799, 31
      %p802 = scmp.lt.s32.totalorder %s21, 0
      %s803 = scalar_select %p802, %s21, 0
      %s804 = sadd.s32 %s803, %s801
      %s805 = smul.addr %s804, 4
      %s806 = scalar_lea.vmem %s4, %s805
      // Predicated region
      $region45: #{pcb_test_forward.24} parent=35 // pred_check
        %p807 = pneg %p164
      $region46: #{pcb_test_forward.24} parent=35 // pred_check_branch
        %809 = sbr.rel (%p807) target = $region48
      $region47: #{pcb_test_forward.24} parent=35 // pred_region
        %s810 = smul.u32 16, %s20
      $region48: #{pcb_test_forward.24} parent=35 // pred_fallthru
        _
    $region36: #{pcb_test_forward.24} parent=5 // pred_fallthru
      _
    %p811 = scmp.le.s32.totalorder 2, %s10
    // Predicated region
    $region49: #{pcb_test_forward.24} parent=5 // pred_check
      %p812 = pneg %p811
    $region50: #{pcb_test_forward.24} parent=5 // pred_check_branch
      %814 = sbr.rel (%p812) target = $region52
    $region51: #{pcb_test_forward.24} parent=5 // pred_region
      %s815 = ssub.s32 %s10, 2
      // Predicated region
      $region53: #{pcb_test_forward.24} parent=51 // pred_check
        %p816 = pneg %p170
      $region54: #{pcb_test_forward.24} parent=51 // pred_check_branch
        %818 = sbr.rel (%p816) target = $region56
      $region55: #{pcb_test_forward.24} parent=51 // pred_region
        %s819 = smul.u32 16, %s23
        %p820 = scmp.lt.s32.totalorder %s819, 31
        %s821 = scalar_select %p820, %s819, 31
        %p822 = scmp.lt.s32.totalorder %s24, 0
        %s823 = scalar_select %p822, %s24, 0
        %s824 = sadd.s32 %s823, %s821
        %s825 = smul.addr %s824, 4
        %s826 = scalar_lea.vmem %s4, %s825
      $region56: #{pcb_test_forward.24} parent=51 // pred_fallthru
        _
    $region52: #{pcb_test_forward.24} parent=5 // pred_fallthru
      _
  $region6: #{pcb_test_forward.24} parent=0 // loop_footer
    %s14 = sadd.s32 1, %s10
  $region7: #{pcb_test_forward.24} parent=0 // loop_footer_branch
    %9 = sbr.rel target = $region3
  $region8: #{pcb_test_forward.24} parent=0 // loop_exit
    _

// kernel: pcb_test_forward.21
$region0: #{pcb_test_forward.21}
  #allocation0 [shape = 'u32[]', space=smem, size = 0x4, offset = 0x4, fixed_abs, tag = 'smem constant byte address 0x4 - core index']
  #allocation1 [shape = 'u32[144,128]{1,0:T(1,128)}', space=vmem, size = 0x12000, scoped, tag = 'internal scratch']
  #allocation2 [shape = 'f32[128,128]{1,0:T(8,128)}', space=vmem, size = 0x10000, scoped, tag = 'scratch operand']
  %s0 = inlined_call_operand.vmem [shape: bf16[256,128], index: 0, kind: input, shape index: {}]
  %s1 = inlined_call_operand.vmem [shape: bf16[128,128], index: 1, kind: input, shape index: {}]
  %s2 = inlined_call_operand.vmem [shape: f32[1,128], index: 2, kind: input, shape index: {}]
  %s3 = inlined_call_operand.vmem [shape: bf16[256,128], index: 3, kind: output, shape index: {}]
  %s4 = sld [smem:[#allocation0]]
  $region53: #{pcb_test_forward.21} parent=0
    _
  %s6 = ssub.s32 1, %s4
  %s7 = scalar_select 0, %s6, %s4
  loop: start=0, step=1, limit=4
  $region2: #{pcb_test_forward.21} parent=0 // loop_pre_header
    _
  $region3: #{pcb_test_forward.21} parent=0 // loop_header
    %s9 = sphi 0, %s13
    %p10 = scmp.ge.s32.totalorder %s9, 4
    %s16 = sphi 0, %s35
    %s17 = sphi 0, %s31
    %s18 = sphi 0, %s27
    %s19 = sphi 0, %s16
    %s20 = sphi 0, %s17
    %s21 = sphi 0, %s18
    %s22 = sphi 0, %s19
    %s23 = sphi 0, %s20
    %s24 = sphi 0, %s21
    %s40 = sphi 0, %s42
    %s43 = sphi 0, %s40
    %s44 = sphi 0, %s43
    %s60 = sphi 0, %s44
    %s68 = sphi 0, %s70
    %s71 = sphi 0, %s68
    %s72 = sphi 0, %s71
    %s88 = sphi 0, %s72
    %s94 = sphi 0, %s96
    %s97 = sphi 0, %s94
    %s98 = sphi 0, %s97
    %s114 = sphi 0, %s98
    %s122 = sphi 0, %s124
    %s125 = sphi 0, %s122
    %s126 = sphi 0, %s125
    %s142 = sphi 0, %s126
  $region4: #{pcb_test_forward.21} parent=0 // loop_header_branch
    %12 = sbr.rel (%p10) target = $region8
  $region5: #{pcb_test_forward.21} parent=0 // loop_body
    %s14 = ssub.s32 %s9, 1
    %s15 = ssub.s32 %s9, 2
    %s25 = sadd.s32 1, %s18
    %p26 = scmp.ge.s32.totalorder %s25, 1
    %s27 = scalar_select %p26, 0, %s25
    %s28 = sadd.s32 1, %s17
    %s29 = scalar_select %p26, %s28, %s17
    %p30 = scmp.ge.s32.totalorder %s29, 1
    %s31 = scalar_select %p30, 0, %s29
    %s32 = sadd.s32 1, %s16
    %s33 = scalar_select %p30, %s32, %s16
    %p34 = scmp.ge.s32.totalorder %s33, 2
    %s35 = scalar_select %p34, 0, %s33
    %s36 = ssub.s32 %s16, %s35
    %s37 = ssub.s32 %s18, %s27
    %s38 = sor.u32 %s36, %s37
    %p39 = scmp.eq.s32.totalorder %s38, 0
    %s41 = sadd.s32 %s40, 1
    %s42 = scalar_select %p39, %s40, %s41
    %p45 = pneg %p39
    %p46 = scmp.eq.s32.totalorder %s9, 1
    %p47 = por %p45, %p46
    %p48 = scmp.ne.s32.totalorder %s40, %s43
    %p49 = scmp.eq.s32.totalorder %s9, 0
    %p50 = por %p48, %p49
    %p51 = scmp.ne.s32.totalorder %s40, %s43
    %p52 = scmp.eq.s32.totalorder %s14, 1
    %p53 = por %p51, %p52
    %p54 = scmp.ne.s32.totalorder %s43, %s44
    %p55 = scmp.eq.s32.totalorder %s14, 0
    %p56 = por %p54, %p55
    %p57 = scmp.ne.s32.totalorder %s43, %s44
    %p58 = scmp.eq.s32.totalorder %s15, 1
    %p59 = por %p57, %p58
    %p61 = scmp.ne.s32.totalorder %s44, %s60
    %p62 = scmp.eq.s32.totalorder %s15, 0
    %p63 = por %p61, %p62
    %s64 = ssub.s32 %s18, %s27
    %s65 = ssub.s32 %s17, %s31
    %s66 = sor.u32 %s64, %s65
    %p67 = scmp.eq.s32.totalorder %s66, 0
    %s69 = sadd.s32 %s68, 1
    %s70 = scalar_select %p67, %s68, %s69
    %p73 = pneg %p67
    %p74 = scmp.eq.s32.totalorder %s9, 1
    %p75 = por %p73, %p74
    %p76 = scmp.ne.s32.totalorder %s68, %s71
    %p77 = scmp.eq.s32.totalorder %s9, 0
    %p78 = por %p76, %p77
    %p79 = scmp.ne.s32.totalorder %s68, %s71
    %p80 = scmp.eq.s32.totalorder %s14, 1
    %p81 = por %p79, %p80
    %p82 = scmp.ne.s32.totalorder %s71, %s72
    %p83 = scmp.eq.s32.totalorder %s14, 0
    %p84 = por %p82, %p83
    %p85 = scmp.ne.s32.totalorder %s71, %s72
    %p86 = scmp.eq.s32.totalorder %s15, 1
    %p87 = por %p85, %p86
    %p89 = scmp.ne.s32.totalorder %s72, %s88
    %p90 = scmp.eq.s32.totalorder %s15, 0
    %p91 = por %p89, %p90
    %s92 = ssub.s32 %s17, %s31
    %p93 = scmp.eq.s32.totalorder %s92, 0
    %s95 = sadd.s32 %s94, 1
    %s96 = scalar_select %p93, %s94, %s95
    %p99 = pneg %p93
    %p100 = scmp.eq.s32.totalorder %s9, 1
    %p101 = por %p99, %p100
    %p102 = scmp.ne.s32.totalorder %s94, %s97
    %p103 = scmp.eq.s32.totalorder %s9, 0
    %p104 = por %p102, %p103
    %p105 = scmp.ne.s32.totalorder %s94, %s97
    %p106 = scmp.eq.s32.totalorder %s14, 1
    %p107 = por %p105, %p106
    %p108 = scmp.ne.s32.totalorder %s97, %s98
    %p109 = scmp.eq.s32.totalorder %s14, 0
    %p110 = por %p108, %p109
    %p111 = scmp.ne.s32.totalorder %s97, %s98
    %p112 = scmp.eq.s32.totalorder %s15, 1
    %p113 = por %p111, %p112
    %p115 = scmp.ne.s32.totalorder %s98, %s114
    %p116 = scmp.eq.s32.totalorder %s15, 0
    %p117 = por %p115, %p116
    %s118 = ssub.s32 %s16, %s35
    %s119 = ssub.s32 %s17, %s31
    %s120 = sor.u32 %s118, %s119
    %p121 = scmp.eq.s32.totalorder %s120, 0
    %s123 = sadd.s32 %s122, 1
    %s124 = scalar_select %p121, %s122, %s123
    %p127 = pneg %p121
    %p128 = scmp.eq.s32.totalorder %s9, 1
    %p129 = por %p127, %p128
    %p130 = scmp.ne.s32.totalorder %s122, %s125
    %p131 = scmp.eq.s32.totalorder %s9, 0
    %p132 = por %p130, %p131
    %p133 = scmp.ne.s32.totalorder %s122, %s125
    %p134 = scmp.eq.s32.totalorder %s14, 1
    %p135 = por %p133, %p134
    %p136 = scmp.ne.s32.totalorder %s125, %s126
    %p137 = scmp.eq.s32.totalorder %s14, 0
    %p138 = por %p136, %p137
    %p139 = scmp.ne.s32.totalorder %s125, %s126
    %p140 = scmp.eq.s32.totalorder %s15, 1
    %p141 = por %p139, %p140
    %p143 = scmp.ne.s32.totalorder %s126, %s142
    %p144 = scmp.eq.s32.totalorder %s15, 0
    %p145 = por %p143, %p144
    %p146 = scmp.le.s32.totalorder 1, %s9
    %p147 = scmp.lt.s32.totalorder %s9, 3
    %p148 = pnand %p146, %p147
    %p149 = pneg %p148
    // Predicated region
    $region9: #{pcb_test_forward.21} parent=5 // pred_check
      _
    $region10: #{pcb_test_forward.21} parent=5 // pred_check_branch
      %151 = sbr.rel (%p148) target = $region12
    $region11: #{pcb_test_forward.21} parent=5 // pred_region
      %s152 = ssub.s32 %s9, 1
      // Predicated region
      $region13: #{pcb_test_forward.21} parent=11 // pred_check
        %p153 = pneg %p84
      $region14: #{pcb_test_forward.21} parent=11 // pred_check_branch
        %155 = sbr.rel (%p153) target = $region16
      $region15: #{pcb_test_forward.21} parent=11 // pred_region
        %s156 = smul.u32 16, %s21
        %p157 = scmp.lt.s32.totalorder %s156, 15
        %s158 = scalar_select %p157, %s156, 15
        %p159 = scmp.lt.s32.totalorder %s20, 0
        %s160 = scalar_select %p159, %s20, 0
        %s161 = sadd.s32 %s160, %s158
        %s162 = smul.addr %s161, 4
        %s163 = scalar_lea.vmem %s1, %s162
        %s164 = smul.u32 16, %s21
      $region16: #{pcb_test_forward.21} parent=11 // pred_fallthru
        _
      // Predicated region
      $region17: #{pcb_test_forward.21} parent=11 // pred_check
        %p165 = pneg %p110
      $region18: #{pcb_test_forward.21} parent=11 // pred_check_branch
        %167 = sbr.rel (%p165) target = $region20
      $region19: #{pcb_test_forward.21} parent=11 // pred_region
        %p168 = scmp.lt.s32.totalorder %s20, 0
        %s169 = scalar_select %p168, %s20, 0
        %s170 = scalar_lea.vmem %s2, %s169
      $region20: #{pcb_test_forward.21} parent=11 // pred_fallthru
        _
    $region12: #{pcb_test_forward.21} parent=5 // pred_fallthru
      _
    %p171 = scmp.lt.s32.totalorder %s9, 2
    // Predicated region
    $region21: #{pcb_test_forward.21} parent=5 // pred_check
      %p172 = pneg %p171
    $region22: #{pcb_test_forward.21} parent=5 // pred_check_branch
      %174 = sbr.rel (%p172) target = $region24
    $region23: #{pcb_test_forward.21} parent=5 // pred_region
      // Predicated region
      $region25: #{pcb_test_forward.21} parent=23 // pred_check
        %p175 = pneg %p50
      $region26: #{pcb_test_forward.21} parent=23 // pred_check_branch
        %177 = sbr.rel (%p175) target = $region28
      $region27: #{pcb_test_forward.21} parent=23 // pred_region
        %s178 = smul.u32 16, %s16
        %p179 = scmp.lt.s32.totalorder %s178, 31
        %s180 = scalar_select %p179, %s178, 31
        %p181 = scmp.lt.s32.totalorder %s18, 0
        %s182 = scalar_select %p181, %s18, 0
        %s183 = sadd.s32 %s182, %s180
        %s184 = smul.addr %s183, 4
        %s185 = scalar_lea.vmem %s0, %s184
        %s186 = smul.u32 16, %s16
      $region28: #{pcb_test_forward.21} parent=23 // pred_fallthru
        _
    $region24: #{pcb_test_forward.21} parent=5 // pred_fallthru
      _
    %p187 = scmp.le.s32.totalorder 1, %s9
    %p188 = scmp.lt.s32.totalorder %s9, 3
    %p189 = pnand %p187, %p188
    %p190 = pneg %p189
    // Predicated region
    $region29: #{pcb_test_forward.21} parent=5 // pred_check
      _
    $region30: #{pcb_test_forward.21} parent=5 // pred_check_branch
      %192 = sbr.rel (%p189) target = $region32
    $region31: #{pcb_test_forward.21} parent=5 // pred_region
      %s193 = ssub.s32 %s9, 1
      %s194 = smul.u32 16, %s19
      %p195 = scmp.lt.s32.totalorder %s194, 31
      %s196 = scalar_select %p195, %s194, 31
      %p197 = scmp.lt.s32.totalorder %s21, 0
      %s198 = scalar_select %p197, %s21, 0
      %s199 = sadd.s32 %s198, %s196
      %s200 = smul.addr %s199, 4
      %s201 = scalar_lea.vmem %s0, %s200
      %p202 = pneg %p56
      %p203 = pneg %p53
      %s204 = smul.u32 16, %s21
      %p205 = scmp.lt.s32.totalorder %s204, 15
      %s206 = scalar_select %p205, %s204, 15
      %p207 = scmp.lt.s32.totalorder %s20, 0
      %s208 = scalar_select %p207, %s20, 0
      %s209 = sadd.s32 %s208, %s206
      %s210 = smul.addr %s209, 4
      %s211 = scalar_lea.vmem %s1, %s210
      %p212 = pneg %p84
      %p213 = pneg %p81
      %p214 = scmp.lt.s32.totalorder %s20, 0
      %s215 = scalar_select %p214, %s20, 0
      %s216 = scalar_lea.vmem %s2, %s215
      %p217 = pneg %p110
      %p218 = pneg %p107
      %p219 = pneg %p138
      %p220 = pneg %p135
      %s221 = smul.u32 16, %s19
      %p222 = scmp.lt.s32.totalorder %s221, 31
      %s223 = scalar_select %p222, %s221, 31
      %p224 = scmp.lt.s32.totalorder %s20, 0
      %s225 = scalar_select %p224, %s20, 0
      %s226 = sadd.s32 %s225, %s223
      %s227 = smul.addr %s226, 4
      %s228 = scalar_lea.vmem %s3, %s227
      %s229 = smul.u32 16, %s19
      %p230 = scmp.lt.s32.totalorder %s229, 31
      %s231 = scalar_select %p230, %s229, 31
      %p232 = scmp.lt.s32.totalorder %s21, 0
      %s233 = scalar_select %p232, %s21, 0
      %s234 = sadd.s32 %s233, %s231
      %s235 = smul.addr %s234, 4
      %s236 = scalar_lea.vmem %s0, %s235
      %s237 = smul.u32 16, %s19
      %s238 = smul.u32 16, %s21
      %p239 = scmp.lt.s32.totalorder %s238, 15
      %s240 = scalar_select %p239, %s238, 15
      %p241 = scmp.lt.s32.totalorder %s20, 0
      %s242 = scalar_select %p241, %s20, 0
      %s243 = sadd.s32 %s242, %s240
      %s244 = smul.addr %s243, 4
      %s245 = scalar_lea.vmem %s1, %s244
      %s246 = smul.u32 16, %s21
      %p247 = scmp.lt.s32.totalorder %s20, 0
      %s248 = scalar_select %p247, %s20, 0
      %s249 = scalar_lea.vmem %s2, %s248
      %s250 = smul.u32 16, %s19
      %p251 = scmp.lt.s32.totalorder %s250, 31
      %s252 = scalar_select %p251, %s250, 31
      %p253 = scmp.lt.s32.totalorder %s20, 0
      %s254 = scalar_select %p253, %s20, 0
      %s255 = sadd.s32 %s254, %s252
      %s256 = smul.addr %s255, 4
      %s257 = scalar_lea.vmem %s3, %s256
      %s258 = smul.u32 16, %s19
      %p260 = scmp.eq.s32.totalorder %s21, 0
      // Predicated region
      $region33: #{pcb_test_forward.21} parent=31 // pred_check
        %p261 = pneg %p260
      $region34: #{pcb_test_forward.21} parent=31 // pred_check_branch
        %263 = sbr.rel (%p261) target = $region36
      $region35: #{pcb_test_forward.21} parent=31 // pred_region
        %264 = vst [vmem:[#allocation2] sm:$0xff] 0.0
        %265 = vst [vmem:[#allocation2 + $0x8] sm:$0xff] 0.0
        %266 = vst [vmem:[#allocation2 + $0x10] sm:$0xff] 0.0
        %267 = vst [vmem:[#allocation2 + $0x18] sm:$0xff] 0.0
        %268 = vst [vmem:[#allocation2 + $0x20] sm:$0xff] 0.0
        %269 = vst [vmem:[#allocation2 + $0x28] sm:$0xff] 0.0
        %270 = vst [vmem:[#allocation2 + $0x30] sm:$0xff] 0.0
        %271 = vst [vmem:[#allocation2 + $0x38] sm:$0xff] 0.0
        %272 = vst [vmem:[#allocation2 + $0x40] sm:$0xff] 0.0
        %273 = vst [vmem:[#allocation2 + $0x48] sm:$0xff] 0.0
        %274 = vst [vmem:[#allocation2 + $0x50] sm:$0xff] 0.0
        %275 = vst [vmem:[#allocation2 + $0x58] sm:$0xff] 0.0
        %276 = vst [vmem:[#allocation2 + $0x60] sm:$0xff] 0.0
        %277 = vst [vmem:[#allocation2 + $0x68] sm:$0xff] 0.0
        %278 = vst [vmem:[#allocation2 + $0x70] sm:$0xff] 0.0
        %279 = vst [vmem:[#allocation2 + $0x78] sm:$0xff] 0.0
      $region36: #{pcb_test_forward.21} parent=31 // pred_fallthru
        _
      %v280 = vld [vmem:[#allocation2] sm:$0xff]
      %v281 = vld [vmem:[#allocation2 + $0x8] sm:$0xff]
      %v282 = vld [vmem:[#allocation2 + $0x10] sm:$0xff]
      %v283 = vld [vmem:[#allocation2 + $0x18] sm:$0xff]
      %v284 = vld [vmem:[#allocation2 + $0x20] sm:$0xff]
      %v285 = vld [vmem:[#allocation2 + $0x28] sm:$0xff]
      %v286 = vld [vmem:[#allocation2 + $0x30] sm:$0xff]
      %v287 = vld [vmem:[#allocation2 + $0x38] sm:$0xff]
      %v288 = vld [vmem:[#allocation2 + $0x40] sm:$0xff]
      %v289 = vld [vmem:[#allocation2 + $0x48] sm:$0xff]
      %v290 = vld [vmem:[#allocation2 + $0x50] sm:$0xff]
      %v291 = vld [vmem:[#allocation2 + $0x58] sm:$0xff]
      %v292 = vld [vmem:[#allocation2 + $0x60] sm:$0xff]
      %v293 = vld [vmem:[#allocation2 + $0x68] sm:$0xff]
      %v294 = vld [vmem:[#allocation2 + $0x70] sm:$0xff]
      %v295 = vld [vmem:[#allocation2 + $0x78] sm:$0xff]
      %v296 = vld [vmem:[%s236] sm:$0xf]
      %v297 = vld [vmem:[%s236 + $0x4] sm:$0xf]
      %v298 = vld [vmem:[%s236 + $0x8] sm:$0xf]
      %v299 = vld [vmem:[%s236 + $0xc] sm:$0xf]
      %v300 = vld [vmem:[%s236 + $0x10] sm:$0xf]
      %v301 = vld [vmem:[%s236 + $0x14] sm:$0xf]
      %v302 = vld [vmem:[%s236 + $0x18] sm:$0xf]
      %v303 = vld [vmem:[%s236 + $0x1c] sm:$0xf]
      %v304 = vld [vmem:[%s236 + $0x20] sm:$0xf]
      %v305 = vld [vmem:[%s236 + $0x24] sm:$0xf]
      %v306 = vld [vmem:[%s236 + $0x28] sm:$0xf]
      %v307 = vld [vmem:[%s236 + $0x2c] sm:$0xf]
      %v308 = vld [vmem:[%s236 + $0x30] sm:$0xf]
      %v309 = vld [vmem:[%s236 + $0x34] sm:$0xf]
      %v310 = vld [vmem:[%s236 + $0x38] sm:$0xf]
      %v311 = vld [vmem:[%s236 + $0x3c] sm:$0xf]
      %v312 = vld [vmem:[%s245] sm:$0xf]
      %v313 = vld [vmem:[%s245 + $0x4] sm:$0xf]
      %v314 = vld [vmem:[%s245 + $0x8] sm:$0xf]
      %v315 = vld [vmem:[%s245 + $0xc] sm:$0xf]
      %v316 = vld [vmem:[%s245 + $0x10] sm:$0xf]
      %v317 = vld [vmem:[%s245 + $0x14] sm:$0xf]
      %v318 = vld [vmem:[%s245 + $0x18] sm:$0xf]
      %v319 = vld [vmem:[%s245 + $0x1c] sm:$0xf]
      %v320 = vld [vmem:[%s245 + $0x20] sm:$0xf]
      %v321 = vld [vmem:[%s245 + $0x24] sm:$0xf]
      %v322 = vld [vmem:[%s245 + $0x28] sm:$0xf]
      %v323 = vld [vmem:[%s245 + $0x2c] sm:$0xf]
      %v324 = vld [vmem:[%s245 + $0x30] sm:$0xf]
      %v325 = vld [vmem:[%s245 + $0x34] sm:$0xf]
      %v326 = vld [vmem:[%s245 + $0x38] sm:$0xf]
      %v327 = vld [vmem:[%s245 + $0x3c] sm:$0xf]
      %v344 = vunpack.c.l.b16 %v296
      %v345 = vunpack.c.l.b16 %v297
      %v346 = vunpack.c.l.b16 %v298
      %v347 = vunpack.c.l.b16 %v299
      %v348 = vunpack.c.l.b16 %v300
      %v349 = vunpack.c.l.b16 %v301
      %v350 = vunpack.c.l.b16 %v302
      %v351 = vunpack.c.l.b16 %v303
      %v352 = vunpack.c.l.b16 %v304
      %v353 = vunpack.c.l.b16 %v305
      %v354 = vunpack.c.l.b16 %v306
      %v355 = vunpack.c.l.b16 %v307
      %v356 = vunpack.c.l.b16 %v308
      %v357 = vunpack.c.l.b16 %v309
      %v358 = vunpack.c.l.b16 %v310
      %v359 = vunpack.c.l.b16 %v311
      %v360 = vpack.c.b16 %v345, %v344
      %v361 = vpack.c.b16 %v347, %v346
      %v362 = vpack.c.b16 %v349, %v348
      %v363 = vpack.c.b16 %v351, %v350
      %v364 = vpack.c.b16 %v353, %v352
      %v365 = vpack.c.b16 %v355, %v354
      %v366 = vpack.c.b16 %v357, %v356
      %v367 = vpack.c.b16 %v359, %v358
      %v392 = vunpack.c.l.b16 %v312
      %v393 = vunpack.c.l.b16 %v313
      %v394 = vunpack.c.l.b16 %v314
      %v395 = vunpack.c.l.b16 %v315
      %v396 = vunpack.c.l.b16 %v316
      %v397 = vunpack.c.l.b16 %v317
      %v398 = vunpack.c.l.b16 %v318
      %v399 = vunpack.c.l.b16 %v319
      %v400 = vunpack.c.l.b16 %v320
      %v401 = vunpack.c.l.b16 %v321
      %v402 = vunpack.c.l.b16 %v322
      %v403 = vunpack.c.l.b16 %v323
      %v404 = vunpack.c.l.b16 %v324
      %v405 = vunpack.c.l.b16 %v325
      %v406 = vunpack.c.l.b16 %v326
      %v407 = vunpack.c.l.b16 %v327
      %v408 = vpack.c.b16 %v393, %v392
      %v409 = vpack.c.b16 %v395, %v394
      %v410 = vpack.c.b16 %v397, %v396
      %v411 = vpack.c.b16 %v399, %v398
      %v412 = vpack.c.b16 %v401, %v400
      %v413 = vpack.c.b16 %v403, %v402
      %v414 = vpack.c.b16 %v405, %v404
      %v415 = vpack.c.b16 %v407, %v406
      %424 = vmatprep.subr.bf16.mxu0 0
      %425 = vmatpush1.bf16.msra.mxu0 %v415
      %426 = vmatprep.subr.bf16.mxu0 0
      %427 = vmatpush1.bf16.msra.mxu0 %v414
      %428 = vmatprep.subr.bf16.mxu0 0
      %429 = vmatpush1.bf16.msra.mxu0 %v413
      %430 = vmatprep.subr.bf16.mxu0 0
      %431 = vmatpush1.bf16.msra.mxu0 %v412
      %432 = vmatprep.subr.bf16.mxu0 0
      %433 = vmatpush1.bf16.msra.mxu0 %v411
      %434 = vmatprep.subr.bf16.mxu0 0
      %435 = vmatpush1.bf16.msra.mxu0 %v410
      %436 = vmatprep.subr.bf16.mxu0 0
      %437 = vmatpush1.bf16.msra.mxu0 %v409
      %438 = vmatprep.subr.bf16.mxu0 0
      %439 = vmatpush1.bf16.msra.mxu0 %v408
      %440 = vmatprep.subr.bf16.mxu0 0
      %441 = vmatpush2.bf16.msra.mxu0 0
      %442 = vmatprep.subr.bf16.mxu0 0
      %443 = vmatpush2.bf16.msra.mxu0 0
      %444 = vmatprep.subr.bf16.mxu0 0
      %445 = vmatpush2.bf16.msra.mxu0 0
      %446 = vmatprep.subr.bf16.mxu0 0
      %447 = vmatpush2.bf16.msra.mxu0 0
      %448 = vmatprep.subr.bf16.mxu0 0
      %449 = vmatpush2.bf16.msra.mxu0 0
      %450 = vmatprep.subr.bf16.mxu0 0
      %451 = vmatpush2.bf16.msra.mxu0 0
      %452 = vmatprep.subr.bf16.mxu0 0
      %453 = vmatpush2.bf16.msra.mxu0 0
      %454 = vmatprep.subr.bf16.mxu0 0
      %455 = vmatpush2.bf16.msra.mxu0 0
      %456 = vmatprep.mubr.bf16.mxu0 0
      %457 = vmatmul.mubr.bf16.gmra.mxu0 %v360
      %v458 = vpop.f32.mrf.mxu0
      %v459 = vadd.f32 0.0, %v458
      %v460 = vpop.f32.mrf.mxu0
      %v461 = vpop.f32.mrf.mxu0
      %v462 = vadd.f32 0.0, %v461
      %v463 = vpop.f32.mrf.mxu0
      %464 = vmatprep.mubr.bf16.mxu0 0
      %465 = vmatmul.mubr.bf16.gmra.mxu0 %v361
      %v466 = vpop.f32.mrf.mxu0
      %v467 = vadd.f32 0.0, %v466
      %v468 = vpop.f32.mrf.mxu0
      %v469 = vpop.f32.mrf.mxu0
      %v470 = vadd.f32 0.0, %v469
      %v471 = vpop.f32.mrf.mxu0
      %472 = vmatprep.mubr.bf16.mxu0 0
      %473 = vmatmul.mubr.bf16.gmra.mxu0 %v362
      %v474 = vpop.f32.mrf.mxu0
      %v475 = vadd.f32 0.0, %v474
      %v476 = vpop.f32.mrf.mxu0
      %v477 = vpop.f32.mrf.mxu0
      %v478 = vadd.f32 0.0, %v477
      %v479 = vpop.f32.mrf.mxu0
      %480 = vmatprep.mubr.bf16.mxu0 0
      %481 = vmatmul.mubr.bf16.gmra.mxu0 %v363
      %v482 = vpop.f32.mrf.mxu0
      %v483 = vadd.f32 0.0, %v482
      %v484 = vpop.f32.mrf.mxu0
      %v485 = vpop.f32.mrf.mxu0
      %v486 = vadd.f32 0.0, %v485
      %v487 = vpop.f32.mrf.mxu0
      %488 = vmatprep.mubr.bf16.mxu0 0
      %489 = vmatmul.mubr.bf16.gmra.mxu0 %v364
      %v490 = vpop.f32.mrf.mxu0
      %v491 = vadd.f32 0.0, %v490
      %v492 = vpop.f32.mrf.mxu0
      %v493 = vpop.f32.mrf.mxu0
      %v494 = vadd.f32 0.0, %v493
      %v495 = vpop.f32.mrf.mxu0
      %496 = vmatprep.mubr.bf16.mxu0 0
      %497 = vmatmul.mubr.bf16.gmra.mxu0 %v365
      %v498 = vpop.f32.mrf.mxu0
      %v499 = vadd.f32 0.0, %v498
      %v500 = vpop.f32.mrf.mxu0
      %v501 = vpop.f32.mrf.mxu0
      %v502 = vadd.f32 0.0, %v501
      %v503 = vpop.f32.mrf.mxu0
      %504 = vmatprep.mubr.bf16.mxu0 0
      %505 = vmatmul.mubr.bf16.gmra.mxu0 %v366
      %v506 = vpop.f32.mrf.mxu0
      %v507 = vadd.f32 0.0, %v506
      %v508 = vpop.f32.mrf.mxu0
      %v509 = vpop.f32.mrf.mxu0
      %v510 = vadd.f32 0.0, %v509
      %v511 = vpop.f32.mrf.mxu0
      %512 = vmatprep.mubr.bf16.mxu0 0
      %513 = vmatmul.mubr.bf16.gmra.mxu0 %v367
      %v514 = vpop.f32.mrf.mxu0
      %v515 = vadd.f32 0.0, %v514
      %v516 = vpop.f32.mrf.mxu0
      %v517 = vpop.f32.mrf.mxu0
      %v518 = vadd.f32 0.0, %v517
      %v519 = vpop.f32.mrf.mxu0
      %520 = vdwg.mxu0
      %v521 = vadd.f32 %v280, %v459
      %v522 = vadd.f32 %v281, %v462
      %v523 = vadd.f32 %v282, %v467
      %v524 = vadd.f32 %v283, %v470
      %v525 = vadd.f32 %v284, %v475
      %v526 = vadd.f32 %v285, %v478
      %v527 = vadd.f32 %v286, %v483
      %v528 = vadd.f32 %v287, %v486
      %v529 = vadd.f32 %v288, %v491
      %v530 = vadd.f32 %v289, %v494
      %v531 = vadd.f32 %v290, %v499
      %v532 = vadd.f32 %v291, %v502
      %v533 = vadd.f32 %v292, %v507
      %v534 = vadd.f32 %v293, %v510
      %v535 = vadd.f32 %v294, %v515
      %v536 = vadd.f32 %v295, %v518
      %537 = vst [vmem:[#allocation2] sm:$0xff] %v521
      %538 = vst [vmem:[#allocation2 + $0x8] sm:$0xff] %v522
      %539 = vst [vmem:[#allocation2 + $0x10] sm:$0xff] %v523
      %540 = vst [vmem:[#allocation2 + $0x18] sm:$0xff] %v524
      %541 = vst [vmem:[#allocation2 + $0x20] sm:$0xff] %v525
      %542 = vst [vmem:[#allocation2 + $0x28] sm:$0xff] %v526
      %543 = vst [vmem:[#allocation2 + $0x30] sm:$0xff] %v527
      %544 = vst [vmem:[#allocation2 + $0x38] sm:$0xff] %v528
      %545 = vst [vmem:[#allocation2 + $0x40] sm:$0xff] %v529
      %546 = vst [vmem:[#allocation2 + $0x48] sm:$0xff] %v530
      %547 = vst [vmem:[#allocation2 + $0x50] sm:$0xff] %v531
      %548 = vst [vmem:[#allocation2 + $0x58] sm:$0xff] %v532
      %549 = vst [vmem:[#allocation2 + $0x60] sm:$0xff] %v533
      %550 = vst [vmem:[#allocation2 + $0x68] sm:$0xff] %v534
      %551 = vst [vmem:[#allocation2 + $0x70] sm:$0xff] %v535
      %552 = vst [vmem:[#allocation2 + $0x78] sm:$0xff] %v536
      // Predicated region
      $region37: #{pcb_test_forward.21} parent=31 // pred_check
        %p553 = pneg %p260
      $region38: #{pcb_test_forward.21} parent=31 // pred_check_branch
        %555 = sbr.rel (%p553) target = $region40
      $region39: #{pcb_test_forward.21} parent=31 // pred_region
        %v556 = vld [vmem:[#allocation2] sm:$0xff]
        %v557 = vld [vmem:[#allocation2 + $0x8] sm:$0xff]
        %v558 = vld [vmem:[#allocation2 + $0x10] sm:$0xff]
        %v559 = vld [vmem:[#allocation2 + $0x18] sm:$0xff]
        %v560 = vld [vmem:[#allocation2 + $0x20] sm:$0xff]
        %v561 = vld [vmem:[#allocation2 + $0x28] sm:$0xff]
        %v562 = vld [vmem:[#allocation2 + $0x30] sm:$0xff]
        %v563 = vld [vmem:[#allocation2 + $0x38] sm:$0xff]
        %v564 = vld [vmem:[#allocation2 + $0x40] sm:$0xff]
        %v565 = vld [vmem:[#allocation2 + $0x48] sm:$0xff]
        %v566 = vld [vmem:[#allocation2 + $0x50] sm:$0xff]
        %v567 = vld [vmem:[#allocation2 + $0x58] sm:$0xff]
        %v568 = vld [vmem:[#allocation2 + $0x60] sm:$0xff]
        %v569 = vld [vmem:[#allocation2 + $0x68] sm:$0xff]
        %v570 = vld [vmem:[#allocation2 + $0x70] sm:$0xff]
        %v571 = vld [vmem:[#allocation2 + $0x78] sm:$0xff]
        %v572 = vld [vmem:[%s249] sm:$0x1]
        %v574 = vlaneseq
        %v575 = vshrl.u32 %v574, 7
        %v576 = vsub.s32 0, %v575
        %v577 = vrot.slane %v572, %v576
        %v579 = vadd.f32 %v556, %v577
        %v580 = vadd.f32 %v557, %v577
        %v581 = vadd.f32 %v558, %v577
        %v582 = vadd.f32 %v559, %v577
        %v583 = vadd.f32 %v560, %v577
        %v584 = vadd.f32 %v561, %v577
        %v585 = vadd.f32 %v562, %v577
        %v586 = vadd.f32 %v563, %v577
        %v587 = vadd.f32 %v564, %v577
        %v588 = vadd.f32 %v565, %v577
        %v589 = vadd.f32 %v566, %v577
        %v590 = vadd.f32 %v567, %v577
        %v591 = vadd.f32 %v568, %v577
        %v592 = vadd.f32 %v569, %v577
        %v593 = vadd.f32 %v570, %v577
        %v594 = vadd.f32 %v571, %v577
        %v595 = vpack.c.bf16 %v580, %v579
        %v596 = vpack.c.bf16 %v582, %v581
        %v597 = vpack.c.bf16 %v584, %v583
        %v598 = vpack.c.bf16 %v586, %v585
        %v599 = vpack.c.bf16 %v588, %v587
        %v600 = vpack.c.bf16 %v590, %v589
        %v601 = vpack.c.bf16 %v592, %v591
        %v602 = vpack.c.bf16 %v594, %v593
        %v611 = vunpack.c.l.b16 %v595
        %v612 = vunpack.c.h.b16 %v595
        %v613 = vunpack.c.l.b16 %v596
        %v614 = vunpack.c.h.b16 %v596
        %v615 = vunpack.c.l.b16 %v597
        %v616 = vunpack.c.h.b16 %v597
        %v617 = vunpack.c.l.b16 %v598
        %v618 = vunpack.c.h.b16 %v598
        %v619 = vunpack.c.l.b16 %v599
        %v620 = vunpack.c.h.b16 %v599
        %v621 = vunpack.c.l.b16 %v600
        %v622 = vunpack.c.h.b16 %v600
        %v623 = vunpack.c.l.b16 %v601
        %v624 = vunpack.c.h.b16 %v601
        %v625 = vunpack.c.l.b16 %v602
        %v626 = vunpack.c.h.b16 %v602
        %v627 = vpack.c.b16 %v611, %v611
        %v628 = vpack.c.b16 %v612, %v612
        %v629 = vpack.c.b16 %v613, %v613
        %v630 = vpack.c.b16 %v614, %v614
        %v631 = vpack.c.b16 %v615, %v615
        %v632 = vpack.c.b16 %v616, %v616
        %v633 = vpack.c.b16 %v617, %v617
        %v634 = vpack.c.b16 %v618, %v618
        %v635 = vpack.c.b16 %v619, %v619
        %v636 = vpack.c.b16 %v620, %v620
        %v637 = vpack.c.b16 %v621, %v621
        %v638 = vpack.c.b16 %v622, %v622
        %v639 = vpack.c.b16 %v623, %v623
        %v640 = vpack.c.b16 %v624, %v624
        %v641 = vpack.c.b16 %v625, %v625
        %v642 = vpack.c.b16 %v626, %v626
        %659 = vst [vmem:[%s257] sm:$0xf] %v627
        %660 = vst [vmem:[%s257 + $0x4] sm:$0xf] %v628
        %661 = vst [vmem:[%s257 + $0x8] sm:$0xf] %v629
        %662 = vst [vmem:[%s257 + $0xc] sm:$0xf] %v630
        %663 = vst [vmem:[%s257 + $0x10] sm:$0xf] %v631
        %664 = vst [vmem:[%s257 + $0x14] sm:$0xf] %v632
        %665 = vst [vmem:[%s257 + $0x18] sm:$0xf] %v633
        %666 = vst [vmem:[%s257 + $0x1c] sm:$0xf] %v634
        %667 = vst [vmem:[%s257 + $0x20] sm:$0xf] %v635
        %668 = vst [vmem:[%s257 + $0x24] sm:$0xf] %v636
        %669 = vst [vmem:[%s257 + $0x28] sm:$0xf] %v637
        %670 = vst [vmem:[%s257 + $0x2c] sm:$0xf] %v638
        %671 = vst [vmem:[%s257 + $0x30] sm:$0xf] %v639
        %672 = vst [vmem:[%s257 + $0x34] sm:$0xf] %v640
        %673 = vst [vmem:[%s257 + $0x38] sm:$0xf] %v641
        %674 = vst [vmem:[%s257 + $0x3c] sm:$0xf] %v642
      $region40: #{pcb_test_forward.21} parent=31 // pred_fallthru
        _
      %s675 = smul.u32 16, %s19
      %p676 = scmp.lt.s32.totalorder %s675, 31
      %s677 = scalar_select %p676, %s675, 31
      %p678 = scmp.lt.s32.totalorder %s20, 0
      %s679 = scalar_select %p678, %s20, 0
      %s680 = sadd.s32 %s679, %s677
      %s681 = smul.addr %s680, 4
      %s682 = scalar_lea.vmem %s3, %s681
      // Predicated region
      $region41: #{pcb_test_forward.21} parent=31 // pred_check
        %p683 = pneg %p135
      $region42: #{pcb_test_forward.21} parent=31 // pred_check_branch
        %685 = sbr.rel (%p683) target = $region44
      $region43: #{pcb_test_forward.21} parent=31 // pred_region
        %s686 = smul.u32 16, %s19
      $region44: #{pcb_test_forward.21} parent=31 // pred_fallthru
        _
    $region32: #{pcb_test_forward.21} parent=5 // pred_fallthru
      _
    %p687 = scmp.le.s32.totalorder 2, %s9
    // Predicated region
    $region45: #{pcb_test_forward.21} parent=5 // pred_check
      %p688 = pneg %p687
    $region46: #{pcb_test_forward.21} parent=5 // pred_check_branch
      %690 = sbr.rel (%p688) target = $region48
    $region47: #{pcb_test_forward.21} parent=5 // pred_region
      %s691 = ssub.s32 %s9, 2
      // Predicated region
      $region49: #{pcb_test_forward.21} parent=47 // pred_check
        %p692 = pneg %p141
      $region50: #{pcb_test_forward.21} parent=47 // pred_check_branch
        %694 = sbr.rel (%p692) target = $region52
      $region51: #{pcb_test_forward.21} parent=47 // pred_region
        %s695 = smul.u32 16, %s22
        %p696 = scmp.lt.s32.totalorder %s695, 31
        %s697 = scalar_select %p696, %s695, 31
        %p698 = scmp.lt.s32.totalorder %s23, 0
        %s699 = scalar_select %p698, %s23, 0
        %s700 = sadd.s32 %s699, %s697
        %s701 = smul.addr %s700, 4
        %s702 = scalar_lea.vmem %s3, %s701
      $region52: #{pcb_test_forward.21} parent=47 // pred_fallthru
        _
    $region48: #{pcb_test_forward.21} parent=5 // pred_fallthru
      _
  $region6: #{pcb_test_forward.21} parent=0 // loop_footer
    %s13 = sadd.s32 1, %s9
  $region7: #{pcb_test_forward.21} parent=0 // loop_footer_branch
    %8 = sbr.rel target = $region3
  $region8: #{pcb_test_forward.21} parent=0 // loop_exit
    _

// kernel: pcb_test_forward.27
$region0: #{pcb_test_forward.27}
  #allocation0 [shape = 'u32[]', space=smem, size = 0x4, offset = 0x4, fixed_abs, tag = 'smem constant byte address 0x4 - core index']
  #allocation1 [shape = 'u32[144,128]{1,0:T(1,128)}', space=vmem, size = 0x12000, scoped, tag = 'internal scratch']
  #allocation2 [shape = 'f32[128,128]{1,0:T(8,128)}', space=vmem, size = 0x10000, scoped, tag = 'scratch operand']
  %s0 = inlined_call_operand.vmem [shape: bf16[128,1152], index: 0, kind: input, shape index: {}]
  %s1 = inlined_call_operand.vmem [shape: bf16[1152,128], index: 1, kind: input, shape index: {}]
  %s2 = inlined_call_operand.vmem [shape: f32[1,128], index: 2, kind: input, shape index: {}]
  %s3 = inlined_call_operand.vmem [shape: bf16[128,128], index: 3, kind: output, shape index: {}]
  %s4 = sld [smem:[#allocation0]]
  $region94: #{pcb_test_forward.27} parent=0
    _
  %s6 = ssub.s32 1, %s4
  %s7 = scalar_select 0, %s6, %s4
  $region1: #{pcb_test_forward.27} parent=0
    #allocation3 [shape = 'u8[65536]{0}', space=vmem, size = 0x10000, scoped, tag = 'input window, operand 0']
    loop: start=0, step=1, limit=11
    $region2: #{pcb_test_forward.27} parent=1 // loop_pre_header
      _
    $region3: #{pcb_test_forward.27} parent=1 // loop_header
      %s9 = sphi 0, %s13
      %p10 = scmp.ge.s32.totalorder %s9, 11
      %s16 = sphi 0, %s35
      %s17 = sphi 0, %s31
      %s18 = sphi 0, %s27
      %s19 = sphi 0, %s16
      %s20 = sphi 0, %s17
      %s21 = sphi 0, %s18
      %s22 = sphi 0, %s19
      %s23 = sphi 0, %s20
      %s24 = sphi 0, %s21
      %s40 = sphi 0, %s42
      %s43 = sphi 0, %s40
      %s44 = sphi 0, %s43
      %s60 = sphi 0, %s44
      %s68 = sphi 0, %s70
      %s71 = sphi 0, %s68
      %s72 = sphi 0, %s71
      %s88 = sphi 0, %s72
      %s94 = sphi 0, %s96
      %s97 = sphi 0, %s94
      %s98 = sphi 0, %s97
      %s114 = sphi 0, %s98
      %s122 = sphi 0, %s124
      %s125 = sphi 0, %s122
      %s126 = sphi 0, %s125
      %s142 = sphi 0, %s126
    $region4: #{pcb_test_forward.27} parent=1 // loop_header_branch
      %12 = sbr.rel (%p10) target = $region8
    $region5: #{pcb_test_forward.27} parent=1 // loop_body
      %s14 = ssub.s32 %s9, 1
      %s15 = ssub.s32 %s9, 2
      %s25 = sadd.s32 1, %s18
      %p26 = scmp.ge.s32.totalorder %s25, 9
      %s27 = scalar_select %p26, 0, %s25
      %s28 = sadd.s32 1, %s17
      %s29 = scalar_select %p26, %s28, %s17
      %p30 = scmp.ge.s32.totalorder %s29, 1
      %s31 = scalar_select %p30, 0, %s29
      %s32 = sadd.s32 1, %s16
      %s33 = scalar_select %p30, %s32, %s16
      %p34 = scmp.ge.s32.totalorder %s33, 1
      %s35 = scalar_select %p34, 0, %s33
      %s36 = ssub.s32 %s16, %s35
      %s37 = ssub.s32 %s18, %s27
      %s38 = sor.u32 %s36, %s37
      %p39 = scmp.eq.s32.totalorder %s38, 0
      %s41 = sadd.s32 %s40, 1
      %s42 = scalar_select %p39, %s40, %s41
      %p45 = pneg %p39
      %p46 = scmp.eq.s32.totalorder %s9, 8
      %p47 = por %p45, %p46
      %p48 = scmp.ne.s32.totalorder %s40, %s43
      %p49 = scmp.eq.s32.totalorder %s9, 0
      %p50 = por %p48, %p49
      %p51 = scmp.ne.s32.totalorder %s40, %s43
      %p52 = scmp.eq.s32.totalorder %s14, 8
      %p53 = por %p51, %p52
      %p54 = scmp.ne.s32.totalorder %s43, %s44
      %p55 = scmp.eq.s32.totalorder %s14, 0
      %p56 = por %p54, %p55
      %p57 = scmp.ne.s32.totalorder %s43, %s44
      %p58 = scmp.eq.s32.totalorder %s15, 8
      %p59 = por %p57, %p58
      %p61 = scmp.ne.s32.totalorder %s44, %s60
      %p62 = scmp.eq.s32.totalorder %s15, 0
      %p63 = por %p61, %p62
      %s64 = ssub.s32 %s18, %s27
      %s65 = ssub.s32 %s17, %s31
      %s66 = sor.u32 %s64, %s65
      %p67 = scmp.eq.s32.totalorder %s66, 0
      %s69 = sadd.s32 %s68, 1
      %s70 = scalar_select %p67, %s68, %s69
      %p73 = pneg %p67
      %p74 = scmp.eq.s32.totalorder %s9, 8
      %p75 = por %p73, %p74
      %p76 = scmp.ne.s32.totalorder %s68, %s71
      %p77 = scmp.eq.s32.totalorder %s9, 0
      %p78 = por %p76, %p77
      %p79 = scmp.ne.s32.totalorder %s68, %s71
      %p80 = scmp.eq.s32.totalorder %s14, 8
      %p81 = por %p79, %p80
      %p82 = scmp.ne.s32.totalorder %s71, %s72
      %p83 = scmp.eq.s32.totalorder %s14, 0
      %p84 = por %p82, %p83
      %p85 = scmp.ne.s32.totalorder %s71, %s72
      %p86 = scmp.eq.s32.totalorder %s15, 8
      %p87 = por %p85, %p86
      %p89 = scmp.ne.s32.totalorder %s72, %s88
      %p90 = scmp.eq.s32.totalorder %s15, 0
      %p91 = por %p89, %p90
      %s92 = ssub.s32 %s17, %s31
      %p93 = scmp.eq.s32.totalorder %s92, 0
      %s95 = sadd.s32 %s94, 1
      %s96 = scalar_select %p93, %s94, %s95
      %p99 = pneg %p93
      %p100 = scmp.eq.s32.totalorder %s9, 8
      %p101 = por %p99, %p100
      %p102 = scmp.ne.s32.totalorder %s94, %s97
      %p103 = scmp.eq.s32.totalorder %s9, 0
      %p104 = por %p102, %p103
      %p105 = scmp.ne.s32.totalorder %s94, %s97
      %p106 = scmp.eq.s32.totalorder %s14, 8
      %p107 = por %p105, %p106
      %p108 = scmp.ne.s32.totalorder %s97, %s98
      %p109 = scmp.eq.s32.totalorder %s14, 0
      %p110 = por %p108, %p109
      %p111 = scmp.ne.s32.totalorder %s97, %s98
      %p112 = scmp.eq.s32.totalorder %s15, 8
      %p113 = por %p111, %p112
      %p115 = scmp.ne.s32.totalorder %s98, %s114
      %p116 = scmp.eq.s32.totalorder %s15, 0
      %p117 = por %p115, %p116
      %s118 = ssub.s32 %s16, %s35
      %s119 = ssub.s32 %s17, %s31
      %s120 = sor.u32 %s118, %s119
      %p121 = scmp.eq.s32.totalorder %s120, 0
      %s123 = sadd.s32 %s122, 1
      %s124 = scalar_select %p121, %s122, %s123
      %p127 = pneg %p121
      %p128 = scmp.eq.s32.totalorder %s9, 8
      %p129 = por %p127, %p128
      %p130 = scmp.ne.s32.totalorder %s122, %s125
      %p131 = scmp.eq.s32.totalorder %s9, 0
      %p132 = por %p130, %p131
      %p133 = scmp.ne.s32.totalorder %s122, %s125
      %p134 = scmp.eq.s32.totalorder %s14, 8
      %p135 = por %p133, %p134
      %p136 = scmp.ne.s32.totalorder %s125, %s126
      %p137 = scmp.eq.s32.totalorder %s14, 0
      %p138 = por %p136, %p137
      %p139 = scmp.ne.s32.totalorder %s125, %s126
      %p140 = scmp.eq.s32.totalorder %s15, 8
      %p141 = por %p139, %p140
      %p143 = scmp.ne.s32.totalorder %s126, %s142
      %p144 = scmp.eq.s32.totalorder %s15, 0
      %p145 = por %p143, %p144
      %p146 = scmp.le.s32.totalorder 1, %s9
      %p147 = scmp.lt.s32.totalorder %s9, 10
      %p148 = pnand %p146, %p147
      %p149 = pneg %p148
      // Predicated region
      $region9: #{pcb_test_forward.27} parent=5 // pred_check
        _
      $region10: #{pcb_test_forward.27} parent=5 // pred_check_branch
        %151 = sbr.rel (%p148) target = $region12
      $region11: #{pcb_test_forward.27} parent=5 // pred_region
        %s152 = ssub.s32 %s9, 1
        // Predicated region
        $region13: #{pcb_test_forward.27} parent=11 // pred_check
          %p153 = pneg %p110
        $region14: #{pcb_test_forward.27} parent=11 // pred_check_branch
          %155 = sbr.rel (%p153) target = $region16
        $region15: #{pcb_test_forward.27} parent=11 // pred_region
          %p156 = scmp.lt.s32.totalorder %s20, 0
          %s157 = scalar_select %p156, %s20, 0
          %s158 = scalar_lea.vmem %s2, %s157
        $region16: #{pcb_test_forward.27} parent=11 // pred_fallthru
          _
      $region12: #{pcb_test_forward.27} parent=5 // pred_fallthru
        _
      %p159 = scmp.lt.s32.totalorder %s9, 9
      // Predicated region
      $region17: #{pcb_test_forward.27} parent=5 // pred_check
        %p160 = pneg %p159
      $region18: #{pcb_test_forward.27} parent=5 // pred_check_branch
        %162 = sbr.rel (%p160) target = $region20
      $region19: #{pcb_test_forward.27} parent=5 // pred_region
        // Predicated region
        $region21: #{pcb_test_forward.27} parent=19 // pred_check
          %p163 = pneg %p50
        $region22: #{pcb_test_forward.27} parent=19 // pred_check_branch
          %165 = sbr.rel (%p163) target = $region24
        $region23: #{pcb_test_forward.27} parent=19 // pred_region
          %s166 = sand.u32 %s40, 1
          %s167 = sand.u32 %s40, 1
          %s168 = smul.addr %s167, 64
          %s169 = scalar_lea.vmem [#allocation3], %s168
          %s170 = smul.u32 16, %s16
          %s171 = smul.addr %s170, 9
          %s172 = sadd.s32 %s18, %s171
          %s173 = smul.addr %s172, 4
          %s174 = scalar_lea.vmem %s0, %s173
          // Predicated region
          $region25: #{pcb_test_forward.27} parent=23 // pred_check
            _
          $region26: #{pcb_test_forward.27} parent=23 // pred_check_branch
            %176 = sbr.rel (0) target = $region28
          $region27: #{pcb_test_forward.27} parent=23 // pred_region
            // Predicated region
            $region29: #{pcb_test_forward.27} parent=27 // pred_check
              _
            $region30: #{pcb_test_forward.27} parent=27 // pred_check_branch
              %178 = sbr.rel target = $region32
            $region31: #{pcb_test_forward.27} parent=27 // pred_region
              // Predicated region
              $region44: #{pcb_test_forward.27} parent=31 // pred_check
                _
              $region45: #{pcb_test_forward.27} parent=31 // pred_check_branch
                %224 = sbr.rel (0) target = $region47
              $region46: #{pcb_test_forward.27} parent=31 // pred_region
                loop: start=0, step=1, limit=1
                $region48: #{pcb_test_forward.27} parent=46 // loop_pre_header
                  _
                $region49: #{pcb_test_forward.27} parent=46 // loop_header
                  %s226 = sphi 0, %s230
                  %p227 = scmp.ge.s32.totalorder %s226, 1
                  %s231 = sphi %s174, %s174
                  %s232 = sphi %s169, %s169
                $region50: #{pcb_test_forward.27} parent=46 // loop_header_branch
                  %229 = sbr.rel (%p227) target = $region54
                $region51: #{pcb_test_forward.27} parent=46 // loop_body
                  _
                $region52: #{pcb_test_forward.27} parent=46 // loop_footer
                  %s230 = sadd.s32 1, %s226
                $region53: #{pcb_test_forward.27} parent=46 // loop_footer_branch
                  %225 = sbr.rel target = $region49
                $region54: #{pcb_test_forward.27} parent=46 // loop_exit
                  _
                %s234 = ssub.s32 16, 1
                loop: start=0, step=1, limit=1
                $region55: #{pcb_test_forward.27} parent=46 // loop_pre_header
                  _
                $region56: #{pcb_test_forward.27} parent=46 // loop_header
                  %s236 = sphi 0, %s240
                  %p237 = scmp.ge.s32.totalorder %s236, 1
                  %s241 = sphi %s174, %s174
                  %s242 = sphi %s169, %s169
                $region57: #{pcb_test_forward.27} parent=46 // loop_header_branch
                  %239 = sbr.rel (%p237) target = $region61
                $region58: #{pcb_test_forward.27} parent=46 // loop_body
                  %v243 = vld [vmem:[%s241] sm:%s234]
                  %244 = vst [vmem:[%s242] sm:%s234] %v243
                  %v245 = vld [vmem:[%s241 + $0x24] sm:%s234]
                  %246 = vst [vmem:[%s242 + $0x4] sm:%s234] %v245
                  %v247 = vld [vmem:[%s241 + $0x48] sm:%s234]
                  %248 = vst [vmem:[%s242 + $0x8] sm:%s234] %v247
                  %v249 = vld [vmem:[%s241 + $0x6c] sm:%s234]
                  %250 = vst [vmem:[%s242 + $0xc] sm:%s234] %v249
                  %v251 = vld [vmem:[%s241 + $0x90] sm:%s234]
                  %252 = vst [vmem:[%s242 + $0x10] sm:%s234] %v251
                  %v253 = vld [vmem:[%s241 + $0xb4] sm:%s234]
                  %254 = vst [vmem:[%s242 + $0x14] sm:%s234] %v253
                  %v255 = vld [vmem:[%s241 + $0xd8] sm:%s234]
                  %256 = vst [vmem:[%s242 + $0x18] sm:%s234] %v255
                  %v257 = vld [vmem:[%s241 + $0xfc] sm:%s234]
                  %258 = vst [vmem:[%s242 + $0x1c] sm:%s234] %v257
                  %v259 = vld [vmem:[%s241 + $0x120] sm:%s234]
                  %260 = vst [vmem:[%s242 + $0x20] sm:%s234] %v259
                  %v261 = vld [vmem:[%s241 + $0x144] sm:%s234]
                  %262 = vst [vmem:[%s242 + $0x24] sm:%s234] %v261
                  %v263 = vld [vmem:[%s241 + $0x168] sm:%s234]
                  %264 = vst [vmem:[%s242 + $0x28] sm:%s234] %v263
                  %v265 = vld [vmem:[%s241 + $0x18c] sm:%s234]
                  %266 = vst [vmem:[%s242 + $0x2c] sm:%s234] %v265
                  %v267 = vld [vmem:[%s241 + $0x1b0] sm:%s234]
                  %268 = vst [vmem:[%s242 + $0x30] sm:%s234] %v267
                  %v269 = vld [vmem:[%s241 + $0x1d4] sm:%s234]
                  %270 = vst [vmem:[%s242 + $0x34] sm:%s234] %v269
                  %v271 = vld [vmem:[%s241 + $0x1f8] sm:%s234]
                  %272 = vst [vmem:[%s242 + $0x38] sm:%s234] %v271
                  %v273 = vld [vmem:[%s241 + $0x21c] sm:%s234]
                  %274 = vst [vmem:[%s242 + $0x3c] sm:%s234] %v273
                $region59: #{pcb_test_forward.27} parent=46 // loop_footer
                  %s240 = sadd.s32 1, %s236
                $region60: #{pcb_test_forward.27} parent=46 // loop_footer_branch
                  %235 = sbr.rel target = $region56
                $region61: #{pcb_test_forward.27} parent=46 // loop_exit
                  _
              $region47: #{pcb_test_forward.27} parent=31 // pred_fallthru
                _
            $region32: #{pcb_test_forward.27} parent=27 // pred_fallthru
              _
            // Predicated region
            $region33: #{pcb_test_forward.27} parent=27 // pred_check
              _
            $region34: #{pcb_test_forward.27} parent=27 // pred_check_branch
              %180 = sbr.rel (0) target = $region36
            $region35: #{pcb_test_forward.27} parent=27 // pred_region
              %s182 = ssub.s32 16, 1
              loop: start=0, step=1, limit=1
              $region37: #{pcb_test_forward.27} parent=35 // loop_pre_header
                _
              $region38: #{pcb_test_forward.27} parent=35 // loop_header
                %s184 = sphi 0, %s188
                %p185 = scmp.ge.s32.totalorder %s184, 1
                %s189 = sphi %s174, %s174
                %s190 = sphi %s169, %s169
              $region39: #{pcb_test_forward.27} parent=35 // loop_header_branch
                %187 = sbr.rel (%p185) target = $region43
              $region40: #{pcb_test_forward.27} parent=35 // loop_body
                %v191 = vld [vmem:[%s189] sm:%s182]
                %192 = vst [vmem:[%s190] sm:%s182] %v191
                %v193 = vld [vmem:[%s189 + $0x24] sm:%s182]
                %194 = vst [vmem:[%s190 + $0x4] sm:%s182] %v193
                %v195 = vld [vmem:[%s189 + $0x48] sm:%s182]
                %196 = vst [vmem:[%s190 + $0x8] sm:%s182] %v195
                %v197 = vld [vmem:[%s189 + $0x6c] sm:%s182]
                %198 = vst [vmem:[%s190 + $0xc] sm:%s182] %v197
                %v199 = vld [vmem:[%s189 + $0x90] sm:%s182]
                %200 = vst [vmem:[%s190 + $0x10] sm:%s182] %v199
                %v201 = vld [vmem:[%s189 + $0xb4] sm:%s182]
                %202 = vst [vmem:[%s190 + $0x14] sm:%s182] %v201
                %v203 = vld [vmem:[%s189 + $0xd8] sm:%s182]
                %204 = vst [vmem:[%s190 + $0x18] sm:%s182] %v203
                %v205 = vld [vmem:[%s189 + $0xfc] sm:%s182]
                %206 = vst [vmem:[%s190 + $0x1c] sm:%s182] %v205
                %v207 = vld [vmem:[%s189 + $0x120] sm:%s182]
                %208 = vst [vmem:[%s190 + $0x20] sm:%s182] %v207
                %v209 = vld [vmem:[%s189 + $0x144] sm:%s182]
                %210 = vst [vmem:[%s190 + $0x24] sm:%s182] %v209
                %v211 = vld [vmem:[%s189 + $0x168] sm:%s182]
                %212 = vst [vmem:[%s190 + $0x28] sm:%s182] %v211
                %v213 = vld [vmem:[%s189 + $0x18c] sm:%s182]
                %214 = vst [vmem:[%s190 + $0x2c] sm:%s182] %v213
                %v215 = vld [vmem:[%s189 + $0x1b0] sm:%s182]
                %216 = vst [vmem:[%s190 + $0x30] sm:%s182] %v215
                %v217 = vld [vmem:[%s189 + $0x1d4] sm:%s182]
                %218 = vst [vmem:[%s190 + $0x34] sm:%s182] %v217
                %v219 = vld [vmem:[%s189 + $0x1f8] sm:%s182]
                %220 = vst [vmem:[%s190 + $0x38] sm:%s182] %v219
                %v221 = vld [vmem:[%s189 + $0x21c] sm:%s182]
                %222 = vst [vmem:[%s190 + $0x3c] sm:%s182] %v221
              $region41: #{pcb_test_forward.27} parent=35 // loop_footer
                %s188 = sadd.s32 1, %s184
              $region42: #{pcb_test_forward.27} parent=35 // loop_footer_branch
                %183 = sbr.rel target = $region38
              $region43: #{pcb_test_forward.27} parent=35 // loop_exit
                _
            $region36: #{pcb_test_forward.27} parent=27 // pred_fallthru
              _
          $region28: #{pcb_test_forward.27} parent=23 // pred_fallthru
            _
          %275 = vnop
        $region24: #{pcb_test_forward.27} parent=19 // pred_fallthru
          _
        // Predicated region
        $region62: #{pcb_test_forward.27} parent=19 // pred_check
          %p276 = pneg %p78
        $region63: #{pcb_test_forward.27} parent=19 // pred_check_branch
          %278 = sbr.rel (%p276) target = $region65
        $region64: #{pcb_test_forward.27} parent=19 // pred_region
          %s279 = smul.u32 16, %s18
          %p280 = scmp.lt.s32.totalorder %s279, 143
          %s281 = scalar_select %p280, %s279, 143
          %p282 = scmp.lt.s32.totalorder %s17, 0
          %s283 = scalar_select %p282, %s17, 0
          %s284 = sadd.s32 %s283, %s281
          %s285 = smul.addr %s284, 4
          %s286 = scalar_lea.vmem %s1, %s285
          %s287 = smul.u32 16, %s18
        $region65: #{pcb_test_forward.27} parent=19 // pred_fallthru
          _
      $region20: #{pcb_test_forward.27} parent=5 // pred_fallthru
        _
      %p288 = scmp.le.s32.totalorder 1, %s9
      %p289 = scmp.lt.s32.totalorder %s9, 10
      %p290 = pnand %p288, %p289
      %p291 = pneg %p290
      // Predicated region
      $region66: #{pcb_test_forward.27} parent=5 // pred_check
        _
      $region67: #{pcb_test_forward.27} parent=5 // pred_check_branch
        %293 = sbr.rel (%p290) target = $region69
      $region68: #{pcb_test_forward.27} parent=5 // pred_region
        %s294 = ssub.s32 %s9, 1
        %s295 = sand.u32 %s43, 1
        %s296 = sand.u32 %s43, 1
        %s297 = smul.addr %s296, 64
        %s298 = scalar_lea.vmem [#allocation3], %s297
        // Predicated region
        $region70: #{pcb_test_forward.27} parent=68 // pred_check
          %p299 = pneg %p56
        $region71: #{pcb_test_forward.27} parent=68 // pred_check_branch
          %301 = sbr.rel (%p299) target = $region73
        $region72: #{pcb_test_forward.27} parent=68 // pred_region
          _
        $region73: #{pcb_test_forward.27} parent=68 // pred_fallthru
          _
        %s302 = sand.u32 %s43, 1
        %s303 = sand.u32 %s43, 1
        %s304 = smul.addr %s303, 64
        %s305 = scalar_lea.vmem [#allocation3], %s304
        %p306 = pneg %p56
        %p307 = pneg %p53
        %s308 = smul.u32 16, %s21
        %p309 = scmp.lt.s32.totalorder %s308, 143
        %s310 = scalar_select %p309, %s308, 143
        %p311 = scmp.lt.s32.totalorder %s20, 0
        %s312 = scalar_select %p311, %s20, 0
        %s313 = sadd.s32 %s312, %s310
        %s314 = smul.addr %s313, 4
        %s315 = scalar_lea.vmem %s1, %s314
        %p316 = pneg %p84
        %p317 = pneg %p81
        %p318 = scmp.lt.s32.totalorder %s20, 0
        %s319 = scalar_select %p318, %s20, 0
        %s320 = scalar_lea.vmem %s2, %s319
        %p321 = pneg %p110
        %p322 = pneg %p107
        %p323 = pneg %p138
        %p324 = pneg %p135
        %s325 = smul.u32 16, %s19
        %p326 = scmp.lt.s32.totalorder %s325, 15
        %s327 = scalar_select %p326, %s325, 15
        %p328 = scmp.lt.s32.totalorder %s20, 0
        %s329 = scalar_select %p328, %s20, 0
        %s330 = sadd.s32 %s329, %s327
        %s331 = smul.addr %s330, 4
        %s332 = scalar_lea.vmem %s3, %s331
        %s333 = smul.u32 16, %s19
        %s334 = smul.u32 16, %s21
        %p335 = scmp.lt.s32.totalorder %s334, 143
        %s336 = scalar_select %p335, %s334, 143
        %p337 = scmp.lt.s32.totalorder %s20, 0
        %s338 = scalar_select %p337, %s20, 0
        %s339 = sadd.s32 %s338, %s336
        %s340 = smul.addr %s339, 4
        %s341 = scalar_lea.vmem %s1, %s340
        %s342 = smul.u32 16, %s21
        %p343 = scmp.lt.s32.totalorder %s20, 0
        %s344 = scalar_select %p343, %s20, 0
        %s345 = scalar_lea.vmem %s2, %s344
        %s346 = smul.u32 16, %s19
        %p347 = scmp.lt.s32.totalorder %s346, 15
        %s348 = scalar_select %p347, %s346, 15
        %p349 = scmp.lt.s32.totalorder %s20, 0
        %s350 = scalar_select %p349, %s20, 0
        %s351 = sadd.s32 %s350, %s348
        %s352 = smul.addr %s351, 4
        %s353 = scalar_lea.vmem %s3, %s352
        %s354 = smul.u32 16, %s19
        %p356 = scmp.eq.s32.totalorder %s21, 0
        // Predicated region
        $region74: #{pcb_test_forward.27} parent=68 // pred_check
          %p357 = pneg %p356
        $region75: #{pcb_test_forward.27} parent=68 // pred_check_branch
          %359 = sbr.rel (%p357) target = $region77
        $region76: #{pcb_test_forward.27} parent=68 // pred_region
          %360 = vst [vmem:[#allocation2] sm:$0xff] 0.0
          %361 = vst [vmem:[#allocation2 + $0x8] sm:$0xff] 0.0
          %362 = vst [vmem:[#allocation2 + $0x10] sm:$0xff] 0.0
          %363 = vst [vmem:[#allocation2 + $0x18] sm:$0xff] 0.0
          %364 = vst [vmem:[#allocation2 + $0x20] sm:$0xff] 0.0
          %365 = vst [vmem:[#allocation2 + $0x28] sm:$0xff] 0.0
          %366 = vst [vmem:[#allocation2 + $0x30] sm:$0xff] 0.0
          %367 = vst [vmem:[#allocation2 + $0x38] sm:$0xff] 0.0
          %368 = vst [vmem:[#allocation2 + $0x40] sm:$0xff] 0.0
          %369 = vst [vmem:[#allocation2 + $0x48] sm:$0xff] 0.0
          %370 = vst [vmem:[#allocation2 + $0x50] sm:$0xff] 0.0
          %371 = vst [vmem:[#allocation2 + $0x58] sm:$0xff] 0.0
          %372 = vst [vmem:[#allocation2 + $0x60] sm:$0xff] 0.0
          %373 = vst [vmem:[#allocation2 + $0x68] sm:$0xff] 0.0
          %374 = vst [vmem:[#allocation2 + $0x70] sm:$0xff] 0.0
          %375 = vst [vmem:[#allocation2 + $0x78] sm:$0xff] 0.0
        $region77: #{pcb_test_forward.27} parent=68 // pred_fallthru
          _
        %v376 = vld [vmem:[#allocation2] sm:$0xff]
        %v377 = vld [vmem:[#allocation2 + $0x8] sm:$0xff]
        %v378 = vld [vmem:[#allocation2 + $0x10] sm:$0xff]
        %v379 = vld [vmem:[#allocation2 + $0x18] sm:$0xff]
        %v380 = vld [vmem:[#allocation2 + $0x20] sm:$0xff]
        %v381 = vld [vmem:[#allocation2 + $0x28] sm:$0xff]
        %v382 = vld [vmem:[#allocation2 + $0x30] sm:$0xff]
        %v383 = vld [vmem:[#allocation2 + $0x38] sm:$0xff]
        %v384 = vld [vmem:[#allocation2 + $0x40] sm:$0xff]
        %v385 = vld [vmem:[#allocation2 + $0x48] sm:$0xff]
        %v386 = vld [vmem:[#allocation2 + $0x50] sm:$0xff]
        %v387 = vld [vmem:[#allocation2 + $0x58] sm:$0xff]
        %v388 = vld [vmem:[#allocation2 + $0x60] sm:$0xff]
        %v389 = vld [vmem:[#allocation2 + $0x68] sm:$0xff]
        %v390 = vld [vmem:[#allocation2 + $0x70] sm:$0xff]
        %v391 = vld [vmem:[#allocation2 + $0x78] sm:$0xff]
        %v392 = vld [vmem:[%s298] sm:$0xf]
        %v393 = vld [vmem:[%s298 + $0x4] sm:$0xf]
        %v394 = vld [vmem:[%s298 + $0x8] sm:$0xf]
        %v395 = vld [vmem:[%s298 + $0xc] sm:$0xf]
        %v396 = vld [vmem:[%s298 + $0x10] sm:$0xf]
        %v397 = vld [vmem:[%s298 + $0x14] sm:$0xf]
        %v398 = vld [vmem:[%s298 + $0x18] sm:$0xf]
        %v399 = vld [vmem:[%s298 + $0x1c] sm:$0xf]
        %v400 = vld [vmem:[%s298 + $0x20] sm:$0xf]
        %v401 = vld [vmem:[%s298 + $0x24] sm:$0xf]
        %v402 = vld [vmem:[%s298 + $0x28] sm:$0xf]
        %v403 = vld [vmem:[%s298 + $0x2c] sm:$0xf]
        %v404 = vld [vmem:[%s298 + $0x30] sm:$0xf]
        %v405 = vld [vmem:[%s298 + $0x34] sm:$0xf]
        %v406 = vld [vmem:[%s298 + $0x38] sm:$0xf]
        %v407 = vld [vmem:[%s298 + $0x3c] sm:$0xf]
        %v408 = vld [vmem:[%s341] sm:$0xf]
        %v409 = vld [vmem:[%s341 + $0x4] sm:$0xf]
        %v410 = vld [vmem:[%s341 + $0x8] sm:$0xf]
        %v411 = vld [vmem:[%s341 + $0xc] sm:$0xf]
        %v412 = vld [vmem:[%s341 + $0x10] sm:$0xf]
        %v413 = vld [vmem:[%s341 + $0x14] sm:$0xf]
        %v414 = vld [vmem:[%s341 + $0x18] sm:$0xf]
        %v415 = vld [vmem:[%s341 + $0x1c] sm:$0xf]
        %v416 = vld [vmem:[%s341 + $0x20] sm:$0xf]
        %v417 = vld [vmem:[%s341 + $0x24] sm:$0xf]
        %v418 = vld [vmem:[%s341 + $0x28] sm:$0xf]
        %v419 = vld [vmem:[%s341 + $0x2c] sm:$0xf]
        %v420 = vld [vmem:[%s341 + $0x30] sm:$0xf]
        %v421 = vld [vmem:[%s341 + $0x34] sm:$0xf]
        %v422 = vld [vmem:[%s341 + $0x38] sm:$0xf]
        %v423 = vld [vmem:[%s341 + $0x3c] sm:$0xf]
        %v440 = vunpack.c.l.b16 %v392
        %v441 = vunpack.c.l.b16 %v393
        %v442 = vunpack.c.l.b16 %v394
        %v443 = vunpack.c.l.b16 %v395
        %v444 = vunpack.c.l.b16 %v396
        %v445 = vunpack.c.l.b16 %v397
        %v446 = vunpack.c.l.b16 %v398
        %v447 = vunpack.c.l.b16 %v399
        %v448 = vunpack.c.l.b16 %v400
        %v449 = vunpack.c.l.b16 %v401
        %v450 = vunpack.c.l.b16 %v402
        %v451 = vunpack.c.l.b16 %v403
        %v452 = vunpack.c.l.b16 %v404
        %v453 = vunpack.c.l.b16 %v405
        %v454 = vunpack.c.l.b16 %v406
        %v455 = vunpack.c.l.b16 %v407
        %v456 = vpack.c.b16 %v441, %v440
        %v457 = vpack.c.b16 %v443, %v442
        %v458 = vpack.c.b16 %v445, %v444
        %v459 = vpack.c.b16 %v447, %v446
        %v460 = vpack.c.b16 %v449, %v448
        %v461 = vpack.c.b16 %v451, %v450
        %v462 = vpack.c.b16 %v453, %v452
        %v463 = vpack.c.b16 %v455, %v454
        %v488 = vunpack.c.l.b16 %v408
        %v489 = vunpack.c.l.b16 %v409
        %v490 = vunpack.c.l.b16 %v410
        %v491 = vunpack.c.l.b16 %v411
        %v492 = vunpack.c.l.b16 %v412
        %v493 = vunpack.c.l.b16 %v413
        %v494 = vunpack.c.l.b16 %v414
        %v495 = vunpack.c.l.b16 %v415
        %v496 = vunpack.c.l.b16 %v416
        %v497 = vunpack.c.l.b16 %v417
        %v498 = vunpack.c.l.b16 %v418
        %v499 = vunpack.c.l.b16 %v419
        %v500 = vunpack.c.l.b16 %v420
        %v501 = vunpack.c.l.b16 %v421
        %v502 = vunpack.c.l.b16 %v422
        %v503 = vunpack.c.l.b16 %v423
        %v504 = vpack.c.b16 %v489, %v488
        %v505 = vpack.c.b16 %v491, %v490
        %v506 = vpack.c.b16 %v493, %v492
        %v507 = vpack.c.b16 %v495, %v494
        %v508 = vpack.c.b16 %v497, %v496
        %v509 = vpack.c.b16 %v499, %v498
        %v510 = vpack.c.b16 %v501, %v500
        %v511 = vpack.c.b16 %v503, %v502
        %520 = vmatprep.subr.bf16.mxu0 0
        %521 = vmatpush1.bf16.msra.mxu0 %v511
        %522 = vmatprep.subr.bf16.mxu0 0
        %523 = vmatpush1.bf16.msra.mxu0 %v510
        %524 = vmatprep.subr.bf16.mxu0 0
        %525 = vmatpush1.bf16.msra.mxu0 %v509
        %526 = vmatprep.subr.bf16.mxu0 0
        %527 = vmatpush1.bf16.msra.mxu0 %v508
        %528 = vmatprep.subr.bf16.mxu0 0
        %529 = vmatpush1.bf16.msra.mxu0 %v507
        %530 = vmatprep.subr.bf16.mxu0 0
        %531 = vmatpush1.bf16.msra.mxu0 %v506
        %532 = vmatprep.subr.bf16.mxu0 0
        %533 = vmatpush1.bf16.msra.mxu0 %v505
        %534 = vmatprep.subr.bf16.mxu0 0
        %535 = vmatpush1.bf16.msra.mxu0 %v504
        %536 = vmatprep.subr.bf16.mxu0 0
        %537 = vmatpush2.bf16.msra.mxu0 0
        %538 = vmatprep.subr.bf16.mxu0 0
        %539 = vmatpush2.bf16.msra.mxu0 0
        %540 = vmatprep.subr.bf16.mxu0 0
        %541 = vmatpush2.bf16.msra.mxu0 0
        %542 = vmatprep.subr.bf16.mxu0 0
        %543 = vmatpush2.bf16.msra.mxu0 0
        %544 = vmatprep.subr.bf16.mxu0 0
        %545 = vmatpush2.bf16.msra.mxu0 0
        %546 = vmatprep.subr.bf16.mxu0 0
        %547 = vmatpush2.bf16.msra.mxu0 0
        %548 = vmatprep.subr.bf16.mxu0 0
        %549 = vmatpush2.bf16.msra.mxu0 0
        %550 = vmatprep.subr.bf16.mxu0 0
        %551 = vmatpush2.bf16.msra.mxu0 0
        %552 = vmatprep.mubr.bf16.mxu0 0
        %553 = vmatmul.mubr.bf16.gmra.mxu0 %v456
        %v554 = vpop.f32.mrf.mxu0
        %v555 = vadd.f32 0.0, %v554
        %v556 = vpop.f32.mrf.mxu0
        %v557 = vpop.f32.mrf.mxu0
        %v558 = vadd.f32 0.0, %v557
        %v559 = vpop.f32.mrf.mxu0
        %560 = vmatprep.mubr.bf16.mxu0 0
        %561 = vmatmul.mubr.bf16.gmra.mxu0 %v457
        %v562 = vpop.f32.mrf.mxu0
        %v563 = vadd.f32 0.0, %v562
        %v564 = vpop.f32.mrf.mxu0
        %v565 = vpop.f32.mrf.mxu0
        %v566 = vadd.f32 0.0, %v565
        %v567 = vpop.f32.mrf.mxu0
        %568 = vmatprep.mubr.bf16.mxu0 0
        %569 = vmatmul.mubr.bf16.gmra.mxu0 %v458
        %v570 = vpop.f32.mrf.mxu0
        %v571 = vadd.f32 0.0, %v570
        %v572 = vpop.f32.mrf.mxu0
        %v573 = vpop.f32.mrf.mxu0
        %v574 = vadd.f32 0.0, %v573
        %v575 = vpop.f32.mrf.mxu0
        %576 = vmatprep.mubr.bf16.mxu0 0
        %577 = vmatmul.mubr.bf16.gmra.mxu0 %v459
        %v578 = vpop.f32.mrf.mxu0
        %v579 = vadd.f32 0.0, %v578
        %v580 = vpop.f32.mrf.mxu0
        %v581 = vpop.f32.mrf.mxu0
        %v582 = vadd.f32 0.0, %v581
        %v583 = vpop.f32.mrf.mxu0
        %584 = vmatprep.mubr.bf16.mxu0 0
        %585 = vmatmul.mubr.bf16.gmra.mxu0 %v460
        %v586 = vpop.f32.mrf.mxu0
        %v587 = vadd.f32 0.0, %v586
        %v588 = vpop.f32.mrf.mxu0
        %v589 = vpop.f32.mrf.mxu0
        %v590 = vadd.f32 0.0, %v589
        %v591 = vpop.f32.mrf.mxu0
        %592 = vmatprep.mubr.bf16.mxu0 0
        %593 = vmatmul.mubr.bf16.gmra.mxu0 %v461
        %v594 = vpop.f32.mrf.mxu0
        %v595 = vadd.f32 0.0, %v594
        %v596 = vpop.f32.mrf.mxu0
        %v597 = vpop.f32.mrf.mxu0
        %v598 = vadd.f32 0.0, %v597
        %v599 = vpop.f32.mrf.mxu0
        %600 = vmatprep.mubr.bf16.mxu0 0
        %601 = vmatmul.mubr.bf16.gmra.mxu0 %v462
        %v602 = vpop.f32.mrf.mxu0
        %v603 = vadd.f32 0.0, %v602
        %v604 = vpop.f32.mrf.mxu0
        %v605 = vpop.f32.mrf.mxu0
        %v606 = vadd.f32 0.0, %v605
        %v607 = vpop.f32.mrf.mxu0
        %608 = vmatprep.mubr.bf16.mxu0 0
        %609 = vmatmul.mubr.bf16.gmra.mxu0 %v463
        %v610 = vpop.f32.mrf.mxu0
        %v611 = vadd.f32 0.0, %v610
        %v612 = vpop.f32.mrf.mxu0
        %v613 = vpop.f32.mrf.mxu0
        %v614 = vadd.f32 0.0, %v613
        %v615 = vpop.f32.mrf.mxu0
        %616 = vdwg.mxu0
        %v617 = vadd.f32 %v376, %v555
        %v618 = vadd.f32 %v377, %v558
        %v619 = vadd.f32 %v378, %v563
        %v620 = vadd.f32 %v379, %v566
        %v621 = vadd.f32 %v380, %v571
        %v622 = vadd.f32 %v381, %v574
        %v623 = vadd.f32 %v382, %v579
        %v624 = vadd.f32 %v383, %v582
        %v625 = vadd.f32 %v384, %v587
        %v626 = vadd.f32 %v385, %v590
        %v627 = vadd.f32 %v386, %v595
        %v628 = vadd.f32 %v387, %v598
        %v629 = vadd.f32 %v388, %v603
        %v630 = vadd.f32 %v389, %v606
        %v631 = vadd.f32 %v390, %v611
        %v632 = vadd.f32 %v391, %v614
        %633 = vst [vmem:[#allocation2] sm:$0xff] %v617
        %634 = vst [vmem:[#allocation2 + $0x8] sm:$0xff] %v618
        %635 = vst [vmem:[#allocation2 + $0x10] sm:$0xff] %v619
        %636 = vst [vmem:[#allocation2 + $0x18] sm:$0xff] %v620
        %637 = vst [vmem:[#allocation2 + $0x20] sm:$0xff] %v621
        %638 = vst [vmem:[#allocation2 + $0x28] sm:$0xff] %v622
        %639 = vst [vmem:[#allocation2 + $0x30] sm:$0xff] %v623
        %640 = vst [vmem:[#allocation2 + $0x38] sm:$0xff] %v624
        %641 = vst [vmem:[#allocation2 + $0x40] sm:$0xff] %v625
        %642 = vst [vmem:[#allocation2 + $0x48] sm:$0xff] %v626
        %643 = vst [vmem:[#allocation2 + $0x50] sm:$0xff] %v627
        %644 = vst [vmem:[#allocation2 + $0x58] sm:$0xff] %v628
        %645 = vst [vmem:[#allocation2 + $0x60] sm:$0xff] %v629
        %646 = vst [vmem:[#allocation2 + $0x68] sm:$0xff] %v630
        %647 = vst [vmem:[#allocation2 + $0x70] sm:$0xff] %v631
        %648 = vst [vmem:[#allocation2 + $0x78] sm:$0xff] %v632
        %p649 = scmp.eq.s32.totalorder %s21, 8
        // Predicated region
        $region78: #{pcb_test_forward.27} parent=68 // pred_check
          %p650 = pneg %p649
        $region79: #{pcb_test_forward.27} parent=68 // pred_check_branch
          %652 = sbr.rel (%p650) target = $region81
        $region80: #{pcb_test_forward.27} parent=68 // pred_region
          %v653 = vld [vmem:[#allocation2] sm:$0xff]
          %v654 = vld [vmem:[#allocation2 + $0x8] sm:$0xff]
          %v655 = vld [vmem:[#allocation2 + $0x10] sm:$0xff]
          %v656 = vld [vmem:[#allocation2 + $0x18] sm:$0xff]
          %v657 = vld [vmem:[#allocation2 + $0x20] sm:$0xff]
          %v658 = vld [vmem:[#allocation2 + $0x28] sm:$0xff]
          %v659 = vld [vmem:[#allocation2 + $0x30] sm:$0xff]
          %v660 = vld [vmem:[#allocation2 + $0x38] sm:$0xff]
          %v661 = vld [vmem:[#allocation2 + $0x40] sm:$0xff]
          %v662 = vld [vmem:[#allocation2 + $0x48] sm:$0xff]
          %v663 = vld [vmem:[#allocation2 + $0x50] sm:$0xff]
          %v664 = vld [vmem:[#allocation2 + $0x58] sm:$0xff]
          %v665 = vld [vmem:[#allocation2 + $0x60] sm:$0xff]
          %v666 = vld [vmem:[#allocation2 + $0x68] sm:$0xff]
          %v667 = vld [vmem:[#allocation2 + $0x70] sm:$0xff]
          %v668 = vld [vmem:[#allocation2 + $0x78] sm:$0xff]
          %v669 = vld [vmem:[%s345] sm:$0x1]
          %v671 = vlaneseq
          %v672 = vshrl.u32 %v671, 7
          %v673 = vsub.s32 0, %v672
          %v674 = vrot.slane %v669, %v673
          %v676 = vadd.f32 %v653, %v674
          %v677 = vadd.f32 %v654, %v674
          %v678 = vadd.f32 %v655, %v674
          %v679 = vadd.f32 %v656, %v674
          %v680 = vadd.f32 %v657, %v674
          %v681 = vadd.f32 %v658, %v674
          %v682 = vadd.f32 %v659, %v674
          %v683 = vadd.f32 %v660, %v674
          %v684 = vadd.f32 %v661, %v674
          %v685 = vadd.f32 %v662, %v674
          %v686 = vadd.f32 %v663, %v674
          %v687 = vadd.f32 %v664, %v674
          %v688 = vadd.f32 %v665, %v674
          %v689 = vadd.f32 %v666, %v674
          %v690 = vadd.f32 %v667, %v674
          %v691 = vadd.f32 %v668, %v674
          %v692 = vmax.f32 %v676, 0.0
          %v693 = vmax.f32 %v677, 0.0
          %v694 = vmax.f32 %v678, 0.0
          %v695 = vmax.f32 %v679, 0.0
          %v696 = vmax.f32 %v680, 0.0
          %v697 = vmax.f32 %v681, 0.0
          %v698 = vmax.f32 %v682, 0.0
          %v699 = vmax.f32 %v683, 0.0
          %v700 = vmax.f32 %v684, 0.0
          %v701 = vmax.f32 %v685, 0.0
          %v702 = vmax.f32 %v686, 0.0
          %v703 = vmax.f32 %v687, 0.0
          %v704 = vmax.f32 %v688, 0.0
          %v705 = vmax.f32 %v689, 0.0
          %v706 = vmax.f32 %v690, 0.0
          %v707 = vmax.f32 %v691, 0.0
          %v708 = vpack.c.bf16 %v693, %v692
          %v709 = vpack.c.bf16 %v695, %v694
          %v710 = vpack.c.bf16 %v697, %v696
          %v711 = vpack.c.bf16 %v699, %v698
          %v712 = vpack.c.bf16 %v701, %v700
          %v713 = vpack.c.bf16 %v703, %v702
          %v714 = vpack.c.bf16 %v705, %v704
          %v715 = vpack.c.bf16 %v707, %v706
          %v724 = vunpack.c.l.b16 %v708
          %v725 = vunpack.c.h.b16 %v708
          %v726 = vunpack.c.l.b16 %v709
          %v727 = vunpack.c.h.b16 %v709
          %v728 = vunpack.c.l.b16 %v710
          %v729 = vunpack.c.h.b16 %v710
          %v730 = vunpack.c.l.b16 %v711
          %v731 = vunpack.c.h.b16 %v711
          %v732 = vunpack.c.l.b16 %v712
          %v733 = vunpack.c.h.b16 %v712
          %v734 = vunpack.c.l.b16 %v713
          %v735 = vunpack.c.h.b16 %v713
          %v736 = vunpack.c.l.b16 %v714
          %v737 = vunpack.c.h.b16 %v714
          %v738 = vunpack.c.l.b16 %v715
          %v739 = vunpack.c.h.b16 %v715
          %v740 = vpack.c.b16 %v724, %v724
          %v741 = vpack.c.b16 %v725, %v725
          %v742 = vpack.c.b16 %v726, %v726
          %v743 = vpack.c.b16 %v727, %v727
          %v744 = vpack.c.b16 %v728, %v728
          %v745 = vpack.c.b16 %v729, %v729
          %v746 = vpack.c.b16 %v730, %v730
          %v747 = vpack.c.b16 %v731, %v731
          %v748 = vpack.c.b16 %v732, %v732
          %v749 = vpack.c.b16 %v733, %v733
          %v750 = vpack.c.b16 %v734, %v734
          %v751 = vpack.c.b16 %v735, %v735
          %v752 = vpack.c.b16 %v736, %v736
          %v753 = vpack.c.b16 %v737, %v737
          %v754 = vpack.c.b16 %v738, %v738
          %v755 = vpack.c.b16 %v739, %v739
          %772 = vst [vmem:[%s353] sm:$0xf] %v740
          %773 = vst [vmem:[%s353 + $0x4] sm:$0xf] %v741
          %774 = vst [vmem:[%s353 + $0x8] sm:$0xf] %v742
          %775 = vst [vmem:[%s353 + $0xc] sm:$0xf] %v743
          %776 = vst [vmem:[%s353 + $0x10] sm:$0xf] %v744
          %777 = vst [vmem:[%s353 + $0x14] sm:$0xf] %v745
          %778 = vst [vmem:[%s353 + $0x18] sm:$0xf] %v746
          %779 = vst [vmem:[%s353 + $0x1c] sm:$0xf] %v747
          %780 = vst [vmem:[%s353 + $0x20] sm:$0xf] %v748
          %781 = vst [vmem:[%s353 + $0x24] sm:$0xf] %v749
          %782 = vst [vmem:[%s353 + $0x28] sm:$0xf] %v750
          %783 = vst [vmem:[%s353 + $0x2c] sm:$0xf] %v751
          %784 = vst [vmem:[%s353 + $0x30] sm:$0xf] %v752
          %785 = vst [vmem:[%s353 + $0x34] sm:$0xf] %v753
          %786 = vst [vmem:[%s353 + $0x38] sm:$0xf] %v754
          %787 = vst [vmem:[%s353 + $0x3c] sm:$0xf] %v755
        $region81: #{pcb_test_forward.27} parent=68 // pred_fallthru
          _
        %s788 = smul.u32 16, %s19
        %p789 = scmp.lt.s32.totalorder %s788, 15
        %s790 = scalar_select %p789, %s788, 15
        %p791 = scmp.lt.s32.totalorder %s20, 0
        %s792 = scalar_select %p791, %s20, 0
        %s793 = sadd.s32 %s792, %s790
        %s794 = smul.addr %s793, 4
        %s795 = scalar_lea.vmem %s3, %s794
        // Predicated region
        $region82: #{pcb_test_forward.27} parent=68 // pred_check
          %p796 = pneg %p135
        $region83: #{pcb_test_forward.27} parent=68 // pred_check_branch
          %798 = sbr.rel (%p796) target = $region85
        $region84: #{pcb_test_forward.27} parent=68 // pred_region
          %s799 = smul.u32 16, %s19
        $region85: #{pcb_test_forward.27} parent=68 // pred_fallthru
          _
        // Predicated region
        $region86: #{pcb_test_forward.27} parent=68 // pred_check
          %p800 = pneg %p135
        $region87: #{pcb_test_forward.27} parent=68 // pred_check_branch
          %802 = sbr.rel (%p800) target = $region89
        $region88: #{pcb_test_forward.27} parent=68 // pred_region
          %s803 = smul.u32 16, %s19
          %p804 = scmp.lt.s32.totalorder %s803, 15
          %s805 = scalar_select %p804, %s803, 15
          %p806 = scmp.lt.s32.totalorder %s20, 0
          %s807 = scalar_select %p806, %s20, 0
          %s808 = sadd.s32 %s807, %s805
          %s809 = smul.addr %s808, 4
          %s810 = scalar_lea.vmem %s3, %s809
        $region89: #{pcb_test_forward.27} parent=68 // pred_fallthru
          _
      $region69: #{pcb_test_forward.27} parent=5 // pred_fallthru
        _
      %p811 = scmp.le.s32.totalorder 2, %s9
      // Predicated region
      $region90: #{pcb_test_forward.27} parent=5 // pred_check
        %p812 = pneg %p811
      $region91: #{pcb_test_forward.27} parent=5 // pred_check_branch
        %814 = sbr.rel (%p812) target = $region93
      $region92: #{pcb_test_forward.27} parent=5 // pred_region
        %s815 = ssub.s32 %s9, 2
      $region93: #{pcb_test_forward.27} parent=5 // pred_fallthru
        _
    $region6: #{pcb_test_forward.27} parent=1 // loop_footer
      %s13 = sadd.s32 1, %s9
    $region7: #{pcb_test_forward.27} parent=1 // loop_footer_branch
      %8 = sbr.rel target = $region3
    $region8: #{pcb_test_forward.27} parent=1 // loop_exit
      _

// kernel: pcb_test_forward.25
$region0: #{pcb_test_forward.25}
  #allocation0 [shape = 'u32[]', space=smem, size = 0x4, offset = 0x4, fixed_abs, tag = 'smem constant byte address 0x4 - core index']
  #allocation1 [shape = 'u32[144,128]{1,0:T(1,128)}', space=vmem, size = 0x12000, scoped, tag = 'internal scratch']
  #allocation2 [shape = 'f32[128,128]{1,0:T(8,128)}', space=vmem, size = 0x10000, scoped, tag = 'scratch operand']
  %s0 = inlined_call_operand.vmem [shape: bf16[128,128], index: 0, kind: input, shape index: {}]
  %s1 = inlined_call_operand.vmem [shape: bf16[128,128], index: 1, kind: input, shape index: {}]
  %s2 = inlined_call_operand.vmem [shape: f32[1,128], index: 2, kind: input, shape index: {}]
  %s3 = inlined_call_operand.vmem [shape: bf16[128,128], index: 3, kind: output, shape index: {}]
  %s4 = sld [smem:[#allocation0]]
  $region30: #{pcb_test_forward.25} parent=0
    _
  %s6 = ssub.s32 1, %s4
  %s7 = scalar_select 0, %s6, %s4
  // Predicated region
  $region2: #{pcb_test_forward.25} parent=0 // pred_check
    _
  $region3: #{pcb_test_forward.25} parent=0 // pred_check_branch
    %9 = sbr.rel (0) target = $region5
  $region4: #{pcb_test_forward.25} parent=0 // pred_region
    _
  $region5: #{pcb_test_forward.25} parent=0 // pred_fallthru
    _
  // Predicated region
  $region6: #{pcb_test_forward.25} parent=0 // pred_check
    _
  $region7: #{pcb_test_forward.25} parent=0 // pred_check_branch
    %11 = sbr.rel (0) target = $region9
  $region8: #{pcb_test_forward.25} parent=0 // pred_region
    _
  $region9: #{pcb_test_forward.25} parent=0 // pred_fallthru
    _
  // Predicated region
  $region10: #{pcb_test_forward.25} parent=0 // pred_check
    _
  $region11: #{pcb_test_forward.25} parent=0 // pred_check_branch
    %13 = sbr.rel (0) target = $region13
  $region12: #{pcb_test_forward.25} parent=0 // pred_region
    _
  $region13: #{pcb_test_forward.25} parent=0 // pred_fallthru
    _
  %p15 = scmp.eq.s32.totalorder 0, 0
  // Predicated region
  $region14: #{pcb_test_forward.25} parent=0 // pred_check
    %p16 = pneg %p15
  $region15: #{pcb_test_forward.25} parent=0 // pred_check_branch
    %18 = sbr.rel (%p16) target = $region17
  $region16: #{pcb_test_forward.25} parent=0 // pred_region
    %19 = vst [vmem:[#allocation2] sm:$0xff] 0.0
    %20 = vst [vmem:[#allocation2 + $0x8] sm:$0xff] 0.0
    %21 = vst [vmem:[#allocation2 + $0x10] sm:$0xff] 0.0
    %22 = vst [vmem:[#allocation2 + $0x18] sm:$0xff] 0.0
    %23 = vst [vmem:[#allocation2 + $0x20] sm:$0xff] 0.0
    %24 = vst [vmem:[#allocation2 + $0x28] sm:$0xff] 0.0
    %25 = vst [vmem:[#allocation2 + $0x30] sm:$0xff] 0.0
    %26 = vst [vmem:[#allocation2 + $0x38] sm:$0xff] 0.0
    %27 = vst [vmem:[#allocation2 + $0x40] sm:$0xff] 0.0
    %28 = vst [vmem:[#allocation2 + $0x48] sm:$0xff] 0.0
    %29 = vst [vmem:[#allocation2 + $0x50] sm:$0xff] 0.0
    %30 = vst [vmem:[#allocation2 + $0x58] sm:$0xff] 0.0
    %31 = vst [vmem:[#allocation2 + $0x60] sm:$0xff] 0.0
    %32 = vst [vmem:[#allocation2 + $0x68] sm:$0xff] 0.0
    %33 = vst [vmem:[#allocation2 + $0x70] sm:$0xff] 0.0
    %34 = vst [vmem:[#allocation2 + $0x78] sm:$0xff] 0.0
  $region17: #{pcb_test_forward.25} parent=0 // pred_fallthru
    _
  %v35 = vld [vmem:[#allocation2] sm:$0xff]
  %v36 = vld [vmem:[#allocation2 + $0x8] sm:$0xff]
  %v37 = vld [vmem:[#allocation2 + $0x10] sm:$0xff]
  %v38 = vld [vmem:[#allocation2 + $0x18] sm:$0xff]
  %v39 = vld [vmem:[#allocation2 + $0x20] sm:$0xff]
  %v40 = vld [vmem:[#allocation2 + $0x28] sm:$0xff]
  %v41 = vld [vmem:[#allocation2 + $0x30] sm:$0xff]
  %v42 = vld [vmem:[#allocation2 + $0x38] sm:$0xff]
  %v43 = vld [vmem:[#allocation2 + $0x40] sm:$0xff]
  %v44 = vld [vmem:[#allocation2 + $0x48] sm:$0xff]
  %v45 = vld [vmem:[#allocation2 + $0x50] sm:$0xff]
  %v46 = vld [vmem:[#allocation2 + $0x58] sm:$0xff]
  %v47 = vld [vmem:[#allocation2 + $0x60] sm:$0xff]
  %v48 = vld [vmem:[#allocation2 + $0x68] sm:$0xff]
  %v49 = vld [vmem:[#allocation2 + $0x70] sm:$0xff]
  %v50 = vld [vmem:[#allocation2 + $0x78] sm:$0xff]
  %v51 = vld [vmem:[%s0] sm:$0xf]
  %v52 = vld [vmem:[%s0 + $0x4] sm:$0xf]
  %v53 = vld [vmem:[%s0 + $0x8] sm:$0xf]
  %v54 = vld [vmem:[%s0 + $0xc] sm:$0xf]
  %v55 = vld [vmem:[%s0 + $0x10] sm:$0xf]
  %v56 = vld [vmem:[%s0 + $0x14] sm:$0xf]
  %v57 = vld [vmem:[%s0 + $0x18] sm:$0xf]
  %v58 = vld [vmem:[%s0 + $0x1c] sm:$0xf]
  %v59 = vld [vmem:[%s0 + $0x20] sm:$0xf]
  %v60 = vld [vmem:[%s0 + $0x24] sm:$0xf]
  %v61 = vld [vmem:[%s0 + $0x28] sm:$0xf]
  %v62 = vld [vmem:[%s0 + $0x2c] sm:$0xf]
  %v63 = vld [vmem:[%s0 + $0x30] sm:$0xf]
  %v64 = vld [vmem:[%s0 + $0x34] sm:$0xf]
  %v65 = vld [vmem:[%s0 + $0x38] sm:$0xf]
  %v66 = vld [vmem:[%s0 + $0x3c] sm:$0xf]
  %v67 = vld [vmem:[%s1] sm:$0xf]
  %v68 = vld [vmem:[%s1 + $0x4] sm:$0xf]
  %v69 = vld [vmem:[%s1 + $0x8] sm:$0xf]
  %v70 = vld [vmem:[%s1 + $0xc] sm:$0xf]
  %v71 = vld [vmem:[%s1 + $0x10] sm:$0xf]
  %v72 = vld [vmem:[%s1 + $0x14] sm:$0xf]
  %v73 = vld [vmem:[%s1 + $0x18] sm:$0xf]
  %v74 = vld [vmem:[%s1 + $0x1c] sm:$0xf]
  %v75 = vld [vmem:[%s1 + $0x20] sm:$0xf]
  %v76 = vld [vmem:[%s1 + $0x24] sm:$0xf]
  %v77 = vld [vmem:[%s1 + $0x28] sm:$0xf]
  %v78 = vld [vmem:[%s1 + $0x2c] sm:$0xf]
  %v79 = vld [vmem:[%s1 + $0x30] sm:$0xf]
  %v80 = vld [vmem:[%s1 + $0x34] sm:$0xf]
  %v81 = vld [vmem:[%s1 + $0x38] sm:$0xf]
  %v82 = vld [vmem:[%s1 + $0x3c] sm:$0xf]
  %v99 = vunpack.c.l.b16 %v51
  %v100 = vunpack.c.l.b16 %v52
  %v101 = vunpack.c.l.b16 %v53
  %v102 = vunpack.c.l.b16 %v54
  %v103 = vunpack.c.l.b16 %v55
  %v104 = vunpack.c.l.b16 %v56
  %v105 = vunpack.c.l.b16 %v57
  %v106 = vunpack.c.l.b16 %v58
  %v107 = vunpack.c.l.b16 %v59
  %v108 = vunpack.c.l.b16 %v60
  %v109 = vunpack.c.l.b16 %v61
  %v110 = vunpack.c.l.b16 %v62
  %v111 = vunpack.c.l.b16 %v63
  %v112 = vunpack.c.l.b16 %v64
  %v113 = vunpack.c.l.b16 %v65
  %v114 = vunpack.c.l.b16 %v66
  %v115 = vpack.c.b16 %v100, %v99
  %v116 = vpack.c.b16 %v102, %v101
  %v117 = vpack.c.b16 %v104, %v103
  %v118 = vpack.c.b16 %v106, %v105
  %v119 = vpack.c.b16 %v108, %v107
  %v120 = vpack.c.b16 %v110, %v109
  %v121 = vpack.c.b16 %v112, %v111
  %v122 = vpack.c.b16 %v114, %v113
  %v147 = vunpack.c.l.b16 %v67
  %v148 = vunpack.c.l.b16 %v68
  %v149 = vunpack.c.l.b16 %v69
  %v150 = vunpack.c.l.b16 %v70
  %v151 = vunpack.c.l.b16 %v71
  %v152 = vunpack.c.l.b16 %v72
  %v153 = vunpack.c.l.b16 %v73
  %v154 = vunpack.c.l.b16 %v74
  %v155 = vunpack.c.l.b16 %v75
  %v156 = vunpack.c.l.b16 %v76
  %v157 = vunpack.c.l.b16 %v77
  %v158 = vunpack.c.l.b16 %v78
  %v159 = vunpack.c.l.b16 %v79
  %v160 = vunpack.c.l.b16 %v80
  %v161 = vunpack.c.l.b16 %v81
  %v162 = vunpack.c.l.b16 %v82
  %v163 = vpack.c.b16 %v148, %v147
  %v164 = vpack.c.b16 %v150, %v149
  %v165 = vpack.c.b16 %v152, %v151
  %v166 = vpack.c.b16 %v154, %v153
  %v167 = vpack.c.b16 %v156, %v155
  %v168 = vpack.c.b16 %v158, %v157
  %v169 = vpack.c.b16 %v160, %v159
  %v170 = vpack.c.b16 %v162, %v161
  %179 = vmatprep.subr.bf16.mxu0 0
  %180 = vmatpush1.bf16.msra.mxu0 %v170
  %181 = vmatprep.subr.bf16.mxu0 0
  %182 = vmatpush1.bf16.msra.mxu0 %v169
  %183 = vmatprep.subr.bf16.mxu0 0
  %184 = vmatpush1.bf16.msra.mxu0 %v168
  %185 = vmatprep.subr.bf16.mxu0 0
  %186 = vmatpush1.bf16.msra.mxu0 %v167
  %187 = vmatprep.subr.bf16.mxu0 0
  %188 = vmatpush1.bf16.msra.mxu0 %v166
  %189 = vmatprep.subr.bf16.mxu0 0
  %190 = vmatpush1.bf16.msra.mxu0 %v165
  %191 = vmatprep.subr.bf16.mxu0 0
  %192 = vmatpush1.bf16.msra.mxu0 %v164
  %193 = vmatprep.subr.bf16.mxu0 0
  %194 = vmatpush1.bf16.msra.mxu0 %v163
  %195 = vmatprep.subr.bf16.mxu0 0
  %196 = vmatpush2.bf16.msra.mxu0 0
  %197 = vmatprep.subr.bf16.mxu0 0
  %198 = vmatpush2.bf16.msra.mxu0 0
  %199 = vmatprep.subr.bf16.mxu0 0
  %200 = vmatpush2.bf16.msra.mxu0 0
  %201 = vmatprep.subr.bf16.mxu0 0
  %202 = vmatpush2.bf16.msra.mxu0 0
  %203 = vmatprep.subr.bf16.mxu0 0
  %204 = vmatpush2.bf16.msra.mxu0 0
  %205 = vmatprep.subr.bf16.mxu0 0
  %206 = vmatpush2.bf16.msra.mxu0 0
  %207 = vmatprep.subr.bf16.mxu0 0
  %208 = vmatpush2.bf16.msra.mxu0 0
  %209 = vmatprep.subr.bf16.mxu0 0
  %210 = vmatpush2.bf16.msra.mxu0 0
  %211 = vmatprep.mubr.bf16.mxu0 0
  %212 = vmatmul.mubr.bf16.gmra.mxu0 %v115
  %v213 = vpop.f32.mrf.mxu0
  %v214 = vadd.f32 0.0, %v213
  %v215 = vpop.f32.mrf.mxu0
  %v216 = vpop.f32.mrf.mxu0
  %v217 = vadd.f32 0.0, %v216
  %v218 = vpop.f32.mrf.mxu0
  %219 = vmatprep.mubr.bf16.mxu0 0
  %220 = vmatmul.mubr.bf16.gmra.mxu0 %v116
  %v221 = vpop.f32.mrf.mxu0
  %v222 = vadd.f32 0.0, %v221
  %v223 = vpop.f32.mrf.mxu0
  %v224 = vpop.f32.mrf.mxu0
  %v225 = vadd.f32 0.0, %v224
  %v226 = vpop.f32.mrf.mxu0
  %227 = vmatprep.mubr.bf16.mxu0 0
  %228 = vmatmul.mubr.bf16.gmra.mxu0 %v117
  %v229 = vpop.f32.mrf.mxu0
  %v230 = vadd.f32 0.0, %v229
  %v231 = vpop.f32.mrf.mxu0
  %v232 = vpop.f32.mrf.mxu0
  %v233 = vadd.f32 0.0, %v232
  %v234 = vpop.f32.mrf.mxu0
  %235 = vmatprep.mubr.bf16.mxu0 0
  %236 = vmatmul.mubr.bf16.gmra.mxu0 %v118
  %v237 = vpop.f32.mrf.mxu0
  %v238 = vadd.f32 0.0, %v237
  %v239 = vpop.f32.mrf.mxu0
  %v240 = vpop.f32.mrf.mxu0
  %v241 = vadd.f32 0.0, %v240
  %v242 = vpop.f32.mrf.mxu0
  %243 = vmatprep.mubr.bf16.mxu0 0
  %244 = vmatmul.mubr.bf16.gmra.mxu0 %v119
  %v245 = vpop.f32.mrf.mxu0
  %v246 = vadd.f32 0.0, %v245
  %v247 = vpop.f32.mrf.mxu0
  %v248 = vpop.f32.mrf.mxu0
  %v249 = vadd.f32 0.0, %v248
  %v250 = vpop.f32.mrf.mxu0
  %251 = vmatprep.mubr.bf16.mxu0 0
  %252 = vmatmul.mubr.bf16.gmra.mxu0 %v120
  %v253 = vpop.f32.mrf.mxu0
  %v254 = vadd.f32 0.0, %v253
  %v255 = vpop.f32.mrf.mxu0
  %v256 = vpop.f32.mrf.mxu0
  %v257 = vadd.f32 0.0, %v256
  %v258 = vpop.f32.mrf.mxu0
  %259 = vmatprep.mubr.bf16.mxu0 0
  %260 = vmatmul.mubr.bf16.gmra.mxu0 %v121
  %v261 = vpop.f32.mrf.mxu0
  %v262 = vadd.f32 0.0, %v261
  %v263 = vpop.f32.mrf.mxu0
  %v264 = vpop.f32.mrf.mxu0
  %v265 = vadd.f32 0.0, %v264
  %v266 = vpop.f32.mrf.mxu0
  %267 = vmatprep.mubr.bf16.mxu0 0
  %268 = vmatmul.mubr.bf16.gmra.mxu0 %v122
  %v269 = vpop.f32.mrf.mxu0
  %v270 = vadd.f32 0.0, %v269
  %v271 = vpop.f32.mrf.mxu0
  %v272 = vpop.f32.mrf.mxu0
  %v273 = vadd.f32 0.0, %v272
  %v274 = vpop.f32.mrf.mxu0
  %275 = vdwg.mxu0
  %v276 = vadd.f32 %v35, %v214
  %v277 = vadd.f32 %v36, %v217
  %v278 = vadd.f32 %v37, %v222
  %v279 = vadd.f32 %v38, %v225
  %v280 = vadd.f32 %v39, %v230
  %v281 = vadd.f32 %v40, %v233
  %v282 = vadd.f32 %v41, %v238
  %v283 = vadd.f32 %v42, %v241
  %v284 = vadd.f32 %v43, %v246
  %v285 = vadd.f32 %v44, %v249
  %v286 = vadd.f32 %v45, %v254
  %v287 = vadd.f32 %v46, %v257
  %v288 = vadd.f32 %v47, %v262
  %v289 = vadd.f32 %v48, %v265
  %v290 = vadd.f32 %v49, %v270
  %v291 = vadd.f32 %v50, %v273
  %292 = vst [vmem:[#allocation2] sm:$0xff] %v276
  %293 = vst [vmem:[#allocation2 + $0x8] sm:$0xff] %v277
  %294 = vst [vmem:[#allocation2 + $0x10] sm:$0xff] %v278
  %295 = vst [vmem:[#allocation2 + $0x18] sm:$0xff] %v279
  %296 = vst [vmem:[#allocation2 + $0x20] sm:$0xff] %v280
  %297 = vst [vmem:[#allocation2 + $0x28] sm:$0xff] %v281
  %298 = vst [vmem:[#allocation2 + $0x30] sm:$0xff] %v282
  %299 = vst [vmem:[#allocation2 + $0x38] sm:$0xff] %v283
  %300 = vst [vmem:[#allocation2 + $0x40] sm:$0xff] %v284
  %301 = vst [vmem:[#allocation2 + $0x48] sm:$0xff] %v285
  %302 = vst [vmem:[#allocation2 + $0x50] sm:$0xff] %v286
  %303 = vst [vmem:[#allocation2 + $0x58] sm:$0xff] %v287
  %304 = vst [vmem:[#allocation2 + $0x60] sm:$0xff] %v288
  %305 = vst [vmem:[#allocation2 + $0x68] sm:$0xff] %v289
  %306 = vst [vmem:[#allocation2 + $0x70] sm:$0xff] %v290
  %307 = vst [vmem:[#allocation2 + $0x78] sm:$0xff] %v291
  // Predicated region
  $region18: #{pcb_test_forward.25} parent=0 // pred_check
    %p308 = pneg %p15
  $region19: #{pcb_test_forward.25} parent=0 // pred_check_branch
    %310 = sbr.rel (%p308) target = $region21
  $region20: #{pcb_test_forward.25} parent=0 // pred_region
    %v311 = vld [vmem:[#allocation2] sm:$0xff]
    %v312 = vld [vmem:[#allocation2 + $0x8] sm:$0xff]
    %v313 = vld [vmem:[#allocation2 + $0x10] sm:$0xff]
    %v314 = vld [vmem:[#allocation2 + $0x18] sm:$0xff]
    %v315 = vld [vmem:[#allocation2 + $0x20] sm:$0xff]
    %v316 = vld [vmem:[#allocation2 + $0x28] sm:$0xff]
    %v317 = vld [vmem:[#allocation2 + $0x30] sm:$0xff]
    %v318 = vld [vmem:[#allocation2 + $0x38] sm:$0xff]
    %v319 = vld [vmem:[#allocation2 + $0x40] sm:$0xff]
    %v320 = vld [vmem:[#allocation2 + $0x48] sm:$0xff]
    %v321 = vld [vmem:[#allocation2 + $0x50] sm:$0xff]
    %v322 = vld [vmem:[#allocation2 + $0x58] sm:$0xff]
    %v323 = vld [vmem:[#allocation2 + $0x60] sm:$0xff]
    %v324 = vld [vmem:[#allocation2 + $0x68] sm:$0xff]
    %v325 = vld [vmem:[#allocation2 + $0x70] sm:$0xff]
    %v326 = vld [vmem:[#allocation2 + $0x78] sm:$0xff]
    %v327 = vld [vmem:[%s2] sm:$0x1]
    %v329 = vlaneseq
    %v330 = vshrl.u32 %v329, 7
    %v331 = vsub.s32 0, %v330
    %v332 = vrot.slane %v327, %v331
    %v334 = vadd.f32 %v311, %v332
    %v335 = vadd.f32 %v312, %v332
    %v336 = vadd.f32 %v313, %v332
    %v337 = vadd.f32 %v314, %v332
    %v338 = vadd.f32 %v315, %v332
    %v339 = vadd.f32 %v316, %v332
    %v340 = vadd.f32 %v317, %v332
    %v341 = vadd.f32 %v318, %v332
    %v342 = vadd.f32 %v319, %v332
    %v343 = vadd.f32 %v320, %v332
    %v344 = vadd.f32 %v321, %v332
    %v345 = vadd.f32 %v322, %v332
    %v346 = vadd.f32 %v323, %v332
    %v347 = vadd.f32 %v324, %v332
    %v348 = vadd.f32 %v325, %v332
    %v349 = vadd.f32 %v326, %v332
    %v350 = vpack.c.bf16 %v335, %v334
    %v351 = vpack.c.bf16 %v337, %v336
    %v352 = vpack.c.bf16 %v339, %v338
    %v353 = vpack.c.bf16 %v341, %v340
    %v354 = vpack.c.bf16 %v343, %v342
    %v355 = vpack.c.bf16 %v345, %v344
    %v356 = vpack.c.bf16 %v347, %v346
    %v357 = vpack.c.bf16 %v349, %v348
    %v366 = vunpack.c.l.b16 %v350
    %v367 = vunpack.c.h.b16 %v350
    %v368 = vunpack.c.l.b16 %v351
    %v369 = vunpack.c.h.b16 %v351
    %v370 = vunpack.c.l.b16 %v352
    %v371 = vunpack.c.h.b16 %v352
    %v372 = vunpack.c.l.b16 %v353
    %v373 = vunpack.c.h.b16 %v353
    %v374 = vunpack.c.l.b16 %v354
    %v375 = vunpack.c.h.b16 %v354
    %v376 = vunpack.c.l.b16 %v355
    %v377 = vunpack.c.h.b16 %v355
    %v378 = vunpack.c.l.b16 %v356
    %v379 = vunpack.c.h.b16 %v356
    %v380 = vunpack.c.l.b16 %v357
    %v381 = vunpack.c.h.b16 %v357
    %v382 = vpack.c.b16 %v366, %v366
    %v383 = vpack.c.b16 %v367, %v367
    %v384 = vpack.c.b16 %v368, %v368
    %v385 = vpack.c.b16 %v369, %v369
    %v386 = vpack.c.b16 %v370, %v370
    %v387 = vpack.c.b16 %v371, %v371
    %v388 = vpack.c.b16 %v372, %v372
    %v389 = vpack.c.b16 %v373, %v373
    %v390 = vpack.c.b16 %v374, %v374
    %v391 = vpack.c.b16 %v375, %v375
    %v392 = vpack.c.b16 %v376, %v376
    %v393 = vpack.c.b16 %v377, %v377
    %v394 = vpack.c.b16 %v378, %v378
    %v395 = vpack.c.b16 %v379, %v379
    %v396 = vpack.c.b16 %v380, %v380
    %v397 = vpack.c.b16 %v381, %v381
    %414 = vst [vmem:[%s3] sm:$0xf] %v382
    %415 = vst [vmem:[%s3 + $0x4] sm:$0xf] %v383
    %416 = vst [vmem:[%s3 + $0x8] sm:$0xf] %v384
    %417 = vst [vmem:[%s3 + $0xc] sm:$0xf] %v385
    %418 = vst [vmem:[%s3 + $0x10] sm:$0xf] %v386
    %419 = vst [vmem:[%s3 + $0x14] sm:$0xf] %v387
    %420 = vst [vmem:[%s3 + $0x18] sm:$0xf] %v388
    %421 = vst [vmem:[%s3 + $0x1c] sm:$0xf] %v389
    %422 = vst [vmem:[%s3 + $0x20] sm:$0xf] %v390
    %423 = vst [vmem:[%s3 + $0x24] sm:$0xf] %v391
    %424 = vst [vmem:[%s3 + $0x28] sm:$0xf] %v392
    %425 = vst [vmem:[%s3 + $0x2c] sm:$0xf] %v393
    %426 = vst [vmem:[%s3 + $0x30] sm:$0xf] %v394
    %427 = vst [vmem:[%s3 + $0x34] sm:$0xf] %v395
    %428 = vst [vmem:[%s3 + $0x38] sm:$0xf] %v396
    %429 = vst [vmem:[%s3 + $0x3c] sm:$0xf] %v397
  $region21: #{pcb_test_forward.25} parent=0 // pred_fallthru
    _
  // Predicated region
  $region22: #{pcb_test_forward.25} parent=0 // pred_check
    _
  $region23: #{pcb_test_forward.25} parent=0 // pred_check_branch
    %431 = sbr.rel (0) target = $region25
  $region24: #{pcb_test_forward.25} parent=0 // pred_region
    _
  $region25: #{pcb_test_forward.25} parent=0 // pred_fallthru
    _
  // Predicated region
  $region26: #{pcb_test_forward.25} parent=0 // pred_check
    _
  $region27: #{pcb_test_forward.25} parent=0 // pred_check_branch
    %433 = sbr.rel (0) target = $region29
  $region28: #{pcb_test_forward.25} parent=0 // pred_region
    _
  $region29: #{pcb_test_forward.25} parent=0 // pred_fallthru
    _

// kernel: pcb_test_forward.28
$region0: #{pcb_test_forward.28}
  #allocation0 [shape = 'u32[]', space=smem, size = 0x4, offset = 0x4, fixed_abs, tag = 'smem constant byte address 0x4 - core index']
  #allocation1 [shape = 'u32[144,128]{1,0:T(1,128)}', space=vmem, size = 0x12000, scoped, tag = 'internal scratch']
  #allocation2 [shape = 'f32[128,128]{1,0:T(8,128)}', space=vmem, size = 0x10000, scoped, tag = 'scratch operand']
  %s0 = inlined_call_operand.vmem [shape: bf16[128,128], index: 0, kind: input, shape index: {}]
  %s1 = inlined_call_operand.vmem [shape: bf16[128,128], index: 1, kind: input, shape index: {}]
  %s2 = inlined_call_operand.vmem [shape: f32[1,128], index: 2, kind: input, shape index: {}]
  %s3 = inlined_call_operand.vmem [shape: bf16[128,128], index: 3, kind: input, shape index: {}]
  %s4 = inlined_call_operand.vmem [shape: bf16[128,128], index: 4, kind: output, shape index: {}]
  %s5 = sld [smem:[#allocation0]]
  $region34: #{pcb_test_forward.28} parent=0
    _
  %s7 = ssub.s32 1, %s5
  %s8 = scalar_select 0, %s7, %s5
  // Predicated region
  $region2: #{pcb_test_forward.28} parent=0 // pred_check
    _
  $region3: #{pcb_test_forward.28} parent=0 // pred_check_branch
    %10 = sbr.rel (0) target = $region5
  $region4: #{pcb_test_forward.28} parent=0 // pred_region
    _
  $region5: #{pcb_test_forward.28} parent=0 // pred_fallthru
    _
  // Predicated region
  $region6: #{pcb_test_forward.28} parent=0 // pred_check
    _
  $region7: #{pcb_test_forward.28} parent=0 // pred_check_branch
    %12 = sbr.rel (0) target = $region9
  $region8: #{pcb_test_forward.28} parent=0 // pred_region
    _
  $region9: #{pcb_test_forward.28} parent=0 // pred_fallthru
    _
  // Predicated region
  $region10: #{pcb_test_forward.28} parent=0 // pred_check
    _
  $region11: #{pcb_test_forward.28} parent=0 // pred_check_branch
    %14 = sbr.rel (0) target = $region13
  $region12: #{pcb_test_forward.28} parent=0 // pred_region
    _
  $region13: #{pcb_test_forward.28} parent=0 // pred_fallthru
    _
  // Predicated region
  $region14: #{pcb_test_forward.28} parent=0 // pred_check
    _
  $region15: #{pcb_test_forward.28} parent=0 // pred_check_branch
    %16 = sbr.rel (0) target = $region17
  $region16: #{pcb_test_forward.28} parent=0 // pred_region
    _
  $region17: #{pcb_test_forward.28} parent=0 // pred_fallthru
    _
  %p18 = scmp.eq.s32.totalorder 0, 0
  // Predicated region
  $region18: #{pcb_test_forward.28} parent=0 // pred_check
    %p19 = pneg %p18
  $region19: #{pcb_test_forward.28} parent=0 // pred_check_branch
    %21 = sbr.rel (%p19) target = $region21
  $region20: #{pcb_test_forward.28} parent=0 // pred_region
    %22 = vst [vmem:[#allocation2] sm:$0xff] 0.0
    %23 = vst [vmem:[#allocation2 + $0x8] sm:$0xff] 0.0
    %24 = vst [vmem:[#allocation2 + $0x10] sm:$0xff] 0.0
    %25 = vst [vmem:[#allocation2 + $0x18] sm:$0xff] 0.0
    %26 = vst [vmem:[#allocation2 + $0x20] sm:$0xff] 0.0
    %27 = vst [vmem:[#allocation2 + $0x28] sm:$0xff] 0.0
    %28 = vst [vmem:[#allocation2 + $0x30] sm:$0xff] 0.0
    %29 = vst [vmem:[#allocation2 + $0x38] sm:$0xff] 0.0
    %30 = vst [vmem:[#allocation2 + $0x40] sm:$0xff] 0.0
    %31 = vst [vmem:[#allocation2 + $0x48] sm:$0xff] 0.0
    %32 = vst [vmem:[#allocation2 + $0x50] sm:$0xff] 0.0
    %33 = vst [vmem:[#allocation2 + $0x58] sm:$0xff] 0.0
    %34 = vst [vmem:[#allocation2 + $0x60] sm:$0xff] 0.0
    %35 = vst [vmem:[#allocation2 + $0x68] sm:$0xff] 0.0
    %36 = vst [vmem:[#allocation2 + $0x70] sm:$0xff] 0.0
    %37 = vst [vmem:[#allocation2 + $0x78] sm:$0xff] 0.0
  $region21: #{pcb_test_forward.28} parent=0 // pred_fallthru
    _
  %v38 = vld [vmem:[#allocation2] sm:$0xff]
  %v39 = vld [vmem:[#allocation2 + $0x8] sm:$0xff]
  %v40 = vld [vmem:[#allocation2 + $0x10] sm:$0xff]
  %v41 = vld [vmem:[#allocation2 + $0x18] sm:$0xff]
  %v42 = vld [vmem:[#allocation2 + $0x20] sm:$0xff]
  %v43 = vld [vmem:[#allocation2 + $0x28] sm:$0xff]
  %v44 = vld [vmem:[#allocation2 + $0x30] sm:$0xff]
  %v45 = vld [vmem:[#allocation2 + $0x38] sm:$0xff]
  %v46 = vld [vmem:[#allocation2 + $0x40] sm:$0xff]
  %v47 = vld [vmem:[#allocation2 + $0x48] sm:$0xff]
  %v48 = vld [vmem:[#allocation2 + $0x50] sm:$0xff]
  %v49 = vld [vmem:[#allocation2 + $0x58] sm:$0xff]
  %v50 = vld [vmem:[#allocation2 + $0x60] sm:$0xff]
  %v51 = vld [vmem:[#allocation2 + $0x68] sm:$0xff]
  %v52 = vld [vmem:[#allocation2 + $0x70] sm:$0xff]
  %v53 = vld [vmem:[#allocation2 + $0x78] sm:$0xff]
  %v54 = vld [vmem:[%s0] sm:$0xf]
  %v55 = vld [vmem:[%s0 + $0x4] sm:$0xf]
  %v56 = vld [vmem:[%s0 + $0x8] sm:$0xf]
  %v57 = vld [vmem:[%s0 + $0xc] sm:$0xf]
  %v58 = vld [vmem:[%s0 + $0x10] sm:$0xf]
  %v59 = vld [vmem:[%s0 + $0x14] sm:$0xf]
  %v60 = vld [vmem:[%s0 + $0x18] sm:$0xf]
  %v61 = vld [vmem:[%s0 + $0x1c] sm:$0xf]
  %v62 = vld [vmem:[%s0 + $0x20] sm:$0xf]
  %v63 = vld [vmem:[%s0 + $0x24] sm:$0xf]
  %v64 = vld [vmem:[%s0 + $0x28] sm:$0xf]
  %v65 = vld [vmem:[%s0 + $0x2c] sm:$0xf]
  %v66 = vld [vmem:[%s0 + $0x30] sm:$0xf]
  %v67 = vld [vmem:[%s0 + $0x34] sm:$0xf]
  %v68 = vld [vmem:[%s0 + $0x38] sm:$0xf]
  %v69 = vld [vmem:[%s0 + $0x3c] sm:$0xf]
  %v70 = vld [vmem:[%s1] sm:$0xf]
  %v71 = vld [vmem:[%s1 + $0x4] sm:$0xf]
  %v72 = vld [vmem:[%s1 + $0x8] sm:$0xf]
  %v73 = vld [vmem:[%s1 + $0xc] sm:$0xf]
  %v74 = vld [vmem:[%s1 + $0x10] sm:$0xf]
  %v75 = vld [vmem:[%s1 + $0x14] sm:$0xf]
  %v76 = vld [vmem:[%s1 + $0x18] sm:$0xf]
  %v77 = vld [vmem:[%s1 + $0x1c] sm:$0xf]
  %v78 = vld [vmem:[%s1 + $0x20] sm:$0xf]
  %v79 = vld [vmem:[%s1 + $0x24] sm:$0xf]
  %v80 = vld [vmem:[%s1 + $0x28] sm:$0xf]
  %v81 = vld [vmem:[%s1 + $0x2c] sm:$0xf]
  %v82 = vld [vmem:[%s1 + $0x30] sm:$0xf]
  %v83 = vld [vmem:[%s1 + $0x34] sm:$0xf]
  %v84 = vld [vmem:[%s1 + $0x38] sm:$0xf]
  %v85 = vld [vmem:[%s1 + $0x3c] sm:$0xf]
  %v102 = vunpack.c.l.b16 %v54
  %v103 = vunpack.c.l.b16 %v55
  %v104 = vunpack.c.l.b16 %v56
  %v105 = vunpack.c.l.b16 %v57
  %v106 = vunpack.c.l.b16 %v58
  %v107 = vunpack.c.l.b16 %v59
  %v108 = vunpack.c.l.b16 %v60
  %v109 = vunpack.c.l.b16 %v61
  %v110 = vunpack.c.l.b16 %v62
  %v111 = vunpack.c.l.b16 %v63
  %v112 = vunpack.c.l.b16 %v64
  %v113 = vunpack.c.l.b16 %v65
  %v114 = vunpack.c.l.b16 %v66
  %v115 = vunpack.c.l.b16 %v67
  %v116 = vunpack.c.l.b16 %v68
  %v117 = vunpack.c.l.b16 %v69
  %v118 = vpack.c.b16 %v103, %v102
  %v119 = vpack.c.b16 %v105, %v104
  %v120 = vpack.c.b16 %v107, %v106
  %v121 = vpack.c.b16 %v109, %v108
  %v122 = vpack.c.b16 %v111, %v110
  %v123 = vpack.c.b16 %v113, %v112
  %v124 = vpack.c.b16 %v115, %v114
  %v125 = vpack.c.b16 %v117, %v116
  %v150 = vunpack.c.l.b16 %v70
  %v151 = vunpack.c.l.b16 %v71
  %v152 = vunpack.c.l.b16 %v72
  %v153 = vunpack.c.l.b16 %v73
  %v154 = vunpack.c.l.b16 %v74
  %v155 = vunpack.c.l.b16 %v75
  %v156 = vunpack.c.l.b16 %v76
  %v157 = vunpack.c.l.b16 %v77
  %v158 = vunpack.c.l.b16 %v78
  %v159 = vunpack.c.l.b16 %v79
  %v160 = vunpack.c.l.b16 %v80
  %v161 = vunpack.c.l.b16 %v81
  %v162 = vunpack.c.l.b16 %v82
  %v163 = vunpack.c.l.b16 %v83
  %v164 = vunpack.c.l.b16 %v84
  %v165 = vunpack.c.l.b16 %v85
  %v166 = vpack.c.b16 %v151, %v150
  %v167 = vpack.c.b16 %v153, %v152
  %v168 = vpack.c.b16 %v155, %v154
  %v169 = vpack.c.b16 %v157, %v156
  %v170 = vpack.c.b16 %v159, %v158
  %v171 = vpack.c.b16 %v161, %v160
  %v172 = vpack.c.b16 %v163, %v162
  %v173 = vpack.c.b16 %v165, %v164
  %182 = vmatprep.subr.bf16.mxu0 0
  %183 = vmatpush1.bf16.msra.mxu0 %v173
  %184 = vmatprep.subr.bf16.mxu0 0
  %185 = vmatpush1.bf16.msra.mxu0 %v172
  %186 = vmatprep.subr.bf16.mxu0 0
  %187 = vmatpush1.bf16.msra.mxu0 %v171
  %188 = vmatprep.subr.bf16.mxu0 0
  %189 = vmatpush1.bf16.msra.mxu0 %v170
  %190 = vmatprep.subr.bf16.mxu0 0
  %191 = vmatpush1.bf16.msra.mxu0 %v169
  %192 = vmatprep.subr.bf16.mxu0 0
  %193 = vmatpush1.bf16.msra.mxu0 %v168
  %194 = vmatprep.subr.bf16.mxu0 0
  %195 = vmatpush1.bf16.msra.mxu0 %v167
  %196 = vmatprep.subr.bf16.mxu0 0
  %197 = vmatpush1.bf16.msra.mxu0 %v166
  %198 = vmatprep.subr.bf16.mxu0 0
  %199 = vmatpush2.bf16.msra.mxu0 0
  %200 = vmatprep.subr.bf16.mxu0 0
  %201 = vmatpush2.bf16.msra.mxu0 0
  %202 = vmatprep.subr.bf16.mxu0 0
  %203 = vmatpush2.bf16.msra.mxu0 0
  %204 = vmatprep.subr.bf16.mxu0 0
  %205 = vmatpush2.bf16.msra.mxu0 0
  %206 = vmatprep.subr.bf16.mxu0 0
  %207 = vmatpush2.bf16.msra.mxu0 0
  %208 = vmatprep.subr.bf16.mxu0 0
  %209 = vmatpush2.bf16.msra.mxu0 0
  %210 = vmatprep.subr.bf16.mxu0 0
  %211 = vmatpush2.bf16.msra.mxu0 0
  %212 = vmatprep.subr.bf16.mxu0 0
  %213 = vmatpush2.bf16.msra.mxu0 0
  %214 = vmatprep.mubr.bf16.mxu0 0
  %215 = vmatmul.mubr.bf16.gmra.mxu0 %v118
  %v216 = vpop.f32.mrf.mxu0
  %v217 = vadd.f32 0.0, %v216
  %v218 = vpop.f32.mrf.mxu0
  %v219 = vpop.f32.mrf.mxu0
  %v220 = vadd.f32 0.0, %v219
  %v221 = vpop.f32.mrf.mxu0
  %222 = vmatprep.mubr.bf16.mxu0 0
  %223 = vmatmul.mubr.bf16.gmra.mxu0 %v119
  %v224 = vpop.f32.mrf.mxu0
  %v225 = vadd.f32 0.0, %v224
  %v226 = vpop.f32.mrf.mxu0
  %v227 = vpop.f32.mrf.mxu0
  %v228 = vadd.f32 0.0, %v227
  %v229 = vpop.f32.mrf.mxu0
  %230 = vmatprep.mubr.bf16.mxu0 0
  %231 = vmatmul.mubr.bf16.gmra.mxu0 %v120
  %v232 = vpop.f32.mrf.mxu0
  %v233 = vadd.f32 0.0, %v232
  %v234 = vpop.f32.mrf.mxu0
  %v235 = vpop.f32.mrf.mxu0
  %v236 = vadd.f32 0.0, %v235
  %v237 = vpop.f32.mrf.mxu0
  %238 = vmatprep.mubr.bf16.mxu0 0
  %239 = vmatmul.mubr.bf16.gmra.mxu0 %v121
  %v240 = vpop.f32.mrf.mxu0
  %v241 = vadd.f32 0.0, %v240
  %v242 = vpop.f32.mrf.mxu0
  %v243 = vpop.f32.mrf.mxu0
  %v244 = vadd.f32 0.0, %v243
  %v245 = vpop.f32.mrf.mxu0
  %246 = vmatprep.mubr.bf16.mxu0 0
  %247 = vmatmul.mubr.bf16.gmra.mxu0 %v122
  %v248 = vpop.f32.mrf.mxu0
  %v249 = vadd.f32 0.0, %v248
  %v250 = vpop.f32.mrf.mxu0
  %v251 = vpop.f32.mrf.mxu0
  %v252 = vadd.f32 0.0, %v251
  %v253 = vpop.f32.mrf.mxu0
  %254 = vmatprep.mubr.bf16.mxu0 0
  %255 = vmatmul.mubr.bf16.gmra.mxu0 %v123
  %v256 = vpop.f32.mrf.mxu0
  %v257 = vadd.f32 0.0, %v256
  %v258 = vpop.f32.mrf.mxu0
  %v259 = vpop.f32.mrf.mxu0
  %v260 = vadd.f32 0.0, %v259
  %v261 = vpop.f32.mrf.mxu0
  %262 = vmatprep.mubr.bf16.mxu0 0
  %263 = vmatmul.mubr.bf16.gmra.mxu0 %v124
  %v264 = vpop.f32.mrf.mxu0
  %v265 = vadd.f32 0.0, %v264
  %v266 = vpop.f32.mrf.mxu0
  %v267 = vpop.f32.mrf.mxu0
  %v268 = vadd.f32 0.0, %v267
  %v269 = vpop.f32.mrf.mxu0
  %270 = vmatprep.mubr.bf16.mxu0 0
  %271 = vmatmul.mubr.bf16.gmra.mxu0 %v125
  %v272 = vpop.f32.mrf.mxu0
  %v273 = vadd.f32 0.0, %v272
  %v274 = vpop.f32.mrf.mxu0
  %v275 = vpop.f32.mrf.mxu0
  %v276 = vadd.f32 0.0, %v275
  %v277 = vpop.f32.mrf.mxu0
  %278 = vdwg.mxu0
  %v279 = vadd.f32 %v38, %v217
  %v280 = vadd.f32 %v39, %v220
  %v281 = vadd.f32 %v40, %v225
  %v282 = vadd.f32 %v41, %v228
  %v283 = vadd.f32 %v42, %v233
  %v284 = vadd.f32 %v43, %v236
  %v285 = vadd.f32 %v44, %v241
  %v286 = vadd.f32 %v45, %v244
  %v287 = vadd.f32 %v46, %v249
  %v288 = vadd.f32 %v47, %v252
  %v289 = vadd.f32 %v48, %v257
  %v290 = vadd.f32 %v49, %v260
  %v291 = vadd.f32 %v50, %v265
  %v292 = vadd.f32 %v51, %v268
  %v293 = vadd.f32 %v52, %v273
  %v294 = vadd.f32 %v53, %v276
  %295 = vst [vmem:[#allocation2] sm:$0xff] %v279
  %296 = vst [vmem:[#allocation2 + $0x8] sm:$0xff] %v280
  %297 = vst [vmem:[#allocation2 + $0x10] sm:$0xff] %v281
  %298 = vst [vmem:[#allocation2 + $0x18] sm:$0xff] %v282
  %299 = vst [vmem:[#allocation2 + $0x20] sm:$0xff] %v283
  %300 = vst [vmem:[#allocation2 + $0x28] sm:$0xff] %v284
  %301 = vst [vmem:[#allocation2 + $0x30] sm:$0xff] %v285
  %302 = vst [vmem:[#allocation2 + $0x38] sm:$0xff] %v286
  %303 = vst [vmem:[#allocation2 + $0x40] sm:$0xff] %v287
  %304 = vst [vmem:[#allocation2 + $0x48] sm:$0xff] %v288
  %305 = vst [vmem:[#allocation2 + $0x50] sm:$0xff] %v289
  %306 = vst [vmem:[#allocation2 + $0x58] sm:$0xff] %v290
  %307 = vst [vmem:[#allocation2 + $0x60] sm:$0xff] %v291
  %308 = vst [vmem:[#allocation2 + $0x68] sm:$0xff] %v292
  %309 = vst [vmem:[#allocation2 + $0x70] sm:$0xff] %v293
  %310 = vst [vmem:[#allocation2 + $0x78] sm:$0xff] %v294
  // Predicated region
  $region22: #{pcb_test_forward.28} parent=0 // pred_check
    %p311 = pneg %p18
  $region23: #{pcb_test_forward.28} parent=0 // pred_check_branch
    %313 = sbr.rel (%p311) target = $region25
  $region24: #{pcb_test_forward.28} parent=0 // pred_region
    %v314 = vld [vmem:[#allocation2] sm:$0xff]
    %v315 = vld [vmem:[#allocation2 + $0x8] sm:$0xff]
    %v316 = vld [vmem:[#allocation2 + $0x10] sm:$0xff]
    %v317 = vld [vmem:[#allocation2 + $0x18] sm:$0xff]
    %v318 = vld [vmem:[#allocation2 + $0x20] sm:$0xff]
    %v319 = vld [vmem:[#allocation2 + $0x28] sm:$0xff]
    %v320 = vld [vmem:[#allocation2 + $0x30] sm:$0xff]
    %v321 = vld [vmem:[#allocation2 + $0x38] sm:$0xff]
    %v322 = vld [vmem:[#allocation2 + $0x40] sm:$0xff]
    %v323 = vld [vmem:[#allocation2 + $0x48] sm:$0xff]
    %v324 = vld [vmem:[#allocation2 + $0x50] sm:$0xff]
    %v325 = vld [vmem:[#allocation2 + $0x58] sm:$0xff]
    %v326 = vld [vmem:[#allocation2 + $0x60] sm:$0xff]
    %v327 = vld [vmem:[#allocation2 + $0x68] sm:$0xff]
    %v328 = vld [vmem:[#allocation2 + $0x70] sm:$0xff]
    %v329 = vld [vmem:[#allocation2 + $0x78] sm:$0xff]
    %v330 = vld [vmem:[%s2] sm:$0x1]
    %v332 = vlaneseq
    %v333 = vshrl.u32 %v332, 7
    %v334 = vsub.s32 0, %v333
    %v335 = vrot.slane %v330, %v334
    %v337 = vadd.f32 %v314, %v335
    %v338 = vadd.f32 %v315, %v335
    %v339 = vadd.f32 %v316, %v335
    %v340 = vadd.f32 %v317, %v335
    %v341 = vadd.f32 %v318, %v335
    %v342 = vadd.f32 %v319, %v335
    %v343 = vadd.f32 %v320, %v335
    %v344 = vadd.f32 %v321, %v335
    %v345 = vadd.f32 %v322, %v335
    %v346 = vadd.f32 %v323, %v335
    %v347 = vadd.f32 %v324, %v335
    %v348 = vadd.f32 %v325, %v335
    %v349 = vadd.f32 %v326, %v335
    %v350 = vadd.f32 %v327, %v335
    %v351 = vadd.f32 %v328, %v335
    %v352 = vadd.f32 %v329, %v335
    %v353 = vld [vmem:[%s3] sm:$0xf]
    %v354 = vld [vmem:[%s3 + $0x4] sm:$0xf]
    %v355 = vld [vmem:[%s3 + $0x8] sm:$0xf]
    %v356 = vld [vmem:[%s3 + $0xc] sm:$0xf]
    %v357 = vld [vmem:[%s3 + $0x10] sm:$0xf]
    %v358 = vld [vmem:[%s3 + $0x14] sm:$0xf]
    %v359 = vld [vmem:[%s3 + $0x18] sm:$0xf]
    %v360 = vld [vmem:[%s3 + $0x1c] sm:$0xf]
    %v361 = vld [vmem:[%s3 + $0x20] sm:$0xf]
    %v362 = vld [vmem:[%s3 + $0x24] sm:$0xf]
    %v363 = vld [vmem:[%s3 + $0x28] sm:$0xf]
    %v364 = vld [vmem:[%s3 + $0x2c] sm:$0xf]
    %v365 = vld [vmem:[%s3 + $0x30] sm:$0xf]
    %v366 = vld [vmem:[%s3 + $0x34] sm:$0xf]
    %v367 = vld [vmem:[%s3 + $0x38] sm:$0xf]
    %v368 = vld [vmem:[%s3 + $0x3c] sm:$0xf]
    %v369 = vunpack.c.l.bf16 %v353
    %v370 = vunpack.c.l.bf16 %v354
    %v371 = vunpack.c.l.bf16 %v355
    %v372 = vunpack.c.l.bf16 %v356
    %v373 = vunpack.c.l.bf16 %v357
    %v374 = vunpack.c.l.bf16 %v358
    %v375 = vunpack.c.l.bf16 %v359
    %v376 = vunpack.c.l.bf16 %v360
    %v377 = vunpack.c.l.bf16 %v361
    %v378 = vunpack.c.l.bf16 %v362
    %v379 = vunpack.c.l.bf16 %v363
    %v380 = vunpack.c.l.bf16 %v364
    %v381 = vunpack.c.l.bf16 %v365
    %v382 = vunpack.c.l.bf16 %v366
    %v383 = vunpack.c.l.bf16 %v367
    %v384 = vunpack.c.l.bf16 %v368
    %v385 = vadd.f32 %v337, %v369
    %v386 = vadd.f32 %v338, %v370
    %v387 = vadd.f32 %v339, %v371
    %v388 = vadd.f32 %v340, %v372
    %v389 = vadd.f32 %v341, %v373
    %v390 = vadd.f32 %v342, %v374
    %v391 = vadd.f32 %v343, %v375
    %v392 = vadd.f32 %v344, %v376
    %v393 = vadd.f32 %v345, %v377
    %v394 = vadd.f32 %v346, %v378
    %v395 = vadd.f32 %v347, %v379
    %v396 = vadd.f32 %v348, %v380
    %v397 = vadd.f32 %v349, %v381
    %v398 = vadd.f32 %v350, %v382
    %v399 = vadd.f32 %v351, %v383
    %v400 = vadd.f32 %v352, %v384
    %v401 = vmax.f32 %v385, 0.0
    %v402 = vmax.f32 %v386, 0.0
    %v403 = vmax.f32 %v387, 0.0
    %v404 = vmax.f32 %v388, 0.0
    %v405 = vmax.f32 %v389, 0.0
    %v406 = vmax.f32 %v390, 0.0
    %v407 = vmax.f32 %v391, 0.0
    %v408 = vmax.f32 %v392, 0.0
    %v409 = vmax.f32 %v393, 0.0
    %v410 = vmax.f32 %v394, 0.0
    %v411 = vmax.f32 %v395, 0.0
    %v412 = vmax.f32 %v396, 0.0
    %v413 = vmax.f32 %v397, 0.0
    %v414 = vmax.f32 %v398, 0.0
    %v415 = vmax.f32 %v399, 0.0
    %v416 = vmax.f32 %v400, 0.0
    %v417 = vpack.c.bf16 %v402, %v401
    %v418 = vpack.c.bf16 %v404, %v403
    %v419 = vpack.c.bf16 %v406, %v405
    %v420 = vpack.c.bf16 %v408, %v407
    %v421 = vpack.c.bf16 %v410, %v409
    %v422 = vpack.c.bf16 %v412, %v411
    %v423 = vpack.c.bf16 %v414, %v413
    %v424 = vpack.c.bf16 %v416, %v415
    %v433 = vunpack.c.l.b16 %v417
    %v434 = vunpack.c.h.b16 %v417
    %v435 = vunpack.c.l.b16 %v418
    %v436 = vunpack.c.h.b16 %v418
    %v437 = vunpack.c.l.b16 %v419
    %v438 = vunpack.c.h.b16 %v419
    %v439 = vunpack.c.l.b16 %v420
    %v440 = vunpack.c.h.b16 %v420
    %v441 = vunpack.c.l.b16 %v421
    %v442 = vunpack.c.h.b16 %v421
    %v443 = vunpack.c.l.b16 %v422
    %v444 = vunpack.c.h.b16 %v422
    %v445 = vunpack.c.l.b16 %v423
    %v446 = vunpack.c.h.b16 %v423
    %v447 = vunpack.c.l.b16 %v424
    %v448 = vunpack.c.h.b16 %v424
    %v449 = vpack.c.b16 %v433, %v433
    %v450 = vpack.c.b16 %v434, %v434
    %v451 = vpack.c.b16 %v435, %v435
    %v452 = vpack.c.b16 %v436, %v436
    %v453 = vpack.c.b16 %v437, %v437
    %v454 = vpack.c.b16 %v438, %v438
    %v455 = vpack.c.b16 %v439, %v439
    %v456 = vpack.c.b16 %v440, %v440
    %v457 = vpack.c.b16 %v441, %v441
    %v458 = vpack.c.b16 %v442, %v442
    %v459 = vpack.c.b16 %v443, %v443
    %v460 = vpack.c.b16 %v444, %v444
    %v461 = vpack.c.b16 %v445, %v445
    %v462 = vpack.c.b16 %v446, %v446
    %v463 = vpack.c.b16 %v447, %v447
    %v464 = vpack.c.b16 %v448, %v448
    %481 = vst [vmem:[%s4] sm:$0xf] %v449
    %482 = vst [vmem:[%s4 + $0x4] sm:$0xf] %v450
    %483 = vst [vmem:[%s4 + $0x8] sm:$0xf] %v451
    %484 = vst [vmem:[%s4 + $0xc] sm:$0xf] %v452
    %485 = vst [vmem:[%s4 + $0x10] sm:$0xf] %v453
    %486 = vst [vmem:[%s4 + $0x14] sm:$0xf] %v454
    %487 = vst [vmem:[%s4 + $0x18] sm:$0xf] %v455
    %488 = vst [vmem:[%s4 + $0x1c] sm:$0xf] %v456
    %489 = vst [vmem:[%s4 + $0x20] sm:$0xf] %v457
    %490 = vst [vmem:[%s4 + $0x24] sm:$0xf] %v458
    %491 = vst [vmem:[%s4 + $0x28] sm:$0xf] %v459
    %492 = vst [vmem:[%s4 + $0x2c] sm:$0xf] %v460
    %493 = vst [vmem:[%s4 + $0x30] sm:$0xf] %v461
    %494 = vst [vmem:[%s4 + $0x34] sm:$0xf] %v462
    %495 = vst [vmem:[%s4 + $0x38] sm:$0xf] %v463
    %496 = vst [vmem:[%s4 + $0x3c] sm:$0xf] %v464
  $region25: #{pcb_test_forward.28} parent=0 // pred_fallthru
    _
  // Predicated region
  $region26: #{pcb_test_forward.28} parent=0 // pred_check
    _
  $region27: #{pcb_test_forward.28} parent=0 // pred_check_branch
    %498 = sbr.rel (0) target = $region29
  $region28: #{pcb_test_forward.28} parent=0 // pred_region
    _
  $region29: #{pcb_test_forward.28} parent=0 // pred_fallthru
    _
  // Predicated region
  $region30: #{pcb_test_forward.28} parent=0 // pred_check
    _
  $region31: #{pcb_test_forward.28} parent=0 // pred_check_branch
    %500 = sbr.rel (0) target = $region33
  $region32: #{pcb_test_forward.28} parent=0 // pred_region
    _
  $region33: #{pcb_test_forward.28} parent=0 // pred_fallthru
    _

// kernel: pcb_test_forward.30
$region0: #{pcb_test_forward.30}
  #allocation0 [shape = 'u32[]', space=smem, size = 0x4, offset = 0x4, fixed_abs, tag = 'smem constant byte address 0x4 - core index']
  #allocation1 [shape = 'u32[144,128]{1,0:T(1,128)}', space=vmem, size = 0x12000, scoped, tag = 'internal scratch']
  #allocation2 [shape = 'f32[128,128]{1,0:T(8,128)}', space=vmem, size = 0x10000, scoped, tag = 'scratch operand']
  %s0 = inlined_call_operand.vmem [shape: bf16[128,128], index: 0, kind: input, shape index: {}]
  %s1 = inlined_call_operand.vmem [shape: bf16[128,128], index: 1, kind: input, shape index: {}]
  %s2 = inlined_call_operand.vmem [shape: f32[1,128], index: 2, kind: input, shape index: {}]
  %s3 = inlined_call_operand.vmem [shape: bf16[128,128], index: 3, kind: output, shape index: {}]
  %s4 = sld [smem:[#allocation0]]
  $region30: #{pcb_test_forward.30} parent=0
    _
  %s6 = ssub.s32 1, %s4
  %s7 = scalar_select 0, %s6, %s4
  // Predicated region
  $region2: #{pcb_test_forward.30} parent=0 // pred_check
    _
  $region3: #{pcb_test_forward.30} parent=0 // pred_check_branch
    %9 = sbr.rel (0) target = $region5
  $region4: #{pcb_test_forward.30} parent=0 // pred_region
    _
  $region5: #{pcb_test_forward.30} parent=0 // pred_fallthru
    _
  // Predicated region
  $region6: #{pcb_test_forward.30} parent=0 // pred_check
    _
  $region7: #{pcb_test_forward.30} parent=0 // pred_check_branch
    %11 = sbr.rel (0) target = $region9
  $region8: #{pcb_test_forward.30} parent=0 // pred_region
    _
  $region9: #{pcb_test_forward.30} parent=0 // pred_fallthru
    _
  // Predicated region
  $region10: #{pcb_test_forward.30} parent=0 // pred_check
    _
  $region11: #{pcb_test_forward.30} parent=0 // pred_check_branch
    %13 = sbr.rel (0) target = $region13
  $region12: #{pcb_test_forward.30} parent=0 // pred_region
    _
  $region13: #{pcb_test_forward.30} parent=0 // pred_fallthru
    _
  %p15 = scmp.eq.s32.totalorder 0, 0
  // Predicated region
  $region14: #{pcb_test_forward.30} parent=0 // pred_check
    %p16 = pneg %p15
  $region15: #{pcb_test_forward.30} parent=0 // pred_check_branch
    %18 = sbr.rel (%p16) target = $region17
  $region16: #{pcb_test_forward.30} parent=0 // pred_region
    %19 = vst [vmem:[#allocation2] sm:$0xff] 0.0
    %20 = vst [vmem:[#allocation2 + $0x8] sm:$0xff] 0.0
    %21 = vst [vmem:[#allocation2 + $0x10] sm:$0xff] 0.0
    %22 = vst [vmem:[#allocation2 + $0x18] sm:$0xff] 0.0
    %23 = vst [vmem:[#allocation2 + $0x20] sm:$0xff] 0.0
    %24 = vst [vmem:[#allocation2 + $0x28] sm:$0xff] 0.0
    %25 = vst [vmem:[#allocation2 + $0x30] sm:$0xff] 0.0
    %26 = vst [vmem:[#allocation2 + $0x38] sm:$0xff] 0.0
    %27 = vst [vmem:[#allocation2 + $0x40] sm:$0xff] 0.0
    %28 = vst [vmem:[#allocation2 + $0x48] sm:$0xff] 0.0
    %29 = vst [vmem:[#allocation2 + $0x50] sm:$0xff] 0.0
    %30 = vst [vmem:[#allocation2 + $0x58] sm:$0xff] 0.0
    %31 = vst [vmem:[#allocation2 + $0x60] sm:$0xff] 0.0
    %32 = vst [vmem:[#allocation2 + $0x68] sm:$0xff] 0.0
    %33 = vst [vmem:[#allocation2 + $0x70] sm:$0xff] 0.0
    %34 = vst [vmem:[#allocation2 + $0x78] sm:$0xff] 0.0
  $region17: #{pcb_test_forward.30} parent=0 // pred_fallthru
    _
  %v35 = vld [vmem:[#allocation2] sm:$0xff]
  %v36 = vld [vmem:[#allocation2 + $0x8] sm:$0xff]
  %v37 = vld [vmem:[#allocation2 + $0x10] sm:$0xff]
  %v38 = vld [vmem:[#allocation2 + $0x18] sm:$0xff]
  %v39 = vld [vmem:[#allocation2 + $0x20] sm:$0xff]
  %v40 = vld [vmem:[#allocation2 + $0x28] sm:$0xff]
  %v41 = vld [vmem:[#allocation2 + $0x30] sm:$0xff]
  %v42 = vld [vmem:[#allocation2 + $0x38] sm:$0xff]
  %v43 = vld [vmem:[#allocation2 + $0x40] sm:$0xff]
  %v44 = vld [vmem:[#allocation2 + $0x48] sm:$0xff]
  %v45 = vld [vmem:[#allocation2 + $0x50] sm:$0xff]
  %v46 = vld [vmem:[#allocation2 + $0x58] sm:$0xff]
  %v47 = vld [vmem:[#allocation2 + $0x60] sm:$0xff]
  %v48 = vld [vmem:[#allocation2 + $0x68] sm:$0xff]
  %v49 = vld [vmem:[#allocation2 + $0x70] sm:$0xff]
  %v50 = vld [vmem:[#allocation2 + $0x78] sm:$0xff]
  %v51 = vld [vmem:[%s0] sm:$0xf]
  %v52 = vld [vmem:[%s0 + $0x4] sm:$0xf]
  %v53 = vld [vmem:[%s0 + $0x8] sm:$0xf]
  %v54 = vld [vmem:[%s0 + $0xc] sm:$0xf]
  %v55 = vld [vmem:[%s0 + $0x10] sm:$0xf]
  %v56 = vld [vmem:[%s0 + $0x14] sm:$0xf]
  %v57 = vld [vmem:[%s0 + $0x18] sm:$0xf]
  %v58 = vld [vmem:[%s0 + $0x1c] sm:$0xf]
  %v59 = vld [vmem:[%s0 + $0x20] sm:$0xf]
  %v60 = vld [vmem:[%s0 + $0x24] sm:$0xf]
  %v61 = vld [vmem:[%s0 + $0x28] sm:$0xf]
  %v62 = vld [vmem:[%s0 + $0x2c] sm:$0xf]
  %v63 = vld [vmem:[%s0 + $0x30] sm:$0xf]
  %v64 = vld [vmem:[%s0 + $0x34] sm:$0xf]
  %v65 = vld [vmem:[%s0 + $0x38] sm:$0xf]
  %v66 = vld [vmem:[%s0 + $0x3c] sm:$0xf]
  %v67 = vld [vmem:[%s1] sm:$0xf]
  %v68 = vld [vmem:[%s1 + $0x4] sm:$0xf]
  %v69 = vld [vmem:[%s1 + $0x8] sm:$0xf]
  %v70 = vld [vmem:[%s1 + $0xc] sm:$0xf]
  %v71 = vld [vmem:[%s1 + $0x10] sm:$0xf]
  %v72 = vld [vmem:[%s1 + $0x14] sm:$0xf]
  %v73 = vld [vmem:[%s1 + $0x18] sm:$0xf]
  %v74 = vld [vmem:[%s1 + $0x1c] sm:$0xf]
  %v75 = vld [vmem:[%s1 + $0x20] sm:$0xf]
  %v76 = vld [vmem:[%s1 + $0x24] sm:$0xf]
  %v77 = vld [vmem:[%s1 + $0x28] sm:$0xf]
  %v78 = vld [vmem:[%s1 + $0x2c] sm:$0xf]
  %v79 = vld [vmem:[%s1 + $0x30] sm:$0xf]
  %v80 = vld [vmem:[%s1 + $0x34] sm:$0xf]
  %v81 = vld [vmem:[%s1 + $0x38] sm:$0xf]
  %v82 = vld [vmem:[%s1 + $0x3c] sm:$0xf]
  %v99 = vunpack.c.l.b16 %v51
  %v100 = vunpack.c.l.b16 %v52
  %v101 = vunpack.c.l.b16 %v53
  %v102 = vunpack.c.l.b16 %v54
  %v103 = vunpack.c.l.b16 %v55
  %v104 = vunpack.c.l.b16 %v56
  %v105 = vunpack.c.l.b16 %v57
  %v106 = vunpack.c.l.b16 %v58
  %v107 = vunpack.c.l.b16 %v59
  %v108 = vunpack.c.l.b16 %v60
  %v109 = vunpack.c.l.b16 %v61
  %v110 = vunpack.c.l.b16 %v62
  %v111 = vunpack.c.l.b16 %v63
  %v112 = vunpack.c.l.b16 %v64
  %v113 = vunpack.c.l.b16 %v65
  %v114 = vunpack.c.l.b16 %v66
  %v115 = vpack.c.b16 %v100, %v99
  %v116 = vpack.c.b16 %v102, %v101
  %v117 = vpack.c.b16 %v104, %v103
  %v118 = vpack.c.b16 %v106, %v105
  %v119 = vpack.c.b16 %v108, %v107
  %v120 = vpack.c.b16 %v110, %v109
  %v121 = vpack.c.b16 %v112, %v111
  %v122 = vpack.c.b16 %v114, %v113
  %v147 = vunpack.c.l.b16 %v67
  %v148 = vunpack.c.l.b16 %v68
  %v149 = vunpack.c.l.b16 %v69
  %v150 = vunpack.c.l.b16 %v70
  %v151 = vunpack.c.l.b16 %v71
  %v152 = vunpack.c.l.b16 %v72
  %v153 = vunpack.c.l.b16 %v73
  %v154 = vunpack.c.l.b16 %v74
  %v155 = vunpack.c.l.b16 %v75
  %v156 = vunpack.c.l.b16 %v76
  %v157 = vunpack.c.l.b16 %v77
  %v158 = vunpack.c.l.b16 %v78
  %v159 = vunpack.c.l.b16 %v79
  %v160 = vunpack.c.l.b16 %v80
  %v161 = vunpack.c.l.b16 %v81
  %v162 = vunpack.c.l.b16 %v82
  %v163 = vpack.c.b16 %v148, %v147
  %v164 = vpack.c.b16 %v150, %v149
  %v165 = vpack.c.b16 %v152, %v151
  %v166 = vpack.c.b16 %v154, %v153
  %v167 = vpack.c.b16 %v156, %v155
  %v168 = vpack.c.b16 %v158, %v157
  %v169 = vpack.c.b16 %v160, %v159
  %v170 = vpack.c.b16 %v162, %v161
  %179 = vmatprep.subr.bf16.mxu0 0
  %180 = vmatpush1.bf16.msra.mxu0 %v170
  %181 = vmatprep.subr.bf16.mxu0 0
  %182 = vmatpush1.bf16.msra.mxu0 %v169
  %183 = vmatprep.subr.bf16.mxu0 0
  %184 = vmatpush1.bf16.msra.mxu0 %v168
  %185 = vmatprep.subr.bf16.mxu0 0
  %186 = vmatpush1.bf16.msra.mxu0 %v167
  %187 = vmatprep.subr.bf16.mxu0 0
  %188 = vmatpush1.bf16.msra.mxu0 %v166
  %189 = vmatprep.subr.bf16.mxu0 0
  %190 = vmatpush1.bf16.msra.mxu0 %v165
  %191 = vmatprep.subr.bf16.mxu0 0
  %192 = vmatpush1.bf16.msra.mxu0 %v164
  %193 = vmatprep.subr.bf16.mxu0 0
  %194 = vmatpush1.bf16.msra.mxu0 %v163
  %195 = vmatprep.subr.bf16.mxu0 0
  %196 = vmatpush2.bf16.msra.mxu0 0
  %197 = vmatprep.subr.bf16.mxu0 0
  %198 = vmatpush2.bf16.msra.mxu0 0
  %199 = vmatprep.subr.bf16.mxu0 0
  %200 = vmatpush2.bf16.msra.mxu0 0
  %201 = vmatprep.subr.bf16.mxu0 0
  %202 = vmatpush2.bf16.msra.mxu0 0
  %203 = vmatprep.subr.bf16.mxu0 0
  %204 = vmatpush2.bf16.msra.mxu0 0
  %205 = vmatprep.subr.bf16.mxu0 0
  %206 = vmatpush2.bf16.msra.mxu0 0
  %207 = vmatprep.subr.bf16.mxu0 0
  %208 = vmatpush2.bf16.msra.mxu0 0
  %209 = vmatprep.subr.bf16.mxu0 0
  %210 = vmatpush2.bf16.msra.mxu0 0
  %211 = vmatprep.mubr.bf16.mxu0 0
  %212 = vmatmul.mubr.bf16.gmra.mxu0 %v115
  %v213 = vpop.f32.mrf.mxu0
  %v214 = vadd.f32 0.0, %v213
  %v215 = vpop.f32.mrf.mxu0
  %v216 = vpop.f32.mrf.mxu0
  %v217 = vadd.f32 0.0, %v216
  %v218 = vpop.f32.mrf.mxu0
  %219 = vmatprep.mubr.bf16.mxu0 0
  %220 = vmatmul.mubr.bf16.gmra.mxu0 %v116
  %v221 = vpop.f32.mrf.mxu0
  %v222 = vadd.f32 0.0, %v221
  %v223 = vpop.f32.mrf.mxu0
  %v224 = vpop.f32.mrf.mxu0
  %v225 = vadd.f32 0.0, %v224
  %v226 = vpop.f32.mrf.mxu0
  %227 = vmatprep.mubr.bf16.mxu0 0
  %228 = vmatmul.mubr.bf16.gmra.mxu0 %v117
  %v229 = vpop.f32.mrf.mxu0
  %v230 = vadd.f32 0.0, %v229
  %v231 = vpop.f32.mrf.mxu0
  %v232 = vpop.f32.mrf.mxu0
  %v233 = vadd.f32 0.0, %v232
  %v234 = vpop.f32.mrf.mxu0
  %235 = vmatprep.mubr.bf16.mxu0 0
  %236 = vmatmul.mubr.bf16.gmra.mxu0 %v118
  %v237 = vpop.f32.mrf.mxu0
  %v238 = vadd.f32 0.0, %v237
  %v239 = vpop.f32.mrf.mxu0
  %v240 = vpop.f32.mrf.mxu0
  %v241 = vadd.f32 0.0, %v240
  %v242 = vpop.f32.mrf.mxu0
  %243 = vmatprep.mubr.bf16.mxu0 0
  %244 = vmatmul.mubr.bf16.gmra.mxu0 %v119
  %v245 = vpop.f32.mrf.mxu0
  %v246 = vadd.f32 0.0, %v245
  %v247 = vpop.f32.mrf.mxu0
  %v248 = vpop.f32.mrf.mxu0
  %v249 = vadd.f32 0.0, %v248
  %v250 = vpop.f32.mrf.mxu0
  %251 = vmatprep.mubr.bf16.mxu0 0
  %252 = vmatmul.mubr.bf16.gmra.mxu0 %v120
  %v253 = vpop.f32.mrf.mxu0
  %v254 = vadd.f32 0.0, %v253
  %v255 = vpop.f32.mrf.mxu0
  %v256 = vpop.f32.mrf.mxu0
  %v257 = vadd.f32 0.0, %v256
  %v258 = vpop.f32.mrf.mxu0
  %259 = vmatprep.mubr.bf16.mxu0 0
  %260 = vmatmul.mubr.bf16.gmra.mxu0 %v121
  %v261 = vpop.f32.mrf.mxu0
  %v262 = vadd.f32 0.0, %v261
  %v263 = vpop.f32.mrf.mxu0
  %v264 = vpop.f32.mrf.mxu0
  %v265 = vadd.f32 0.0, %v264
  %v266 = vpop.f32.mrf.mxu0
  %267 = vmatprep.mubr.bf16.mxu0 0
  %268 = vmatmul.mubr.bf16.gmra.mxu0 %v122
  %v269 = vpop.f32.mrf.mxu0
  %v270 = vadd.f32 0.0, %v269
  %v271 = vpop.f32.mrf.mxu0
  %v272 = vpop.f32.mrf.mxu0
  %v273 = vadd.f32 0.0, %v272
  %v274 = vpop.f32.mrf.mxu0
  %275 = vdwg.mxu0
  %v276 = vadd.f32 %v35, %v214
  %v277 = vadd.f32 %v36, %v217
  %v278 = vadd.f32 %v37, %v222
  %v279 = vadd.f32 %v38, %v225
  %v280 = vadd.f32 %v39, %v230
  %v281 = vadd.f32 %v40, %v233
  %v282 = vadd.f32 %v41, %v238
  %v283 = vadd.f32 %v42, %v241
  %v284 = vadd.f32 %v43, %v246
  %v285 = vadd.f32 %v44, %v249
  %v286 = vadd.f32 %v45, %v254
  %v287 = vadd.f32 %v46, %v257
  %v288 = vadd.f32 %v47, %v262
  %v289 = vadd.f32 %v48, %v265
  %v290 = vadd.f32 %v49, %v270
  %v291 = vadd.f32 %v50, %v273
  %292 = vst [vmem:[#allocation2] sm:$0xff] %v276
  %293 = vst [vmem:[#allocation2 + $0x8] sm:$0xff] %v277
  %294 = vst [vmem:[#allocation2 + $0x10] sm:$0xff] %v278
  %295 = vst [vmem:[#allocation2 + $0x18] sm:$0xff] %v279
  %296 = vst [vmem:[#allocation2 + $0x20] sm:$0xff] %v280
  %297 = vst [vmem:[#allocation2 + $0x28] sm:$0xff] %v281
  %298 = vst [vmem:[#allocation2 + $0x30] sm:$0xff] %v282
  %299 = vst [vmem:[#allocation2 + $0x38] sm:$0xff] %v283
  %300 = vst [vmem:[#allocation2 + $0x40] sm:$0xff] %v284
  %301 = vst [vmem:[#allocation2 + $0x48] sm:$0xff] %v285
  %302 = vst [vmem:[#allocation2 + $0x50] sm:$0xff] %v286
  %303 = vst [vmem:[#allocation2 + $0x58] sm:$0xff] %v287
  %304 = vst [vmem:[#allocation2 + $0x60] sm:$0xff] %v288
  %305 = vst [vmem:[#allocation2 + $0x68] sm:$0xff] %v289
  %306 = vst [vmem:[#allocation2 + $0x70] sm:$0xff] %v290
  %307 = vst [vmem:[#allocation2 + $0x78] sm:$0xff] %v291
  // Predicated region
  $region18: #{pcb_test_forward.30} parent=0 // pred_check
    %p308 = pneg %p15
  $region19: #{pcb_test_forward.30} parent=0 // pred_check_branch
    %310 = sbr.rel (%p308) target = $region21
  $region20: #{pcb_test_forward.30} parent=0 // pred_region
    %v311 = vld [vmem:[#allocation2] sm:$0xff]
    %v312 = vld [vmem:[#allocation2 + $0x8] sm:$0xff]
    %v313 = vld [vmem:[#allocation2 + $0x10] sm:$0xff]
    %v314 = vld [vmem:[#allocation2 + $0x18] sm:$0xff]
    %v315 = vld [vmem:[#allocation2 + $0x20] sm:$0xff]
    %v316 = vld [vmem:[#allocation2 + $0x28] sm:$0xff]
    %v317 = vld [vmem:[#allocation2 + $0x30] sm:$0xff]
    %v318 = vld [vmem:[#allocation2 + $0x38] sm:$0xff]
    %v319 = vld [vmem:[#allocation2 + $0x40] sm:$0xff]
    %v320 = vld [vmem:[#allocation2 + $0x48] sm:$0xff]
    %v321 = vld [vmem:[#allocation2 + $0x50] sm:$0xff]
    %v322 = vld [vmem:[#allocation2 + $0x58] sm:$0xff]
    %v323 = vld [vmem:[#allocation2 + $0x60] sm:$0xff]
    %v324 = vld [vmem:[#allocation2 + $0x68] sm:$0xff]
    %v325 = vld [vmem:[#allocation2 + $0x70] sm:$0xff]
    %v326 = vld [vmem:[#allocation2 + $0x78] sm:$0xff]
    %v327 = vld [vmem:[%s2] sm:$0x1]
    %v329 = vlaneseq
    %v330 = vshrl.u32 %v329, 7
    %v331 = vsub.s32 0, %v330
    %v332 = vrot.slane %v327, %v331
    %v334 = vadd.f32 %v311, %v332
    %v335 = vadd.f32 %v312, %v332
    %v336 = vadd.f32 %v313, %v332
    %v337 = vadd.f32 %v314, %v332
    %v338 = vadd.f32 %v315, %v332
    %v339 = vadd.f32 %v316, %v332
    %v340 = vadd.f32 %v317, %v332
    %v341 = vadd.f32 %v318, %v332
    %v342 = vadd.f32 %v319, %v332
    %v343 = vadd.f32 %v320, %v332
    %v344 = vadd.f32 %v321, %v332
    %v345 = vadd.f32 %v322, %v332
    %v346 = vadd.f32 %v323, %v332
    %v347 = vadd.f32 %v324, %v332
    %v348 = vadd.f32 %v325, %v332
    %v349 = vadd.f32 %v326, %v332
    %v350 = vmax.f32 %v334, 0.0
    %v351 = vmax.f32 %v335, 0.0
    %v352 = vmax.f32 %v336, 0.0
    %v353 = vmax.f32 %v337, 0.0
    %v354 = vmax.f32 %v338, 0.0
    %v355 = vmax.f32 %v339, 0.0
    %v356 = vmax.f32 %v340, 0.0
    %v357 = vmax.f32 %v341, 0.0
    %v358 = vmax.f32 %v342, 0.0
    %v359 = vmax.f32 %v343, 0.0
    %v360 = vmax.f32 %v344, 0.0
    %v361 = vmax.f32 %v345, 0.0
    %v362 = vmax.f32 %v346, 0.0
    %v363 = vmax.f32 %v347, 0.0
    %v364 = vmax.f32 %v348, 0.0
    %v365 = vmax.f32 %v349, 0.0
    %v366 = vpack.c.bf16 %v351, %v350
    %v367 = vpack.c.bf16 %v353, %v352
    %v368 = vpack.c.bf16 %v355, %v354
    %v369 = vpack.c.bf16 %v357, %v356
    %v370 = vpack.c.bf16 %v359, %v358
    %v371 = vpack.c.bf16 %v361, %v360
    %v372 = vpack.c.bf16 %v363, %v362
    %v373 = vpack.c.bf16 %v365, %v364
    %v382 = vunpack.c.l.b16 %v366
    %v383 = vunpack.c.h.b16 %v366
    %v384 = vunpack.c.l.b16 %v367
    %v385 = vunpack.c.h.b16 %v367
    %v386 = vunpack.c.l.b16 %v368
    %v387 = vunpack.c.h.b16 %v368
    %v388 = vunpack.c.l.b16 %v369
    %v389 = vunpack.c.h.b16 %v369
    %v390 = vunpack.c.l.b16 %v370
    %v391 = vunpack.c.h.b16 %v370
    %v392 = vunpack.c.l.b16 %v371
    %v393 = vunpack.c.h.b16 %v371
    %v394 = vunpack.c.l.b16 %v372
    %v395 = vunpack.c.h.b16 %v372
    %v396 = vunpack.c.l.b16 %v373
    %v397 = vunpack.c.h.b16 %v373
    %v398 = vpack.c.b16 %v382, %v382
    %v399 = vpack.c.b16 %v383, %v383
    %v400 = vpack.c.b16 %v384, %v384
    %v401 = vpack.c.b16 %v385, %v385
    %v402 = vpack.c.b16 %v386, %v386
    %v403 = vpack.c.b16 %v387, %v387
    %v404 = vpack.c.b16 %v388, %v388
    %v405 = vpack.c.b16 %v389, %v389
    %v406 = vpack.c.b16 %v390, %v390
    %v407 = vpack.c.b16 %v391, %v391
    %v408 = vpack.c.b16 %v392, %v392
    %v409 = vpack.c.b16 %v393, %v393
    %v410 = vpack.c.b16 %v394, %v394
    %v411 = vpack.c.b16 %v395, %v395
    %v412 = vpack.c.b16 %v396, %v396
    %v413 = vpack.c.b16 %v397, %v397
    %430 = vst [vmem:[%s3] sm:$0xf] %v398
    %431 = vst [vmem:[%s3 + $0x4] sm:$0xf] %v399
    %432 = vst [vmem:[%s3 + $0x8] sm:$0xf] %v400
    %433 = vst [vmem:[%s3 + $0xc] sm:$0xf] %v401
    %434 = vst [vmem:[%s3 + $0x10] sm:$0xf] %v402
    %435 = vst [vmem:[%s3 + $0x14] sm:$0xf] %v403
    %436 = vst [vmem:[%s3 + $0x18] sm:$0xf] %v404
    %437 = vst [vmem:[%s3 + $0x1c] sm:$0xf] %v405
    %438 = vst [vmem:[%s3 + $0x20] sm:$0xf] %v406
    %439 = vst [vmem:[%s3 + $0x24] sm:$0xf] %v407
    %440 = vst [vmem:[%s3 + $0x28] sm:$0xf] %v408
    %441 = vst [vmem:[%s3 + $0x2c] sm:$0xf] %v409
    %442 = vst [vmem:[%s3 + $0x30] sm:$0xf] %v410
    %443 = vst [vmem:[%s3 + $0x34] sm:$0xf] %v411
    %444 = vst [vmem:[%s3 + $0x38] sm:$0xf] %v412
    %445 = vst [vmem:[%s3 + $0x3c] sm:$0xf] %v413
  $region21: #{pcb_test_forward.30} parent=0 // pred_fallthru
    _
  // Predicated region
  $region22: #{pcb_test_forward.30} parent=0 // pred_check
    _
  $region23: #{pcb_test_forward.30} parent=0 // pred_check_branch
    %447 = sbr.rel (0) target = $region25
  $region24: #{pcb_test_forward.30} parent=0 // pred_region
    _
  $region25: #{pcb_test_forward.30} parent=0 // pred_fallthru
    _
  // Predicated region
  $region26: #{pcb_test_forward.30} parent=0 // pred_check
    _
  $region27: #{pcb_test_forward.30} parent=0 // pred_check_branch
    %449 = sbr.rel (0) target = $region29
  $region28: #{pcb_test_forward.30} parent=0 // pred_region
    _
  $region29: #{pcb_test_forward.30} parent=0 // pred_fallthru
    _

// kernel: pcb_test_forward.37
$region0: #{pcb_test_forward.37}
  #allocation0 [shape = 'u32[]', space=smem, size = 0x4, offset = 0x4, fixed_abs, tag = 'smem constant byte address 0x4 - core index']
  #allocation1 [shape = 'u32[144,128]{1,0:T(1,128)}', space=vmem, size = 0x12000, scoped, tag = 'internal scratch']
  %s0 = inlined_call_operand.vmem [shape: bf16[4,4,256], index: 0, kind: input, shape index: {}]
  %s1 = inlined_call_operand.vmem [shape: f32[4,256], index: 1, kind: output, shape index: {}]
  %s2 = sld [smem:[#allocation0]]
  $region14: #{pcb_test_forward.37} parent=0
    _
  %s4 = ssub.s32 1, %s2
  %s5 = scalar_select 0, %s4, %s2
  // Predicated region
  $region2: #{pcb_test_forward.37} parent=0 // pred_check
    _
  $region3: #{pcb_test_forward.37} parent=0 // pred_check_branch
    %7 = sbr.rel (0) target = $region5
  $region4: #{pcb_test_forward.37} parent=0 // pred_region
    _
  $region5: #{pcb_test_forward.37} parent=0 // pred_fallthru
    _
  %v8 = vld [vmem:[%s0] sm:$0xf]
  %v9 = vld [vmem:[%s0 + $0x4] sm:$0xf]
  %v10 = vld [vmem:[%s0 + $0x8] sm:$0xf]
  %v11 = vld [vmem:[%s0 + $0xc] sm:$0xf]
  %v12 = vunpack.c.l.bf16 %v8
  %v13 = vunpack.c.l.bf16 %v9
  %v14 = vunpack.c.l.bf16 %v10
  %v15 = vunpack.c.l.bf16 %v11
  %v20 = vcombine.high %v12, %v12
  %v21 = vcombine.high %v13, %v13
  %v22 = vcombine.high %v14, %v14
  %v23 = vcombine.high %v15, %v15
  %vm28 = vcmask 1043456
  %v29 = vsel %vm28, %v12, 0.0
  %v30 = vsel %vm28, %v13, 0.0
  %v31 = vadd.f32 %v29, %v30
  %v32 = vsel %vm28, %v14, 0.0
  %v33 = vadd.f32 %v31, %v32
  %v34 = vsel %vm28, %v15, 0.0
  %v35 = vadd.f32 %v33, %v34
  %v36 = vsel %vm28, %v20, 0.0
  %v37 = vsel %vm28, %v21, 0.0
  %v38 = vadd.f32 %v36, %v37
  %v39 = vsel %vm28, %v22, 0.0
  %v40 = vadd.f32 %v38, %v39
  %v41 = vsel %vm28, %v23, 0.0
  %v42 = vadd.f32 %v40, %v41
  %v43 = vrcp.pop 4.0
  %v44 = vmul.f32 %v35, %v43
  %v45 = vmul.f32 %v42, %v43
  %v48 = vcombine.low %v44, %v45
  %50 = vst [vmem:[%s1] sm:$0xff] %v48
  // Predicated region
  $region6: #{pcb_test_forward.37} parent=0 // pred_check
    _
  $region7: #{pcb_test_forward.37} parent=0 // pred_check_branch
    %52 = sbr.rel (0) target = $region9
  $region8: #{pcb_test_forward.37} parent=0 // pred_region
    _
  $region9: #{pcb_test_forward.37} parent=0 // pred_fallthru
    _
  // Predicated region
  $region10: #{pcb_test_forward.37} parent=0 // pred_check
    _
  $region11: #{pcb_test_forward.37} parent=0 // pred_check_branch
    %54 = sbr.rel (0) target = $region13
  $region12: #{pcb_test_forward.37} parent=0 // pred_region
    _
  $region13: #{pcb_test_forward.37} parent=0 // pred_fallthru
    _

// kernel: pcb_test_forward.33
$region0: #{pcb_test_forward.33}
  #allocation0 [shape = 'u32[]', space=smem, size = 0x4, offset = 0x4, fixed_abs, tag = 'smem constant byte address 0x4 - core index']
  #allocation1 [shape = 'u32[144,128]{1,0:T(1,128)}', space=vmem, size = 0x12000, scoped, tag = 'internal scratch']
  #allocation2 [shape = 'f32[128,128]{1,0:T(8,128)}', space=vmem, size = 0x10000, scoped, tag = 'scratch operand']
  %s0 = inlined_call_operand.vmem [shape: bf16[128,128], index: 0, kind: input, shape index: {}]
  %s1 = inlined_call_operand.vmem [shape: bf16[128,256], index: 1, kind: input, shape index: {}]
  %s2 = inlined_call_operand.vmem [shape: f32[1,256], index: 2, kind: input, shape index: {}]
  %s3 = inlined_call_operand.vmem [shape: bf16[128,256], index: 3, kind: output, shape index: {}]
  %s4 = sld [smem:[#allocation0]]
  $region131: #{pcb_test_forward.33} parent=0
    _
  %s6 = ssub.s32 1, %s4
  %s7 = scalar_select 0, %s6, %s4
  $region1: #{pcb_test_forward.33} parent=0
    #allocation3 [shape = 'u8[65536]{0}', space=vmem, size = 0x10000, scoped, tag = 'input window, operand 1']
    #allocation4 [shape = 'u8[65536]{0}', space=vmem, size = 0x10000, scoped, tag = 'output window, operand 0']
    loop: start=0, step=1, limit=4
    $region2: #{pcb_test_forward.33} parent=1 // loop_pre_header
      _
    $region3: #{pcb_test_forward.33} parent=1 // loop_header
      %s9 = sphi 0, %s13
      %p10 = scmp.ge.s32.totalorder %s9, 4
      %s16 = sphi 0, %s35
      %s17 = sphi 0, %s31
      %s18 = sphi 0, %s27
      %s19 = sphi 0, %s16
      %s20 = sphi 0, %s17
      %s21 = sphi 0, %s18
      %s22 = sphi 0, %s19
      %s23 = sphi 0, %s20
      %s24 = sphi 0, %s21
      %s40 = sphi 0, %s42
      %s43 = sphi 0, %s40
      %s44 = sphi 0, %s43
      %s60 = sphi 0, %s44
      %s68 = sphi 0, %s70
      %s71 = sphi 0, %s68
      %s72 = sphi 0, %s71
      %s88 = sphi 0, %s72
      %s94 = sphi 0, %s96
      %s97 = sphi 0, %s94
      %s98 = sphi 0, %s97
      %s114 = sphi 0, %s98
      %s122 = sphi 0, %s124
      %s125 = sphi 0, %s122
      %s126 = sphi 0, %s125
      %s142 = sphi 0, %s126
    $region4: #{pcb_test_forward.33} parent=1 // loop_header_branch
      %12 = sbr.rel (%p10) target = $region8
    $region5: #{pcb_test_forward.33} parent=1 // loop_body
      %s14 = ssub.s32 %s9, 1
      %s15 = ssub.s32 %s9, 2
      %s25 = sadd.s32 1, %s18
      %p26 = scmp.ge.s32.totalorder %s25, 1
      %s27 = scalar_select %p26, 0, %s25
      %s28 = sadd.s32 1, %s17
      %s29 = scalar_select %p26, %s28, %s17
      %p30 = scmp.ge.s32.totalorder %s29, 2
      %s31 = scalar_select %p30, 0, %s29
      %s32 = sadd.s32 1, %s16
      %s33 = scalar_select %p30, %s32, %s16
      %p34 = scmp.ge.s32.totalorder %s33, 1
      %s35 = scalar_select %p34, 0, %s33
      %s36 = ssub.s32 %s16, %s35
      %s37 = ssub.s32 %s18, %s27
      %s38 = sor.u32 %s36, %s37
      %p39 = scmp.eq.s32.totalorder %s38, 0
      %s41 = sadd.s32 %s40, 1
      %s42 = scalar_select %p39, %s40, %s41
      %p45 = pneg %p39
      %p46 = scmp.eq.s32.totalorder %s9, 1
      %p47 = por %p45, %p46
      %p48 = scmp.ne.s32.totalorder %s40, %s43
      %p49 = scmp.eq.s32.totalorder %s9, 0
      %p50 = por %p48, %p49
      %p51 = scmp.ne.s32.totalorder %s40, %s43
      %p52 = scmp.eq.s32.totalorder %s14, 1
      %p53 = por %p51, %p52
      %p54 = scmp.ne.s32.totalorder %s43, %s44
      %p55 = scmp.eq.s32.totalorder %s14, 0
      %p56 = por %p54, %p55
      %p57 = scmp.ne.s32.totalorder %s43, %s44
      %p58 = scmp.eq.s32.totalorder %s15, 1
      %p59 = por %p57, %p58
      %p61 = scmp.ne.s32.totalorder %s44, %s60
      %p62 = scmp.eq.s32.totalorder %s15, 0
      %p63 = por %p61, %p62
      %s64 = ssub.s32 %s18, %s27
      %s65 = ssub.s32 %s17, %s31
      %s66 = sor.u32 %s64, %s65
      %p67 = scmp.eq.s32.totalorder %s66, 0
      %s69 = sadd.s32 %s68, 1
      %s70 = scalar_select %p67, %s68, %s69
      %p73 = pneg %p67
      %p74 = scmp.eq.s32.totalorder %s9, 1
      %p75 = por %p73, %p74
      %p76 = scmp.ne.s32.totalorder %s68, %s71
      %p77 = scmp.eq.s32.totalorder %s9, 0
      %p78 = por %p76, %p77
      %p79 = scmp.ne.s32.totalorder %s68, %s71
      %p80 = scmp.eq.s32.totalorder %s14, 1
      %p81 = por %p79, %p80
      %p82 = scmp.ne.s32.totalorder %s71, %s72
      %p83 = scmp.eq.s32.totalorder %s14, 0
      %p84 = por %p82, %p83
      %p85 = scmp.ne.s32.totalorder %s71, %s72
      %p86 = scmp.eq.s32.totalorder %s15, 1
      %p87 = por %p85, %p86
      %p89 = scmp.ne.s32.totalorder %s72, %s88
      %p90 = scmp.eq.s32.totalorder %s15, 0
      %p91 = por %p89, %p90
      %s92 = ssub.s32 %s17, %s31
      %p93 = scmp.eq.s32.totalorder %s92, 0
      %s95 = sadd.s32 %s94, 1
      %s96 = scalar_select %p93, %s94, %s95
      %p99 = pneg %p93
      %p100 = scmp.eq.s32.totalorder %s9, 1
      %p101 = por %p99, %p100
      %p102 = scmp.ne.s32.totalorder %s94, %s97
      %p103 = scmp.eq.s32.totalorder %s9, 0
      %p104 = por %p102, %p103
      %p105 = scmp.ne.s32.totalorder %s94, %s97
      %p106 = scmp.eq.s32.totalorder %s14, 1
      %p107 = por %p105, %p106
      %p108 = scmp.ne.s32.totalorder %s97, %s98
      %p109 = scmp.eq.s32.totalorder %s14, 0
      %p110 = por %p108, %p109
      %p111 = scmp.ne.s32.totalorder %s97, %s98
      %p112 = scmp.eq.s32.totalorder %s15, 1
      %p113 = por %p111, %p112
      %p115 = scmp.ne.s32.totalorder %s98, %s114
      %p116 = scmp.eq.s32.totalorder %s15, 0
      %p117 = por %p115, %p116
      %s118 = ssub.s32 %s16, %s35
      %s119 = ssub.s32 %s17, %s31
      %s120 = sor.u32 %s118, %s119
      %p121 = scmp.eq.s32.totalorder %s120, 0
      %s123 = sadd.s32 %s122, 1
      %s124 = scalar_select %p121, %s122, %s123
      %p127 = pneg %p121
      %p128 = scmp.eq.s32.totalorder %s9, 1
      %p129 = por %p127, %p128
      %p130 = scmp.ne.s32.totalorder %s122, %s125
      %p131 = scmp.eq.s32.totalorder %s9, 0
      %p132 = por %p130, %p131
      %p133 = scmp.ne.s32.totalorder %s122, %s125
      %p134 = scmp.eq.s32.totalorder %s14, 1
      %p135 = por %p133, %p134
      %p136 = scmp.ne.s32.totalorder %s125, %s126
      %p137 = scmp.eq.s32.totalorder %s14, 0
      %p138 = por %p136, %p137
      %p139 = scmp.ne.s32.totalorder %s125, %s126
      %p140 = scmp.eq.s32.totalorder %s15, 1
      %p141 = por %p139, %p140
      %p143 = scmp.ne.s32.totalorder %s126, %s142
      %p144 = scmp.eq.s32.totalorder %s15, 0
      %p145 = por %p143, %p144
      %p146 = scmp.le.s32.totalorder 1, %s9
      %p147 = scmp.lt.s32.totalorder %s9, 3
      %p148 = pnand %p146, %p147
      %p149 = pneg %p148
      // Predicated region
      $region9: #{pcb_test_forward.33} parent=5 // pred_check
        _
      $region10: #{pcb_test_forward.33} parent=5 // pred_check_branch
        %151 = sbr.rel (%p148) target = $region12
      $region11: #{pcb_test_forward.33} parent=5 // pred_region
        %s152 = ssub.s32 %s9, 1
        // Predicated region
        $region13: #{pcb_test_forward.33} parent=11 // pred_check
          %p153 = pneg %p56
        $region14: #{pcb_test_forward.33} parent=11 // pred_check_branch
          %155 = sbr.rel (%p153) target = $region16
        $region15: #{pcb_test_forward.33} parent=11 // pred_region
          %s156 = smul.u32 16, %s19
          %p157 = scmp.lt.s32.totalorder %s156, 15
          %s158 = scalar_select %p157, %s156, 15
          %p159 = scmp.lt.s32.totalorder %s21, 0
          %s160 = scalar_select %p159, %s21, 0
          %s161 = sadd.s32 %s160, %s158
          %s162 = smul.addr %s161, 4
          %s163 = scalar_lea.vmem %s0, %s162
          %s164 = smul.u32 16, %s19
        $region16: #{pcb_test_forward.33} parent=11 // pred_fallthru
          _
      $region12: #{pcb_test_forward.33} parent=5 // pred_fallthru
        _
      %p165 = scmp.lt.s32.totalorder %s9, 2
      // Predicated region
      $region17: #{pcb_test_forward.33} parent=5 // pred_check
        %p166 = pneg %p165
      $region18: #{pcb_test_forward.33} parent=5 // pred_check_branch
        %168 = sbr.rel (%p166) target = $region20
      $region19: #{pcb_test_forward.33} parent=5 // pred_region
        // Predicated region
        $region21: #{pcb_test_forward.33} parent=19 // pred_check
          %p169 = pneg %p78
        $region22: #{pcb_test_forward.33} parent=19 // pred_check_branch
          %171 = sbr.rel (%p169) target = $region24
        $region23: #{pcb_test_forward.33} parent=19 // pred_region
          %s172 = sand.u32 %s68, 1
          %s173 = sand.u32 %s68, 1
          %s174 = smul.addr %s173, 64
          %s175 = scalar_lea.vmem [#allocation3], %s174
          %s176 = smul.u32 16, %s18
          %s177 = smul.addr %s176, 2
          %s178 = sadd.s32 %s17, %s177
          %s179 = smul.addr %s178, 4
          %s180 = scalar_lea.vmem %s1, %s179
          // Predicated region
          $region25: #{pcb_test_forward.33} parent=23 // pred_check
            _
          $region26: #{pcb_test_forward.33} parent=23 // pred_check_branch
            %182 = sbr.rel (0) target = $region28
          $region27: #{pcb_test_forward.33} parent=23 // pred_region
            // Predicated region
            $region29: #{pcb_test_forward.33} parent=27 // pred_check
              _
            $region30: #{pcb_test_forward.33} parent=27 // pred_check_branch
              %184 = sbr.rel target = $region32
            $region31: #{pcb_test_forward.33} parent=27 // pred_region
              // Predicated region
              $region44: #{pcb_test_forward.33} parent=31 // pred_check
                _
              $region45: #{pcb_test_forward.33} parent=31 // pred_check_branch
                %230 = sbr.rel (0) target = $region47
              $region46: #{pcb_test_forward.33} parent=31 // pred_region
                loop: start=0, step=1, limit=1
                $region48: #{pcb_test_forward.33} parent=46 // loop_pre_header
                  _
                $region49: #{pcb_test_forward.33} parent=46 // loop_header
                  %s232 = sphi 0, %s236
                  %p233 = scmp.ge.s32.totalorder %s232, 1
                  %s237 = sphi %s180, %s180
                  %s238 = sphi %s175, %s175
                $region50: #{pcb_test_forward.33} parent=46 // loop_header_branch
                  %235 = sbr.rel (%p233) target = $region54
                $region51: #{pcb_test_forward.33} parent=46 // loop_body
                  _
                $region52: #{pcb_test_forward.33} parent=46 // loop_footer
                  %s236 = sadd.s32 1, %s232
                $region53: #{pcb_test_forward.33} parent=46 // loop_footer_branch
                  %231 = sbr.rel target = $region49
                $region54: #{pcb_test_forward.33} parent=46 // loop_exit
                  _
                %s240 = ssub.s32 16, 1
                loop: start=0, step=1, limit=1
                $region55: #{pcb_test_forward.33} parent=46 // loop_pre_header
                  _
                $region56: #{pcb_test_forward.33} parent=46 // loop_header
                  %s242 = sphi 0, %s246
                  %p243 = scmp.ge.s32.totalorder %s242, 1
                  %s247 = sphi %s180, %s180
                  %s248 = sphi %s175, %s175
                $region57: #{pcb_test_forward.33} parent=46 // loop_header_branch
                  %245 = sbr.rel (%p243) target = $region61
                $region58: #{pcb_test_forward.33} parent=46 // loop_body
                  %v249 = vld [vmem:[%s247] sm:%s240]
                  %250 = vst [vmem:[%s248] sm:%s240] %v249
                  %v251 = vld [vmem:[%s247 + $0x8] sm:%s240]
                  %252 = vst [vmem:[%s248 + $0x4] sm:%s240] %v251
                  %v253 = vld [vmem:[%s247 + $0x10] sm:%s240]
                  %254 = vst [vmem:[%s248 + $0x8] sm:%s240] %v253
                  %v255 = vld [vmem:[%s247 + $0x18] sm:%s240]
                  %256 = vst [vmem:[%s248 + $0xc] sm:%s240] %v255
                  %v257 = vld [vmem:[%s247 + $0x20] sm:%s240]
                  %258 = vst [vmem:[%s248 + $0x10] sm:%s240] %v257
                  %v259 = vld [vmem:[%s247 + $0x28] sm:%s240]
                  %260 = vst [vmem:[%s248 + $0x14] sm:%s240] %v259
                  %v261 = vld [vmem:[%s247 + $0x30] sm:%s240]
                  %262 = vst [vmem:[%s248 + $0x18] sm:%s240] %v261
                  %v263 = vld [vmem:[%s247 + $0x38] sm:%s240]
                  %264 = vst [vmem:[%s248 + $0x1c] sm:%s240] %v263
                  %v265 = vld [vmem:[%s247 + $0x40] sm:%s240]
                  %266 = vst [vmem:[%s248 + $0x20] sm:%s240] %v265
                  %v267 = vld [vmem:[%s247 + $0x48] sm:%s240]
                  %268 = vst [vmem:[%s248 + $0x24] sm:%s240] %v267
                  %v269 = vld [vmem:[%s247 + $0x50] sm:%s240]
                  %270 = vst [vmem:[%s248 + $0x28] sm:%s240] %v269
                  %v271 = vld [vmem:[%s247 + $0x58] sm:%s240]
                  %272 = vst [vmem:[%s248 + $0x2c] sm:%s240] %v271
                  %v273 = vld [vmem:[%s247 + $0x60] sm:%s240]
                  %274 = vst [vmem:[%s248 + $0x30] sm:%s240] %v273
                  %v275 = vld [vmem:[%s247 + $0x68] sm:%s240]
                  %276 = vst [vmem:[%s248 + $0x34] sm:%s240] %v275
                  %v277 = vld [vmem:[%s247 + $0x70] sm:%s240]
                  %278 = vst [vmem:[%s248 + $0x38] sm:%s240] %v277
                  %v279 = vld [vmem:[%s247 + $0x78] sm:%s240]
                  %280 = vst [vmem:[%s248 + $0x3c] sm:%s240] %v279
                $region59: #{pcb_test_forward.33} parent=46 // loop_footer
                  %s246 = sadd.s32 1, %s242
                $region60: #{pcb_test_forward.33} parent=46 // loop_footer_branch
                  %241 = sbr.rel target = $region56
                $region61: #{pcb_test_forward.33} parent=46 // loop_exit
                  _
              $region47: #{pcb_test_forward.33} parent=31 // pred_fallthru
                _
            $region32: #{pcb_test_forward.33} parent=27 // pred_fallthru
              _
            // Predicated region
            $region33: #{pcb_test_forward.33} parent=27 // pred_check
              _
            $region34: #{pcb_test_forward.33} parent=27 // pred_check_branch
              %186 = sbr.rel (0) target = $region36
            $region35: #{pcb_test_forward.33} parent=27 // pred_region
              %s188 = ssub.s32 16, 1
              loop: start=0, step=1, limit=1
              $region37: #{pcb_test_forward.33} parent=35 // loop_pre_header
                _
              $region38: #{pcb_test_forward.33} parent=35 // loop_header
                %s190 = sphi 0, %s194
                %p191 = scmp.ge.s32.totalorder %s190, 1
                %s195 = sphi %s180, %s180
                %s196 = sphi %s175, %s175
              $region39: #{pcb_test_forward.33} parent=35 // loop_header_branch
                %193 = sbr.rel (%p191) target = $region43
              $region40: #{pcb_test_forward.33} parent=35 // loop_body
                %v197 = vld [vmem:[%s195] sm:%s188]
                %198 = vst [vmem:[%s196] sm:%s188] %v197
                %v199 = vld [vmem:[%s195 + $0x8] sm:%s188]
                %200 = vst [vmem:[%s196 + $0x4] sm:%s188] %v199
                %v201 = vld [vmem:[%s195 + $0x10] sm:%s188]
                %202 = vst [vmem:[%s196 + $0x8] sm:%s188] %v201
                %v203 = vld [vmem:[%s195 + $0x18] sm:%s188]
                %204 = vst [vmem:[%s196 + $0xc] sm:%s188] %v203
                %v205 = vld [vmem:[%s195 + $0x20] sm:%s188]
                %206 = vst [vmem:[%s196 + $0x10] sm:%s188] %v205
                %v207 = vld [vmem:[%s195 + $0x28] sm:%s188]
                %208 = vst [vmem:[%s196 + $0x14] sm:%s188] %v207
                %v209 = vld [vmem:[%s195 + $0x30] sm:%s188]
                %210 = vst [vmem:[%s196 + $0x18] sm:%s188] %v209
                %v211 = vld [vmem:[%s195 + $0x38] sm:%s188]
                %212 = vst [vmem:[%s196 + $0x1c] sm:%s188] %v211
                %v213 = vld [vmem:[%s195 + $0x40] sm:%s188]
                %214 = vst [vmem:[%s196 + $0x20] sm:%s188] %v213
                %v215 = vld [vmem:[%s195 + $0x48] sm:%s188]
                %216 = vst [vmem:[%s196 + $0x24] sm:%s188] %v215
                %v217 = vld [vmem:[%s195 + $0x50] sm:%s188]
                %218 = vst [vmem:[%s196 + $0x28] sm:%s188] %v217
                %v219 = vld [vmem:[%s195 + $0x58] sm:%s188]
                %220 = vst [vmem:[%s196 + $0x2c] sm:%s188] %v219
                %v221 = vld [vmem:[%s195 + $0x60] sm:%s188]
                %222 = vst [vmem:[%s196 + $0x30] sm:%s188] %v221
                %v223 = vld [vmem:[%s195 + $0x68] sm:%s188]
                %224 = vst [vmem:[%s196 + $0x34] sm:%s188] %v223
                %v225 = vld [vmem:[%s195 + $0x70] sm:%s188]
                %226 = vst [vmem:[%s196 + $0x38] sm:%s188] %v225
                %v227 = vld [vmem:[%s195 + $0x78] sm:%s188]
                %228 = vst [vmem:[%s196 + $0x3c] sm:%s188] %v227
              $region41: #{pcb_test_forward.33} parent=35 // loop_footer
                %s194 = sadd.s32 1, %s190
              $region42: #{pcb_test_forward.33} parent=35 // loop_footer_branch
                %189 = sbr.rel target = $region38
              $region43: #{pcb_test_forward.33} parent=35 // loop_exit
                _
            $region36: #{pcb_test_forward.33} parent=27 // pred_fallthru
              _
          $region28: #{pcb_test_forward.33} parent=23 // pred_fallthru
            _
          %281 = vnop
        $region24: #{pcb_test_forward.33} parent=19 // pred_fallthru
          _
        // Predicated region
        $region62: #{pcb_test_forward.33} parent=19 // pred_check
          %p282 = pneg %p104
        $region63: #{pcb_test_forward.33} parent=19 // pred_check_branch
          %284 = sbr.rel (%p282) target = $region65
        $region64: #{pcb_test_forward.33} parent=19 // pred_region
          %p285 = scmp.lt.s32.totalorder %s17, 1
          %s286 = scalar_select %p285, %s17, 1
          %s287 = scalar_lea.vmem %s2, %s286
        $region65: #{pcb_test_forward.33} parent=19 // pred_fallthru
          _
      $region20: #{pcb_test_forward.33} parent=5 // pred_fallthru
        _
      %p288 = scmp.le.s32.totalorder 1, %s9
      %p289 = scmp.lt.s32.totalorder %s9, 3
      %p290 = pnand %p288, %p289
      %p291 = pneg %p290
      // Predicated region
      $region66: #{pcb_test_forward.33} parent=5 // pred_check
        _
      $region67: #{pcb_test_forward.33} parent=5 // pred_check_branch
        %293 = sbr.rel (%p290) target = $region69
      $region68: #{pcb_test_forward.33} parent=5 // pred_region
        %s294 = ssub.s32 %s9, 1
        %s295 = sand.u32 %s71, 1
        %s296 = sand.u32 %s71, 1
        %s297 = smul.addr %s296, 64
        %s298 = scalar_lea.vmem [#allocation3], %s297
        // Predicated region
        $region70: #{pcb_test_forward.33} parent=68 // pred_check
          %p299 = pneg %p84
        $region71: #{pcb_test_forward.33} parent=68 // pred_check_branch
          %301 = sbr.rel (%p299) target = $region73
        $region72: #{pcb_test_forward.33} parent=68 // pred_region
          _
        $region73: #{pcb_test_forward.33} parent=68 // pred_fallthru
          _
        %s302 = smul.u32 16, %s19
        %p303 = scmp.lt.s32.totalorder %s302, 15
        %s304 = scalar_select %p303, %s302, 15
        %p305 = scmp.lt.s32.totalorder %s21, 0
        %s306 = scalar_select %p305, %s21, 0
        %s307 = sadd.s32 %s306, %s304
        %s308 = smul.addr %s307, 4
        %s309 = scalar_lea.vmem %s0, %s308
        %p310 = pneg %p56
        %p311 = pneg %p53
        %s312 = sand.u32 %s71, 1
        %s313 = sand.u32 %s71, 1
        %s314 = smul.addr %s313, 64
        %s315 = scalar_lea.vmem [#allocation3], %s314
        %p316 = pneg %p84
        %p317 = pneg %p81
        %p318 = scmp.lt.s32.totalorder %s20, 1
        %s319 = scalar_select %p318, %s20, 1
        %s320 = scalar_lea.vmem %s2, %s319
        %p321 = pneg %p110
        %p322 = pneg %p107
        %p323 = pneg %p138
        %p324 = pneg %p135
        %s325 = sand.u32 %s125, 1
        %s326 = sand.u32 %s125, 1
        %s327 = smul.addr %s326, 64
        %s328 = scalar_lea.vmem [#allocation4], %s327
        %s329 = smul.u32 16, %s19
        %p330 = scmp.lt.s32.totalorder %s329, 15
        %s331 = scalar_select %p330, %s329, 15
        %p332 = scmp.lt.s32.totalorder %s21, 0
        %s333 = scalar_select %p332, %s21, 0
        %s334 = sadd.s32 %s333, %s331
        %s335 = smul.addr %s334, 4
        %s336 = scalar_lea.vmem %s0, %s335
        %s337 = smul.u32 16, %s19
        %s338 = smul.u32 16, %s21
        %p339 = scmp.lt.s32.totalorder %s20, 1
        %s340 = scalar_select %p339, %s20, 1
        %s341 = scalar_lea.vmem %s2, %s340
        %s342 = smul.u32 16, %s19
        %p344 = scmp.eq.s32.totalorder %s21, 0
        // Predicated region
        $region74: #{pcb_test_forward.33} parent=68 // pred_check
          %p345 = pneg %p344
        $region75: #{pcb_test_forward.33} parent=68 // pred_check_branch
          %347 = sbr.rel (%p345) target = $region77
        $region76: #{pcb_test_forward.33} parent=68 // pred_region
          %348 = vst [vmem:[#allocation2] sm:$0xff] 0.0
          %349 = vst [vmem:[#allocation2 + $0x8] sm:$0xff] 0.0
          %350 = vst [vmem:[#allocation2 + $0x10] sm:$0xff] 0.0
          %351 = vst [vmem:[#allocation2 + $0x18] sm:$0xff] 0.0
          %352 = vst [vmem:[#allocation2 + $0x20] sm:$0xff] 0.0
          %353 = vst [vmem:[#allocation2 + $0x28] sm:$0xff] 0.0
          %354 = vst [vmem:[#allocation2 + $0x30] sm:$0xff] 0.0
          %355 = vst [vmem:[#allocation2 + $0x38] sm:$0xff] 0.0
          %356 = vst [vmem:[#allocation2 + $0x40] sm:$0xff] 0.0
          %357 = vst [vmem:[#allocation2 + $0x48] sm:$0xff] 0.0
          %358 = vst [vmem:[#allocation2 + $0x50] sm:$0xff] 0.0
          %359 = vst [vmem:[#allocation2 + $0x58] sm:$0xff] 0.0
          %360 = vst [vmem:[#allocation2 + $0x60] sm:$0xff] 0.0
          %361 = vst [vmem:[#allocation2 + $0x68] sm:$0xff] 0.0
          %362 = vst [vmem:[#allocation2 + $0x70] sm:$0xff] 0.0
          %363 = vst [vmem:[#allocation2 + $0x78] sm:$0xff] 0.0
        $region77: #{pcb_test_forward.33} parent=68 // pred_fallthru
          _
        %v364 = vld [vmem:[#allocation2] sm:$0xff]
        %v365 = vld [vmem:[#allocation2 + $0x8] sm:$0xff]
        %v366 = vld [vmem:[#allocation2 + $0x10] sm:$0xff]
        %v367 = vld [vmem:[#allocation2 + $0x18] sm:$0xff]
        %v368 = vld [vmem:[#allocation2 + $0x20] sm:$0xff]
        %v369 = vld [vmem:[#allocation2 + $0x28] sm:$0xff]
        %v370 = vld [vmem:[#allocation2 + $0x30] sm:$0xff]
        %v371 = vld [vmem:[#allocation2 + $0x38] sm:$0xff]
        %v372 = vld [vmem:[#allocation2 + $0x40] sm:$0xff]
        %v373 = vld [vmem:[#allocation2 + $0x48] sm:$0xff]
        %v374 = vld [vmem:[#allocation2 + $0x50] sm:$0xff]
        %v375 = vld [vmem:[#allocation2 + $0x58] sm:$0xff]
        %v376 = vld [vmem:[#allocation2 + $0x60] sm:$0xff]
        %v377 = vld [vmem:[#allocation2 + $0x68] sm:$0xff]
        %v378 = vld [vmem:[#allocation2 + $0x70] sm:$0xff]
        %v379 = vld [vmem:[#allocation2 + $0x78] sm:$0xff]
        %v380 = vld [vmem:[%s336] sm:$0xf]
        %v381 = vld [vmem:[%s336 + $0x4] sm:$0xf]
        %v382 = vld [vmem:[%s336 + $0x8] sm:$0xf]
        %v383 = vld [vmem:[%s336 + $0xc] sm:$0xf]
        %v384 = vld [vmem:[%s336 + $0x10] sm:$0xf]
        %v385 = vld [vmem:[%s336 + $0x14] sm:$0xf]
        %v386 = vld [vmem:[%s336 + $0x18] sm:$0xf]
        %v387 = vld [vmem:[%s336 + $0x1c] sm:$0xf]
        %v388 = vld [vmem:[%s336 + $0x20] sm:$0xf]
        %v389 = vld [vmem:[%s336 + $0x24] sm:$0xf]
        %v390 = vld [vmem:[%s336 + $0x28] sm:$0xf]
        %v391 = vld [vmem:[%s336 + $0x2c] sm:$0xf]
        %v392 = vld [vmem:[%s336 + $0x30] sm:$0xf]
        %v393 = vld [vmem:[%s336 + $0x34] sm:$0xf]
        %v394 = vld [vmem:[%s336 + $0x38] sm:$0xf]
        %v395 = vld [vmem:[%s336 + $0x3c] sm:$0xf]
        %v396 = vld [vmem:[%s298] sm:$0xf]
        %v397 = vld [vmem:[%s298 + $0x4] sm:$0xf]
        %v398 = vld [vmem:[%s298 + $0x8] sm:$0xf]
        %v399 = vld [vmem:[%s298 + $0xc] sm:$0xf]
        %v400 = vld [vmem:[%s298 + $0x10] sm:$0xf]
        %v401 = vld [vmem:[%s298 + $0x14] sm:$0xf]
        %v402 = vld [vmem:[%s298 + $0x18] sm:$0xf]
        %v403 = vld [vmem:[%s298 + $0x1c] sm:$0xf]
        %v404 = vld [vmem:[%s298 + $0x20] sm:$0xf]
        %v405 = vld [vmem:[%s298 + $0x24] sm:$0xf]
        %v406 = vld [vmem:[%s298 + $0x28] sm:$0xf]
        %v407 = vld [vmem:[%s298 + $0x2c] sm:$0xf]
        %v408 = vld [vmem:[%s298 + $0x30] sm:$0xf]
        %v409 = vld [vmem:[%s298 + $0x34] sm:$0xf]
        %v410 = vld [vmem:[%s298 + $0x38] sm:$0xf]
        %v411 = vld [vmem:[%s298 + $0x3c] sm:$0xf]
        %v428 = vunpack.c.l.b16 %v380
        %v429 = vunpack.c.l.b16 %v381
        %v430 = vunpack.c.l.b16 %v382
        %v431 = vunpack.c.l.b16 %v383
        %v432 = vunpack.c.l.b16 %v384
        %v433 = vunpack.c.l.b16 %v385
        %v434 = vunpack.c.l.b16 %v386
        %v435 = vunpack.c.l.b16 %v387
        %v436 = vunpack.c.l.b16 %v388
        %v437 = vunpack.c.l.b16 %v389
        %v438 = vunpack.c.l.b16 %v390
        %v439 = vunpack.c.l.b16 %v391
        %v440 = vunpack.c.l.b16 %v392
        %v441 = vunpack.c.l.b16 %v393
        %v442 = vunpack.c.l.b16 %v394
        %v443 = vunpack.c.l.b16 %v395
        %v444 = vpack.c.b16 %v429, %v428
        %v445 = vpack.c.b16 %v431, %v430
        %v446 = vpack.c.b16 %v433, %v432
        %v447 = vpack.c.b16 %v435, %v434
        %v448 = vpack.c.b16 %v437, %v436
        %v449 = vpack.c.b16 %v439, %v438
        %v450 = vpack.c.b16 %v441, %v440
        %v451 = vpack.c.b16 %v443, %v442
        %v476 = vunpack.c.l.b16 %v396
        %v477 = vunpack.c.l.b16 %v397
        %v478 = vunpack.c.l.b16 %v398
        %v479 = vunpack.c.l.b16 %v399
        %v480 = vunpack.c.l.b16 %v400
        %v481 = vunpack.c.l.b16 %v401
        %v482 = vunpack.c.l.b16 %v402
        %v483 = vunpack.c.l.b16 %v403
        %v484 = vunpack.c.l.b16 %v404
        %v485 = vunpack.c.l.b16 %v405
        %v486 = vunpack.c.l.b16 %v406
        %v487 = vunpack.c.l.b16 %v407
        %v488 = vunpack.c.l.b16 %v408
        %v489 = vunpack.c.l.b16 %v409
        %v490 = vunpack.c.l.b16 %v410
        %v491 = vunpack.c.l.b16 %v411
        %v492 = vpack.c.b16 %v477, %v476
        %v493 = vpack.c.b16 %v479, %v478
        %v494 = vpack.c.b16 %v481, %v480
        %v495 = vpack.c.b16 %v483, %v482
        %v496 = vpack.c.b16 %v485, %v484
        %v497 = vpack.c.b16 %v487, %v486
        %v498 = vpack.c.b16 %v489, %v488
        %v499 = vpack.c.b16 %v491, %v490
        %508 = vmatprep.subr.bf16.mxu0 0
        %509 = vmatpush1.bf16.msra.mxu0 %v499
        %510 = vmatprep.subr.bf16.mxu0 0
        %511 = vmatpush1.bf16.msra.mxu0 %v498
        %512 = vmatprep.subr.bf16.mxu0 0
        %513 = vmatpush1.bf16.msra.mxu0 %v497
        %514 = vmatprep.subr.bf16.mxu0 0
        %515 = vmatpush1.bf16.msra.mxu0 %v496
        %516 = vmatprep.subr.bf16.mxu0 0
        %517 = vmatpush1.bf16.msra.mxu0 %v495
        %518 = vmatprep.subr.bf16.mxu0 0
        %519 = vmatpush1.bf16.msra.mxu0 %v494
        %520 = vmatprep.subr.bf16.mxu0 0
        %521 = vmatpush1.bf16.msra.mxu0 %v493
        %522 = vmatprep.subr.bf16.mxu0 0
        %523 = vmatpush1.bf16.msra.mxu0 %v492
        %524 = vmatprep.subr.bf16.mxu0 0
        %525 = vmatpush2.bf16.msra.mxu0 0
        %526 = vmatprep.subr.bf16.mxu0 0
        %527 = vmatpush2.bf16.msra.mxu0 0
        %528 = vmatprep.subr.bf16.mxu0 0
        %529 = vmatpush2.bf16.msra.mxu0 0
        %530 = vmatprep.subr.bf16.mxu0 0
        %531 = vmatpush2.bf16.msra.mxu0 0
        %532 = vmatprep.subr.bf16.mxu0 0
        %533 = vmatpush2.bf16.msra.mxu0 0
        %534 = vmatprep.subr.bf16.mxu0 0
        %535 = vmatpush2.bf16.msra.mxu0 0
        %536 = vmatprep.subr.bf16.mxu0 0
        %537 = vmatpush2.bf16.msra.mxu0 0
        %538 = vmatprep.subr.bf16.mxu0 0
        %539 = vmatpush2.bf16.msra.mxu0 0
        %540 = vmatprep.mubr.bf16.mxu0 0
        %541 = vmatmul.mubr.bf16.gmra.mxu0 %v444
        %v542 = vpop.f32.mrf.mxu0
        %v543 = vadd.f32 0.0, %v542
        %v544 = vpop.f32.mrf.mxu0
        %v545 = vpop.f32.mrf.mxu0
        %v546 = vadd.f32 0.0, %v545
        %v547 = vpop.f32.mrf.mxu0
        %548 = vmatprep.mubr.bf16.mxu0 0
        %549 = vmatmul.mubr.bf16.gmra.mxu0 %v445
        %v550 = vpop.f32.mrf.mxu0
        %v551 = vadd.f32 0.0, %v550
        %v552 = vpop.f32.mrf.mxu0
        %v553 = vpop.f32.mrf.mxu0
        %v554 = vadd.f32 0.0, %v553
        %v555 = vpop.f32.mrf.mxu0
        %556 = vmatprep.mubr.bf16.mxu0 0
        %557 = vmatmul.mubr.bf16.gmra.mxu0 %v446
        %v558 = vpop.f32.mrf.mxu0
        %v559 = vadd.f32 0.0, %v558
        %v560 = vpop.f32.mrf.mxu0
        %v561 = vpop.f32.mrf.mxu0
        %v562 = vadd.f32 0.0, %v561
        %v563 = vpop.f32.mrf.mxu0
        %564 = vmatprep.mubr.bf16.mxu0 0
        %565 = vmatmul.mubr.bf16.gmra.mxu0 %v447
        %v566 = vpop.f32.mrf.mxu0
        %v567 = vadd.f32 0.0, %v566
        %v568 = vpop.f32.mrf.mxu0
        %v569 = vpop.f32.mrf.mxu0
        %v570 = vadd.f32 0.0, %v569
        %v571 = vpop.f32.mrf.mxu0
        %572 = vmatprep.mubr.bf16.mxu0 0
        %573 = vmatmul.mubr.bf16.gmra.mxu0 %v448
        %v574 = vpop.f32.mrf.mxu0
        %v575 = vadd.f32 0.0, %v574
        %v576 = vpop.f32.mrf.mxu0
        %v577 = vpop.f32.mrf.mxu0
        %v578 = vadd.f32 0.0, %v577
        %v579 = vpop.f32.mrf.mxu0
        %580 = vmatprep.mubr.bf16.mxu0 0
        %581 = vmatmul.mubr.bf16.gmra.mxu0 %v449
        %v582 = vpop.f32.mrf.mxu0
        %v583 = vadd.f32 0.0, %v582
        %v584 = vpop.f32.mrf.mxu0
        %v585 = vpop.f32.mrf.mxu0
        %v586 = vadd.f32 0.0, %v585
        %v587 = vpop.f32.mrf.mxu0
        %588 = vmatprep.mubr.bf16.mxu0 0
        %589 = vmatmul.mubr.bf16.gmra.mxu0 %v450
        %v590 = vpop.f32.mrf.mxu0
        %v591 = vadd.f32 0.0, %v590
        %v592 = vpop.f32.mrf.mxu0
        %v593 = vpop.f32.mrf.mxu0
        %v594 = vadd.f32 0.0, %v593
        %v595 = vpop.f32.mrf.mxu0
        %596 = vmatprep.mubr.bf16.mxu0 0
        %597 = vmatmul.mubr.bf16.gmra.mxu0 %v451
        %v598 = vpop.f32.mrf.mxu0
        %v599 = vadd.f32 0.0, %v598
        %v600 = vpop.f32.mrf.mxu0
        %v601 = vpop.f32.mrf.mxu0
        %v602 = vadd.f32 0.0, %v601
        %v603 = vpop.f32.mrf.mxu0
        %604 = vdwg.mxu0
        %v605 = vadd.f32 %v364, %v543
        %v606 = vadd.f32 %v365, %v546
        %v607 = vadd.f32 %v366, %v551
        %v608 = vadd.f32 %v367, %v554
        %v609 = vadd.f32 %v368, %v559
        %v610 = vadd.f32 %v369, %v562
        %v611 = vadd.f32 %v370, %v567
        %v612 = vadd.f32 %v371, %v570
        %v613 = vadd.f32 %v372, %v575
        %v614 = vadd.f32 %v373, %v578
        %v615 = vadd.f32 %v374, %v583
        %v616 = vadd.f32 %v375, %v586
        %v617 = vadd.f32 %v376, %v591
        %v618 = vadd.f32 %v377, %v594
        %v619 = vadd.f32 %v378, %v599
        %v620 = vadd.f32 %v379, %v602
        %621 = vst [vmem:[#allocation2] sm:$0xff] %v605
        %622 = vst [vmem:[#allocation2 + $0x8] sm:$0xff] %v606
        %623 = vst [vmem:[#allocation2 + $0x10] sm:$0xff] %v607
        %624 = vst [vmem:[#allocation2 + $0x18] sm:$0xff] %v608
        %625 = vst [vmem:[#allocation2 + $0x20] sm:$0xff] %v609
        %626 = vst [vmem:[#allocation2 + $0x28] sm:$0xff] %v610
        %627 = vst [vmem:[#allocation2 + $0x30] sm:$0xff] %v611
        %628 = vst [vmem:[#allocation2 + $0x38] sm:$0xff] %v612
        %629 = vst [vmem:[#allocation2 + $0x40] sm:$0xff] %v613
        %630 = vst [vmem:[#allocation2 + $0x48] sm:$0xff] %v614
        %631 = vst [vmem:[#allocation2 + $0x50] sm:$0xff] %v615
        %632 = vst [vmem:[#allocation2 + $0x58] sm:$0xff] %v616
        %633 = vst [vmem:[#allocation2 + $0x60] sm:$0xff] %v617
        %634 = vst [vmem:[#allocation2 + $0x68] sm:$0xff] %v618
        %635 = vst [vmem:[#allocation2 + $0x70] sm:$0xff] %v619
        %636 = vst [vmem:[#allocation2 + $0x78] sm:$0xff] %v620
        // Predicated region
        $region78: #{pcb_test_forward.33} parent=68 // pred_check
          %p637 = pneg %p344
        $region79: #{pcb_test_forward.33} parent=68 // pred_check_branch
          %639 = sbr.rel (%p637) target = $region81
        $region80: #{pcb_test_forward.33} parent=68 // pred_region
          %v640 = vld [vmem:[#allocation2] sm:$0xff]
          %v641 = vld [vmem:[#allocation2 + $0x8] sm:$0xff]
          %v642 = vld [vmem:[#allocation2 + $0x10] sm:$0xff]
          %v643 = vld [vmem:[#allocation2 + $0x18] sm:$0xff]
          %v644 = vld [vmem:[#allocation2 + $0x20] sm:$0xff]
          %v645 = vld [vmem:[#allocation2 + $0x28] sm:$0xff]
          %v646 = vld [vmem:[#allocation2 + $0x30] sm:$0xff]
          %v647 = vld [vmem:[#allocation2 + $0x38] sm:$0xff]
          %v648 = vld [vmem:[#allocation2 + $0x40] sm:$0xff]
          %v649 = vld [vmem:[#allocation2 + $0x48] sm:$0xff]
          %v650 = vld [vmem:[#allocation2 + $0x50] sm:$0xff]
          %v651 = vld [vmem:[#allocation2 + $0x58] sm:$0xff]
          %v652 = vld [vmem:[#allocation2 + $0x60] sm:$0xff]
          %v653 = vld [vmem:[#allocation2 + $0x68] sm:$0xff]
          %v654 = vld [vmem:[#allocation2 + $0x70] sm:$0xff]
          %v655 = vld [vmem:[#allocation2 + $0x78] sm:$0xff]
          %v656 = vld [vmem:[%s341] sm:$0x1]
          %v658 = vlaneseq
          %v659 = vshrl.u32 %v658, 7
          %v660 = vsub.s32 0, %v659
          %v661 = vrot.slane %v656, %v660
          %v663 = vadd.f32 %v640, %v661
          %v664 = vadd.f32 %v641, %v661
          %v665 = vadd.f32 %v642, %v661
          %v666 = vadd.f32 %v643, %v661
          %v667 = vadd.f32 %v644, %v661
          %v668 = vadd.f32 %v645, %v661
          %v669 = vadd.f32 %v646, %v661
          %v670 = vadd.f32 %v647, %v661
          %v671 = vadd.f32 %v648, %v661
          %v672 = vadd.f32 %v649, %v661
          %v673 = vadd.f32 %v650, %v661
          %v674 = vadd.f32 %v651, %v661
          %v675 = vadd.f32 %v652, %v661
          %v676 = vadd.f32 %v653, %v661
          %v677 = vadd.f32 %v654, %v661
          %v678 = vadd.f32 %v655, %v661
          %v679 = vpack.c.bf16 %v664, %v663
          %v680 = vpack.c.bf16 %v666, %v665
          %v681 = vpack.c.bf16 %v668, %v667
          %v682 = vpack.c.bf16 %v670, %v669
          %v683 = vpack.c.bf16 %v672, %v671
          %v684 = vpack.c.bf16 %v674, %v673
          %v685 = vpack.c.bf16 %v676, %v675
          %v686 = vpack.c.bf16 %v678, %v677
          %v695 = vunpack.c.l.b16 %v679
          %v696 = vunpack.c.h.b16 %v679
          %v697 = vunpack.c.l.b16 %v680
          %v698 = vunpack.c.h.b16 %v680
          %v699 = vunpack.c.l.b16 %v681
          %v700 = vunpack.c.h.b16 %v681
          %v701 = vunpack.c.l.b16 %v682
          %v702 = vunpack.c.h.b16 %v682
          %v703 = vunpack.c.l.b16 %v683
          %v704 = vunpack.c.h.b16 %v683
          %v705 = vunpack.c.l.b16 %v684
          %v706 = vunpack.c.h.b16 %v684
          %v707 = vunpack.c.l.b16 %v685
          %v708 = vunpack.c.h.b16 %v685
          %v709 = vunpack.c.l.b16 %v686
          %v710 = vunpack.c.h.b16 %v686
          %v711 = vpack.c.b16 %v695, %v695
          %v712 = vpack.c.b16 %v696, %v696
          %v713 = vpack.c.b16 %v697, %v697
          %v714 = vpack.c.b16 %v698, %v698
          %v715 = vpack.c.b16 %v699, %v699
          %v716 = vpack.c.b16 %v700, %v700
          %v717 = vpack.c.b16 %v701, %v701
          %v718 = vpack.c.b16 %v702, %v702
          %v719 = vpack.c.b16 %v703, %v703
          %v720 = vpack.c.b16 %v704, %v704
          %v721 = vpack.c.b16 %v705, %v705
          %v722 = vpack.c.b16 %v706, %v706
          %v723 = vpack.c.b16 %v707, %v707
          %v724 = vpack.c.b16 %v708, %v708
          %v725 = vpack.c.b16 %v709, %v709
          %v726 = vpack.c.b16 %v710, %v710
          %743 = vst [vmem:[%s328] sm:$0xf] %v711
          %744 = vst [vmem:[%s328 + $0x4] sm:$0xf] %v712
          %745 = vst [vmem:[%s328 + $0x8] sm:$0xf] %v713
          %746 = vst [vmem:[%s328 + $0xc] sm:$0xf] %v714
          %747 = vst [vmem:[%s328 + $0x10] sm:$0xf] %v715
          %748 = vst [vmem:[%s328 + $0x14] sm:$0xf] %v716
          %749 = vst [vmem:[%s328 + $0x18] sm:$0xf] %v717
          %750 = vst [vmem:[%s328 + $0x1c] sm:$0xf] %v718
          %751 = vst [vmem:[%s328 + $0x20] sm:$0xf] %v719
          %752 = vst [vmem:[%s328 + $0x24] sm:$0xf] %v720
          %753 = vst [vmem:[%s328 + $0x28] sm:$0xf] %v721
          %754 = vst [vmem:[%s328 + $0x2c] sm:$0xf] %v722
          %755 = vst [vmem:[%s328 + $0x30] sm:$0xf] %v723
          %756 = vst [vmem:[%s328 + $0x34] sm:$0xf] %v724
          %757 = vst [vmem:[%s328 + $0x38] sm:$0xf] %v725
          %758 = vst [vmem:[%s328 + $0x3c] sm:$0xf] %v726
        $region81: #{pcb_test_forward.33} parent=68 // pred_fallthru
          _
        %s759 = sand.u32 %s125, 1
        %s760 = sand.u32 %s125, 1
        %s761 = smul.addr %s760, 64
        %s762 = scalar_lea.vmem [#allocation4], %s761
        // Predicated region
        $region82: #{pcb_test_forward.33} parent=68 // pred_check
          %p763 = pneg %p135
        $region83: #{pcb_test_forward.33} parent=68 // pred_check_branch
          %765 = sbr.rel (%p763) target = $region85
        $region84: #{pcb_test_forward.33} parent=68 // pred_region
          %s766 = smul.u32 16, %s19
          %s767 = smul.addr %s766, 2
          %s768 = sadd.s32 %s20, %s767
          %s769 = smul.addr %s768, 4
          %s770 = scalar_lea.vmem %s3, %s769
          // Predicated region
          $region86: #{pcb_test_forward.33} parent=84 // pred_check
            _
          $region87: #{pcb_test_forward.33} parent=84 // pred_check_branch
            %772 = sbr.rel (0) target = $region89
          $region88: #{pcb_test_forward.33} parent=84 // pred_region
            // Predicated region
            $region90: #{pcb_test_forward.33} parent=88 // pred_check
              _
            $region91: #{pcb_test_forward.33} parent=88 // pred_check_branch
              %774 = sbr.rel target = $region93
            $region92: #{pcb_test_forward.33} parent=88 // pred_region
              // Predicated region
              $region105: #{pcb_test_forward.33} parent=92 // pred_check
                _
              $region106: #{pcb_test_forward.33} parent=92 // pred_check_branch
                %820 = sbr.rel (0) target = $region108
              $region107: #{pcb_test_forward.33} parent=92 // pred_region
                loop: start=0, step=1, limit=1
                $region109: #{pcb_test_forward.33} parent=107 // loop_pre_header
                  _
                $region110: #{pcb_test_forward.33} parent=107 // loop_header
                  %s822 = sphi 0, %s826
                  %p823 = scmp.ge.s32.totalorder %s822, 1
                  %s827 = sphi %s762, %s762
                  %s828 = sphi %s770, %s770
                $region111: #{pcb_test_forward.33} parent=107 // loop_header_branch
                  %825 = sbr.rel (%p823) target = $region115
                $region112: #{pcb_test_forward.33} parent=107 // loop_body
                  _
                $region113: #{pcb_test_forward.33} parent=107 // loop_footer
                  %s826 = sadd.s32 1, %s822
                $region114: #{pcb_test_forward.33} parent=107 // loop_footer_branch
                  %821 = sbr.rel target = $region110
                $region115: #{pcb_test_forward.33} parent=107 // loop_exit
                  _
                %s830 = ssub.s32 16, 1
                loop: start=0, step=1, limit=1
                $region116: #{pcb_test_forward.33} parent=107 // loop_pre_header
                  _
                $region117: #{pcb_test_forward.33} parent=107 // loop_header
                  %s832 = sphi 0, %s836
                  %p833 = scmp.ge.s32.totalorder %s832, 1
                  %s837 = sphi %s762, %s762
                  %s838 = sphi %s770, %s770
                $region118: #{pcb_test_forward.33} parent=107 // loop_header_branch
                  %835 = sbr.rel (%p833) target = $region122
                $region119: #{pcb_test_forward.33} parent=107 // loop_body
                  %v839 = vld [vmem:[%s837] sm:%s830]
                  %840 = vst [vmem:[%s838] sm:%s830] %v839
                  %v841 = vld [vmem:[%s837 + $0x4] sm:%s830]
                  %842 = vst [vmem:[%s838 + $0x8] sm:%s830] %v841
                  %v843 = vld [vmem:[%s837 + $0x8] sm:%s830]
                  %844 = vst [vmem:[%s838 + $0x10] sm:%s830] %v843
                  %v845 = vld [vmem:[%s837 + $0xc] sm:%s830]
                  %846 = vst [vmem:[%s838 + $0x18] sm:%s830] %v845
                  %v847 = vld [vmem:[%s837 + $0x10] sm:%s830]
                  %848 = vst [vmem:[%s838 + $0x20] sm:%s830] %v847
                  %v849 = vld [vmem:[%s837 + $0x14] sm:%s830]
                  %850 = vst [vmem:[%s838 + $0x28] sm:%s830] %v849
                  %v851 = vld [vmem:[%s837 + $0x18] sm:%s830]
                  %852 = vst [vmem:[%s838 + $0x30] sm:%s830] %v851
                  %v853 = vld [vmem:[%s837 + $0x1c] sm:%s830]
                  %854 = vst [vmem:[%s838 + $0x38] sm:%s830] %v853
                  %v855 = vld [vmem:[%s837 + $0x20] sm:%s830]
                  %856 = vst [vmem:[%s838 + $0x40] sm:%s830] %v855
                  %v857 = vld [vmem:[%s837 + $0x24] sm:%s830]
                  %858 = vst [vmem:[%s838 + $0x48] sm:%s830] %v857
                  %v859 = vld [vmem:[%s837 + $0x28] sm:%s830]
                  %860 = vst [vmem:[%s838 + $0x50] sm:%s830] %v859
                  %v861 = vld [vmem:[%s837 + $0x2c] sm:%s830]
                  %862 = vst [vmem:[%s838 + $0x58] sm:%s830] %v861
                  %v863 = vld [vmem:[%s837 + $0x30] sm:%s830]
                  %864 = vst [vmem:[%s838 + $0x60] sm:%s830] %v863
                  %v865 = vld [vmem:[%s837 + $0x34] sm:%s830]
                  %866 = vst [vmem:[%s838 + $0x68] sm:%s830] %v865
                  %v867 = vld [vmem:[%s837 + $0x38] sm:%s830]
                  %868 = vst [vmem:[%s838 + $0x70] sm:%s830] %v867
                  %v869 = vld [vmem:[%s837 + $0x3c] sm:%s830]
                  %870 = vst [vmem:[%s838 + $0x78] sm:%s830] %v869
                $region120: #{pcb_test_forward.33} parent=107 // loop_footer
                  %s836 = sadd.s32 1, %s832
                $region121: #{pcb_test_forward.33} parent=107 // loop_footer_branch
                  %831 = sbr.rel target = $region117
                $region122: #{pcb_test_forward.33} parent=107 // loop_exit
                  _
              $region108: #{pcb_test_forward.33} parent=92 // pred_fallthru
                _
            $region93: #{pcb_test_forward.33} parent=88 // pred_fallthru
              _
            // Predicated region
            $region94: #{pcb_test_forward.33} parent=88 // pred_check
              _
            $region95: #{pcb_test_forward.33} parent=88 // pred_check_branch
              %776 = sbr.rel (0) target = $region97
            $region96: #{pcb_test_forward.33} parent=88 // pred_region
              %s778 = ssub.s32 16, 1
              loop: start=0, step=1, limit=1
              $region98: #{pcb_test_forward.33} parent=96 // loop_pre_header
                _
              $region99: #{pcb_test_forward.33} parent=96 // loop_header
                %s780 = sphi 0, %s784
                %p781 = scmp.ge.s32.totalorder %s780, 1
                %s785 = sphi %s762, %s762
                %s786 = sphi %s770, %s770
              $region100: #{pcb_test_forward.33} parent=96 // loop_header_branch
                %783 = sbr.rel (%p781) target = $region104
              $region101: #{pcb_test_forward.33} parent=96 // loop_body
                %v787 = vld [vmem:[%s785] sm:%s778]
                %788 = vst [vmem:[%s786] sm:%s778] %v787
                %v789 = vld [vmem:[%s785 + $0x4] sm:%s778]
                %790 = vst [vmem:[%s786 + $0x8] sm:%s778] %v789
                %v791 = vld [vmem:[%s785 + $0x8] sm:%s778]
                %792 = vst [vmem:[%s786 + $0x10] sm:%s778] %v791
                %v793 = vld [vmem:[%s785 + $0xc] sm:%s778]
                %794 = vst [vmem:[%s786 + $0x18] sm:%s778] %v793
                %v795 = vld [vmem:[%s785 + $0x10] sm:%s778]
                %796 = vst [vmem:[%s786 + $0x20] sm:%s778] %v795
                %v797 = vld [vmem:[%s785 + $0x14] sm:%s778]
                %798 = vst [vmem:[%s786 + $0x28] sm:%s778] %v797
                %v799 = vld [vmem:[%s785 + $0x18] sm:%s778]
                %800 = vst [vmem:[%s786 + $0x30] sm:%s778] %v799
                %v801 = vld [vmem:[%s785 + $0x1c] sm:%s778]
                %802 = vst [vmem:[%s786 + $0x38] sm:%s778] %v801
                %v803 = vld [vmem:[%s785 + $0x20] sm:%s778]
                %804 = vst [vmem:[%s786 + $0x40] sm:%s778] %v803
                %v805 = vld [vmem:[%s785 + $0x24] sm:%s778]
                %806 = vst [vmem:[%s786 + $0x48] sm:%s778] %v805
                %v807 = vld [vmem:[%s785 + $0x28] sm:%s778]
                %808 = vst [vmem:[%s786 + $0x50] sm:%s778] %v807
                %v809 = vld [vmem:[%s785 + $0x2c] sm:%s778]
                %810 = vst [vmem:[%s786 + $0x58] sm:%s778] %v809
                %v811 = vld [vmem:[%s785 + $0x30] sm:%s778]
                %812 = vst [vmem:[%s786 + $0x60] sm:%s778] %v811
                %v813 = vld [vmem:[%s785 + $0x34] sm:%s778]
                %814 = vst [vmem:[%s786 + $0x68] sm:%s778] %v813
                %v815 = vld [vmem:[%s785 + $0x38] sm:%s778]
                %816 = vst [vmem:[%s786 + $0x70] sm:%s778] %v815
                %v817 = vld [vmem:[%s785 + $0x3c] sm:%s778]
                %818 = vst [vmem:[%s786 + $0x78] sm:%s778] %v817
              $region102: #{pcb_test_forward.33} parent=96 // loop_footer
                %s784 = sadd.s32 1, %s780
              $region103: #{pcb_test_forward.33} parent=96 // loop_footer_branch
                %779 = sbr.rel target = $region99
              $region104: #{pcb_test_forward.33} parent=96 // loop_exit
                _
            $region97: #{pcb_test_forward.33} parent=88 // pred_fallthru
              _
          $region89: #{pcb_test_forward.33} parent=84 // pred_fallthru
            _
          %871 = vnop
        $region85: #{pcb_test_forward.33} parent=68 // pred_fallthru
          _
      $region69: #{pcb_test_forward.33} parent=5 // pred_fallthru
        _
      %p872 = scmp.le.s32.totalorder 2, %s9
      // Predicated region
      $region123: #{pcb_test_forward.33} parent=5 // pred_check
        %p873 = pneg %p872
      $region124: #{pcb_test_forward.33} parent=5 // pred_check_branch
        %875 = sbr.rel (%p873) target = $region126
      $region125: #{pcb_test_forward.33} parent=5 // pred_region
        %s876 = ssub.s32 %s9, 2
        // Predicated region
        $region127: #{pcb_test_forward.33} parent=125 // pred_check
          %p877 = pneg %p141
        $region128: #{pcb_test_forward.33} parent=125 // pred_check_branch
          %879 = sbr.rel (%p877) target = $region130
        $region129: #{pcb_test_forward.33} parent=125 // pred_region
          %s880 = sand.u32 %s126, 1
          %s881 = sand.u32 %s126, 1
          %s882 = smul.addr %s881, 64
          %s883 = scalar_lea.vmem [#allocation4], %s882
        $region130: #{pcb_test_forward.33} parent=125 // pred_fallthru
          _
      $region126: #{pcb_test_forward.33} parent=5 // pred_fallthru
        _
    $region6: #{pcb_test_forward.33} parent=1 // loop_footer
      %s13 = sadd.s32 1, %s9
    $region7: #{pcb_test_forward.33} parent=1 // loop_footer_branch
      %8 = sbr.rel target = $region3
    $region8: #{pcb_test_forward.33} parent=1 // loop_exit
      _

// kernel: pcb_test_forward.36
$region0: #{pcb_test_forward.36}
  #allocation0 [shape = 'u32[]', space=smem, size = 0x4, offset = 0x4, fixed_abs, tag = 'smem constant byte address 0x4 - core index']
  #allocation1 [shape = 'u32[144,128]{1,0:T(1,128)}', space=vmem, size = 0x12000, scoped, tag = 'internal scratch']
  #allocation2 [shape = 'f32[128,128]{1,0:T(8,128)}', space=vmem, size = 0x10000, scoped, tag = 'scratch operand']
  %s0 = inlined_call_operand.vmem [shape: bf16[128,128], index: 0, kind: input, shape index: {}]
  %s1 = inlined_call_operand.vmem [shape: bf16[128,256], index: 1, kind: input, shape index: {}]
  %s2 = inlined_call_operand.vmem [shape: f32[1,256], index: 2, kind: input, shape index: {}]
  %s3 = inlined_call_operand.vmem [shape: bf16[128,256], index: 3, kind: input, shape index: {}]
  %s4 = inlined_call_operand.vmem [shape: bf16[128,256], index: 4, kind: output, shape index: {}]
  %s5 = sld [smem:[#allocation0]]
  $region176: #{pcb_test_forward.36} parent=0
    _
  %s7 = ssub.s32 1, %s5
  %s8 = scalar_select 0, %s7, %s5
  $region1: #{pcb_test_forward.36} parent=0
    #allocation3 [shape = 'u8[65536]{0}', space=vmem, size = 0x10000, scoped, tag = 'input window, operand 1']
    #allocation4 [shape = 'u8[65536]{0}', space=vmem, size = 0x10000, scoped, tag = 'input window, operand 3']
    #allocation5 [shape = 'u8[65536]{0}', space=vmem, size = 0x10000, scoped, tag = 'output window, operand 0']
    loop: start=0, step=1, limit=4
    $region2: #{pcb_test_forward.36} parent=1 // loop_pre_header
      _
    $region3: #{pcb_test_forward.36} parent=1 // loop_header
      %s10 = sphi 0, %s14
      %p11 = scmp.ge.s32.totalorder %s10, 4
      %s17 = sphi 0, %s36
      %s18 = sphi 0, %s32
      %s19 = sphi 0, %s28
      %s20 = sphi 0, %s17
      %s21 = sphi 0, %s18
      %s22 = sphi 0, %s19
      %s23 = sphi 0, %s20
      %s24 = sphi 0, %s21
      %s25 = sphi 0, %s22
      %s41 = sphi 0, %s43
      %s44 = sphi 0, %s41
      %s45 = sphi 0, %s44
      %s61 = sphi 0, %s45
      %s69 = sphi 0, %s71
      %s72 = sphi 0, %s69
      %s73 = sphi 0, %s72
      %s89 = sphi 0, %s73
      %s95 = sphi 0, %s97
      %s98 = sphi 0, %s95
      %s99 = sphi 0, %s98
      %s115 = sphi 0, %s99
      %s123 = sphi 0, %s125
      %s126 = sphi 0, %s123
      %s127 = sphi 0, %s126
      %s143 = sphi 0, %s127
      %s151 = sphi 0, %s153
      %s154 = sphi 0, %s151
      %s155 = sphi 0, %s154
      %s171 = sphi 0, %s155
    $region4: #{pcb_test_forward.36} parent=1 // loop_header_branch
      %13 = sbr.rel (%p11) target = $region8
    $region5: #{pcb_test_forward.36} parent=1 // loop_body
      %s15 = ssub.s32 %s10, 1
      %s16 = ssub.s32 %s10, 2
      %s26 = sadd.s32 1, %s19
      %p27 = scmp.ge.s32.totalorder %s26, 1
      %s28 = scalar_select %p27, 0, %s26
      %s29 = sadd.s32 1, %s18
      %s30 = scalar_select %p27, %s29, %s18
      %p31 = scmp.ge.s32.totalorder %s30, 2
      %s32 = scalar_select %p31, 0, %s30
      %s33 = sadd.s32 1, %s17
      %s34 = scalar_select %p31, %s33, %s17
      %p35 = scmp.ge.s32.totalorder %s34, 1
      %s36 = scalar_select %p35, 0, %s34
      %s37 = ssub.s32 %s17, %s36
      %s38 = ssub.s32 %s19, %s28
      %s39 = sor.u32 %s37, %s38
      %p40 = scmp.eq.s32.totalorder %s39, 0
      %s42 = sadd.s32 %s41, 1
      %s43 = scalar_select %p40, %s41, %s42
      %p46 = pneg %p40
      %p47 = scmp.eq.s32.totalorder %s10, 1
      %p48 = por %p46, %p47
      %p49 = scmp.ne.s32.totalorder %s41, %s44
      %p50 = scmp.eq.s32.totalorder %s10, 0
      %p51 = por %p49, %p50
      %p52 = scmp.ne.s32.totalorder %s41, %s44
      %p53 = scmp.eq.s32.totalorder %s15, 1
      %p54 = por %p52, %p53
      %p55 = scmp.ne.s32.totalorder %s44, %s45
      %p56 = scmp.eq.s32.totalorder %s15, 0
      %p57 = por %p55, %p56
      %p58 = scmp.ne.s32.totalorder %s44, %s45
      %p59 = scmp.eq.s32.totalorder %s16, 1
      %p60 = por %p58, %p59
      %p62 = scmp.ne.s32.totalorder %s45, %s61
      %p63 = scmp.eq.s32.totalorder %s16, 0
      %p64 = por %p62, %p63
      %s65 = ssub.s32 %s19, %s28
      %s66 = ssub.s32 %s18, %s32
      %s67 = sor.u32 %s65, %s66
      %p68 = scmp.eq.s32.totalorder %s67, 0
      %s70 = sadd.s32 %s69, 1
      %s71 = scalar_select %p68, %s69, %s70
      %p74 = pneg %p68
      %p75 = scmp.eq.s32.totalorder %s10, 1
      %p76 = por %p74, %p75
      %p77 = scmp.ne.s32.totalorder %s69, %s72
      %p78 = scmp.eq.s32.totalorder %s10, 0
      %p79 = por %p77, %p78
      %p80 = scmp.ne.s32.totalorder %s69, %s72
      %p81 = scmp.eq.s32.totalorder %s15, 1
      %p82 = por %p80, %p81
      %p83 = scmp.ne.s32.totalorder %s72, %s73
      %p84 = scmp.eq.s32.totalorder %s15, 0
      %p85 = por %p83, %p84
      %p86 = scmp.ne.s32.totalorder %s72, %s73
      %p87 = scmp.eq.s32.totalorder %s16, 1
      %p88 = por %p86, %p87
      %p90 = scmp.ne.s32.totalorder %s73, %s89
      %p91 = scmp.eq.s32.totalorder %s16, 0
      %p92 = por %p90, %p91
      %s93 = ssub.s32 %s18, %s32
      %p94 = scmp.eq.s32.totalorder %s93, 0
      %s96 = sadd.s32 %s95, 1
      %s97 = scalar_select %p94, %s95, %s96
      %p100 = pneg %p94
      %p101 = scmp.eq.s32.totalorder %s10, 1
      %p102 = por %p100, %p101
      %p103 = scmp.ne.s32.totalorder %s95, %s98
      %p104 = scmp.eq.s32.totalorder %s10, 0
      %p105 = por %p103, %p104
      %p106 = scmp.ne.s32.totalorder %s95, %s98
      %p107 = scmp.eq.s32.totalorder %s15, 1
      %p108 = por %p106, %p107
      %p109 = scmp.ne.s32.totalorder %s98, %s99
      %p110 = scmp.eq.s32.totalorder %s15, 0
      %p111 = por %p109, %p110
      %p112 = scmp.ne.s32.totalorder %s98, %s99
      %p113 = scmp.eq.s32.totalorder %s16, 1
      %p114 = por %p112, %p113
      %p116 = scmp.ne.s32.totalorder %s99, %s115
      %p117 = scmp.eq.s32.totalorder %s16, 0
      %p118 = por %p116, %p117
      %s119 = ssub.s32 %s17, %s36
      %s120 = ssub.s32 %s18, %s32
      %s121 = sor.u32 %s119, %s120
      %p122 = scmp.eq.s32.totalorder %s121, 0
      %s124 = sadd.s32 %s123, 1
      %s125 = scalar_select %p122, %s123, %s124
      %p128 = pneg %p122
      %p129 = scmp.eq.s32.totalorder %s10, 1
      %p130 = por %p128, %p129
      %p131 = scmp.ne.s32.totalorder %s123, %s126
      %p132 = scmp.eq.s32.totalorder %s10, 0
      %p133 = por %p131, %p132
      %p134 = scmp.ne.s32.totalorder %s123, %s126
      %p135 = scmp.eq.s32.totalorder %s15, 1
      %p136 = por %p134, %p135
      %p137 = scmp.ne.s32.totalorder %s126, %s127
      %p138 = scmp.eq.s32.totalorder %s15, 0
      %p139 = por %p137, %p138
      %p140 = scmp.ne.s32.totalorder %s126, %s127
      %p141 = scmp.eq.s32.totalorder %s16, 1
      %p142 = por %p140, %p141
      %p144 = scmp.ne.s32.totalorder %s127, %s143
      %p145 = scmp.eq.s32.totalorder %s16, 0
      %p146 = por %p144, %p145
      %s147 = ssub.s32 %s17, %s36
      %s148 = ssub.s32 %s18, %s32
      %s149 = sor.u32 %s147, %s148
      %p150 = scmp.eq.s32.totalorder %s149, 0
      %s152 = sadd.s32 %s151, 1
      %s153 = scalar_select %p150, %s151, %s152
      %p156 = pneg %p150
      %p157 = scmp.eq.s32.totalorder %s10, 1
      %p158 = por %p156, %p157
      %p159 = scmp.ne.s32.totalorder %s151, %s154
      %p160 = scmp.eq.s32.totalorder %s10, 0
      %p161 = por %p159, %p160
      %p162 = scmp.ne.s32.totalorder %s151, %s154
      %p163 = scmp.eq.s32.totalorder %s15, 1
      %p164 = por %p162, %p163
      %p165 = scmp.ne.s32.totalorder %s154, %s155
      %p166 = scmp.eq.s32.totalorder %s15, 0
      %p167 = por %p165, %p166
      %p168 = scmp.ne.s32.totalorder %s154, %s155
      %p169 = scmp.eq.s32.totalorder %s16, 1
      %p170 = por %p168, %p169
      %p172 = scmp.ne.s32.totalorder %s155, %s171
      %p173 = scmp.eq.s32.totalorder %s16, 0
      %p174 = por %p172, %p173
      %p175 = scmp.le.s32.totalorder 1, %s10
      %p176 = scmp.lt.s32.totalorder %s10, 3
      %p177 = pnand %p175, %p176
      %p178 = pneg %p177
      // Predicated region
      $region9: #{pcb_test_forward.36} parent=5 // pred_check
        _
      $region10: #{pcb_test_forward.36} parent=5 // pred_check_branch
        %180 = sbr.rel (%p177) target = $region12
      $region11: #{pcb_test_forward.36} parent=5 // pred_region
        %s181 = ssub.s32 %s10, 1
        // Predicated region
        $region13: #{pcb_test_forward.36} parent=11 // pred_check
          %p182 = pneg %p57
        $region14: #{pcb_test_forward.36} parent=11 // pred_check_branch
          %184 = sbr.rel (%p182) target = $region16
        $region15: #{pcb_test_forward.36} parent=11 // pred_region
          %s185 = smul.u32 16, %s20
          %p186 = scmp.lt.s32.totalorder %s185, 15
          %s187 = scalar_select %p186, %s185, 15
          %p188 = scmp.lt.s32.totalorder %s22, 0
          %s189 = scalar_select %p188, %s22, 0
          %s190 = sadd.s32 %s189, %s187
          %s191 = smul.addr %s190, 4
          %s192 = scalar_lea.vmem %s0, %s191
          %s193 = smul.u32 16, %s20
        $region16: #{pcb_test_forward.36} parent=11 // pred_fallthru
          _
      $region12: #{pcb_test_forward.36} parent=5 // pred_fallthru
        _
      %p194 = scmp.lt.s32.totalorder %s10, 2
      // Predicated region
      $region17: #{pcb_test_forward.36} parent=5 // pred_check
        %p195 = pneg %p194
      $region18: #{pcb_test_forward.36} parent=5 // pred_check_branch
        %197 = sbr.rel (%p195) target = $region20
      $region19: #{pcb_test_forward.36} parent=5 // pred_region
        // Predicated region
        $region21: #{pcb_test_forward.36} parent=19 // pred_check
          %p198 = pneg %p79
        $region22: #{pcb_test_forward.36} parent=19 // pred_check_branch
          %200 = sbr.rel (%p198) target = $region24
        $region23: #{pcb_test_forward.36} parent=19 // pred_region
          %s201 = sand.u32 %s69, 1
          %s202 = sand.u32 %s69, 1
          %s203 = smul.addr %s202, 64
          %s204 = scalar_lea.vmem [#allocation3], %s203
          %s205 = smul.u32 16, %s19
          %s206 = smul.addr %s205, 2
          %s207 = sadd.s32 %s18, %s206
          %s208 = smul.addr %s207, 4
          %s209 = scalar_lea.vmem %s1, %s208
          // Predicated region
          $region25: #{pcb_test_forward.36} parent=23 // pred_check
            _
          $region26: #{pcb_test_forward.36} parent=23 // pred_check_branch
            %211 = sbr.rel (0) target = $region28
          $region27: #{pcb_test_forward.36} parent=23 // pred_region
            // Predicated region
            $region29: #{pcb_test_forward.36} parent=27 // pred_check
              _
            $region30: #{pcb_test_forward.36} parent=27 // pred_check_branch
              %213 = sbr.rel target = $region32
            $region31: #{pcb_test_forward.36} parent=27 // pred_region
              // Predicated region
              $region44: #{pcb_test_forward.36} parent=31 // pred_check
                _
              $region45: #{pcb_test_forward.36} parent=31 // pred_check_branch
                %259 = sbr.rel (0) target = $region47
              $region46: #{pcb_test_forward.36} parent=31 // pred_region
                loop: start=0, step=1, limit=1
                $region48: #{pcb_test_forward.36} parent=46 // loop_pre_header
                  _
                $region49: #{pcb_test_forward.36} parent=46 // loop_header
                  %s261 = sphi 0, %s265
                  %p262 = scmp.ge.s32.totalorder %s261, 1
                  %s266 = sphi %s209, %s209
                  %s267 = sphi %s204, %s204
                $region50: #{pcb_test_forward.36} parent=46 // loop_header_branch
                  %264 = sbr.rel (%p262) target = $region54
                $region51: #{pcb_test_forward.36} parent=46 // loop_body
                  _
                $region52: #{pcb_test_forward.36} parent=46 // loop_footer
                  %s265 = sadd.s32 1, %s261
                $region53: #{pcb_test_forward.36} parent=46 // loop_footer_branch
                  %260 = sbr.rel target = $region49
                $region54: #{pcb_test_forward.36} parent=46 // loop_exit
                  _
                %s269 = ssub.s32 16, 1
                loop: start=0, step=1, limit=1
                $region55: #{pcb_test_forward.36} parent=46 // loop_pre_header
                  _
                $region56: #{pcb_test_forward.36} parent=46 // loop_header
                  %s271 = sphi 0, %s275
                  %p272 = scmp.ge.s32.totalorder %s271, 1
                  %s276 = sphi %s209, %s209
                  %s277 = sphi %s204, %s204
                $region57: #{pcb_test_forward.36} parent=46 // loop_header_branch
                  %274 = sbr.rel (%p272) target = $region61
                $region58: #{pcb_test_forward.36} parent=46 // loop_body
                  %v278 = vld [vmem:[%s276] sm:%s269]
                  %279 = vst [vmem:[%s277] sm:%s269] %v278
                  %v280 = vld [vmem:[%s276 + $0x8] sm:%s269]
                  %281 = vst [vmem:[%s277 + $0x4] sm:%s269] %v280
                  %v282 = vld [vmem:[%s276 + $0x10] sm:%s269]
                  %283 = vst [vmem:[%s277 + $0x8] sm:%s269] %v282
                  %v284 = vld [vmem:[%s276 + $0x18] sm:%s269]
                  %285 = vst [vmem:[%s277 + $0xc] sm:%s269] %v284
                  %v286 = vld [vmem:[%s276 + $0x20] sm:%s269]
                  %287 = vst [vmem:[%s277 + $0x10] sm:%s269] %v286
                  %v288 = vld [vmem:[%s276 + $0x28] sm:%s269]
                  %289 = vst [vmem:[%s277 + $0x14] sm:%s269] %v288
                  %v290 = vld [vmem:[%s276 + $0x30] sm:%s269]
                  %291 = vst [vmem:[%s277 + $0x18] sm:%s269] %v290
                  %v292 = vld [vmem:[%s276 + $0x38] sm:%s269]
                  %293 = vst [vmem:[%s277 + $0x1c] sm:%s269] %v292
                  %v294 = vld [vmem:[%s276 + $0x40] sm:%s269]
                  %295 = vst [vmem:[%s277 + $0x20] sm:%s269] %v294
                  %v296 = vld [vmem:[%s276 + $0x48] sm:%s269]
                  %297 = vst [vmem:[%s277 + $0x24] sm:%s269] %v296
                  %v298 = vld [vmem:[%s276 + $0x50] sm:%s269]
                  %299 = vst [vmem:[%s277 + $0x28] sm:%s269] %v298
                  %v300 = vld [vmem:[%s276 + $0x58] sm:%s269]
                  %301 = vst [vmem:[%s277 + $0x2c] sm:%s269] %v300
                  %v302 = vld [vmem:[%s276 + $0x60] sm:%s269]
                  %303 = vst [vmem:[%s277 + $0x30] sm:%s269] %v302
                  %v304 = vld [vmem:[%s276 + $0x68] sm:%s269]
                  %305 = vst [vmem:[%s277 + $0x34] sm:%s269] %v304
                  %v306 = vld [vmem:[%s276 + $0x70] sm:%s269]
                  %307 = vst [vmem:[%s277 + $0x38] sm:%s269] %v306
                  %v308 = vld [vmem:[%s276 + $0x78] sm:%s269]
                  %309 = vst [vmem:[%s277 + $0x3c] sm:%s269] %v308
                $region59: #{pcb_test_forward.36} parent=46 // loop_footer
                  %s275 = sadd.s32 1, %s271
                $region60: #{pcb_test_forward.36} parent=46 // loop_footer_branch
                  %270 = sbr.rel target = $region56
                $region61: #{pcb_test_forward.36} parent=46 // loop_exit
                  _
              $region47: #{pcb_test_forward.36} parent=31 // pred_fallthru
                _
            $region32: #{pcb_test_forward.36} parent=27 // pred_fallthru
              _
            // Predicated region
            $region33: #{pcb_test_forward.36} parent=27 // pred_check
              _
            $region34: #{pcb_test_forward.36} parent=27 // pred_check_branch
              %215 = sbr.rel (0) target = $region36
            $region35: #{pcb_test_forward.36} parent=27 // pred_region
              %s217 = ssub.s32 16, 1
              loop: start=0, step=1, limit=1
              $region37: #{pcb_test_forward.36} parent=35 // loop_pre_header
                _
              $region38: #{pcb_test_forward.36} parent=35 // loop_header
                %s219 = sphi 0, %s223
                %p220 = scmp.ge.s32.totalorder %s219, 1
                %s224 = sphi %s209, %s209
                %s225 = sphi %s204, %s204
              $region39: #{pcb_test_forward.36} parent=35 // loop_header_branch
                %222 = sbr.rel (%p220) target = $region43
              $region40: #{pcb_test_forward.36} parent=35 // loop_body
                %v226 = vld [vmem:[%s224] sm:%s217]
                %227 = vst [vmem:[%s225] sm:%s217] %v226
                %v228 = vld [vmem:[%s224 + $0x8] sm:%s217]
                %229 = vst [vmem:[%s225 + $0x4] sm:%s217] %v228
                %v230 = vld [vmem:[%s224 + $0x10] sm:%s217]
                %231 = vst [vmem:[%s225 + $0x8] sm:%s217] %v230
                %v232 = vld [vmem:[%s224 + $0x18] sm:%s217]
                %233 = vst [vmem:[%s225 + $0xc] sm:%s217] %v232
                %v234 = vld [vmem:[%s224 + $0x20] sm:%s217]
                %235 = vst [vmem:[%s225 + $0x10] sm:%s217] %v234
                %v236 = vld [vmem:[%s224 + $0x28] sm:%s217]
                %237 = vst [vmem:[%s225 + $0x14] sm:%s217] %v236
                %v238 = vld [vmem:[%s224 + $0x30] sm:%s217]
                %239 = vst [vmem:[%s225 + $0x18] sm:%s217] %v238
                %v240 = vld [vmem:[%s224 + $0x38] sm:%s217]
                %241 = vst [vmem:[%s225 + $0x1c] sm:%s217] %v240
                %v242 = vld [vmem:[%s224 + $0x40] sm:%s217]
                %243 = vst [vmem:[%s225 + $0x20] sm:%s217] %v242
                %v244 = vld [vmem:[%s224 + $0x48] sm:%s217]
                %245 = vst [vmem:[%s225 + $0x24] sm:%s217] %v244
                %v246 = vld [vmem:[%s224 + $0x50] sm:%s217]
                %247 = vst [vmem:[%s225 + $0x28] sm:%s217] %v246
                %v248 = vld [vmem:[%s224 + $0x58] sm:%s217]
                %249 = vst [vmem:[%s225 + $0x2c] sm:%s217] %v248
                %v250 = vld [vmem:[%s224 + $0x60] sm:%s217]
                %251 = vst [vmem:[%s225 + $0x30] sm:%s217] %v250
                %v252 = vld [vmem:[%s224 + $0x68] sm:%s217]
                %253 = vst [vmem:[%s225 + $0x34] sm:%s217] %v252
                %v254 = vld [vmem:[%s224 + $0x70] sm:%s217]
                %255 = vst [vmem:[%s225 + $0x38] sm:%s217] %v254
                %v256 = vld [vmem:[%s224 + $0x78] sm:%s217]
                %257 = vst [vmem:[%s225 + $0x3c] sm:%s217] %v256
              $region41: #{pcb_test_forward.36} parent=35 // loop_footer
                %s223 = sadd.s32 1, %s219
              $region42: #{pcb_test_forward.36} parent=35 // loop_footer_branch
                %218 = sbr.rel target = $region38
              $region43: #{pcb_test_forward.36} parent=35 // loop_exit
                _
            $region36: #{pcb_test_forward.36} parent=27 // pred_fallthru
              _
          $region28: #{pcb_test_forward.36} parent=23 // pred_fallthru
            _
          %310 = vnop
        $region24: #{pcb_test_forward.36} parent=19 // pred_fallthru
          _
        // Predicated region
        $region62: #{pcb_test_forward.36} parent=19 // pred_check
          %p311 = pneg %p105
        $region63: #{pcb_test_forward.36} parent=19 // pred_check_branch
          %313 = sbr.rel (%p311) target = $region65
        $region64: #{pcb_test_forward.36} parent=19 // pred_region
          %p314 = scmp.lt.s32.totalorder %s18, 1
          %s315 = scalar_select %p314, %s18, 1
          %s316 = scalar_lea.vmem %s2, %s315
        $region65: #{pcb_test_forward.36} parent=19 // pred_fallthru
          _
        // Predicated region
        $region66: #{pcb_test_forward.36} parent=19 // pred_check
          %p317 = pneg %p133
        $region67: #{pcb_test_forward.36} parent=19 // pred_check_branch
          %319 = sbr.rel (%p317) target = $region69
        $region68: #{pcb_test_forward.36} parent=19 // pred_region
          %s320 = sand.u32 %s123, 1
          %s321 = sand.u32 %s123, 1
          %s322 = smul.addr %s321, 64
          %s323 = scalar_lea.vmem [#allocation4], %s322
          %s324 = smul.u32 16, %s17
          %s325 = smul.addr %s324, 2
          %s326 = sadd.s32 %s18, %s325
          %s327 = smul.addr %s326, 4
          %s328 = scalar_lea.vmem %s3, %s327
          // Predicated region
          $region70: #{pcb_test_forward.36} parent=68 // pred_check
            _
          $region71: #{pcb_test_forward.36} parent=68 // pred_check_branch
            %330 = sbr.rel (0) target = $region73
          $region72: #{pcb_test_forward.36} parent=68 // pred_region
            // Predicated region
            $region74: #{pcb_test_forward.36} parent=72 // pred_check
              _
            $region75: #{pcb_test_forward.36} parent=72 // pred_check_branch
              %332 = sbr.rel target = $region77
            $region76: #{pcb_test_forward.36} parent=72 // pred_region
              // Predicated region
              $region89: #{pcb_test_forward.36} parent=76 // pred_check
                _
              $region90: #{pcb_test_forward.36} parent=76 // pred_check_branch
                %378 = sbr.rel (0) target = $region92
              $region91: #{pcb_test_forward.36} parent=76 // pred_region
                loop: start=0, step=1, limit=1
                $region93: #{pcb_test_forward.36} parent=91 // loop_pre_header
                  _
                $region94: #{pcb_test_forward.36} parent=91 // loop_header
                  %s380 = sphi 0, %s384
                  %p381 = scmp.ge.s32.totalorder %s380, 1
                  %s385 = sphi %s328, %s328
                  %s386 = sphi %s323, %s323
                $region95: #{pcb_test_forward.36} parent=91 // loop_header_branch
                  %383 = sbr.rel (%p381) target = $region99
                $region96: #{pcb_test_forward.36} parent=91 // loop_body
                  _
                $region97: #{pcb_test_forward.36} parent=91 // loop_footer
                  %s384 = sadd.s32 1, %s380
                $region98: #{pcb_test_forward.36} parent=91 // loop_footer_branch
                  %379 = sbr.rel target = $region94
                $region99: #{pcb_test_forward.36} parent=91 // loop_exit
                  _
                %s388 = ssub.s32 16, 1
                loop: start=0, step=1, limit=1
                $region100: #{pcb_test_forward.36} parent=91 // loop_pre_header
                  _
                $region101: #{pcb_test_forward.36} parent=91 // loop_header
                  %s390 = sphi 0, %s394
                  %p391 = scmp.ge.s32.totalorder %s390, 1
                  %s395 = sphi %s328, %s328
                  %s396 = sphi %s323, %s323
                $region102: #{pcb_test_forward.36} parent=91 // loop_header_branch
                  %393 = sbr.rel (%p391) target = $region106
                $region103: #{pcb_test_forward.36} parent=91 // loop_body
                  %v397 = vld [vmem:[%s395] sm:%s388]
                  %398 = vst [vmem:[%s396] sm:%s388] %v397
                  %v399 = vld [vmem:[%s395 + $0x8] sm:%s388]
                  %400 = vst [vmem:[%s396 + $0x4] sm:%s388] %v399
                  %v401 = vld [vmem:[%s395 + $0x10] sm:%s388]
                  %402 = vst [vmem:[%s396 + $0x8] sm:%s388] %v401
                  %v403 = vld [vmem:[%s395 + $0x18] sm:%s388]
                  %404 = vst [vmem:[%s396 + $0xc] sm:%s388] %v403
                  %v405 = vld [vmem:[%s395 + $0x20] sm:%s388]
                  %406 = vst [vmem:[%s396 + $0x10] sm:%s388] %v405
                  %v407 = vld [vmem:[%s395 + $0x28] sm:%s388]
                  %408 = vst [vmem:[%s396 + $0x14] sm:%s388] %v407
                  %v409 = vld [vmem:[%s395 + $0x30] sm:%s388]
                  %410 = vst [vmem:[%s396 + $0x18] sm:%s388] %v409
                  %v411 = vld [vmem:[%s395 + $0x38] sm:%s388]
                  %412 = vst [vmem:[%s396 + $0x1c] sm:%s388] %v411
                  %v413 = vld [vmem:[%s395 + $0x40] sm:%s388]
                  %414 = vst [vmem:[%s396 + $0x20] sm:%s388] %v413
                  %v415 = vld [vmem:[%s395 + $0x48] sm:%s388]
                  %416 = vst [vmem:[%s396 + $0x24] sm:%s388] %v415
                  %v417 = vld [vmem:[%s395 + $0x50] sm:%s388]
                  %418 = vst [vmem:[%s396 + $0x28] sm:%s388] %v417
                  %v419 = vld [vmem:[%s395 + $0x58] sm:%s388]
                  %420 = vst [vmem:[%s396 + $0x2c] sm:%s388] %v419
                  %v421 = vld [vmem:[%s395 + $0x60] sm:%s388]
                  %422 = vst [vmem:[%s396 + $0x30] sm:%s388] %v421
                  %v423 = vld [vmem:[%s395 + $0x68] sm:%s388]
                  %424 = vst [vmem:[%s396 + $0x34] sm:%s388] %v423
                  %v425 = vld [vmem:[%s395 + $0x70] sm:%s388]
                  %426 = vst [vmem:[%s396 + $0x38] sm:%s388] %v425
                  %v427 = vld [vmem:[%s395 + $0x78] sm:%s388]
                  %428 = vst [vmem:[%s396 + $0x3c] sm:%s388] %v427
                $region104: #{pcb_test_forward.36} parent=91 // loop_footer
                  %s394 = sadd.s32 1, %s390
                $region105: #{pcb_test_forward.36} parent=91 // loop_footer_branch
                  %389 = sbr.rel target = $region101
                $region106: #{pcb_test_forward.36} parent=91 // loop_exit
                  _
              $region92: #{pcb_test_forward.36} parent=76 // pred_fallthru
                _
            $region77: #{pcb_test_forward.36} parent=72 // pred_fallthru
              _
            // Predicated region
            $region78: #{pcb_test_forward.36} parent=72 // pred_check
              _
            $region79: #{pcb_test_forward.36} parent=72 // pred_check_branch
              %334 = sbr.rel (0) target = $region81
            $region80: #{pcb_test_forward.36} parent=72 // pred_region
              %s336 = ssub.s32 16, 1
              loop: start=0, step=1, limit=1
              $region82: #{pcb_test_forward.36} parent=80 // loop_pre_header
                _
              $region83: #{pcb_test_forward.36} parent=80 // loop_header
                %s338 = sphi 0, %s342
                %p339 = scmp.ge.s32.totalorder %s338, 1
                %s343 = sphi %s328, %s328
                %s344 = sphi %s323, %s323
              $region84: #{pcb_test_forward.36} parent=80 // loop_header_branch
                %341 = sbr.rel (%p339) target = $region88
              $region85: #{pcb_test_forward.36} parent=80 // loop_body
                %v345 = vld [vmem:[%s343] sm:%s336]
                %346 = vst [vmem:[%s344] sm:%s336] %v345
                %v347 = vld [vmem:[%s343 + $0x8] sm:%s336]
                %348 = vst [vmem:[%s344 + $0x4] sm:%s336] %v347
                %v349 = vld [vmem:[%s343 + $0x10] sm:%s336]
                %350 = vst [vmem:[%s344 + $0x8] sm:%s336] %v349
                %v351 = vld [vmem:[%s343 + $0x18] sm:%s336]
                %352 = vst [vmem:[%s344 + $0xc] sm:%s336] %v351
                %v353 = vld [vmem:[%s343 + $0x20] sm:%s336]
                %354 = vst [vmem:[%s344 + $0x10] sm:%s336] %v353
                %v355 = vld [vmem:[%s343 + $0x28] sm:%s336]
                %356 = vst [vmem:[%s344 + $0x14] sm:%s336] %v355
                %v357 = vld [vmem:[%s343 + $0x30] sm:%s336]
                %358 = vst [vmem:[%s344 + $0x18] sm:%s336] %v357
                %v359 = vld [vmem:[%s343 + $0x38] sm:%s336]
                %360 = vst [vmem:[%s344 + $0x1c] sm:%s336] %v359
                %v361 = vld [vmem:[%s343 + $0x40] sm:%s336]
                %362 = vst [vmem:[%s344 + $0x20] sm:%s336] %v361
                %v363 = vld [vmem:[%s343 + $0x48] sm:%s336]
                %364 = vst [vmem:[%s344 + $0x24] sm:%s336] %v363
                %v365 = vld [vmem:[%s343 + $0x50] sm:%s336]
                %366 = vst [vmem:[%s344 + $0x28] sm:%s336] %v365
                %v367 = vld [vmem:[%s343 + $0x58] sm:%s336]
                %368 = vst [vmem:[%s344 + $0x2c] sm:%s336] %v367
                %v369 = vld [vmem:[%s343 + $0x60] sm:%s336]
                %370 = vst [vmem:[%s344 + $0x30] sm:%s336] %v369
                %v371 = vld [vmem:[%s343 + $0x68] sm:%s336]
                %372 = vst [vmem:[%s344 + $0x34] sm:%s336] %v371
                %v373 = vld [vmem:[%s343 + $0x70] sm:%s336]
                %374 = vst [vmem:[%s344 + $0x38] sm:%s336] %v373
                %v375 = vld [vmem:[%s343 + $0x78] sm:%s336]
                %376 = vst [vmem:[%s344 + $0x3c] sm:%s336] %v375
              $region86: #{pcb_test_forward.36} parent=80 // loop_footer
                %s342 = sadd.s32 1, %s338
              $region87: #{pcb_test_forward.36} parent=80 // loop_footer_branch
                %337 = sbr.rel target = $region83
              $region88: #{pcb_test_forward.36} parent=80 // loop_exit
                _
            $region81: #{pcb_test_forward.36} parent=72 // pred_fallthru
              _
          $region73: #{pcb_test_forward.36} parent=68 // pred_fallthru
            _
          %429 = vnop
        $region69: #{pcb_test_forward.36} parent=19 // pred_fallthru
          _
      $region20: #{pcb_test_forward.36} parent=5 // pred_fallthru
        _
      %p430 = scmp.le.s32.totalorder 1, %s10
      %p431 = scmp.lt.s32.totalorder %s10, 3
      %p432 = pnand %p430, %p431
      %p433 = pneg %p432
      // Predicated region
      $region107: #{pcb_test_forward.36} parent=5 // pred_check
        _
      $region108: #{pcb_test_forward.36} parent=5 // pred_check_branch
        %435 = sbr.rel (%p432) target = $region110
      $region109: #{pcb_test_forward.36} parent=5 // pred_region
        %s436 = ssub.s32 %s10, 1
        %s437 = sand.u32 %s72, 1
        %s438 = sand.u32 %s72, 1
        %s439 = smul.addr %s438, 64
        %s440 = scalar_lea.vmem [#allocation3], %s439
        // Predicated region
        $region111: #{pcb_test_forward.36} parent=109 // pred_check
          %p441 = pneg %p85
        $region112: #{pcb_test_forward.36} parent=109 // pred_check_branch
          %443 = sbr.rel (%p441) target = $region114
        $region113: #{pcb_test_forward.36} parent=109 // pred_region
          _
        $region114: #{pcb_test_forward.36} parent=109 // pred_fallthru
          _
        %s444 = sand.u32 %s126, 1
        %s445 = sand.u32 %s126, 1
        %s446 = smul.addr %s445, 64
        %s447 = scalar_lea.vmem [#allocation4], %s446
        // Predicated region
        $region115: #{pcb_test_forward.36} parent=109 // pred_check
          %p448 = pneg %p139
        $region116: #{pcb_test_forward.36} parent=109 // pred_check_branch
          %450 = sbr.rel (%p448) target = $region118
        $region117: #{pcb_test_forward.36} parent=109 // pred_region
          _
        $region118: #{pcb_test_forward.36} parent=109 // pred_fallthru
          _
        %s451 = smul.u32 16, %s20
        %p452 = scmp.lt.s32.totalorder %s451, 15
        %s453 = scalar_select %p452, %s451, 15
        %p454 = scmp.lt.s32.totalorder %s22, 0
        %s455 = scalar_select %p454, %s22, 0
        %s456 = sadd.s32 %s455, %s453
        %s457 = smul.addr %s456, 4
        %s458 = scalar_lea.vmem %s0, %s457
        %p459 = pneg %p57
        %p460 = pneg %p54
        %s461 = sand.u32 %s72, 1
        %s462 = sand.u32 %s72, 1
        %s463 = smul.addr %s462, 64
        %s464 = scalar_lea.vmem [#allocation3], %s463
        %p465 = pneg %p85
        %p466 = pneg %p82
        %p467 = scmp.lt.s32.totalorder %s21, 1
        %s468 = scalar_select %p467, %s21, 1
        %s469 = scalar_lea.vmem %s2, %s468
        %p470 = pneg %p111
        %p471 = pneg %p108
        %s472 = sand.u32 %s126, 1
        %s473 = sand.u32 %s126, 1
        %s474 = smul.addr %s473, 64
        %s475 = scalar_lea.vmem [#allocation4], %s474
        %p476 = pneg %p139
        %p477 = pneg %p136
        %p478 = pneg %p167
        %p479 = pneg %p164
        %s480 = sand.u32 %s154, 1
        %s481 = sand.u32 %s154, 1
        %s482 = smul.addr %s481, 64
        %s483 = scalar_lea.vmem [#allocation5], %s482
        %s484 = smul.u32 16, %s20
        %p485 = scmp.lt.s32.totalorder %s484, 15
        %s486 = scalar_select %p485, %s484, 15
        %p487 = scmp.lt.s32.totalorder %s22, 0
        %s488 = scalar_select %p487, %s22, 0
        %s489 = sadd.s32 %s488, %s486
        %s490 = smul.addr %s489, 4
        %s491 = scalar_lea.vmem %s0, %s490
        %s492 = smul.u32 16, %s20
        %s493 = smul.u32 16, %s22
        %p494 = scmp.lt.s32.totalorder %s21, 1
        %s495 = scalar_select %p494, %s21, 1
        %s496 = scalar_lea.vmem %s2, %s495
        %s497 = smul.u32 16, %s20
        %s498 = smul.u32 16, %s20
        %p500 = scmp.eq.s32.totalorder %s22, 0
        // Predicated region
        $region119: #{pcb_test_forward.36} parent=109 // pred_check
          %p501 = pneg %p500
        $region120: #{pcb_test_forward.36} parent=109 // pred_check_branch
          %503 = sbr.rel (%p501) target = $region122
        $region121: #{pcb_test_forward.36} parent=109 // pred_region
          %504 = vst [vmem:[#allocation2] sm:$0xff] 0.0
          %505 = vst [vmem:[#allocation2 + $0x8] sm:$0xff] 0.0
          %506 = vst [vmem:[#allocation2 + $0x10] sm:$0xff] 0.0
          %507 = vst [vmem:[#allocation2 + $0x18] sm:$0xff] 0.0
          %508 = vst [vmem:[#allocation2 + $0x20] sm:$0xff] 0.0
          %509 = vst [vmem:[#allocation2 + $0x28] sm:$0xff] 0.0
          %510 = vst [vmem:[#allocation2 + $0x30] sm:$0xff] 0.0
          %511 = vst [vmem:[#allocation2 + $0x38] sm:$0xff] 0.0
          %512 = vst [vmem:[#allocation2 + $0x40] sm:$0xff] 0.0
          %513 = vst [vmem:[#allocation2 + $0x48] sm:$0xff] 0.0
          %514 = vst [vmem:[#allocation2 + $0x50] sm:$0xff] 0.0
          %515 = vst [vmem:[#allocation2 + $0x58] sm:$0xff] 0.0
          %516 = vst [vmem:[#allocation2 + $0x60] sm:$0xff] 0.0
          %517 = vst [vmem:[#allocation2 + $0x68] sm:$0xff] 0.0
          %518 = vst [vmem:[#allocation2 + $0x70] sm:$0xff] 0.0
          %519 = vst [vmem:[#allocation2 + $0x78] sm:$0xff] 0.0
        $region122: #{pcb_test_forward.36} parent=109 // pred_fallthru
          _
        %v520 = vld [vmem:[#allocation2] sm:$0xff]
        %v521 = vld [vmem:[#allocation2 + $0x8] sm:$0xff]
        %v522 = vld [vmem:[#allocation2 + $0x10] sm:$0xff]
        %v523 = vld [vmem:[#allocation2 + $0x18] sm:$0xff]
        %v524 = vld [vmem:[#allocation2 + $0x20] sm:$0xff]
        %v525 = vld [vmem:[#allocation2 + $0x28] sm:$0xff]
        %v526 = vld [vmem:[#allocation2 + $0x30] sm:$0xff]
        %v527 = vld [vmem:[#allocation2 + $0x38] sm:$0xff]
        %v528 = vld [vmem:[#allocation2 + $0x40] sm:$0xff]
        %v529 = vld [vmem:[#allocation2 + $0x48] sm:$0xff]
        %v530 = vld [vmem:[#allocation2 + $0x50] sm:$0xff]
        %v531 = vld [vmem:[#allocation2 + $0x58] sm:$0xff]
        %v532 = vld [vmem:[#allocation2 + $0x60] sm:$0xff]
        %v533 = vld [vmem:[#allocation2 + $0x68] sm:$0xff]
        %v534 = vld [vmem:[#allocation2 + $0x70] sm:$0xff]
        %v535 = vld [vmem:[#allocation2 + $0x78] sm:$0xff]
        %v536 = vld [vmem:[%s491] sm:$0xf]
        %v537 = vld [vmem:[%s491 + $0x4] sm:$0xf]
        %v538 = vld [vmem:[%s491 + $0x8] sm:$0xf]
        %v539 = vld [vmem:[%s491 + $0xc] sm:$0xf]
        %v540 = vld [vmem:[%s491 + $0x10] sm:$0xf]
        %v541 = vld [vmem:[%s491 + $0x14] sm:$0xf]
        %v542 = vld [vmem:[%s491 + $0x18] sm:$0xf]
        %v543 = vld [vmem:[%s491 + $0x1c] sm:$0xf]
        %v544 = vld [vmem:[%s491 + $0x20] sm:$0xf]
        %v545 = vld [vmem:[%s491 + $0x24] sm:$0xf]
        %v546 = vld [vmem:[%s491 + $0x28] sm:$0xf]
        %v547 = vld [vmem:[%s491 + $0x2c] sm:$0xf]
        %v548 = vld [vmem:[%s491 + $0x30] sm:$0xf]
        %v549 = vld [vmem:[%s491 + $0x34] sm:$0xf]
        %v550 = vld [vmem:[%s491 + $0x38] sm:$0xf]
        %v551 = vld [vmem:[%s491 + $0x3c] sm:$0xf]
        %v552 = vld [vmem:[%s440] sm:$0xf]
        %v553 = vld [vmem:[%s440 + $0x4] sm:$0xf]
        %v554 = vld [vmem:[%s440 + $0x8] sm:$0xf]
        %v555 = vld [vmem:[%s440 + $0xc] sm:$0xf]
        %v556 = vld [vmem:[%s440 + $0x10] sm:$0xf]
        %v557 = vld [vmem:[%s440 + $0x14] sm:$0xf]
        %v558 = vld [vmem:[%s440 + $0x18] sm:$0xf]
        %v559 = vld [vmem:[%s440 + $0x1c] sm:$0xf]
        %v560 = vld [vmem:[%s440 + $0x20] sm:$0xf]
        %v561 = vld [vmem:[%s440 + $0x24] sm:$0xf]
        %v562 = vld [vmem:[%s440 + $0x28] sm:$0xf]
        %v563 = vld [vmem:[%s440 + $0x2c] sm:$0xf]
        %v564 = vld [vmem:[%s440 + $0x30] sm:$0xf]
        %v565 = vld [vmem:[%s440 + $0x34] sm:$0xf]
        %v566 = vld [vmem:[%s440 + $0x38] sm:$0xf]
        %v567 = vld [vmem:[%s440 + $0x3c] sm:$0xf]
        %v584 = vunpack.c.l.b16 %v536
        %v585 = vunpack.c.l.b16 %v537
        %v586 = vunpack.c.l.b16 %v538
        %v587 = vunpack.c.l.b16 %v539
        %v588 = vunpack.c.l.b16 %v540
        %v589 = vunpack.c.l.b16 %v541
        %v590 = vunpack.c.l.b16 %v542
        %v591 = vunpack.c.l.b16 %v543
        %v592 = vunpack.c.l.b16 %v544
        %v593 = vunpack.c.l.b16 %v545
        %v594 = vunpack.c.l.b16 %v546
        %v595 = vunpack.c.l.b16 %v547
        %v596 = vunpack.c.l.b16 %v548
        %v597 = vunpack.c.l.b16 %v549
        %v598 = vunpack.c.l.b16 %v550
        %v599 = vunpack.c.l.b16 %v551
        %v600 = vpack.c.b16 %v585, %v584
        %v601 = vpack.c.b16 %v587, %v586
        %v602 = vpack.c.b16 %v589, %v588
        %v603 = vpack.c.b16 %v591, %v590
        %v604 = vpack.c.b16 %v593, %v592
        %v605 = vpack.c.b16 %v595, %v594
        %v606 = vpack.c.b16 %v597, %v596
        %v607 = vpack.c.b16 %v599, %v598
        %v632 = vunpack.c.l.b16 %v552
        %v633 = vunpack.c.l.b16 %v553
        %v634 = vunpack.c.l.b16 %v554
        %v635 = vunpack.c.l.b16 %v555
        %v636 = vunpack.c.l.b16 %v556
        %v637 = vunpack.c.l.b16 %v557
        %v638 = vunpack.c.l.b16 %v558
        %v639 = vunpack.c.l.b16 %v559
        %v640 = vunpack.c.l.b16 %v560
        %v641 = vunpack.c.l.b16 %v561
        %v642 = vunpack.c.l.b16 %v562
        %v643 = vunpack.c.l.b16 %v563
        %v644 = vunpack.c.l.b16 %v564
        %v645 = vunpack.c.l.b16 %v565
        %v646 = vunpack.c.l.b16 %v566
        %v647 = vunpack.c.l.b16 %v567
        %v648 = vpack.c.b16 %v633, %v632
        %v649 = vpack.c.b16 %v635, %v634
        %v650 = vpack.c.b16 %v637, %v636
        %v651 = vpack.c.b16 %v639, %v638
        %v652 = vpack.c.b16 %v641, %v640
        %v653 = vpack.c.b16 %v643, %v642
        %v654 = vpack.c.b16 %v645, %v644
        %v655 = vpack.c.b16 %v647, %v646
        %664 = vmatprep.subr.bf16.mxu0 0
        %665 = vmatpush1.bf16.msra.mxu0 %v655
        %666 = vmatprep.subr.bf16.mxu0 0
        %667 = vmatpush1.bf16.msra.mxu0 %v654
        %668 = vmatprep.subr.bf16.mxu0 0
        %669 = vmatpush1.bf16.msra.mxu0 %v653
        %670 = vmatprep.subr.bf16.mxu0 0
        %671 = vmatpush1.bf16.msra.mxu0 %v652
        %672 = vmatprep.subr.bf16.mxu0 0
        %673 = vmatpush1.bf16.msra.mxu0 %v651
        %674 = vmatprep.subr.bf16.mxu0 0
        %675 = vmatpush1.bf16.msra.mxu0 %v650
        %676 = vmatprep.subr.bf16.mxu0 0
        %677 = vmatpush1.bf16.msra.mxu0 %v649
        %678 = vmatprep.subr.bf16.mxu0 0
        %679 = vmatpush1.bf16.msra.mxu0 %v648
        %680 = vmatprep.subr.bf16.mxu0 0
        %681 = vmatpush2.bf16.msra.mxu0 0
        %682 = vmatprep.subr.bf16.mxu0 0
        %683 = vmatpush2.bf16.msra.mxu0 0
        %684 = vmatprep.subr.bf16.mxu0 0
        %685 = vmatpush2.bf16.msra.mxu0 0
        %686 = vmatprep.subr.bf16.mxu0 0
        %687 = vmatpush2.bf16.msra.mxu0 0
        %688 = vmatprep.subr.bf16.mxu0 0
        %689 = vmatpush2.bf16.msra.mxu0 0
        %690 = vmatprep.subr.bf16.mxu0 0
        %691 = vmatpush2.bf16.msra.mxu0 0
        %692 = vmatprep.subr.bf16.mxu0 0
        %693 = vmatpush2.bf16.msra.mxu0 0
        %694 = vmatprep.subr.bf16.mxu0 0
        %695 = vmatpush2.bf16.msra.mxu0 0
        %696 = vmatprep.mubr.bf16.mxu0 0
        %697 = vmatmul.mubr.bf16.gmra.mxu0 %v600
        %v698 = vpop.f32.mrf.mxu0
        %v699 = vadd.f32 0.0, %v698
        %v700 = vpop.f32.mrf.mxu0
        %v701 = vpop.f32.mrf.mxu0
        %v702 = vadd.f32 0.0, %v701
        %v703 = vpop.f32.mrf.mxu0
        %704 = vmatprep.mubr.bf16.mxu0 0
        %705 = vmatmul.mubr.bf16.gmra.mxu0 %v601
        %v706 = vpop.f32.mrf.mxu0
        %v707 = vadd.f32 0.0, %v706
        %v708 = vpop.f32.mrf.mxu0
        %v709 = vpop.f32.mrf.mxu0
        %v710 = vadd.f32 0.0, %v709
        %v711 = vpop.f32.mrf.mxu0
        %712 = vmatprep.mubr.bf16.mxu0 0
        %713 = vmatmul.mubr.bf16.gmra.mxu0 %v602
        %v714 = vpop.f32.mrf.mxu0
        %v715 = vadd.f32 0.0, %v714
        %v716 = vpop.f32.mrf.mxu0
        %v717 = vpop.f32.mrf.mxu0
        %v718 = vadd.f32 0.0, %v717
        %v719 = vpop.f32.mrf.mxu0
        %720 = vmatprep.mubr.bf16.mxu0 0
        %721 = vmatmul.mubr.bf16.gmra.mxu0 %v603
        %v722 = vpop.f32.mrf.mxu0
        %v723 = vadd.f32 0.0, %v722
        %v724 = vpop.f32.mrf.mxu0
        %v725 = vpop.f32.mrf.mxu0
        %v726 = vadd.f32 0.0, %v725
        %v727 = vpop.f32.mrf.mxu0
        %728 = vmatprep.mubr.bf16.mxu0 0
        %729 = vmatmul.mubr.bf16.gmra.mxu0 %v604
        %v730 = vpop.f32.mrf.mxu0
        %v731 = vadd.f32 0.0, %v730
        %v732 = vpop.f32.mrf.mxu0
        %v733 = vpop.f32.mrf.mxu0
        %v734 = vadd.f32 0.0, %v733
        %v735 = vpop.f32.mrf.mxu0
        %736 = vmatprep.mubr.bf16.mxu0 0
        %737 = vmatmul.mubr.bf16.gmra.mxu0 %v605
        %v738 = vpop.f32.mrf.mxu0
        %v739 = vadd.f32 0.0, %v738
        %v740 = vpop.f32.mrf.mxu0
        %v741 = vpop.f32.mrf.mxu0
        %v742 = vadd.f32 0.0, %v741
        %v743 = vpop.f32.mrf.mxu0
        %744 = vmatprep.mubr.bf16.mxu0 0
        %745 = vmatmul.mubr.bf16.gmra.mxu0 %v606
        %v746 = vpop.f32.mrf.mxu0
        %v747 = vadd.f32 0.0, %v746
        %v748 = vpop.f32.mrf.mxu0
        %v749 = vpop.f32.mrf.mxu0
        %v750 = vadd.f32 0.0, %v749
        %v751 = vpop.f32.mrf.mxu0
        %752 = vmatprep.mubr.bf16.mxu0 0
        %753 = vmatmul.mubr.bf16.gmra.mxu0 %v607
        %v754 = vpop.f32.mrf.mxu0
        %v755 = vadd.f32 0.0, %v754
        %v756 = vpop.f32.mrf.mxu0
        %v757 = vpop.f32.mrf.mxu0
        %v758 = vadd.f32 0.0, %v757
        %v759 = vpop.f32.mrf.mxu0
        %760 = vdwg.mxu0
        %v761 = vadd.f32 %v520, %v699
        %v762 = vadd.f32 %v521, %v702
        %v763 = vadd.f32 %v522, %v707
        %v764 = vadd.f32 %v523, %v710
        %v765 = vadd.f32 %v524, %v715
        %v766 = vadd.f32 %v525, %v718
        %v767 = vadd.f32 %v526, %v723
        %v768 = vadd.f32 %v527, %v726
        %v769 = vadd.f32 %v528, %v731
        %v770 = vadd.f32 %v529, %v734
        %v771 = vadd.f32 %v530, %v739
        %v772 = vadd.f32 %v531, %v742
        %v773 = vadd.f32 %v532, %v747
        %v774 = vadd.f32 %v533, %v750
        %v775 = vadd.f32 %v534, %v755
        %v776 = vadd.f32 %v535, %v758
        %777 = vst [vmem:[#allocation2] sm:$0xff] %v761
        %778 = vst [vmem:[#allocation2 + $0x8] sm:$0xff] %v762
        %779 = vst [vmem:[#allocation2 + $0x10] sm:$0xff] %v763
        %780 = vst [vmem:[#allocation2 + $0x18] sm:$0xff] %v764
        %781 = vst [vmem:[#allocation2 + $0x20] sm:$0xff] %v765
        %782 = vst [vmem:[#allocation2 + $0x28] sm:$0xff] %v766
        %783 = vst [vmem:[#allocation2 + $0x30] sm:$0xff] %v767
        %784 = vst [vmem:[#allocation2 + $0x38] sm:$0xff] %v768
        %785 = vst [vmem:[#allocation2 + $0x40] sm:$0xff] %v769
        %786 = vst [vmem:[#allocation2 + $0x48] sm:$0xff] %v770
        %787 = vst [vmem:[#allocation2 + $0x50] sm:$0xff] %v771
        %788 = vst [vmem:[#allocation2 + $0x58] sm:$0xff] %v772
        %789 = vst [vmem:[#allocation2 + $0x60] sm:$0xff] %v773
        %790 = vst [vmem:[#allocation2 + $0x68] sm:$0xff] %v774
        %791 = vst [vmem:[#allocation2 + $0x70] sm:$0xff] %v775
        %792 = vst [vmem:[#allocation2 + $0x78] sm:$0xff] %v776
        // Predicated region
        $region123: #{pcb_test_forward.36} parent=109 // pred_check
          %p793 = pneg %p500
        $region124: #{pcb_test_forward.36} parent=109 // pred_check_branch
          %795 = sbr.rel (%p793) target = $region126
        $region125: #{pcb_test_forward.36} parent=109 // pred_region
          %v796 = vld [vmem:[#allocation2] sm:$0xff]
          %v797 = vld [vmem:[#allocation2 + $0x8] sm:$0xff]
          %v798 = vld [vmem:[#allocation2 + $0x10] sm:$0xff]
          %v799 = vld [vmem:[#allocation2 + $0x18] sm:$0xff]
          %v800 = vld [vmem:[#allocation2 + $0x20] sm:$0xff]
          %v801 = vld [vmem:[#allocation2 + $0x28] sm:$0xff]
          %v802 = vld [vmem:[#allocation2 + $0x30] sm:$0xff]
          %v803 = vld [vmem:[#allocation2 + $0x38] sm:$0xff]
          %v804 = vld [vmem:[#allocation2 + $0x40] sm:$0xff]
          %v805 = vld [vmem:[#allocation2 + $0x48] sm:$0xff]
          %v806 = vld [vmem:[#allocation2 + $0x50] sm:$0xff]
          %v807 = vld [vmem:[#allocation2 + $0x58] sm:$0xff]
          %v808 = vld [vmem:[#allocation2 + $0x60] sm:$0xff]
          %v809 = vld [vmem:[#allocation2 + $0x68] sm:$0xff]
          %v810 = vld [vmem:[#allocation2 + $0x70] sm:$0xff]
          %v811 = vld [vmem:[#allocation2 + $0x78] sm:$0xff]
          %v812 = vld [vmem:[%s496] sm:$0x1]
          %v814 = vlaneseq
          %v815 = vshrl.u32 %v814, 7
          %v816 = vsub.s32 0, %v815
          %v817 = vrot.slane %v812, %v816
          %v819 = vadd.f32 %v796, %v817
          %v820 = vadd.f32 %v797, %v817
          %v821 = vadd.f32 %v798, %v817
          %v822 = vadd.f32 %v799, %v817
          %v823 = vadd.f32 %v800, %v817
          %v824 = vadd.f32 %v801, %v817
          %v825 = vadd.f32 %v802, %v817
          %v826 = vadd.f32 %v803, %v817
          %v827 = vadd.f32 %v804, %v817
          %v828 = vadd.f32 %v805, %v817
          %v829 = vadd.f32 %v806, %v817
          %v830 = vadd.f32 %v807, %v817
          %v831 = vadd.f32 %v808, %v817
          %v832 = vadd.f32 %v809, %v817
          %v833 = vadd.f32 %v810, %v817
          %v834 = vadd.f32 %v811, %v817
          %v835 = vld [vmem:[%s447] sm:$0xf]
          %v836 = vld [vmem:[%s447 + $0x4] sm:$0xf]
          %v837 = vld [vmem:[%s447 + $0x8] sm:$0xf]
          %v838 = vld [vmem:[%s447 + $0xc] sm:$0xf]
          %v839 = vld [vmem:[%s447 + $0x10] sm:$0xf]
          %v840 = vld [vmem:[%s447 + $0x14] sm:$0xf]
          %v841 = vld [vmem:[%s447 + $0x18] sm:$0xf]
          %v842 = vld [vmem:[%s447 + $0x1c] sm:$0xf]
          %v843 = vld [vmem:[%s447 + $0x20] sm:$0xf]
          %v844 = vld [vmem:[%s447 + $0x24] sm:$0xf]
          %v845 = vld [vmem:[%s447 + $0x28] sm:$0xf]
          %v846 = vld [vmem:[%s447 + $0x2c] sm:$0xf]
          %v847 = vld [vmem:[%s447 + $0x30] sm:$0xf]
          %v848 = vld [vmem:[%s447 + $0x34] sm:$0xf]
          %v849 = vld [vmem:[%s447 + $0x38] sm:$0xf]
          %v850 = vld [vmem:[%s447 + $0x3c] sm:$0xf]
          %v851 = vunpack.c.l.bf16 %v835
          %v852 = vunpack.c.l.bf16 %v836
          %v853 = vunpack.c.l.bf16 %v837
          %v854 = vunpack.c.l.bf16 %v838
          %v855 = vunpack.c.l.bf16 %v839
          %v856 = vunpack.c.l.bf16 %v840
          %v857 = vunpack.c.l.bf16 %v841
          %v858 = vunpack.c.l.bf16 %v842
          %v859 = vunpack.c.l.bf16 %v843
          %v860 = vunpack.c.l.bf16 %v844
          %v861 = vunpack.c.l.bf16 %v845
          %v862 = vunpack.c.l.bf16 %v846
          %v863 = vunpack.c.l.bf16 %v847
          %v864 = vunpack.c.l.bf16 %v848
          %v865 = vunpack.c.l.bf16 %v849
          %v866 = vunpack.c.l.bf16 %v850
          %v867 = vadd.f32 %v819, %v851
          %v868 = vadd.f32 %v820, %v852
          %v869 = vadd.f32 %v821, %v853
          %v870 = vadd.f32 %v822, %v854
          %v871 = vadd.f32 %v823, %v855
          %v872 = vadd.f32 %v824, %v856
          %v873 = vadd.f32 %v825, %v857
          %v874 = vadd.f32 %v826, %v858
          %v875 = vadd.f32 %v827, %v859
          %v876 = vadd.f32 %v828, %v860
          %v877 = vadd.f32 %v829, %v861
          %v878 = vadd.f32 %v830, %v862
          %v879 = vadd.f32 %v831, %v863
          %v880 = vadd.f32 %v832, %v864
          %v881 = vadd.f32 %v833, %v865
          %v882 = vadd.f32 %v834, %v866
          %v883 = vmax.f32 %v867, 0.0
          %v884 = vmax.f32 %v868, 0.0
          %v885 = vmax.f32 %v869, 0.0
          %v886 = vmax.f32 %v870, 0.0
          %v887 = vmax.f32 %v871, 0.0
          %v888 = vmax.f32 %v872, 0.0
          %v889 = vmax.f32 %v873, 0.0
          %v890 = vmax.f32 %v874, 0.0
          %v891 = vmax.f32 %v875, 0.0
          %v892 = vmax.f32 %v876, 0.0
          %v893 = vmax.f32 %v877, 0.0
          %v894 = vmax.f32 %v878, 0.0
          %v895 = vmax.f32 %v879, 0.0
          %v896 = vmax.f32 %v880, 0.0
          %v897 = vmax.f32 %v881, 0.0
          %v898 = vmax.f32 %v882, 0.0
          %v899 = vpack.c.bf16 %v884, %v883
          %v900 = vpack.c.bf16 %v886, %v885
          %v901 = vpack.c.bf16 %v888, %v887
          %v902 = vpack.c.bf16 %v890, %v889
          %v903 = vpack.c.bf16 %v892, %v891
          %v904 = vpack.c.bf16 %v894, %v893
          %v905 = vpack.c.bf16 %v896, %v895
          %v906 = vpack.c.bf16 %v898, %v897
          %v915 = vunpack.c.l.b16 %v899
          %v916 = vunpack.c.h.b16 %v899
          %v917 = vunpack.c.l.b16 %v900
          %v918 = vunpack.c.h.b16 %v900
          %v919 = vunpack.c.l.b16 %v901
          %v920 = vunpack.c.h.b16 %v901
          %v921 = vunpack.c.l.b16 %v902
          %v922 = vunpack.c.h.b16 %v902
          %v923 = vunpack.c.l.b16 %v903
          %v924 = vunpack.c.h.b16 %v903
          %v925 = vunpack.c.l.b16 %v904
          %v926 = vunpack.c.h.b16 %v904
          %v927 = vunpack.c.l.b16 %v905
          %v928 = vunpack.c.h.b16 %v905
          %v929 = vunpack.c.l.b16 %v906
          %v930 = vunpack.c.h.b16 %v906
          %v931 = vpack.c.b16 %v915, %v915
          %v932 = vpack.c.b16 %v916, %v916
          %v933 = vpack.c.b16 %v917, %v917
          %v934 = vpack.c.b16 %v918, %v918
          %v935 = vpack.c.b16 %v919, %v919
          %v936 = vpack.c.b16 %v920, %v920
          %v937 = vpack.c.b16 %v921, %v921
          %v938 = vpack.c.b16 %v922, %v922
          %v939 = vpack.c.b16 %v923, %v923
          %v940 = vpack.c.b16 %v924, %v924
          %v941 = vpack.c.b16 %v925, %v925
          %v942 = vpack.c.b16 %v926, %v926
          %v943 = vpack.c.b16 %v927, %v927
          %v944 = vpack.c.b16 %v928, %v928
          %v945 = vpack.c.b16 %v929, %v929
          %v946 = vpack.c.b16 %v930, %v930
          %963 = vst [vmem:[%s483] sm:$0xf] %v931
          %964 = vst [vmem:[%s483 + $0x4] sm:$0xf] %v932
          %965 = vst [vmem:[%s483 + $0x8] sm:$0xf] %v933
          %966 = vst [vmem:[%s483 + $0xc] sm:$0xf] %v934
          %967 = vst [vmem:[%s483 + $0x10] sm:$0xf] %v935
          %968 = vst [vmem:[%s483 + $0x14] sm:$0xf] %v936
          %969 = vst [vmem:[%s483 + $0x18] sm:$0xf] %v937
          %970 = vst [vmem:[%s483 + $0x1c] sm:$0xf] %v938
          %971 = vst [vmem:[%s483 + $0x20] sm:$0xf] %v939
          %972 = vst [vmem:[%s483 + $0x24] sm:$0xf] %v940
          %973 = vst [vmem:[%s483 + $0x28] sm:$0xf] %v941
          %974 = vst [vmem:[%s483 + $0x2c] sm:$0xf] %v942
          %975 = vst [vmem:[%s483 + $0x30] sm:$0xf] %v943
          %976 = vst [vmem:[%s483 + $0x34] sm:$0xf] %v944
          %977 = vst [vmem:[%s483 + $0x38] sm:$0xf] %v945
          %978 = vst [vmem:[%s483 + $0x3c] sm:$0xf] %v946
        $region126: #{pcb_test_forward.36} parent=109 // pred_fallthru
          _
        %s979 = sand.u32 %s154, 1
        %s980 = sand.u32 %s154, 1
        %s981 = smul.addr %s980, 64
        %s982 = scalar_lea.vmem [#allocation5], %s981
        // Predicated region
        $region127: #{pcb_test_forward.36} parent=109 // pred_check
          %p983 = pneg %p164
        $region128: #{pcb_test_forward.36} parent=109 // pred_check_branch
          %985 = sbr.rel (%p983) target = $region130
        $region129: #{pcb_test_forward.36} parent=109 // pred_region
          %s986 = smul.u32 16, %s20
          %s987 = smul.addr %s986, 2
          %s988 = sadd.s32 %s21, %s987
          %s989 = smul.addr %s988, 4
          %s990 = scalar_lea.vmem %s4, %s989
          // Predicated region
          $region131: #{pcb_test_forward.36} parent=129 // pred_check
            _
          $region132: #{pcb_test_forward.36} parent=129 // pred_check_branch
            %992 = sbr.rel (0) target = $region134
          $region133: #{pcb_test_forward.36} parent=129 // pred_region
            // Predicated region
            $region135: #{pcb_test_forward.36} parent=133 // pred_check
              _
            $region136: #{pcb_test_forward.36} parent=133 // pred_check_branch
              %994 = sbr.rel target = $region138
            $region137: #{pcb_test_forward.36} parent=133 // pred_region
              // Predicated region
              $region150: #{pcb_test_forward.36} parent=137 // pred_check
                _
              $region151: #{pcb_test_forward.36} parent=137 // pred_check_branch
                %1040 = sbr.rel (0) target = $region153
              $region152: #{pcb_test_forward.36} parent=137 // pred_region
                loop: start=0, step=1, limit=1
                $region154: #{pcb_test_forward.36} parent=152 // loop_pre_header
                  _
                $region155: #{pcb_test_forward.36} parent=152 // loop_header
                  %s1042 = sphi 0, %s1046
                  %p1043 = scmp.ge.s32.totalorder %s1042, 1
                  %s1047 = sphi %s982, %s982
                  %s1048 = sphi %s990, %s990
                $region156: #{pcb_test_forward.36} parent=152 // loop_header_branch
                  %1045 = sbr.rel (%p1043) target = $region160
                $region157: #{pcb_test_forward.36} parent=152 // loop_body
                  _
                $region158: #{pcb_test_forward.36} parent=152 // loop_footer
                  %s1046 = sadd.s32 1, %s1042
                $region159: #{pcb_test_forward.36} parent=152 // loop_footer_branch
                  %1041 = sbr.rel target = $region155
                $region160: #{pcb_test_forward.36} parent=152 // loop_exit
                  _
                %s1050 = ssub.s32 16, 1
                loop: start=0, step=1, limit=1
                $region161: #{pcb_test_forward.36} parent=152 // loop_pre_header
                  _
                $region162: #{pcb_test_forward.36} parent=152 // loop_header
                  %s1052 = sphi 0, %s1056
                  %p1053 = scmp.ge.s32.totalorder %s1052, 1
                  %s1057 = sphi %s982, %s982
                  %s1058 = sphi %s990, %s990
                $region163: #{pcb_test_forward.36} parent=152 // loop_header_branch
                  %1055 = sbr.rel (%p1053) target = $region167
                $region164: #{pcb_test_forward.36} parent=152 // loop_body
                  %v1059 = vld [vmem:[%s1057] sm:%s1050]
                  %1060 = vst [vmem:[%s1058] sm:%s1050] %v1059
                  %v1061 = vld [vmem:[%s1057 + $0x4] sm:%s1050]
                  %1062 = vst [vmem:[%s1058 + $0x8] sm:%s1050] %v1061
                  %v1063 = vld [vmem:[%s1057 + $0x8] sm:%s1050]
                  %1064 = vst [vmem:[%s1058 + $0x10] sm:%s1050] %v1063
                  %v1065 = vld [vmem:[%s1057 + $0xc] sm:%s1050]
                  %1066 = vst [vmem:[%s1058 + $0x18] sm:%s1050] %v1065
                  %v1067 = vld [vmem:[%s1057 + $0x10] sm:%s1050]
                  %1068 = vst [vmem:[%s1058 + $0x20] sm:%s1050] %v1067
                  %v1069 = vld [vmem:[%s1057 + $0x14] sm:%s1050]
                  %1070 = vst [vmem:[%s1058 + $0x28] sm:%s1050] %v1069
                  %v1071 = vld [vmem:[%s1057 + $0x18] sm:%s1050]
                  %1072 = vst [vmem:[%s1058 + $0x30] sm:%s1050] %v1071
                  %v1073 = vld [vmem:[%s1057 + $0x1c] sm:%s1050]
                  %1074 = vst [vmem:[%s1058 + $0x38] sm:%s1050] %v1073
                  %v1075 = vld [vmem:[%s1057 + $0x20] sm:%s1050]
                  %1076 = vst [vmem:[%s1058 + $0x40] sm:%s1050] %v1075
                  %v1077 = vld [vmem:[%s1057 + $0x24] sm:%s1050]
                  %1078 = vst [vmem:[%s1058 + $0x48] sm:%s1050] %v1077
                  %v1079 = vld [vmem:[%s1057 + $0x28] sm:%s1050]
                  %1080 = vst [vmem:[%s1058 + $0x50] sm:%s1050] %v1079
                  %v1081 = vld [vmem:[%s1057 + $0x2c] sm:%s1050]
                  %1082 = vst [vmem:[%s1058 + $0x58] sm:%s1050] %v1081
                  %v1083 = vld [vmem:[%s1057 + $0x30] sm:%s1050]
                  %1084 = vst [vmem:[%s1058 + $0x60] sm:%s1050] %v1083
                  %v1085 = vld [vmem:[%s1057 + $0x34] sm:%s1050]
                  %1086 = vst [vmem:[%s1058 + $0x68] sm:%s1050] %v1085
                  %v1087 = vld [vmem:[%s1057 + $0x38] sm:%s1050]
                  %1088 = vst [vmem:[%s1058 + $0x70] sm:%s1050] %v1087
                  %v1089 = vld [vmem:[%s1057 + $0x3c] sm:%s1050]
                  %1090 = vst [vmem:[%s1058 + $0x78] sm:%s1050] %v1089
                $region165: #{pcb_test_forward.36} parent=152 // loop_footer
                  %s1056 = sadd.s32 1, %s1052
                $region166: #{pcb_test_forward.36} parent=152 // loop_footer_branch
                  %1051 = sbr.rel target = $region162
                $region167: #{pcb_test_forward.36} parent=152 // loop_exit
                  _
              $region153: #{pcb_test_forward.36} parent=137 // pred_fallthru
                _
            $region138: #{pcb_test_forward.36} parent=133 // pred_fallthru
              _
            // Predicated region
            $region139: #{pcb_test_forward.36} parent=133 // pred_check
              _
            $region140: #{pcb_test_forward.36} parent=133 // pred_check_branch
              %996 = sbr.rel (0) target = $region142
            $region141: #{pcb_test_forward.36} parent=133 // pred_region
              %s998 = ssub.s32 16, 1
              loop: start=0, step=1, limit=1
              $region143: #{pcb_test_forward.36} parent=141 // loop_pre_header
                _
              $region144: #{pcb_test_forward.36} parent=141 // loop_header
                %s1000 = sphi 0, %s1004
                %p1001 = scmp.ge.s32.totalorder %s1000, 1
                %s1005 = sphi %s982, %s982
                %s1006 = sphi %s990, %s990
              $region145: #{pcb_test_forward.36} parent=141 // loop_header_branch
                %1003 = sbr.rel (%p1001) target = $region149
              $region146: #{pcb_test_forward.36} parent=141 // loop_body
                %v1007 = vld [vmem:[%s1005] sm:%s998]
                %1008 = vst [vmem:[%s1006] sm:%s998] %v1007
                %v1009 = vld [vmem:[%s1005 + $0x4] sm:%s998]
                %1010 = vst [vmem:[%s1006 + $0x8] sm:%s998] %v1009
                %v1011 = vld [vmem:[%s1005 + $0x8] sm:%s998]
                %1012 = vst [vmem:[%s1006 + $0x10] sm:%s998] %v1011
                %v1013 = vld [vmem:[%s1005 + $0xc] sm:%s998]
                %1014 = vst [vmem:[%s1006 + $0x18] sm:%s998] %v1013
                %v1015 = vld [vmem:[%s1005 + $0x10] sm:%s998]
                %1016 = vst [vmem:[%s1006 + $0x20] sm:%s998] %v1015
                %v1017 = vld [vmem:[%s1005 + $0x14] sm:%s998]
                %1018 = vst [vmem:[%s1006 + $0x28] sm:%s998] %v1017
                %v1019 = vld [vmem:[%s1005 + $0x18] sm:%s998]
                %1020 = vst [vmem:[%s1006 + $0x30] sm:%s998] %v1019
                %v1021 = vld [vmem:[%s1005 + $0x1c] sm:%s998]
                %1022 = vst [vmem:[%s1006 + $0x38] sm:%s998] %v1021
                %v1023 = vld [vmem:[%s1005 + $0x20] sm:%s998]
                %1024 = vst [vmem:[%s1006 + $0x40] sm:%s998] %v1023
                %v1025 = vld [vmem:[%s1005 + $0x24] sm:%s998]
                %1026 = vst [vmem:[%s1006 + $0x48] sm:%s998] %v1025
                %v1027 = vld [vmem:[%s1005 + $0x28] sm:%s998]
                %1028 = vst [vmem:[%s1006 + $0x50] sm:%s998] %v1027
                %v1029 = vld [vmem:[%s1005 + $0x2c] sm:%s998]
                %1030 = vst [vmem:[%s1006 + $0x58] sm:%s998] %v1029
                %v1031 = vld [vmem:[%s1005 + $0x30] sm:%s998]
                %1032 = vst [vmem:[%s1006 + $0x60] sm:%s998] %v1031
                %v1033 = vld [vmem:[%s1005 + $0x34] sm:%s998]
                %1034 = vst [vmem:[%s1006 + $0x68] sm:%s998] %v1033
                %v1035 = vld [vmem:[%s1005 + $0x38] sm:%s998]
                %1036 = vst [vmem:[%s1006 + $0x70] sm:%s998] %v1035
                %v1037 = vld [vmem:[%s1005 + $0x3c] sm:%s998]
                %1038 = vst [vmem:[%s1006 + $0x78] sm:%s998] %v1037
              $region147: #{pcb_test_forward.36} parent=141 // loop_footer
                %s1004 = sadd.s32 1, %s1000
              $region148: #{pcb_test_forward.36} parent=141 // loop_footer_branch
                %999 = sbr.rel target = $region144
              $region149: #{pcb_test_forward.36} parent=141 // loop_exit
                _
            $region142: #{pcb_test_forward.36} parent=133 // pred_fallthru
              _
          $region134: #{pcb_test_forward.36} parent=129 // pred_fallthru
            _
          %1091 = vnop
        $region130: #{pcb_test_forward.36} parent=109 // pred_fallthru
          _
      $region110: #{pcb_test_forward.36} parent=5 // pred_fallthru
        _
      %p1092 = scmp.le.s32.totalorder 2, %s10
      // Predicated region
      $region168: #{pcb_test_forward.36} parent=5 // pred_check
        %p1093 = pneg %p1092
      $region169: #{pcb_test_forward.36} parent=5 // pred_check_branch
        %1095 = sbr.rel (%p1093) target = $region171
      $region170: #{pcb_test_forward.36} parent=5 // pred_region
        %s1096 = ssub.s32 %s10, 2
        // Predicated region
        $region172: #{pcb_test_forward.36} parent=170 // pred_check
          %p1097 = pneg %p170
        $region173: #{pcb_test_forward.36} parent=170 // pred_check_branch
          %1099 = sbr.rel (%p1097) target = $region175
        $region174: #{pcb_test_forward.36} parent=170 // pred_region
          %s1100 = sand.u32 %s155, 1
          %s1101 = sand.u32 %s155, 1
          %s1102 = smul.addr %s1101, 64
          %s1103 = scalar_lea.vmem [#allocation5], %s1102
        $region175: #{pcb_test_forward.36} parent=170 // pred_fallthru
          _
      $region171: #{pcb_test_forward.36} parent=5 // pred_fallthru
        _
    $region6: #{pcb_test_forward.36} parent=1 // loop_footer
      %s14 = sadd.s32 1, %s10
    $region7: #{pcb_test_forward.36} parent=1 // loop_footer_branch
      %9 = sbr.rel target = $region3
    $region8: #{pcb_test_forward.36} parent=1 // loop_exit
      _

</llo_original>
